<compile_context>
chip_gen: v7x
topology: tpu7x:2x2x1
jax: 0.10.0
libtpu: 0.0.40
codegen_flags: <defaults>
</compile_context>

<pallas_src>
import functools

import jax
import jax.numpy as jnp
from jax.experimental import pallas as pl
from jax.experimental.pallas import tpu as pltpu

NUM_CLASSES = 6   # ['cardboard','glass','metal','paper','plastic','non-recyclable']
C_IN = 3
C_STEM = 16       # TODO(synk): b4 stem width is 48; scaled down for the small demo
C_EXP = 64        # MBConv expansion (real lanes; padded to 128)
C_SE = 8          # squeeze-excite reduced channels
C_HEAD = 1792     # == EfficientNet-b4 _fc.in_features (replaced fc: 1792 -> 6)

C_P = 128         # lane-padded width for stem / project activations
C_EXPP = 128      # lane-padded expanded width
C_SEP = 128       # lane-padded SE hidden width
K_STEM = 32       # 3*3*3 = 27 stem patch taps, padded to a dense lane count
NC_P = 128        # lane-padded class logits (sliced back to 6 outside)

PADL = 8          # left zero-column pad in the dw scratch (keeps stores tile-aligned)


def _round_up(x, m):
    return ((x + m - 1) // m) * m


def _pick_vmem_limit():
    # v5e/v6e: 128 MiB physical VMEM -> allow 64 MiB scoped; v7x: 64 MiB -> 32 MiB.
    try:
        cap = int(pltpu.get_tpu_info().vmem_capacity_bytes)
        return min(cap // 2, 64 * 1024 * 1024)
    except Exception:
        return 32 * 1024 * 1024


VMEM_LIMIT = _pick_vmem_limit()


# ----------------------- generic matmul + BN + act ------------------------

def _matmul_bn_act_kernel(x_ref, w_ref, s_ref, b_ref, o_ref, *, act):
    y = jnp.dot(x_ref[...].astype(jnp.bfloat16), w_ref[...],
                preferred_element_type=jnp.float32)
    y = y * s_ref[...] + b_ref[...]               # folded BatchNorm (f32 epilogue)
    if act == "swish":
        y = y * jax.nn.sigmoid(y)
    elif act == "relu":
        y = jnp.maximum(y, 0.0)
    o_ref[...] = y.astype(o_ref.dtype)


def matmul_bn_act(x, w, scale, bias, act="none", out_dtype=jnp.bfloat16):
    """(M,K)@(K,N) * scale + bias (+act).  w is bf16, N must be a multiple of 128."""
    M, K = x.shape
    N = w.shape[1]
    assert N % 128 == 0, N
    # TODO(synk): on v5e (4x128^2 MXU) prefer tn=128 with a taller tm once real
    # b4 widths make N > 128 on this path.
    tn = 256 if N % 256 == 0 else 128
    tm = 512 if M >= 512 else _round_up(M, 8)     # big row tiles, never tm=M bomb
    m_pad = _round_up(M, tm)
    if m_pad != M:
        # Padded rows evaluate to act(bias); they are sliced off below and are
        # never reduced over, so this is safe.
        x = jnp.pad(x, ((0, m_pad - M), (0, 0)))
    cost = pl.CostEstimate(
        flops=2 * M * K * N,
        transcendentals=M * N if act == "swish" else 0,
        bytes_accessed=int(M * K * x.dtype.itemsize + K * N * 2
                           + M * N * jnp.dtype(out_dtype).itemsize))
    out = pl.pallas_call(
        functools.partial(_matmul_bn_act_kernel, act=act),
        out_shape=jax.ShapeDtypeStruct((m_pad, N), out_dtype),
        grid=(m_pad // tm, N // tn),
        in_specs=[
            pl.BlockSpec((tm, K), lambda i, j: (i, 0)),
            pl.BlockSpec((K, tn), lambda i, j: (0, j)),
            pl.BlockSpec((1, tn), lambda i, j: (0, j)),
            pl.BlockSpec((1, tn), lambda i, j: (0, j)),
        ],
        out_specs=pl.BlockSpec((tm, tn), lambda i, j: (i, j)),
        compiler_params=pltpu.CompilerParams(
            dimension_semantics=("parallel", "parallel"),
            vmem_limit_bytes=VMEM_LIMIT),
        cost_estimate=cost,
    )(x, w, scale, bias)
    return out[:M] if m_pad != M else out


# --- fused MBConv: expand 1x1 + dw3x3 + BN + swish + SE + project + residual ---

def _mbconv_kernel(stem_ref, exp_w_ref, exp_s_ref, exp_b_ref,
                   dww_ref, dws_ref, dwb_ref,
                   w1_ref, b1_ref, w2_ref, b2_ref,
                   pw_ref, ps_ref, pb_ref,
                   o_ref, epad_ref, y_ref, *, H, W):
    C = epad_ref.shape[-1]
    band_h = min(8, H)
    n_bands = H // band_h
    rows = band_h * W                 # rows of the flattened (H*W, C) tensors per band

    # Zero the dw scratch once: its zero border rows/cols ARE the conv padding.
    epad_ref[...] = jnp.zeros_like(epad_ref)

    # ---- expand 1x1 + BN + swish (band-wise, MXU), kept entirely in VMEM ----
    for band in range(n_bands):
        r0 = band * band_h
        xb = stem_ref[0, r0 * W:r0 * W + rows, :]            # bf16 (rows, C_P)
        e = jnp.dot(xb, exp_w_ref[...], preferred_element_type=jnp.float32)
        e = e * exp_s_ref[...] + exp_b_ref[...]              # folded BN
        e = e * jax.nn.sigmoid(e)                            # swish
        # tile-aligned store (sublane offset PADL=8, width W) into the padded scratch
        epad_ref[1 + r0:1 + r0 + band_h, PADL:PADL + W, :] = e.reshape(band_h, W, C)

    # ---- depthwise 3x3 + BN + swish (band-wise 9-tap accumulation) ----
    dww = dww_ref[...]                                       # (9, C) f32
    pooled = jnp.zeros((1, C), jnp.float32)
    for band in range(n_bands):
        r0 = band * band_h
        eb = epad_ref[r0:r0 + band_h + 2, :, :]              # (band_h+2, PADL+W+8, C)
        acc = jnp.zeros((band_h, W, C), jnp.float32)
        for a in range(3):
            for b in range(3):
                acc = acc + eb[a:a + band_h,
                               PADL - 1 + b:PADL - 1 + b + W, :] * dww[a * 3 + b]
        y = acc.reshape(rows, C)
        y = y * dws_ref[...] + dwb_ref[...]                  # folded BN
        y = y * jax.nn.sigmoid(y)                            # swish
        pooled = pooled + jnp.sum(y, axis=0, keepdims=True)  # pooled partial sums
        y_ref[r0 * W:r0 * W + rows, :] = y

    # ---- squeeze-excite gates ----
    # TODO(synk): pooled is a single row; could run these FCs on VPU/XLU instead
    # of the MXU to shave per-image latency at small batch.
    pooled = pooled * (1.0 / (H * W))
    h = jnp.dot(pooled.astype(jnp.bfloat16), w1_ref[...],
                preferred_element_type=jnp.float32) + b1_ref[...]
    h = h * jax.nn.sigmoid(h)                                # swish
    g = jax.nn.sigmoid(jnp.dot(h.astype(jnp.bfloat16), w2_ref[...],
                               preferred_element_type=jnp.float32) + b2_ref[...])
    # Pad-lane invariant: y == 0 on lanes >= C_EXP, so g's sigmoid(0)=0.5 there is
    # harmless; mask it anyway so a future non-zero-padded BN bias cannot leak.
    lane = jax.lax.broadcasted_iota(jnp.int32, (1, C), 1)
    g = jnp.where(lane < C_EXP, g, 0.0)

    # ---- project 1x1 + folded BN + residual (band-wise, MXU) ----
    for band in range(n_bands):
        r0w = band * rows
        y = y_ref[r0w:r0w + rows, :]
        s = (y * g).astype(jnp.bfloat16)
        p = jnp.dot(s, pw_ref[...], preferred_element_type=jnp.float32)
        p = p * ps_ref[...] + pb_ref[...]
        res = stem_ref[0, r0w:r0w + rows, :].astype(jnp.float32)
        o_ref[0, r0w:r0w + rows, :] = (p + res).astype(o_ref.dtype)


def mbconv_block(stem, params, *, H, W):
    """Fused MBConv: expand 1x1+BN+swish -> dw3x3+BN+swish -> SE -> project+BN -> +res."""
    n, hw, cp = stem.shape
    assert hw == H * W
    band_h = min(8, H)
    assert H % band_h == 0, (H, band_h)
    cexp = params["exp_w"].shape[1]

    def full_spec(arr):
        nd = arr.ndim
        return pl.BlockSpec(arr.shape, lambda b, _nd=nd: (0,) * _nd)

    # TODO(synk): at real b4 resolution, tile the grid over spatial row bands
    # (halo rows via the index_map) instead of one whole image per grid step so
    # the scratch fits v7x's 64 MiB VMEM and both TensorCores get work at batch 1.
    return pl.pallas_call(
        functools.partial(_mbconv_kernel, H=H, W=W),
        out_shape=jax.ShapeDtypeStruct((n, hw, cp), jnp.bfloat16),
        grid=(n,),
        in_specs=[
            pl.BlockSpec((1, hw, cp), lambda b: (b, 0, 0)),
            full_spec(params["exp_w"]), full_spec(params["exp_s"]), full_spec(params["exp_b"]),
            full_spec(params["dw_w"]), full_spec(params["dw_s"]), full_spec(params["dw_b"]),
            full_spec(params["se_w1"]), full_spec(params["se_b1"]),
            full_spec(params["se_w2"]), full_spec(params["se_b2"]),
            full_spec(params["proj_w"]), full_spec(params["proj_s"]), full_spec(params["proj_b"]),
        ],
        out_specs=pl.BlockSpec((1, hw, cp), lambda b: (b, 0, 0)),
        scratch_shapes=[
            pltpu.VMEM((H + 2, PADL + W + 8, cexp), jnp.float32),   # padded expand act
            pltpu.VMEM((hw, cexp), jnp.float32),                    # dw+BN+swish result
        ],
        compiler_params=pltpu.CompilerParams(
            dimension_semantics=("parallel",),
            vmem_limit_bytes=VMEM_LIMIT),
    )(stem, params["exp_w"], params["exp_s"], params["exp_b"],
      params["dw_w"], params["dw_s"], params["dw_b"],
      params["se_w1"], params["se_b1"], params["se_w2"], params["se_b2"],
      params["proj_w"], params["proj_s"], params["proj_b"])


# ----- head part 1: 1x1 conv(->1792) + BN + swish + global-avg-pool (tiled N) -----

def _head_pool_kernel(h_ref, w_ref, s_ref, b_ref, pooled_ref, acc_ref, *, inv_hw):
    step = pl.program_id(1)

    @pl.when(step == 0)
    def _():
        acc_ref[...] = jnp.zeros_like(acc_ref)

    n, t, c = h_ref.shape
    x = h_ref[...].reshape(n * t, c)                          # bf16
    y = jnp.dot(x, w_ref[...], preferred_element_type=jnp.float32)
    y = y * s_ref[...] + b_ref[...]                           # head BN
    y = y * jax.nn.sigmoid(y)                                 # swish
    acc_ref[...] += jnp.sum(y.reshape(n, t, -1), axis=1)      # pooled partial sums

    @pl.when(step == pl.num_programs(1) - 1)
    def _():
        pooled_ref[...] = acc_ref[...] * inv_hw               # global average pool


def head_pool(h, head_w, head_s, head_b):
    n, hw, cp = h.shape
    c_head = head_w.shape[1]
    tn = 256 if c_head % 256 == 0 else 128
    tile_hw = min(64, hw)
    assert hw % tile_hw == 0 and c_head % tn == 0, (hw, tile_hw, c_head, tn)
    cost = pl.CostEstimate(
        flops=2 * n * hw * cp * c_head,
        transcendentals=n * hw * c_head,
        bytes_accessed=int(n * hw * cp * h.dtype.itemsize + cp * c_head * 2
                           + n * c_head * 4))
    return pl.pallas_call(
        functools.partial(_head_pool_kernel, inv_hw=1.0 / hw),
        out_shape=jax.ShapeDtypeStruct((n, c_head), jnp.float32),
        grid=(c_head // tn, hw // tile_hw),                   # N parallel, HW reduction
        in_specs=[
            pl.BlockSpec((n, tile_hw, cp), lambda j, s: (0, s, 0)),
            pl.BlockSpec((cp, tn), lambda j, s: (0, j)),
            pl.BlockSpec((1, tn), lambda j, s: (0, j)),
            pl.BlockSpec((1, tn), lambda j, s: (0, j)),
        ],
        out_specs=pl.BlockSpec((n, tn), lambda j, s: (0, j)),
        scratch_shapes=[pltpu.VMEM((n, tn), jnp.float32)],
        compiler_params=pltpu.CompilerParams(
            dimension_semantics=("parallel", "arbitrary"),
            vmem_limit_bytes=VMEM_LIMIT),
        cost_estimate=cost,
    )(h, head_w, head_s, head_b)


# ----- head part 2: fc(1792 -> 6) + final F.relu (tiny trailing micro-kernel) -----

def _fc_relu_kernel(p_ref, w_ref, b_ref, o_ref):
    logits = jnp.dot(p_ref[...].astype(jnp.bfloat16), w_ref[...],
                     preferred_element_type=jnp.float32) + b_ref[...]
    o_ref[...] = jnp.maximum(logits, 0.0)         # replaced fc(1792->6) + final F.relu


def fc_relu(pooled, fc_w, fc_b):
    n, c_head = pooled.shape
    n_out = fc_w.shape[1]
    return pl.pallas_call(
        _fc_relu_kernel,
        out_shape=jax.ShapeDtypeStruct((n, n_out), jnp.float32),
        grid=(1,),
        in_specs=[pl.BlockSpec((n, c_head), lambda i: (0, 0)),
                  pl.BlockSpec((c_head, n_out), lambda i: (0, 0)),
                  pl.BlockSpec((1, n_out), lambda i: (0, 0))],
        out_specs=pl.BlockSpec((n, n_out), lambda i: (0, 0)),
        compiler_params=pltpu.CompilerParams(vmem_limit_bytes=VMEM_LIMIT),
    )(pooled, fc_w, fc_b)


# ------------------------------- JAX glue ----------------------------------

def _extract_patches(x, k, stride, pad):
    """x: (N,H,W,C) -> (N,Ho,Wo,k*k,C) im2col patches (stem only, bf16, K small)."""
    x = jnp.pad(x, ((0, 0), (pad, pad), (pad, pad), (0, 0)))
    _, H, W, _ = x.shape
    Ho = (H - k) // stride + 1
    Wo = (W - k) // stride + 1
    taps = []
    for di in range(k):
        for dj in range(k):
            taps.append(x[:, di:di + (Ho - 1) * stride + 1:stride,
                          dj:dj + (Wo - 1) * stride + 1:stride, :])
    return jnp.stack(taps, axis=3), Ho, Wo


def init_params(key):
    ks = jax.random.split(key, 24)
    nrm = lambda k, shape, std: std * jax.random.normal(k, shape, jnp.float32)

    def embed(k, real_shape, pad_shape, std, dtype=jnp.float32):
        w = nrm(k, real_shape, std)
        full = jnp.zeros(pad_shape, jnp.float32)
        full = full.at[tuple(slice(0, s) for s in real_shape)].set(w)
        return full.astype(dtype)

    def scale(k, real_n, pad_n):
        s = 1.0 + nrm(k, (1, real_n), 0.05)
        return jnp.pad(s, ((0, 0), (0, pad_n - real_n)))

    def bias(k, real_n, pad_n):
        return jnp.pad(nrm(k, (1, real_n), 0.05), ((0, 0), (0, pad_n - real_n)))

    bf16 = jnp.bfloat16
    p = {}
    p["stem_w"] = embed(ks[0], (9 * C_IN, C_STEM), (K_STEM, C_P), 0.2, bf16)
    p["stem_s"] = scale(ks[1], C_STEM, C_P)
    p["stem_b"] = bias(ks[2], C_STEM, C_P)
    p["exp_w"] = embed(ks[3], (C_STEM, C_EXP), (C_P, C_EXPP), 0.2, bf16)
    p["exp_s"] = scale(ks[4], C_EXP, C_EXPP)
    p["exp_b"] = bias(ks[5], C_EXP, C_EXPP)
    p["dw_w"] = embed(ks[6], (9, C_EXP), (9, C_EXPP), 0.2)        # f32 (VPU)
    p["dw_s"] = scale(ks[7], C_EXP, C_EXPP)
    p["dw_b"] = bias(ks[8], C_EXP, C_EXPP)
    p["se_w1"] = embed(ks[9], (C_EXP, C_SE), (C_EXPP, C_SEP), 0.2, bf16)
    p["se_b1"] = bias(ks[10], C_SE, C_SEP)
    p["se_w2"] = embed(ks[11], (C_SE, C_EXP), (C_SEP, C_EXPP), 0.2, bf16)
    p["se_b2"] = bias(ks[12], C_EXP, C_EXPP)
    p["proj_w"] = embed(ks[13], (C_EXP, C_STEM), (C_EXPP, C_P), 0.2, bf16)
    p["proj_s"] = scale(ks[14], C_STEM, C_P)
    p["proj_b"] = bias(ks[15], C_STEM, C_P)
    p["head_w"] = embed(ks[16], (C_STEM, C_HEAD), (C_P, C_HEAD), 0.2, bf16)
    p["head_s"] = scale(ks[17], C_HEAD, C_HEAD)
    p["head_b"] = bias(ks[18], C_HEAD, C_HEAD)
    p["fc_w"] = embed(ks[19], (C_HEAD, NUM_CLASSES), (C_HEAD, NC_P), 0.05, bf16)
    p["fc_b"] = bias(ks[20], NUM_CLASSES, NC_P)
    return p


@jax.jit
def effnet_forward(xb, params):
    # xb: (N, 3, H, W) NCHW like the PyTorch module
    x = jnp.transpose(xb, (0, 2, 3, 1)).astype(jnp.bfloat16)    # NHWC, bf16 activations
    n = x.shape[0]

    # stem: conv3x3 stride-2 + BN + swish (bf16 im2col -> one MXU matmul, K 27->32)
    # TODO(synk): fuse the stem taps in-kernel (same 9-shift trick as the dw conv)
    # to remove the 9x im2col HBM traffic at real 380x380 b4 resolution.
    patches, ho, wo = _extract_patches(x, 3, 2, 1)              # (n,ho,wo,9,3) bf16
    m = n * ho * wo
    p = patches.reshape(m, 9 * C_IN)
    p = jnp.pad(p, ((0, 0), (0, K_STEM - 9 * C_IN)))
    stem = matmul_bn_act(p, params["stem_w"], params["stem_s"],
                         params["stem_b"], act="swish")         # bf16 (m, 128)
    stem = stem.reshape(n, ho * wo, C_P)

    # fused MBConv block (expand 1x1 + dw3x3 + SE + project 1x1 + residual);
    # the C_EXP-wide expanded activation never leaves VMEM.
    mb = mbconv_block(stem, params, H=ho, W=wo)                 # bf16 (n, hw, 128)

    # head: 1x1 conv to 1792 + BN + swish + global-avg-pool (C_HEAD-parallel grid),
    # then fc(1792 -> 6) + final F.relu in a trailing micro-kernel.
    pooled = head_pool(mb, params["head_w"], params["head_s"], params["head_b"])
    out = fc_relu(pooled, params["fc_w"], params["fc_b"])
    return out[:, :NUM_CLASSES]


if __name__ == "__main__":
    key = jax.random.PRNGKey(0)
    kp, kx = jax.random.split(key)
    params = init_params(kp)
    xb = jax.random.normal(kx, (2, 3, 32, 32), jnp.float32)
    out = effnet_forward(xb, params)
    out = jax.block_until_ready(out)
    assert out.shape == (2, NUM_CLASSES), out.shape
    assert bool(jnp.all(out >= 0.0)), "final ReLU violated"
    assert bool(jnp.all(jnp.isfinite(out))), "non-finite output"
    print("KERNEL_OK")
</pallas_src>

<mosaic_0001>
module attributes {stable_mosaic.version = 11 : i64} {
  func.func @_matmul_bn_act_kernel(%arg0: i32, %arg1: i32, %arg2: memref<512x32xbf16, #tpu.memory_space<vmem>>, %arg3: memref<32x128xbf16, #tpu.memory_space<vmem>>, %arg4: memref<1x128xf32, #tpu.memory_space<vmem>>, %arg5: memref<1x128xf32, #tpu.memory_space<vmem>>, %arg6: memref<512x128xbf16, #tpu.memory_space<vmem>>) attributes {dimension_semantics = [#tpu.dimension_semantics<parallel>, #tpu.dimension_semantics<parallel>], iteration_bounds = array<i64: 1, 1>, scalar_prefetch = 0 : i64, scratch_operands = 0 : i64, tpu.core_type = #tpu.core_type<tc>, window_params = [{transform_indices = @transform_0, window_bounds = array<i64: 512, 32>}, {transform_indices = @transform_1, window_bounds = array<i64: 32, 128>}, {transform_indices = @transform_2, window_bounds = array<i64: 1, 128>}, {transform_indices = @transform_3, window_bounds = array<i64: 1, 128>}, {transform_indices = @transform_4, window_bounds = array<i64: 512, 128>}]} {
    %c0 = arith.constant 0 : index
    %c0_0 = arith.constant 0 : index
    %0 = vector.load %arg2[%c0, %c0_0] : memref<512x32xbf16, #tpu.memory_space<vmem>>, vector<512x32xbf16>
    %c0_1 = arith.constant 0 : index
    %c0_2 = arith.constant 0 : index
    %1 = vector.load %arg3[%c0_1, %c0_2] : memref<32x128xbf16, #tpu.memory_space<vmem>>, vector<32x128xbf16>
    %cst = arith.constant dense<0.000000e+00> : vector<512x128xf32>
    %2 = tpu.matmul %0, %1, %cst {dimension_numbers = #tpu.dot_dimension_numbers<[1], [0], [0], [1], [0, 0, 1, 1], [], []>} : vector<512x32xbf16>, vector<32x128xbf16>, vector<512x128xf32> -> vector<512x128xf32>
    %c0_3 = arith.constant 0 : index
    %c0_4 = arith.constant 0 : index
    %3 = vector.load %arg4[%c0_3, %c0_4] : memref<1x128xf32, #tpu.memory_space<vmem>>, vector<1x128xf32>
    %4 = vector.broadcast %3 : vector<1x128xf32> to vector<512x128xf32>
    %5 = arith.mulf %2, %4 : vector<512x128xf32>
    %c0_5 = arith.constant 0 : index
    %c0_6 = arith.constant 0 : index
    %6 = vector.load %arg5[%c0_5, %c0_6] : memref<1x128xf32, #tpu.memory_space<vmem>>, vector<1x128xf32>
    %7 = vector.broadcast %6 : vector<1x128xf32> to vector<512x128xf32>
    %8 = arith.addf %5, %7 : vector<512x128xf32>
    %9 = arith.negf %8 : vector<512x128xf32>
    %10 = math.exp %9 : vector<512x128xf32>
    %cst_7 = arith.constant 1.000000e+00 : f32
    %11 = vector.broadcast %cst_7 : f32 to vector<512x128xf32>
    %12 = arith.addf %11, %10 : vector<512x128xf32>
    %13 = arith.divf %11, %12 : vector<512x128xf32>
    %14 = arith.mulf %8, %13 : vector<512x128xf32>
    %15 = arith.truncf %14 : vector<512x128xf32> to vector<512x128xbf16>
    %c0_8 = arith.constant 0 : index
    %c0_9 = arith.constant 0 : index
    %16 = vector.load %arg6[%c0_8, %c0_9] : memref<512x128xbf16, #tpu.memory_space<vmem>>, vector<512x128xbf16>
    tpu.vector_store %arg6[%c0_8, %c0_9], %15 {strides = array<i32>} : memref<512x128xbf16, #tpu.memory_space<vmem>>, vector<512x128xbf16>,
    return
  }
  func.func @transform_0(%arg0: i32, %arg1: i32) -> (i32, i32) {
    %c0_i32 = arith.constant 0 : i32
    %c0_i32_0 = arith.constant 0 : i32
    return %arg0, %c0_i32 : i32, i32
  }
  func.func @transform_1(%arg0: i32, %arg1: i32) -> (i32, i32) {
    %c0_i32 = arith.constant 0 : i32
    %c0_i32_0 = arith.constant 0 : i32
    return %c0_i32, %arg1 : i32, i32
  }
  func.func @transform_2(%arg0: i32, %arg1: i32) -> (i32, i32) {
    %c0_i32 = arith.constant 0 : i32
    %c0_i32_0 = arith.constant 0 : i32
    return %c0_i32, %arg1 : i32, i32
  }
  func.func @transform_3(%arg0: i32, %arg1: i32) -> (i32, i32) {
    %c0_i32 = arith.constant 0 : i32
    %c0_i32_0 = arith.constant 0 : i32
    return %c0_i32, %arg1 : i32, i32
  }
  func.func @transform_4(%arg0: i32, %arg1: i32) -> (i32, i32) {
    %c0_i32 = arith.constant 0 : i32
    return %arg0, %arg1 : i32, i32
  }
}

module attributes {stable_mosaic.version = 11 : i64} {
  func.func @_mbconv_kernel(%arg0: i32, %arg1: memref<1x256x128xbf16, #tpu.memory_space<vmem>>, %arg2: memref<128x128xbf16, #tpu.memory_space<vmem>>, %arg3: memref<1x128xf32, #tpu.memory_space<vmem>>, %arg4: memref<1x128xf32, #tpu.memory_space<vmem>>, %arg5: memref<9x128xf32, #tpu.memory_space<vmem>>, %arg6: memref<1x128xf32, #tpu.memory_space<vmem>>, %arg7: memref<1x128xf32, #tpu.memory_space<vmem>>, %arg8: memref<128x128xbf16, #tpu.memory_space<vmem>>, %arg9: memref<1x128xf32, #tpu.memory_space<vmem>>, %arg10: memref<128x128xbf16, #tpu.memory_space<vmem>>, %arg11: memref<1x128xf32, #tpu.memory_space<vmem>>, %arg12: memref<128x128xbf16, #tpu.memory_space<vmem>>, %arg13: memref<1x128xf32, #tpu.memory_space<vmem>>, %arg14: memref<1x128xf32, #tpu.memory_space<vmem>>, %arg15: memref<1x256x128xbf16, #tpu.memory_space<vmem>>, %arg16: memref<18x32x128xf32, #tpu.memory_space<vmem>>, %arg17: memref<256x128xf32, #tpu.memory_space<vmem>>) attributes {dimension_semantics = [#tpu.dimension_semantics<parallel>], iteration_bounds = array<i64: 2>, scalar_prefetch = 0 : i64, scratch_operands = 2 : i64, tpu.core_type = #tpu.core_type<tc>, window_params = [{transform_indices = @transform_0, window_bounds = array<i64: 1, 256, 128>}, {pipeline_mode = #tpu.pipeline_mode<synchronous>, transform_indices = @transform_1, window_bounds = array<i64: 128, 128>}, {pipeline_mode = #tpu.pipeline_mode<synchronous>, transform_indices = @transform_2, window_bounds = array<i64: 1, 128>}, {pipeline_mode = #tpu.pipeline_mode<synchronous>, transform_indices = @transform_3, window_bounds = array<i64: 1, 128>}, {pipeline_mode = #tpu.pipeline_mode<synchronous>, transform_indices = @transform_4, window_bounds = array<i64: 9, 128>}, {pipeline_mode = #tpu.pipeline_mode<synchronous>, transform_indices = @transform_5, window_bounds = array<i64: 1, 128>}, {pipeline_mode = #tpu.pipeline_mode<synchronous>, transform_indices = @transform_6, window_bounds = array<i64: 1, 128>}, {pipeline_mode = #tpu.pipeline_mode<synchronous>, transform_indices = @transform_7, window_bounds = array<i64: 128, 128>}, {pipeline_mode = #tpu.pipeline_mode<synchronous>, transform_indices = @transform_8, window_bounds = array<i64: 1, 128>}, {pipeline_mode = #tpu.pipeline_mode<synchronous>, transform_indices = @transform_9, window_bounds = array<i64: 128, 128>}, {pipeline_mode = #tpu.pipeline_mode<synchronous>, transform_indices = @transform_10, window_bounds = array<i64: 1, 128>}, {pipeline_mode = #tpu.pipeline_mode<synchronous>, transform_indices = @transform_11, window_bounds = array<i64: 128, 128>}, {pipeline_mode = #tpu.pipeline_mode<synchronous>, transform_indices = @transform_12, window_bounds = array<i64: 1, 128>}, {pipeline_mode = #tpu.pipeline_mode<synchronous>, transform_indices = @transform_13, window_bounds = array<i64: 1, 128>}, {transform_indices = @transform_14, window_bounds = array<i64: 1, 256, 128>}]} {
    %cst = arith.constant 0.000000e+00 : f32
    %0 = vector.broadcast %cst : f32 to vector<18x32x128xf32>
    %c0 = arith.constant 0 : index
    %c0_0 = arith.constant 0 : index
    %c0_1 = arith.constant 0 : index
    %1 = vector.load %arg16[%c0, %c0_0, %c0_1] : memref<18x32x128xf32, #tpu.memory_space<vmem>>, vector<18x32x128xf32>
    tpu.vector_store %arg16[%c0, %c0_0, %c0_1], %0 {strides = array<i32>} : memref<18x32x128xf32, #tpu.memory_space<vmem>>, vector<18x32x128xf32>,
    %c0_2 = arith.constant 0 : index
    %c0_3 = arith.constant 0 : index
    %c0_4 = arith.constant 0 : index
    %2 = vector.load %arg1[%c0_2, %c0_3, %c0_4] : memref<1x256x128xbf16, #tpu.memory_space<vmem>>, vector<1x128x128xbf16>
    %3 = vector.shape_cast %2 : vector<1x128x128xbf16> to vector<128x128xbf16>
    %c0_5 = arith.constant 0 : index
    %c0_6 = arith.constant 0 : index
    %4 = vector.load %arg2[%c0_5, %c0_6] : memref<128x128xbf16, #tpu.memory_space<vmem>>, vector<128x128xbf16>
    %cst_7 = arith.constant dense<0.000000e+00> : vector<128x128xf32>
    %5 = tpu.matmul %3, %4, %cst_7 {dimension_numbers = #tpu.dot_dimension_numbers<[1], [0], [0], [1], [0, 0, 1, 1], [], []>} : vector<128x128xbf16>, vector<128x128xbf16>, vector<128x128xf32> -> vector<128x128xf32>
    %c0_8 = arith.constant 0 : index
    %c0_9 = arith.constant 0 : index
    %6 = vector.load %arg3[%c0_8, %c0_9] : memref<1x128xf32, #tpu.memory_space<vmem>>, vector<1x128xf32>
    %7 = vector.broadcast %6 : vector<1x128xf32> to vector<128x128xf32>
    %8 = arith.mulf %5, %7 : vector<128x128xf32>
    %c0_10 = arith.constant 0 : index
    %c0_11 = arith.constant 0 : index
    %9 = vector.load %arg4[%c0_10, %c0_11] : memref<1x128xf32, #tpu.memory_space<vmem>>, vector<1x128xf32>
    %10 = vector.broadcast %9 : vector<1x128xf32> to vector<128x128xf32>
    %11 = arith.addf %8, %10 : vector<128x128xf32>
    %12 = arith.negf %11 : vector<128x128xf32>
    %13 = math.exp %12 : vector<128x128xf32>
    %cst_12 = arith.constant 1.000000e+00 : f32
    %14 = vector.broadcast %cst_12 : f32 to vector<128x128xf32>
    %15 = arith.addf %14, %13 : vector<128x128xf32>
    %16 = arith.divf %14, %15 : vector<128x128xf32>
    %17 = arith.mulf %11, %16 : vector<128x128xf32>
    %18 = vector.shape_cast %17 : vector<128x128xf32> to vector<8x16x128xf32>
    %c1 = arith.constant 1 : index
    %c8 = arith.constant 8 : index
    %c0_13 = arith.constant 0 : index
    %19 = vector.load %arg16[%c1, %c8, %c0_13] : memref<18x32x128xf32, #tpu.memory_space<vmem>>, vector<8x16x128xf32>
    tpu.vector_store %arg16[%c1, %c8, %c0_13], %18 {strides = array<i32>} : memref<18x32x128xf32, #tpu.memory_space<vmem>>, vector<8x16x128xf32>,
    %c0_14 = arith.constant 0 : index
    %c128 = arith.constant 128 : index
    %c0_15 = arith.constant 0 : index
    %20 = vector.load %arg1[%c0_14, %c128, %c0_15] : memref<1x256x128xbf16, #tpu.memory_space<vmem>>, vector<1x128x128xbf16>
    %21 = vector.shape_cast %20 : vector<1x128x128xbf16> to vector<128x128xbf16>
    %c0_16 = arith.constant 0 : index
    %c0_17 = arith.constant 0 : index
    %22 = vector.load %arg2[%c0_16, %c0_17] : memref<128x128xbf16, #tpu.memory_space<vmem>>, vector<128x128xbf16>
    %cst_18 = arith.constant dense<0.000000e+00> : vector<128x128xf32>
    %23 = tpu.matmul %21, %22, %cst_18 {dimension_numbers = #tpu.dot_dimension_numbers<[1], [0], [0], [1], [0, 0, 1, 1], [], []>} : vector<128x128xbf16>, vector<128x128xbf16>, vector<128x128xf32> -> vector<128x128xf32>
    %c0_19 = arith.constant 0 : index
    %c0_20 = arith.constant 0 : index
    %24 = vector.load %arg3[%c0_19, %c0_20] : memref<1x128xf32, #tpu.memory_space<vmem>>, vector<1x128xf32>
    %25 = vector.broadcast %24 : vector<1x128xf32> to vector<128x128xf32>
    %26 = arith.mulf %23, %25 : vector<128x128xf32>
    %c0_21 = arith.constant 0 : index
    %c0_22 = arith.constant 0 : index
    %27 = vector.load %arg4[%c0_21, %c0_22] : memref<1x128xf32, #tpu.memory_space<vmem>>, vector<1x128xf32>
    %28 = vector.broadcast %27 : vector<1x128xf32> to vector<128x128xf32>
    %29 = arith.addf %26, %28 : vector<128x128xf32>
    %30 = arith.negf %29 : vector<128x128xf32>
    %31 = math.exp %30 : vector<128x128xf32>
    %cst_23 = arith.constant 1.000000e+00 : f32
    %32 = vector.broadcast %cst_23 : f32 to vector<128x128xf32>
    %33 = arith.addf %32, %31 : vector<128x128xf32>
    %34 = arith.divf %32, %33 : vector<128x128xf32>
    %35 = arith.mulf %29, %34 : vector<128x128xf32>
    %36 = vector.shape_cast %35 : vector<128x128xf32> to vector<8x16x128xf32>
    %c9 = arith.constant 9 : index
    %c8_24 = arith.constant 8 : index
    %c0_25 = arith.constant 0 : index
    %37 = vector.load %arg16[%c9, %c8_24, %c0_25] : memref<18x32x128xf32, #tpu.memory_space<vmem>>, vector<8x16x128xf32>
    tpu.vector_store %arg16[%c9, %c8_24, %c0_25], %36 {strides = array<i32>} : memref<18x32x128xf32, #tpu.memory_space<vmem>>, vector<8x16x128xf32>,
    %c0_26 = arith.constant 0 : index
    %c0_27 = arith.constant 0 : index
    %38 = vector.load %arg5[%c0_26, %c0_27] : memref<9x128xf32, #tpu.memory_space<vmem>>, vector<9x128xf32>
    %cst_28 = arith.constant 0.000000e+00 : f32
    %39 = vector.broadcast %cst_28 : f32 to vector<1x128xf32>
    %c0_29 = arith.constant 0 : index
    %c0_30 = arith.constant 0 : index
    %c0_31 = arith.constant 0 : index
    %40 = vector.load %arg16[%c0_29, %c0_30, %c0_31] : memref<18x32x128xf32, #tpu.memory_space<vmem>>, vector<10x32x128xf32>
    %cst_32 = arith.constant 0.000000e+00 : f32
    %41 = vector.broadcast %cst_32 : f32 to vector<8x16x128xf32>
    %42 = vector.extract_strided_slice %40 {offsets = [0, 7, 0], sizes = [8, 16, 128], strides = [1, 1, 1]} : vector<10x32x128xf32> to vector<8x16x128xf32>
    %43 = vector.extract_strided_slice %38 {offsets = [0, 0], sizes = [1, 128], strides = [1, 1]} : vector<9x128xf32> to vector<1x128xf32>
    %44 = vector.shape_cast %43 : vector<1x128xf32> to vector<128xf32>
    %45 = vector.shape_cast %44 : vector<128xf32> to vector<1x1x128xf32>
    %46 = vector.broadcast %45 : vector<1x1x128xf32> to vector<8x16x128xf32>
    %47 = arith.mulf %42, %46 : vector<8x16x128xf32>
    %48 = arith.addf %41, %47 : vector<8x16x128xf32>
    %49 = vector.extract_strided_slice %40 {offsets = [0, 8, 0], sizes = [8, 16, 128], strides = [1, 1, 1]} : vector<10x32x128xf32> to vector<8x16x128xf32>
    %50 = vector.extract_strided_slice %38 {offsets = [1, 0], sizes = [1, 128], strides = [1, 1]} : vector<9x128xf32> to vector<1x128xf32>
    %51 = vector.shape_cast %50 : vector<1x128xf32> to vector<128xf32>
    %52 = vector.shape_cast %51 : vector<128xf32> to vector<1x1x128xf32>
    %53 = vector.broadcast %52 : vector<1x1x128xf32> to vector<8x16x128xf32>
    %54 = arith.mulf %49, %53 : vector<8x16x128xf32>
    %55 = arith.addf %48, %54 : vector<8x16x128xf32>
    %56 = vector.extract_strided_slice %40 {offsets = [0, 9, 0], sizes = [8, 16, 128], strides = [1, 1, 1]} : vector<10x32x128xf32> to vector<8x16x128xf32>
    %57 = vector.extract_strided_slice %38 {offsets = [2, 0], sizes = [1, 128], strides = [1, 1]} : vector<9x128xf32> to vector<1x128xf32>
    %58 = vector.shape_cast %57 : vector<1x128xf32> to vector<128xf32>
    %59 = vector.shape_cast %58 : vector<128xf32> to vector<1x1x128xf32>
    %60 = vector.broadcast %59 : vector<1x1x128xf32> to vector<8x16x128xf32>
    %61 = arith.mulf %56, %60 : vector<8x16x128xf32>
    %62 = arith.addf %55, %61 : vector<8x16x128xf32>
    %63 = vector.extract_strided_slice %40 {offsets = [1, 7, 0], sizes = [8, 16, 128], strides = [1, 1, 1]} : vector<10x32x128xf32> to vector<8x16x128xf32>
    %64 = vector.extract_strided_slice %38 {offsets = [3, 0], sizes = [1, 128], strides = [1, 1]} : vector<9x128xf32> to vector<1x128xf32>
    %65 = vector.shape_cast %64 : vector<1x128xf32> to vector<128xf32>
    %66 = vector.shape_cast %65 : vector<128xf32> to vector<1x1x128xf32>
    %67 = vector.broadcast %66 : vector<1x1x128xf32> to vector<8x16x128xf32>
    %68 = arith.mulf %63, %67 : vector<8x16x128xf32>
    %69 = arith.addf %62, %68 : vector<8x16x128xf32>
    %70 = vector.extract_strided_slice %40 {offsets = [1, 8, 0], sizes = [8, 16, 128], strides = [1, 1, 1]} : vector<10x32x128xf32> to vector<8x16x128xf32>
    %71 = vector.extract_strided_slice %38 {offsets = [4, 0], sizes = [1, 128], strides = [1, 1]} : vector<9x128xf32> to vector<1x128xf32>
    %72 = vector.shape_cast %71 : vector<1x128xf32> to vector<128xf32>
    %73 = vector.shape_cast %72 : vector<128xf32> to vector<1x1x128xf32>
    %74 = vector.broadcast %73 : vector<1x1x128xf32> to vector<8x16x128xf32>
    %75 = arith.mulf %70, %74 : vector<8x16x128xf32>
    %76 = arith.addf %69, %75 : vector<8x16x128xf32>
    %77 = vector.extract_strided_slice %40 {offsets = [1, 9, 0], sizes = [8, 16, 128], strides = [1, 1, 1]} : vector<10x32x128xf32> to vector<8x16x128xf32>
    %78 = vector.extract_strided_slice %38 {offsets = [5, 0], sizes = [1, 128], strides = [1, 1]} : vector<9x128xf32> to vector<1x128xf32>
    %79 = vector.shape_cast %78 : vector<1x128xf32> to vector<128xf32>
    %80 = vector.shape_cast %79 : vector<128xf32> to vector<1x1x128xf32>
    %81 = vector.broadcast %80 : vector<1x1x128xf32> to vector<8x16x128xf32>
    %82 = arith.mulf %77, %81 : vector<8x16x128xf32>
    %83 = arith.addf %76, %82 : vector<8x16x128xf32>
    %84 = vector.extract_strided_slice %40 {offsets = [2, 7, 0], sizes = [8, 16, 128], strides = [1, 1, 1]} : vector<10x32x128xf32> to vector<8x16x128xf32>
    %85 = vector.extract_strided_slice %38 {offsets = [6, 0], sizes = [1, 128], strides = [1, 1]} : vector<9x128xf32> to vector<1x128xf32>
    %86 = vector.shape_cast %85 : vector<1x128xf32> to vector<128xf32>
    %87 = vector.shape_cast %86 : vector<128xf32> to vector<1x1x128xf32>
    %88 = vector.broadcast %87 : vector<1x1x128xf32> to vector<8x16x128xf32>
    %89 = arith.mulf %84, %88 : vector<8x16x128xf32>
    %90 = arith.addf %83, %89 : vector<8x16x128xf32>
    %91 = vector.extract_strided_slice %40 {offsets = [2, 8, 0], sizes = [8, 16, 128], strides = [1, 1, 1]} : vector<10x32x128xf32> to vector<8x16x128xf32>
    %92 = vector.extract_strided_slice %38 {offsets = [7, 0], sizes = [1, 128], strides = [1, 1]} : vector<9x128xf32> to vector<1x128xf32>
    %93 = vector.shape_cast %92 : vector<1x128xf32> to vector<128xf32>
    %94 = vector.shape_cast %93 : vector<128xf32> to vector<1x1x128xf32>
    %95 = vector.broadcast %94 : vector<1x1x128xf32> to vector<8x16x128xf32>
    %96 = arith.mulf %91, %95 : vector<8x16x128xf32>
    %97 = arith.addf %90, %96 : vector<8x16x128xf32>
    %98 = vector.extract_strided_slice %40 {offsets = [2, 9, 0], sizes = [8, 16, 128], strides = [1, 1, 1]} : vector<10x32x128xf32> to vector<8x16x128xf32>
    %99 = vector.extract_strided_slice %38 {offsets = [8, 0], sizes = [1, 128], strides = [1, 1]} : vector<9x128xf32> to vector<1x128xf32>
    %100 = vector.shape_cast %99 : vector<1x128xf32> to vector<128xf32>
    %101 = vector.shape_cast %100 : vector<128xf32> to vector<1x1x128xf32>
    %102 = vector.broadcast %101 : vector<1x1x128xf32> to vector<8x16x128xf32>
    %103 = arith.mulf %98, %102 : vector<8x16x128xf32>
    %104 = arith.addf %97, %103 : vector<8x16x128xf32>
    %105 = vector.shape_cast %104 : vector<8x16x128xf32> to vector<128x128xf32>
    %c0_33 = arith.constant 0 : index
    %c0_34 = arith.constant 0 : index
    %106 = vector.load %arg6[%c0_33, %c0_34] : memref<1x128xf32, #tpu.memory_space<vmem>>, vector<1x128xf32>
    %107 = vector.broadcast %106 : vector<1x128xf32> to vector<128x128xf32>
    %108 = arith.mulf %105, %107 : vector<128x128xf32>
    %c0_35 = arith.constant 0 : index
    %c0_36 = arith.constant 0 : index
    %109 = vector.load %arg7[%c0_35, %c0_36] : memref<1x128xf32, #tpu.memory_space<vmem>>, vector<1x128xf32>
    %110 = vector.broadcast %109 : vector<1x128xf32> to vector<128x128xf32>
    %111 = arith.addf %108, %110 : vector<128x128xf32>
    %112 = arith.negf %111 : vector<128x128xf32>
    %113 = math.exp %112 : vector<128x128xf32>
    %cst_37 = arith.constant 1.000000e+00 : f32
    %114 = vector.broadcast %cst_37 : f32 to vector<128x128xf32>
    %115 = arith.addf %114, %113 : vector<128x128xf32>
    %116 = arith.divf %114, %115 : vector<128x128xf32>
    %117 = arith.mulf %111, %116 : vector<128x128xf32>
    %cst_38 = arith.constant dense<0.000000e+00> : vector<128xf32>
    %118 = vector.multi_reduction <add>, %117, %cst_38 [0] : vector<128x128xf32> to vector<128xf32>
    %119 = vector.shape_cast %118 : vector<128xf32> to vector<1x128xf32>
    %120 = arith.addf %39, %119 : vector<1x128xf32>
    %c0_39 = arith.constant 0 : index
    %c0_40 = arith.constant 0 : index
    %121 = vector.load %arg17[%c0_39, %c0_40] : memref<256x128xf32, #tpu.memory_space<vmem>>, vector<128x128xf32>
    tpu.vector_store %arg17[%c0_39, %c0_40], %117 {strides = array<i32>} : memref<256x128xf32, #tpu.memory_space<vmem>>, vector<128x128xf32>,
    %c8_41 = arith.constant 8 : index
    %c0_42 = arith.constant 0 : index
    %c0_43 = arith.constant 0 : index
    %122 = vector.load %arg16[%c8_41, %c0_42, %c0_43] : memref<18x32x128xf32, #tpu.memory_space<vmem>>, vector<10x32x128xf32>
    %cst_44 = arith.constant 0.000000e+00 : f32
    %123 = vector.broadcast %cst_44 : f32 to vector<8x16x128xf32>
    %124 = vector.extract_strided_slice %122 {offsets = [0, 7, 0], sizes = [8, 16, 128], strides = [1, 1, 1]} : vector<10x32x128xf32> to vector<8x16x128xf32>
    %125 = vector.extract_strided_slice %38 {offsets = [0, 0], sizes = [1, 128], strides = [1, 1]} : vector<9x128xf32> to vector<1x128xf32>
    %126 = vector.shape_cast %125 : vector<1x128xf32> to vector<128xf32>
    %127 = vector.shape_cast %126 : vector<128xf32> to vector<1x1x128xf32>
    %128 = vector.broadcast %127 : vector<1x1x128xf32> to vector<8x16x128xf32>
    %129 = arith.mulf %124, %128 : vector<8x16x128xf32>
    %130 = arith.addf %123, %129 : vector<8x16x128xf32>
    %131 = vector.extract_strided_slice %122 {offsets = [0, 8, 0], sizes = [8, 16, 128], strides = [1, 1, 1]} : vector<10x32x128xf32> to vector<8x16x128xf32>
    %132 = vector.extract_strided_slice %38 {offsets = [1, 0], sizes = [1, 128], strides = [1, 1]} : vector<9x128xf32> to vector<1x128xf32>
    %133 = vector.shape_cast %132 : vector<1x128xf32> to vector<128xf32>
    %134 = vector.shape_cast %133 : vector<128xf32> to vector<1x1x128xf32>
    %135 = vector.broadcast %134 : vector<1x1x128xf32> to vector<8x16x128xf32>
    %136 = arith.mulf %131, %135 : vector<8x16x128xf32>
    %137 = arith.addf %130, %136 : vector<8x16x128xf32>
    %138 = vector.extract_strided_slice %122 {offsets = [0, 9, 0], sizes = [8, 16, 128], strides = [1, 1, 1]} : vector<10x32x128xf32> to vector<8x16x128xf32>
    %139 = vector.extract_strided_slice %38 {offsets = [2, 0], sizes = [1, 128], strides = [1, 1]} : vector<9x128xf32> to vector<1x128xf32>
    %140 = vector.shape_cast %139 : vector<1x128xf32> to vector<128xf32>
    %141 = vector.shape_cast %140 : vector<128xf32> to vector<1x1x128xf32>
    %142 = vector.broadcast %141 : vector<1x1x128xf32> to vector<8x16x128xf32>
    %143 = arith.mulf %138, %142 : vector<8x16x128xf32>
    %144 = arith.addf %137, %143 : vector<8x16x128xf32>
    %145 = vector.extract_strided_slice %122 {offsets = [1, 7, 0], sizes = [8, 16, 128], strides = [1, 1, 1]} : vector<10x32x128xf32> to vector<8x16x128xf32>
    %146 = vector.extract_strided_slice %38 {offsets = [3, 0], sizes = [1, 128], strides = [1, 1]} : vector<9x128xf32> to vector<1x128xf32>
    %147 = vector.shape_cast %146 : vector<1x128xf32> to vector<128xf32>
    %148 = vector.shape_cast %147 : vector<128xf32> to vector<1x1x128xf32>
    %149 = vector.broadcast %148 : vector<1x1x128xf32> to vector<8x16x128xf32>
    %150 = arith.mulf %145, %149 : vector<8x16x128xf32>
    %151 = arith.addf %144, %150 : vector<8x16x128xf32>
    %152 = vector.extract_strided_slice %122 {offsets = [1, 8, 0], sizes = [8, 16, 128], strides = [1, 1, 1]} : vector<10x32x128xf32> to vector<8x16x128xf32>
    %153 = vector.extract_strided_slice %38 {offsets = [4, 0], sizes = [1, 128], strides = [1, 1]} : vector<9x128xf32> to vector<1x128xf32>
    %154 = vector.shape_cast %153 : vector<1x128xf32> to vector<128xf32>
    %155 = vector.shape_cast %154 : vector<128xf32> to vector<1x1x128xf32>
    %156 = vector.broadcast %155 : vector<1x1x128xf32> to vector<8x16x128xf32>
    %157 = arith.mulf %152, %156 : vector<8x16x128xf32>
    %158 = arith.addf %151, %157 : vector<8x16x128xf32>
    %159 = vector.extract_strided_slice %122 {offsets = [1, 9, 0], sizes = [8, 16, 128], strides = [1, 1, 1]} : vector<10x32x128xf32> to vector<8x16x128xf32>
    %160 = vector.extract_strided_slice %38 {offsets = [5, 0], sizes = [1, 128], strides = [1, 1]} : vector<9x128xf32> to vector<1x128xf32>
    %161 = vector.shape_cast %160 : vector<1x128xf32> to vector<128xf32>
    %162 = vector.shape_cast %161 : vector<128xf32> to vector<1x1x128xf32>
    %163 = vector.broadcast %162 : vector<1x1x128xf32> to vector<8x16x128xf32>
    %164 = arith.mulf %159, %163 : vector<8x16x128xf32>
    %165 = arith.addf %158, %164 : vector<8x16x128xf32>
    %166 = vector.extract_strided_slice %122 {offsets = [2, 7, 0], sizes = [8, 16, 128], strides = [1, 1, 1]} : vector<10x32x128xf32> to vector<8x16x128xf32>
    %167 = vector.extract_strided_slice %38 {offsets = [6, 0], sizes = [1, 128], strides = [1, 1]} : vector<9x128xf32> to vector<1x128xf32>
    %168 = vector.shape_cast %167 : vector<1x128xf32> to vector<128xf32>
    %169 = vector.shape_cast %168 : vector<128xf32> to vector<1x1x128xf32>
    %170 = vector.broadcast %169 : vector<1x1x128xf32> to vector<8x16x128xf32>
    %171 = arith.mulf %166, %170 : vector<8x16x128xf32>
    %172 = arith.addf %165, %171 : vector<8x16x128xf32>
    %173 = vector.extract_strided_slice %122 {offsets = [2, 8, 0], sizes = [8, 16, 128], strides = [1, 1, 1]} : vector<10x32x128xf32> to vector<8x16x128xf32>
    %174 = vector.extract_strided_slice %38 {offsets = [7, 0], sizes = [1, 128], strides = [1, 1]} : vector<9x128xf32> to vector<1x128xf32>
    %175 = vector.shape_cast %174 : vector<1x128xf32> to vector<128xf32>
    %176 = vector.shape_cast %175 : vector<128xf32> to vector<1x1x128xf32>
    %177 = vector.broadcast %176 : vector<1x1x128xf32> to vector<8x16x128xf32>
    %178 = arith.mulf %173, %177 : vector<8x16x128xf32>
    %179 = arith.addf %172, %178 : vector<8x16x128xf32>
    %180 = vector.extract_strided_slice %122 {offsets = [2, 9, 0], sizes = [8, 16, 128], strides = [1, 1, 1]} : vector<10x32x128xf32> to vector<8x16x128xf32>
    %181 = vector.extract_strided_slice %38 {offsets = [8, 0], sizes = [1, 128], strides = [1, 1]} : vector<9x128xf32> to vector<1x128xf32>
    %182 = vector.shape_cast %181 : vector<1x128xf32> to vector<128xf32>
    %183 = vector.shape_cast %182 : vector<128xf32> to vector<1x1x128xf32>
    %184 = vector.broadcast %183 : vector<1x1x128xf32> to vector<8x16x128xf32>
    %185 = arith.mulf %180, %184 : vector<8x16x128xf32>
    %186 = arith.addf %179, %185 : vector<8x16x128xf32>
    %187 = vector.shape_cast %186 : vector<8x16x128xf32> to vector<128x128xf32>
    %c0_45 = arith.constant 0 : index
    %c0_46 = arith.constant 0 : index
    %188 = vector.load %arg6[%c0_45, %c0_46] : memref<1x128xf32, #tpu.memory_space<vmem>>, vector<1x128xf32>
    %189 = vector.broadcast %188 : vector<1x128xf32> to vector<128x128xf32>
    %190 = arith.mulf %187, %189 : vector<128x128xf32>
    %c0_47 = arith.constant 0 : index
    %c0_48 = arith.constant 0 : index
    %191 = vector.load %arg7[%c0_47, %c0_48] : memref<1x128xf32, #tpu.memory_space<vmem>>, vector<1x128xf32>
    %192 = vector.broadcast %191 : vector<1x128xf32> to vector<128x128xf32>
    %193 = arith.addf %190, %192 : vector<128x128xf32>
    %194 = arith.negf %193 : vector<128x128xf32>
    %195 = math.exp %194 : vector<128x128xf32>
    %cst_49 = arith.constant 1.000000e+00 : f32
    %196 = vector.broadcast %cst_49 : f32 to vector<128x128xf32>
    %197 = arith.addf %196, %195 : vector<128x128xf32>
    %198 = arith.divf %196, %197 : vector<128x128xf32>
    %199 = arith.mulf %193, %198 : vector<128x128xf32>
    %cst_50 = arith.constant dense<0.000000e+00> : vector<128xf32>
    %200 = vector.multi_reduction <add>, %199, %cst_50 [0] : vector<128x128xf32> to vector<128xf32>
    %201 = vector.shape_cast %200 : vector<128xf32> to vector<1x128xf32>
    %202 = arith.addf %120, %201 : vector<1x128xf32>
    %c128_51 = arith.constant 128 : index
    %c0_52 = arith.constant 0 : index
    %203 = vector.load %arg17[%c128_51, %c0_52] : memref<256x128xf32, #tpu.memory_space<vmem>>, vector<128x128xf32>
    tpu.vector_store %arg17[%c128_51, %c0_52], %199 {strides = array<i32>} : memref<256x128xf32, #tpu.memory_space<vmem>>, vector<128x128xf32>,
    %cst_53 = arith.constant 3.906250e-03 : f32
    %204 = vector.broadcast %cst_53 : f32 to vector<1x128xf32>
    %205 = arith.mulf %202, %204 : vector<1x128xf32>
    %206 = arith.truncf %205 : vector<1x128xf32> to vector<1x128xbf16>
    %c0_54 = arith.constant 0 : index
    %c0_55 = arith.constant 0 : index
    %207 = vector.load %arg8[%c0_54, %c0_55] : memref<128x128xbf16, #tpu.memory_space<vmem>>, vector<128x128xbf16>
    %cst_56 = arith.constant dense<0.000000e+00> : vector<1x128xf32>
    %208 = tpu.matmul %206, %207, %cst_56 {dimension_numbers = #tpu.dot_dimension_numbers<[1], [0], [0], [1], [0, 0, 1, 1], [], []>} : vector<1x128xbf16>, vector<128x128xbf16>, vector<1x128xf32> -> vector<1x128xf32>
    %c0_57 = arith.constant 0 : index
    %c0_58 = arith.constant 0 : index
    %209 = vector.load %arg9[%c0_57, %c0_58] : memref<1x128xf32, #tpu.memory_space<vmem>>, vector<1x128xf32>
    %210 = arith.addf %208, %209 : vector<1x128xf32>
    %211 = arith.negf %210 : vector<1x128xf32>
    %212 = math.exp %211 : vector<1x128xf32>
    %cst_59 = arith.constant 1.000000e+00 : f32
    %213 = vector.broadcast %cst_59 : f32 to vector<1x128xf32>
    %214 = arith.addf %213, %212 : vector<1x128xf32>
    %215 = arith.divf %213, %214 : vector<1x128xf32>
    %216 = arith.mulf %210, %215 : vector<1x128xf32>
    %217 = arith.truncf %216 : vector<1x128xf32> to vector<1x128xbf16>
    %c0_60 = arith.constant 0 : index
    %c0_61 = arith.constant 0 : index
    %218 = vector.load %arg10[%c0_60, %c0_61] : memref<128x128xbf16, #tpu.memory_space<vmem>>, vector<128x128xbf16>
    %cst_62 = arith.constant dense<0.000000e+00> : vector<1x128xf32>
    %219 = tpu.matmul %217, %218, %cst_62 {dimension_numbers = #tpu.dot_dimension_numbers<[1], [0], [0], [1], [0, 0, 1, 1], [], []>} : vector<1x128xbf16>, vector<128x128xbf16>, vector<1x128xf32> -> vector<1x128xf32>
    %c0_63 = arith.constant 0 : index
    %c0_64 = arith.constant 0 : index
    %220 = vector.load %arg11[%c0_63, %c0_64] : memref<1x128xf32, #tpu.memory_space<vmem>>, vector<1x128xf32>
    %221 = arith.addf %219, %220 : vector<1x128xf32>
    %222 = arith.negf %221 : vector<1x128xf32>
    %223 = math.exp %222 : vector<1x128xf32>
    %cst_65 = arith.constant 1.000000e+00 : f32
    %224 = vector.broadcast %cst_65 : f32 to vector<1x128xf32>
    %225 = arith.addf %224, %223 : vector<1x128xf32>
    %226 = arith.divf %224, %225 : vector<1x128xf32>
    %227 = tpu.iota {dimensions = array<i32: 1>} : vector<1x128xi32>
    %c64_i32 = arith.constant 64 : i32
    %228 = vector.broadcast %c64_i32 : i32 to vector<1x128xi32>
    %229 = arith.cmpi slt, %227, %228 : vector<1x128xi32>
    %cst_66 = arith.constant 0.000000e+00 : f32
    %230 = vector.broadcast %cst_66 : f32 to vector<1x128xf32>
    %231 = arith.select %229, %226, %230 : vector<1x128xi1>, vector<1x128xf32>
    %c0_67 = arith.constant 0 : index
    %c0_68 = arith.constant 0 : index
    %232 = vector.load %arg17[%c0_67, %c0_68] : memref<256x128xf32, #tpu.memory_space<vmem>>, vector<128x128xf32>
    %233 = vector.broadcast %231 : vector<1x128xf32> to vector<128x128xf32>
    %234 = arith.mulf %232, %233 : vector<128x128xf32>
    %235 = arith.truncf %234 : vector<128x128xf32> to vector<128x128xbf16>
    %c0_69 = arith.constant 0 : index
    %c0_70 = arith.constant 0 : index
    %236 = vector.load %arg12[%c0_69, %c0_70] : memref<128x128xbf16, #tpu.memory_space<vmem>>, vector<128x128xbf16>
    %cst_71 = arith.constant dense<0.000000e+00> : vector<128x128xf32>
    %237 = tpu.matmul %235, %236, %cst_71 {dimension_numbers = #tpu.dot_dimension_numbers<[1], [0], [0], [1], [0, 0, 1, 1], [], []>} : vector<128x128xbf16>, vector<128x128xbf16>, vector<128x128xf32> -> vector<128x128xf32>
    %c0_72 = arith.constant 0 : index
    %c0_73 = arith.constant 0 : index
    %238 = vector.load %arg13[%c0_72, %c0_73] : memref<1x128xf32, #tpu.memory_space<vmem>>, vector<1x128xf32>
    %239 = vector.broadcast %238 : vector<1x128xf32> to vector<128x128xf32>
    %240 = arith.mulf %237, %239 : vector<128x128xf32>
    %c0_74 = arith.constant 0 : index
    %c0_75 = arith.constant 0 : index
    %241 = vector.load %arg14[%c0_74, %c0_75] : memref<1x128xf32, #tpu.memory_space<vmem>>, vector<1x128xf32>
    %242 = vector.broadcast %241 : vector<1x128xf32> to vector<128x128xf32>
    %243 = arith.addf %240, %242 : vector<128x128xf32>
    %c0_76 = arith.constant 0 : index
    %c0_77 = arith.constant 0 : index
    %c0_78 = arith.constant 0 : index
    %244 = vector.load %arg1[%c0_76, %c0_77, %c0_78] : memref<1x256x128xbf16, #tpu.memory_space<vmem>>, vector<1x128x128xbf16>
    %245 = vector.shape_cast %244 : vector<1x128x128xbf16> to vector<128x128xbf16>
    %246 = arith.extf %245 : vector<128x128xbf16> to vector<128x128xf32>
    %247 = arith.addf %243, %246 : vector<128x128xf32>
    %248 = arith.truncf %247 : vector<128x128xf32> to vector<128x128xbf16>
    %c0_79 = arith.constant 0 : index
    %c0_80 = arith.constant 0 : index
    %c0_81 = arith.constant 0 : index
    %249 = vector.load %arg15[%c0_79, %c0_80, %c0_81] : memref<1x256x128xbf16, #tpu.memory_space<vmem>>, vector<1x128x128xbf16>
    %250 = vector.shape_cast %249 : vector<1x128x128xbf16> to vector<128x128xbf16>
    %251 = vector.shape_cast %248 : vector<128x128xbf16> to vector<1x128x128xbf16>
    tpu.vector_store %arg15[%c0_79, %c0_80, %c0_81], %251 {strides = array<i32>} : memref<1x256x128xbf16, #tpu.memory_space<vmem>>, vector<1x128x128xbf16>,
    %c128_82 = arith.constant 128 : index
    %c0_83 = arith.constant 0 : index
    %252 = vector.load %arg17[%c128_82, %c0_83] : memref<256x128xf32, #tpu.memory_space<vmem>>, vector<128x128xf32>
    %253 = vector.broadcast %231 : vector<1x128xf32> to vector<128x128xf32>
    %254 = arith.mulf %252, %253 : vector<128x128xf32>
    %255 = arith.truncf %254 : vector<128x128xf32> to vector<128x128xbf16>
    %c0_84 = arith.constant 0 : index
    %c0_85 = arith.constant 0 : index
    %256 = vector.load %arg12[%c0_84, %c0_85] : memref<128x128xbf16, #tpu.memory_space<vmem>>, vector<128x128xbf16>
    %cst_86 = arith.constant dense<0.000000e+00> : vector<128x128xf32>
    %257 = tpu.matmul %255, %256, %cst_86 {dimension_numbers = #tpu.dot_dimension_numbers<[1], [0], [0], [1], [0, 0, 1, 1], [], []>} : vector<128x128xbf16>, vector<128x128xbf16>, vector<128x128xf32> -> vector<128x128xf32>
    %c0_87 = arith.constant 0 : index
    %c0_88 = arith.constant 0 : index
    %258 = vector.load %arg13[%c0_87, %c0_88] : memref<1x128xf32, #tpu.memory_space<vmem>>, vector<1x128xf32>
    %259 = vector.broadcast %258 : vector<1x128xf32> to vector<128x128xf32>
    %260 = arith.mulf %257, %259 : vector<128x128xf32>
    %c0_89 = arith.constant 0 : index
    %c0_90 = arith.constant 0 : index
    %261 = vector.load %arg14[%c0_89, %c0_90] : memref<1x128xf32, #tpu.memory_space<vmem>>, vector<1x128xf32>
    %262 = vector.broadcast %261 : vector<1x128xf32> to vector<128x128xf32>
    %263 = arith.addf %260, %262 : vector<128x128xf32>
    %c0_91 = arith.constant 0 : index
    %c128_92 = arith.constant 128 : index
    %c0_93 = arith.constant 0 : index
    %264 = vector.load %arg1[%c0_91, %c128_92, %c0_93] : memref<1x256x128xbf16, #tpu.memory_space<vmem>>, vector<1x128x128xbf16>
    %265 = vector.shape_cast %264 : vector<1x128x128xbf16> to vector<128x128xbf16>
    %266 = arith.extf %265 : vector<128x128xbf16> to vector<128x128xf32>
    %267 = arith.addf %263, %266 : vector<128x128xf32>
    %268 = arith.truncf %267 : vector<128x128xf32> to vector<128x128xbf16>
    %c0_94 = arith.constant 0 : index
    %c128_95 = arith.constant 128 : index
    %c0_96 = arith.constant 0 : index
    %269 = vector.load %arg15[%c0_94, %c128_95, %c0_96] : memref<1x256x128xbf16, #tpu.memory_space<vmem>>, vector<1x128x128xbf16>
    %270 = vector.shape_cast %269 : vector<1x128x128xbf16> to vector<128x128xbf16>
    %271 = vector.shape_cast %268 : vector<128x128xbf16> to vector<1x128x128xbf16>
    tpu.vector_store %arg15[%c0_94, %c128_95, %c0_96], %271 {strides = array<i32>} : memref<1x256x128xbf16, #tpu.memory_space<vmem>>, vector<1x128x128xbf16>,
    return
  }
  func.func @transform_0(%arg0: i32) -> (i32, i32, i32) {
    %c0_i32 = arith.constant 0 : i32
    %c0_i32_0 = arith.constant 0 : i32
    %c0_i32_1 = arith.constant 0 : i32
    return %arg0, %c0_i32, %c0_i32_0 : i32, i32, i32
  }
  func.func @transform_1(%arg0: i32) -> (i32, i32) {
    %c0_i32 = arith.constant 0 : i32
    %c0_i32_0 = arith.constant 0 : i32
    %c0_i32_1 = arith.constant 0 : i32
    return %c0_i32, %c0_i32_0 : i32, i32
  }
  func.func @transform_2(%arg0: i32) -> (i32, i32) {
    %c0_i32 = arith.constant 0 : i32
    %c0_i32_0 = arith.constant 0 : i32
    %c0_i32_1 = arith.constant 0 : i32
    return %c0_i32, %c0_i32_0 : i32, i32
  }
  func.func @transform_3(%arg0: i32) -> (i32, i32) {
    %c0_i32 = arith.constant 0 : i32
    %c0_i32_0 = arith.constant 0 : i32
    %c0_i32_1 = arith.constant 0 : i32
    return %c0_i32, %c0_i32_0 : i32, i32
  }
  func.func @transform_4(%arg0: i32) -> (i32, i32) {
    %c0_i32 = arith.constant 0 : i32
    %c0_i32_0 = arith.constant 0 : i32
    %c0_i32_1 = arith.constant 0 : i32
    return %c0_i32, %c0_i32_0 : i32, i32
  }
  func.func @transform_5(%arg0: i32) -> (i32, i32) {
    %c0_i32 = arith.constant 0 : i32
    %c0_i32_0 = arith.constant 0 : i32
    %c0_i32_1 = arith.constant 0 : i32
    return %c0_i32, %c0_i32_0 : i32, i32
  }
  func.func @transform_6(%arg0: i32) -> (i32, i32) {
    %c0_i32 = arith.constant 0 : i32
    %c0_i32_0 = arith.constant 0 : i32
    %c0_i32_1 = arith.constant 0 : i32
    return %c0_i32, %c0_i32_0 : i32, i32
  }
  func.func @transform_7(%arg0: i32) -> (i32, i32) {
    %c0_i32 = arith.constant 0 : i32
    %c0_i32_0 = arith.constant 0 : i32
    %c0_i32_1 = arith.constant 0 : i32
    return %c0_i32, %c0_i32_0 : i32, i32
  }
  func.func @transform_8(%arg0: i32) -> (i32, i32) {
    %c0_i32 = arith.constant 0 : i32
    %c0_i32_0 = arith.constant 0 : i32
    %c0_i32_1 = arith.constant 0 : i32
    return %c0_i32, %c0_i32_0 : i32, i32
  }
  func.func @transform_9(%arg0: i32) -> (i32, i32) {
    %c0_i32 = arith.constant 0 : i32
    %c0_i32_0 = arith.constant 0 : i32
    %c0_i32_1 = arith.constant 0 : i32
    return %c0_i32, %c0_i32_0 : i32, i32
  }
  func.func @transform_10(%arg0: i32) -> (i32, i32) {
    %c0_i32 = arith.constant 0 : i32
    %c0_i32_0 = arith.constant 0 : i32
    %c0_i32_1 = arith.constant 0 : i32
    return %c0_i32, %c0_i32_0 : i32, i32
  }
  func.func @transform_11(%arg0: i32) -> (i32, i32) {
    %c0_i32 = arith.constant 0 : i32
    %c0_i32_0 = arith.constant 0 : i32
    %c0_i32_1 = arith.constant 0 : i32
    return %c0_i32, %c0_i32_0 : i32, i32
  }
  func.func @transform_12(%arg0: i32) -> (i32, i32) {
    %c0_i32 = arith.constant 0 : i32
    %c0_i32_0 = arith.constant 0 : i32
    %c0_i32_1 = arith.constant 0 : i32
    return %c0_i32, %c0_i32_0 : i32, i32
  }
  func.func @transform_13(%arg0: i32) -> (i32, i32) {
    %c0_i32 = arith.constant 0 : i32
    %c0_i32_0 = arith.constant 0 : i32
    %c0_i32_1 = arith.constant 0 : i32
    return %c0_i32, %c0_i32_0 : i32, i32
  }
  func.func @transform_14(%arg0: i32) -> (i32, i32, i32) {
    %c0_i32 = arith.constant 0 : i32
    %c0_i32_0 = arith.constant 0 : i32
    %c0_i32_1 = arith.constant 0 : i32
    return %arg0, %c0_i32, %c0_i32_0 : i32, i32, i32
  }
}

module attributes {stable_mosaic.version = 11 : i64} {
  func.func @_head_pool_kernel(%arg0: i32, %arg1: i32, %arg2: memref<2x64x128xbf16, #tpu.memory_space<vmem>>, %arg3: memref<128x256xbf16, #tpu.memory_space<vmem>>, %arg4: memref<1x256xf32, #tpu.memory_space<vmem>>, %arg5: memref<1x256xf32, #tpu.memory_space<vmem>>, %arg6: memref<2x256xf32, #tpu.memory_space<vmem>>, %arg7: memref<2x256xf32, #tpu.memory_space<vmem>>) attributes {dimension_semantics = [#tpu.dimension_semantics<parallel>, #tpu.dimension_semantics<arbitrary>], iteration_bounds = array<i64: 7, 4>, scalar_prefetch = 0 : i64, scratch_operands = 1 : i64, tpu.core_type = #tpu.core_type<tc>, window_params = [{transform_indices = @transform_0, window_bounds = array<i64: 2, 64, 128>}, {transform_indices = @transform_1, window_bounds = array<i64: 128, 256>}, {transform_indices = @transform_2, window_bounds = array<i64: 1, 256>}, {transform_indices = @transform_3, window_bounds = array<i64: 1, 256>}, {transform_indices = @transform_4, window_bounds = array<i64: 2, 256>}]} {
    %c0_i32 = arith.constant 0 : i32
    %0 = arith.cmpi eq, %arg1, %c0_i32 : i32
    %1 = arith.extui %0 : i1 to i32
    %c0_i32_0 = arith.constant 0 : i32
    %2 = arith.cmpi ne, %1, %c0_i32_0 : i32
    scf.if %2 {
      %cst_16 = arith.constant 0.000000e+00 : f32
      %27 = vector.broadcast %cst_16 : f32 to vector<2x256xf32>
      %c0_17 = arith.constant 0 : index
      %c0_18 = arith.constant 0 : index
      %28 = vector.load %arg7[%c0_17, %c0_18] : memref<2x256xf32, #tpu.memory_space<vmem>>, vector<2x256xf32>
      tpu.vector_store %arg7[%c0_17, %c0_18], %27 {strides = array<i32>} : memref<2x256xf32, #tpu.memory_space<vmem>>, vector<2x256xf32>,
    } else {
    }
    %c0 = arith.constant 0 : index
    %c0_1 = arith.constant 0 : index
    %c0_2 = arith.constant 0 : index
    %3 = vector.load %arg2[%c0, %c0_1, %c0_2] : memref<2x64x128xbf16, #tpu.memory_space<vmem>>, vector<2x64x128xbf16>
    %4 = vector.shape_cast %3 : vector<2x64x128xbf16> to vector<128x128xbf16>
    %c0_3 = arith.constant 0 : index
    %c0_4 = arith.constant 0 : index
    %5 = vector.load %arg3[%c0_3, %c0_4] : memref<128x256xbf16, #tpu.memory_space<vmem>>, vector<128x256xbf16>
    %cst = arith.constant dense<0.000000e+00> : vector<128x256xf32>
    %6 = tpu.matmul %4, %5, %cst {dimension_numbers = #tpu.dot_dimension_numbers<[1], [0], [0], [1], [0, 0, 1, 1], [], []>} : vector<128x128xbf16>, vector<128x256xbf16>, vector<128x256xf32> -> vector<128x256xf32>
    %c0_5 = arith.constant 0 : index
    %c0_6 = arith.constant 0 : index
    %7 = vector.load %arg4[%c0_5, %c0_6] : memref<1x256xf32, #tpu.memory_space<vmem>>, vector<1x256xf32>
    %8 = vector.broadcast %7 : vector<1x256xf32> to vector<128x256xf32>
    %9 = arith.mulf %6, %8 : vector<128x256xf32>
    %c0_7 = arith.constant 0 : index
    %c0_8 = arith.constant 0 : index
    %10 = vector.load %arg5[%c0_7, %c0_8] : memref<1x256xf32, #tpu.memory_space<vmem>>, vector<1x256xf32>
    %11 = vector.broadcast %10 : vector<1x256xf32> to vector<128x256xf32>
    %12 = arith.addf %9, %11 : vector<128x256xf32>
    %13 = arith.negf %12 : vector<128x256xf32>
    %14 = math.exp %13 : vector<128x256xf32>
    %cst_9 = arith.constant 1.000000e+00 : f32
    %15 = vector.broadcast %cst_9 : f32 to vector<128x256xf32>
    %16 = arith.addf %15, %14 : vector<128x256xf32>
    %17 = arith.divf %15, %16 : vector<128x256xf32>
    %18 = arith.mulf %12, %17 : vector<128x256xf32>
    %c0_10 = arith.constant 0 : index
    %c0_11 = arith.constant 0 : index
    %19 = vector.load %arg7[%c0_10, %c0_11] : memref<2x256xf32, #tpu.memory_space<vmem>>, vector<2x256xf32>
    %20 = vector.shape_cast %18 : vector<128x256xf32> to vector<2x64x256xf32>
    %cst_12 = arith.constant dense<0.000000e+00> : vector<2x256xf32>
    %21 = vector.multi_reduction <add>, %20, %cst_12 [1] : vector<2x64x256xf32> to vector<2x256xf32>
    %22 = arith.addf %19, %21 : vector<2x256xf32>
    %c0_13 = arith.constant 0 : index
    %c0_14 = arith.constant 0 : index
    %23 = vector.load %arg7[%c0_13, %c0_14] : memref<2x256xf32, #tpu.memory_space<vmem>>, vector<2x256xf32>
    tpu.vector_store %arg7[%c0_13, %c0_14], %22 {strides = array<i32>} : memref<2x256xf32, #tpu.memory_space<vmem>>, vector<2x256xf32>,
    %c3_i32 = arith.constant 3 : i32
    %24 = arith.cmpi eq, %arg1, %c3_i32 : i32
    %25 = arith.extui %24 : i1 to i32
    %c0_i32_15 = arith.constant 0 : i32
    %26 = arith.cmpi ne, %25, %c0_i32_15 : i32
    scf.if %26 {
      %c0_16 = arith.constant 0 : index
      %c0_17 = arith.constant 0 : index
      %27 = vector.load %arg7[%c0_16, %c0_17] : memref<2x256xf32, #tpu.memory_space<vmem>>, vector<2x256xf32>
      %cst_18 = arith.constant 3.906250e-03 : f32
      %28 = vector.broadcast %cst_18 : f32 to vector<2x256xf32>
      %29 = arith.mulf %27, %28 : vector<2x256xf32>
      %c0_19 = arith.constant 0 : index
      %c0_20 = arith.constant 0 : index
      %30 = vector.load %arg6[%c0_19, %c0_20] : memref<2x256xf32, #tpu.memory_space<vmem>>, vector<2x256xf32>
      tpu.vector_store %arg6[%c0_19, %c0_20], %29 {strides = array<i32>} : memref<2x256xf32, #tpu.memory_space<vmem>>, vector<2x256xf32>,
    } else {
    }
    return
  }
  func.func @transform_0(%arg0: i32, %arg1: i32) -> (i32, i32, i32) {
    %c0_i32 = arith.constant 0 : i32
    %c0_i32_0 = arith.constant 0 : i32
    %c0_i32_1 = arith.constant 0 : i32
    return %c0_i32, %arg1, %c0_i32_0 : i32, i32, i32
  }
  func.func @transform_1(%arg0: i32, %arg1: i32) -> (i32, i32) {
    %c0_i32 = arith.constant 0 : i32
    %c0_i32_0 = arith.constant 0 : i32
    return %c0_i32, %arg0 : i32, i32
  }
  func.func @transform_2(%arg0: i32, %arg1: i32) -> (i32, i32) {
    %c0_i32 = arith.constant 0 : i32
    %c0_i32_0 = arith.constant 0 : i32
    return %c0_i32, %arg0 : i32, i32
  }
  func.func @transform_3(%arg0: i32, %arg1: i32) -> (i32, i32) {
    %c0_i32 = arith.constant 0 : i32
    %c0_i32_0 = arith.constant 0 : i32
    return %c0_i32, %arg0 : i32, i32
  }
  func.func @transform_4(%arg0: i32, %arg1: i32) -> (i32, i32) {
    %c0_i32 = arith.constant 0 : i32
    %c0_i32_0 = arith.constant 0 : i32
    return %c0_i32, %arg0 : i32, i32
  }
}

module attributes {stable_mosaic.version = 11 : i64} {
  func.func @_fc_relu_kernel(%arg0: i32, %arg1: memref<2x1792xf32, #tpu.memory_space<vmem>>, %arg2: memref<1792x128xbf16, #tpu.memory_space<vmem>>, %arg3: memref<1x128xf32, #tpu.memory_space<vmem>>, %arg4: memref<2x128xf32, #tpu.memory_space<vmem>>) attributes {dimension_semantics = [#tpu.dimension_semantics<arbitrary>], iteration_bounds = array<i64: 1>, scalar_prefetch = 0 : i64, scratch_operands = 0 : i64, tpu.core_type = #tpu.core_type<tc>, window_params = [{pipeline_mode = #tpu.pipeline_mode<synchronous>, transform_indices = @transform_0, window_bounds = array<i64: 2, 1792>}, {pipeline_mode = #tpu.pipeline_mode<synchronous>, transform_indices = @transform_1, window_bounds = array<i64: 1792, 128>}, {pipeline_mode = #tpu.pipeline_mode<synchronous>, transform_indices = @transform_2, window_bounds = array<i64: 1, 128>}, {pipeline_mode = #tpu.pipeline_mode<synchronous>, transform_indices = @transform_3, window_bounds = array<i64: 2, 128>}]} {
    %c0 = arith.constant 0 : index
    %c0_0 = arith.constant 0 : index
    %0 = vector.load %arg1[%c0, %c0_0] : memref<2x1792xf32, #tpu.memory_space<vmem>>, vector<2x1792xf32>
    %1 = arith.truncf %0 : vector<2x1792xf32> to vector<2x1792xbf16>
    %c0_1 = arith.constant 0 : index
    %c0_2 = arith.constant 0 : index
    %2 = vector.load %arg2[%c0_1, %c0_2] : memref<1792x128xbf16, #tpu.memory_space<vmem>>, vector<1792x128xbf16>
    %cst = arith.constant dense<0.000000e+00> : vector<2x128xf32>
    %3 = tpu.matmul %1, %2, %cst {dimension_numbers = #tpu.dot_dimension_numbers<[1], [0], [0], [1], [0, 0, 1, 1], [], []>} : vector<2x1792xbf16>, vector<1792x128xbf16>, vector<2x128xf32> -> vector<2x128xf32>
    %c0_3 = arith.constant 0 : index
    %c0_4 = arith.constant 0 : index
    %4 = vector.load %arg3[%c0_3, %c0_4] : memref<1x128xf32, #tpu.memory_space<vmem>>, vector<1x128xf32>
    %5 = vector.broadcast %4 : vector<1x128xf32> to vector<2x128xf32>
    %6 = arith.addf %3, %5 : vector<2x128xf32>
    %cst_5 = arith.constant 0.000000e+00 : f32
    %7 = vector.broadcast %cst_5 : f32 to vector<2x128xf32>
    %8 = arith.maximumf %6, %7 : vector<2x128xf32>
    %c0_6 = arith.constant 0 : index
    %c0_7 = arith.constant 0 : index
    %9 = vector.load %arg4[%c0_6, %c0_7] : memref<2x128xf32, #tpu.memory_space<vmem>>, vector<2x128xf32>
    tpu.vector_store %arg4[%c0_6, %c0_7], %8 {strides = array<i32>} : memref<2x128xf32, #tpu.memory_space<vmem>>, vector<2x128xf32>,
    return
  }
  func.func @transform_0(%arg0: i32) -> (i32, i32) {
    %c0_i32 = arith.constant 0 : i32
    %c0_i32_0 = arith.constant 0 : i32
    %c0_i32_1 = arith.constant 0 : i32
    return %c0_i32, %c0_i32_0 : i32, i32
  }
  func.func @transform_1(%arg0: i32) -> (i32, i32) {
    %c0_i32 = arith.constant 0 : i32
    %c0_i32_0 = arith.constant 0 : i32
    %c0_i32_1 = arith.constant 0 : i32
    return %c0_i32, %c0_i32_0 : i32, i32
  }
  func.func @transform_2(%arg0: i32) -> (i32, i32) {
    %c0_i32 = arith.constant 0 : i32
    %c0_i32_0 = arith.constant 0 : i32
    %c0_i32_1 = arith.constant 0 : i32
    return %c0_i32, %c0_i32_0 : i32, i32
  }
  func.func @transform_3(%arg0: i32) -> (i32, i32) {
    %c0_i32 = arith.constant 0 : i32
    %c0_i32_0 = arith.constant 0 : i32
    %c0_i32_1 = arith.constant 0 : i32
    return %c0_i32, %c0_i32_0 : i32, i32
  }
}

</mosaic_0001>

<llo_original>
// kernel: effnet_forward.4
$region0: #{effnet_forward.4}
  #allocation0 [shape = 'u32[]', space=smem, size = 0x4, offset = 0x4, fixed_abs, tag = 'smem constant byte address 0x4 - core index']
  #allocation1 [shape = 'u32[144,128]{1,0:T(1,128)}', space=vmem, size = 0x12000, scoped, tag = 'internal scratch']
  %s0 = inlined_call_operand.vmem [shape: bf16[512,32], index: 0, kind: input, shape index: {}]
  %s1 = inlined_call_operand.vmem [shape: bf16[32,128], index: 1, kind: input, shape index: {}]
  %s2 = inlined_call_operand.vmem [shape: f32[1,128], index: 2, kind: input, shape index: {}]
  %s3 = inlined_call_operand.vmem [shape: f32[1,128], index: 3, kind: input, shape index: {}]
  %s4 = inlined_call_operand.vmem [shape: bf16[512,128], index: 4, kind: output, shape index: {}]
  %s5 = sld [smem:[#allocation0]]
  $region26: #{effnet_forward.4} parent=0
    _
  %s7 = ssub.s32 1, %s5
  %s8 = scalar_select 0, %s7, %s5
  // Predicated region
  $region2: #{effnet_forward.4} parent=0 // pred_check
    _
  $region3: #{effnet_forward.4} parent=0 // pred_check_branch
    %10 = sbr.rel (0) target = $region5
  $region4: #{effnet_forward.4} parent=0 // pred_region
    _
  $region5: #{effnet_forward.4} parent=0 // pred_fallthru
    _
  // Predicated region
  $region6: #{effnet_forward.4} parent=0 // pred_check
    _
  $region7: #{effnet_forward.4} parent=0 // pred_check_branch
    %12 = sbr.rel (0) target = $region9
  $region8: #{effnet_forward.4} parent=0 // pred_region
    _
  $region9: #{effnet_forward.4} parent=0 // pred_fallthru
    _
  // Predicated region
  $region10: #{effnet_forward.4} parent=0 // pred_check
    _
  $region11: #{effnet_forward.4} parent=0 // pred_check_branch
    %14 = sbr.rel (0) target = $region13
  $region12: #{effnet_forward.4} parent=0 // pred_region
    _
  $region13: #{effnet_forward.4} parent=0 // pred_fallthru
    _
  // Predicated region
  $region14: #{effnet_forward.4} parent=0 // pred_check
    _
  $region15: #{effnet_forward.4} parent=0 // pred_check_branch
    %16 = sbr.rel (0) target = $region17
  $region16: #{effnet_forward.4} parent=0 // pred_region
    _
  $region17: #{effnet_forward.4} parent=0 // pred_fallthru
    _
  %v18 = vld [vmem:[%s0] sm:$0xf]
  %v19 = vld [vmem:[%s0 + $0x4] sm:$0xf]
  %v20 = vld [vmem:[%s0 + $0x8] sm:$0xf]
  %v21 = vld [vmem:[%s0 + $0xc] sm:$0xf]
  %v22 = vld [vmem:[%s0 + $0x10] sm:$0xf]
  %v23 = vld [vmem:[%s0 + $0x14] sm:$0xf]
  %v24 = vld [vmem:[%s0 + $0x18] sm:$0xf]
  %v25 = vld [vmem:[%s0 + $0x1c] sm:$0xf]
  %v26 = vld [vmem:[%s0 + $0x20] sm:$0xf]
  %v27 = vld [vmem:[%s0 + $0x24] sm:$0xf]
  %v28 = vld [vmem:[%s0 + $0x28] sm:$0xf]
  %v29 = vld [vmem:[%s0 + $0x2c] sm:$0xf]
  %v30 = vld [vmem:[%s0 + $0x30] sm:$0xf]
  %v31 = vld [vmem:[%s0 + $0x34] sm:$0xf]
  %v32 = vld [vmem:[%s0 + $0x38] sm:$0xf]
  %v33 = vld [vmem:[%s0 + $0x3c] sm:$0xf]
  %v34 = vld [vmem:[%s0 + $0x40] sm:$0xf]
  %v35 = vld [vmem:[%s0 + $0x44] sm:$0xf]
  %v36 = vld [vmem:[%s0 + $0x48] sm:$0xf]
  %v37 = vld [vmem:[%s0 + $0x4c] sm:$0xf]
  %v38 = vld [vmem:[%s0 + $0x50] sm:$0xf]
  %v39 = vld [vmem:[%s0 + $0x54] sm:$0xf]
  %v40 = vld [vmem:[%s0 + $0x58] sm:$0xf]
  %v41 = vld [vmem:[%s0 + $0x5c] sm:$0xf]
  %v42 = vld [vmem:[%s0 + $0x60] sm:$0xf]
  %v43 = vld [vmem:[%s0 + $0x64] sm:$0xf]
  %v44 = vld [vmem:[%s0 + $0x68] sm:$0xf]
  %v45 = vld [vmem:[%s0 + $0x6c] sm:$0xf]
  %v46 = vld [vmem:[%s0 + $0x70] sm:$0xf]
  %v47 = vld [vmem:[%s0 + $0x74] sm:$0xf]
  %v48 = vld [vmem:[%s0 + $0x78] sm:$0xf]
  %v49 = vld [vmem:[%s0 + $0x7c] sm:$0xf]
  %v50 = vld [vmem:[%s0 + $0x80] sm:$0xf]
  %v51 = vld [vmem:[%s0 + $0x84] sm:$0xf]
  %v52 = vld [vmem:[%s0 + $0x88] sm:$0xf]
  %v53 = vld [vmem:[%s0 + $0x8c] sm:$0xf]
  %v54 = vld [vmem:[%s0 + $0x90] sm:$0xf]
  %v55 = vld [vmem:[%s0 + $0x94] sm:$0xf]
  %v56 = vld [vmem:[%s0 + $0x98] sm:$0xf]
  %v57 = vld [vmem:[%s0 + $0x9c] sm:$0xf]
  %v58 = vld [vmem:[%s0 + $0xa0] sm:$0xf]
  %v59 = vld [vmem:[%s0 + $0xa4] sm:$0xf]
  %v60 = vld [vmem:[%s0 + $0xa8] sm:$0xf]
  %v61 = vld [vmem:[%s0 + $0xac] sm:$0xf]
  %v62 = vld [vmem:[%s0 + $0xb0] sm:$0xf]
  %v63 = vld [vmem:[%s0 + $0xb4] sm:$0xf]
  %v64 = vld [vmem:[%s0 + $0xb8] sm:$0xf]
  %v65 = vld [vmem:[%s0 + $0xbc] sm:$0xf]
  %v66 = vld [vmem:[%s0 + $0xc0] sm:$0xf]
  %v67 = vld [vmem:[%s0 + $0xc4] sm:$0xf]
  %v68 = vld [vmem:[%s0 + $0xc8] sm:$0xf]
  %v69 = vld [vmem:[%s0 + $0xcc] sm:$0xf]
  %v70 = vld [vmem:[%s0 + $0xd0] sm:$0xf]
  %v71 = vld [vmem:[%s0 + $0xd4] sm:$0xf]
  %v72 = vld [vmem:[%s0 + $0xd8] sm:$0xf]
  %v73 = vld [vmem:[%s0 + $0xdc] sm:$0xf]
  %v74 = vld [vmem:[%s0 + $0xe0] sm:$0xf]
  %v75 = vld [vmem:[%s0 + $0xe4] sm:$0xf]
  %v76 = vld [vmem:[%s0 + $0xe8] sm:$0xf]
  %v77 = vld [vmem:[%s0 + $0xec] sm:$0xf]
  %v78 = vld [vmem:[%s0 + $0xf0] sm:$0xf]
  %v79 = vld [vmem:[%s0 + $0xf4] sm:$0xf]
  %v80 = vld [vmem:[%s0 + $0xf8] sm:$0xf]
  %v81 = vld [vmem:[%s0 + $0xfc] sm:$0xf]
  %v82 = vld [vmem:[%s1] sm:$0xf]
  %v83 = vld [vmem:[%s1 + $0x4] sm:$0xf]
  %v84 = vld [vmem:[%s1 + $0x8] sm:$0xf]
  %v85 = vld [vmem:[%s1 + $0xc] sm:$0xf]
  %v150 = vunpack.c.l.b16 %v18
  %v151 = vunpack.c.l.b16 %v19
  %v152 = vunpack.c.l.b16 %v20
  %v153 = vunpack.c.l.b16 %v21
  %v154 = vunpack.c.l.b16 %v22
  %v155 = vunpack.c.l.b16 %v23
  %v156 = vunpack.c.l.b16 %v24
  %v157 = vunpack.c.l.b16 %v25
  %v158 = vunpack.c.l.b16 %v26
  %v159 = vunpack.c.l.b16 %v27
  %v160 = vunpack.c.l.b16 %v28
  %v161 = vunpack.c.l.b16 %v29
  %v162 = vunpack.c.l.b16 %v30
  %v163 = vunpack.c.l.b16 %v31
  %v164 = vunpack.c.l.b16 %v32
  %v165 = vunpack.c.l.b16 %v33
  %v166 = vunpack.c.l.b16 %v34
  %v167 = vunpack.c.l.b16 %v35
  %v168 = vunpack.c.l.b16 %v36
  %v169 = vunpack.c.l.b16 %v37
  %v170 = vunpack.c.l.b16 %v38
  %v171 = vunpack.c.l.b16 %v39
  %v172 = vunpack.c.l.b16 %v40
  %v173 = vunpack.c.l.b16 %v41
  %v174 = vunpack.c.l.b16 %v42
  %v175 = vunpack.c.l.b16 %v43
  %v176 = vunpack.c.l.b16 %v44
  %v177 = vunpack.c.l.b16 %v45
  %v178 = vunpack.c.l.b16 %v46
  %v179 = vunpack.c.l.b16 %v47
  %v180 = vunpack.c.l.b16 %v48
  %v181 = vunpack.c.l.b16 %v49
  %v182 = vunpack.c.l.b16 %v50
  %v183 = vunpack.c.l.b16 %v51
  %v184 = vunpack.c.l.b16 %v52
  %v185 = vunpack.c.l.b16 %v53
  %v186 = vunpack.c.l.b16 %v54
  %v187 = vunpack.c.l.b16 %v55
  %v188 = vunpack.c.l.b16 %v56
  %v189 = vunpack.c.l.b16 %v57
  %v190 = vunpack.c.l.b16 %v58
  %v191 = vunpack.c.l.b16 %v59
  %v192 = vunpack.c.l.b16 %v60
  %v193 = vunpack.c.l.b16 %v61
  %v194 = vunpack.c.l.b16 %v62
  %v195 = vunpack.c.l.b16 %v63
  %v196 = vunpack.c.l.b16 %v64
  %v197 = vunpack.c.l.b16 %v65
  %v198 = vunpack.c.l.b16 %v66
  %v199 = vunpack.c.l.b16 %v67
  %v200 = vunpack.c.l.b16 %v68
  %v201 = vunpack.c.l.b16 %v69
  %v202 = vunpack.c.l.b16 %v70
  %v203 = vunpack.c.l.b16 %v71
  %v204 = vunpack.c.l.b16 %v72
  %v205 = vunpack.c.l.b16 %v73
  %v206 = vunpack.c.l.b16 %v74
  %v207 = vunpack.c.l.b16 %v75
  %v208 = vunpack.c.l.b16 %v76
  %v209 = vunpack.c.l.b16 %v77
  %v210 = vunpack.c.l.b16 %v78
  %v211 = vunpack.c.l.b16 %v79
  %v212 = vunpack.c.l.b16 %v80
  %v213 = vunpack.c.l.b16 %v81
  %v214 = vpack.c.b16 %v151, %v150
  %v215 = vpack.c.b16 %v153, %v152
  %v216 = vpack.c.b16 %v155, %v154
  %v217 = vpack.c.b16 %v157, %v156
  %v218 = vpack.c.b16 %v159, %v158
  %v219 = vpack.c.b16 %v161, %v160
  %v220 = vpack.c.b16 %v163, %v162
  %v221 = vpack.c.b16 %v165, %v164
  %v222 = vpack.c.b16 %v167, %v166
  %v223 = vpack.c.b16 %v169, %v168
  %v224 = vpack.c.b16 %v171, %v170
  %v225 = vpack.c.b16 %v173, %v172
  %v226 = vpack.c.b16 %v175, %v174
  %v227 = vpack.c.b16 %v177, %v176
  %v228 = vpack.c.b16 %v179, %v178
  %v229 = vpack.c.b16 %v181, %v180
  %v230 = vpack.c.b16 %v183, %v182
  %v231 = vpack.c.b16 %v185, %v184
  %v232 = vpack.c.b16 %v187, %v186
  %v233 = vpack.c.b16 %v189, %v188
  %v234 = vpack.c.b16 %v191, %v190
  %v235 = vpack.c.b16 %v193, %v192
  %v236 = vpack.c.b16 %v195, %v194
  %v237 = vpack.c.b16 %v197, %v196
  %v238 = vpack.c.b16 %v199, %v198
  %v239 = vpack.c.b16 %v201, %v200
  %v240 = vpack.c.b16 %v203, %v202
  %v241 = vpack.c.b16 %v205, %v204
  %v242 = vpack.c.b16 %v207, %v206
  %v243 = vpack.c.b16 %v209, %v208
  %v244 = vpack.c.b16 %v211, %v210
  %v245 = vpack.c.b16 %v213, %v212
  %v250 = vunpack.c.l.b16 %v82
  %v251 = vunpack.c.l.b16 %v83
  %v252 = vunpack.c.l.b16 %v84
  %v253 = vunpack.c.l.b16 %v85
  %v254 = vpack.c.b16 %v251, %v250
  %v255 = vpack.c.b16 %v253, %v252
  %vm258 = vcmask 261120
  %v260 = vsel %vm258, %v214, 0
  %v263 = vsel %vm258, %v215, 0
  %v266 = vsel %vm258, %v216, 0
  %v269 = vsel %vm258, %v217, 0
  %v272 = vsel %vm258, %v218, 0
  %v275 = vsel %vm258, %v219, 0
  %v278 = vsel %vm258, %v220, 0
  %v281 = vsel %vm258, %v221, 0
  %v284 = vsel %vm258, %v222, 0
  %v287 = vsel %vm258, %v223, 0
  %v290 = vsel %vm258, %v224, 0
  %v293 = vsel %vm258, %v225, 0
  %v296 = vsel %vm258, %v226, 0
  %v299 = vsel %vm258, %v227, 0
  %v302 = vsel %vm258, %v228, 0
  %v305 = vsel %vm258, %v229, 0
  %v308 = vsel %vm258, %v230, 0
  %v311 = vsel %vm258, %v231, 0
  %v314 = vsel %vm258, %v232, 0
  %v317 = vsel %vm258, %v233, 0
  %v320 = vsel %vm258, %v234, 0
  %v323 = vsel %vm258, %v235, 0
  %v326 = vsel %vm258, %v236, 0
  %v329 = vsel %vm258, %v237, 0
  %v332 = vsel %vm258, %v238, 0
  %v335 = vsel %vm258, %v239, 0
  %v338 = vsel %vm258, %v240, 0
  %v341 = vsel %vm258, %v241, 0
  %v344 = vsel %vm258, %v242, 0
  %v347 = vsel %vm258, %v243, 0
  %v350 = vsel %vm258, %v244, 0
  %v353 = vsel %vm258, %v245, 0
  %355 = vmatprep.subr.bf16.mxu0 0
  %356 = vmatpush1.bf16.msra.mxu0 %v254
  %357 = vmatprep.subr.bf16.mxu0 0
  %358 = vmatpush1.bf16.msra.mxu0 %v255
  %359 = vmatprep.subr.bf16.mxu0 0
  %360 = vmatpush1.bf16.msra.mxu0 0
  %361 = vmatprep.subr.bf16.mxu0 0
  %362 = vmatpush1.bf16.msra.mxu0 0
  %363 = vmatprep.subr.bf16.mxu0 0
  %364 = vmatpush1.bf16.msra.mxu0 0
  %365 = vmatprep.subr.bf16.mxu0 0
  %366 = vmatpush1.bf16.msra.mxu0 0
  %367 = vmatprep.subr.bf16.mxu0 0
  %368 = vmatpush1.bf16.msra.mxu0 0
  %369 = vmatprep.subr.bf16.mxu0 0
  %370 = vmatpush1.bf16.msra.mxu0 0
  %371 = vmatprep.subr.bf16.mxu0 0
  %372 = vmatpush1.bf16.msra.mxu0 0
  %373 = vmatprep.subr.bf16.mxu0 0
  %374 = vmatpush1.bf16.msra.mxu0 0
  %375 = vmatprep.subr.bf16.mxu0 0
  %376 = vmatpush1.bf16.msra.mxu0 0
  %377 = vmatprep.subr.bf16.mxu0 0
  %378 = vmatpush1.bf16.msra.mxu0 0
  %379 = vmatprep.subr.bf16.mxu0 0
  %380 = vmatpush1.bf16.msra.mxu0 0
  %381 = vmatprep.subr.bf16.mxu0 0
  %382 = vmatpush1.bf16.msra.mxu0 0
  %383 = vmatprep.subr.bf16.mxu0 0
  %384 = vmatpush1.bf16.msra.mxu0 0
  %385 = vmatprep.subr.bf16.mxu0 0
  %386 = vmatpush1.bf16.msra.mxu0 0
  %387 = vmatprep.mubr.bf16.mxu0 0
  %388 = vmatmul.mubr.bf16.gmra.mrb[0].mxu0 %v260
  %v389 = vpop.f32.mrb[0].mxu0
  %v390 = vadd.f32 0.0, %v389
  %v391 = vpop.f32.mrb[0].mxu0
  %v392 = vpop.f32.mrb[0].mxu0
  %v393 = vadd.f32 0.0, %v392
  %v394 = vpop.f32.mrb[0].mxu0
  %395 = vmatprep.mubr.bf16.mxu0 0
  %396 = vmatmul.mubr.bf16.gmra.mrb[0].mxu0 %v263
  %v397 = vpop.f32.mrb[0].mxu0
  %v398 = vadd.f32 0.0, %v397
  %v399 = vpop.f32.mrb[0].mxu0
  %v400 = vpop.f32.mrb[0].mxu0
  %v401 = vadd.f32 0.0, %v400
  %v402 = vpop.f32.mrb[0].mxu0
  %403 = vmatprep.mubr.bf16.mxu0 0
  %404 = vmatmul.mubr.bf16.gmra.mrb[0].mxu0 %v266
  %v405 = vpop.f32.mrb[0].mxu0
  %v406 = vadd.f32 0.0, %v405
  %v407 = vpop.f32.mrb[0].mxu0
  %v408 = vpop.f32.mrb[0].mxu0
  %v409 = vadd.f32 0.0, %v408
  %v410 = vpop.f32.mrb[0].mxu0
  %411 = vmatprep.mubr.bf16.mxu0 0
  %412 = vmatmul.mubr.bf16.gmra.mrb[0].mxu0 %v269
  %v413 = vpop.f32.mrb[0].mxu0
  %v414 = vadd.f32 0.0, %v413
  %v415 = vpop.f32.mrb[0].mxu0
  %v416 = vpop.f32.mrb[0].mxu0
  %v417 = vadd.f32 0.0, %v416
  %v418 = vpop.f32.mrb[0].mxu0
  %419 = vmatprep.mubr.bf16.mxu0 0
  %420 = vmatmul.mubr.bf16.gmra.mrb[0].mxu0 %v272
  %v421 = vpop.f32.mrb[0].mxu0
  %v422 = vadd.f32 0.0, %v421
  %v423 = vpop.f32.mrb[0].mxu0
  %v424 = vpop.f32.mrb[0].mxu0
  %v425 = vadd.f32 0.0, %v424
  %v426 = vpop.f32.mrb[0].mxu0
  %427 = vmatprep.mubr.bf16.mxu0 0
  %428 = vmatmul.mubr.bf16.gmra.mrb[0].mxu0 %v275
  %v429 = vpop.f32.mrb[0].mxu0
  %v430 = vadd.f32 0.0, %v429
  %v431 = vpop.f32.mrb[0].mxu0
  %v432 = vpop.f32.mrb[0].mxu0
  %v433 = vadd.f32 0.0, %v432
  %v434 = vpop.f32.mrb[0].mxu0
  %435 = vmatprep.mubr.bf16.mxu0 0
  %436 = vmatmul.mubr.bf16.gmra.mrb[0].mxu0 %v278
  %v437 = vpop.f32.mrb[0].mxu0
  %v438 = vadd.f32 0.0, %v437
  %v439 = vpop.f32.mrb[0].mxu0
  %v440 = vpop.f32.mrb[0].mxu0
  %v441 = vadd.f32 0.0, %v440
  %v442 = vpop.f32.mrb[0].mxu0
  %443 = vmatprep.mubr.bf16.mxu0 0
  %444 = vmatmul.mubr.bf16.gmra.mrb[0].mxu0 %v281
  %v445 = vpop.f32.mrb[0].mxu0
  %v446 = vadd.f32 0.0, %v445
  %v447 = vpop.f32.mrb[0].mxu0
  %v448 = vpop.f32.mrb[0].mxu0
  %v449 = vadd.f32 0.0, %v448
  %v450 = vpop.f32.mrb[0].mxu0
  %451 = vmatprep.mubr.bf16.mxu0 0
  %452 = vmatmul.mubr.bf16.gmra.mrb[0].mxu0 %v284
  %v453 = vpop.f32.mrb[0].mxu0
  %v454 = vadd.f32 0.0, %v453
  %v455 = vpop.f32.mrb[0].mxu0
  %v456 = vpop.f32.mrb[0].mxu0
  %v457 = vadd.f32 0.0, %v456
  %v458 = vpop.f32.mrb[0].mxu0
  %459 = vmatprep.mubr.bf16.mxu0 0
  %460 = vmatmul.mubr.bf16.gmra.mrb[0].mxu0 %v287
  %v461 = vpop.f32.mrb[0].mxu0
  %v462 = vadd.f32 0.0, %v461
  %v463 = vpop.f32.mrb[0].mxu0
  %v464 = vpop.f32.mrb[0].mxu0
  %v465 = vadd.f32 0.0, %v464
  %v466 = vpop.f32.mrb[0].mxu0
  %467 = vmatprep.mubr.bf16.mxu0 0
  %468 = vmatmul.mubr.bf16.gmra.mrb[0].mxu0 %v290
  %v469 = vpop.f32.mrb[0].mxu0
  %v470 = vadd.f32 0.0, %v469
  %v471 = vpop.f32.mrb[0].mxu0
  %v472 = vpop.f32.mrb[0].mxu0
  %v473 = vadd.f32 0.0, %v472
  %v474 = vpop.f32.mrb[0].mxu0
  %475 = vmatprep.mubr.bf16.mxu0 0
  %476 = vmatmul.mubr.bf16.gmra.mrb[0].mxu0 %v293
  %v477 = vpop.f32.mrb[0].mxu0
  %v478 = vadd.f32 0.0, %v477
  %v479 = vpop.f32.mrb[0].mxu0
  %v480 = vpop.f32.mrb[0].mxu0
  %v481 = vadd.f32 0.0, %v480
  %v482 = vpop.f32.mrb[0].mxu0
  %483 = vmatprep.mubr.bf16.mxu0 0
  %484 = vmatmul.mubr.bf16.gmra.mrb[0].mxu0 %v296
  %v485 = vpop.f32.mrb[0].mxu0
  %v486 = vadd.f32 0.0, %v485
  %v487 = vpop.f32.mrb[0].mxu0
  %v488 = vpop.f32.mrb[0].mxu0
  %v489 = vadd.f32 0.0, %v488
  %v490 = vpop.f32.mrb[0].mxu0
  %491 = vmatprep.mubr.bf16.mxu0 0
  %492 = vmatmul.mubr.bf16.gmra.mrb[0].mxu0 %v299
  %v493 = vpop.f32.mrb[0].mxu0
  %v494 = vadd.f32 0.0, %v493
  %v495 = vpop.f32.mrb[0].mxu0
  %v496 = vpop.f32.mrb[0].mxu0
  %v497 = vadd.f32 0.0, %v496
  %v498 = vpop.f32.mrb[0].mxu0
  %499 = vmatprep.mubr.bf16.mxu0 0
  %500 = vmatmul.mubr.bf16.gmra.mrb[0].mxu0 %v302
  %v501 = vpop.f32.mrb[0].mxu0
  %v502 = vadd.f32 0.0, %v501
  %v503 = vpop.f32.mrb[0].mxu0
  %v504 = vpop.f32.mrb[0].mxu0
  %v505 = vadd.f32 0.0, %v504
  %v506 = vpop.f32.mrb[0].mxu0
  %507 = vmatprep.mubr.bf16.mxu0 0
  %508 = vmatmul.mubr.bf16.gmra.mrb[0].mxu0 %v305
  %v509 = vpop.f32.mrb[0].mxu0
  %v510 = vadd.f32 0.0, %v509
  %v511 = vpop.f32.mrb[0].mxu0
  %v512 = vpop.f32.mrb[0].mxu0
  %v513 = vadd.f32 0.0, %v512
  %v514 = vpop.f32.mrb[0].mxu0
  %515 = vmatprep.mubr.bf16.mxu0 0
  %516 = vmatmul.mubr.bf16.gmra.mrb[0].mxu0 %v308
  %v517 = vpop.f32.mrb[0].mxu0
  %v518 = vadd.f32 0.0, %v517
  %v519 = vpop.f32.mrb[0].mxu0
  %v520 = vpop.f32.mrb[0].mxu0
  %v521 = vadd.f32 0.0, %v520
  %v522 = vpop.f32.mrb[0].mxu0
  %523 = vmatprep.mubr.bf16.mxu0 0
  %524 = vmatmul.mubr.bf16.gmra.mrb[0].mxu0 %v311
  %v525 = vpop.f32.mrb[0].mxu0
  %v526 = vadd.f32 0.0, %v525
  %v527 = vpop.f32.mrb[0].mxu0
  %v528 = vpop.f32.mrb[0].mxu0
  %v529 = vadd.f32 0.0, %v528
  %v530 = vpop.f32.mrb[0].mxu0
  %531 = vmatprep.mubr.bf16.mxu0 0
  %532 = vmatmul.mubr.bf16.gmra.mrb[0].mxu0 %v314
  %v533 = vpop.f32.mrb[0].mxu0
  %v534 = vadd.f32 0.0, %v533
  %v535 = vpop.f32.mrb[0].mxu0
  %v536 = vpop.f32.mrb[0].mxu0
  %v537 = vadd.f32 0.0, %v536
  %v538 = vpop.f32.mrb[0].mxu0
  %539 = vmatprep.mubr.bf16.mxu0 0
  %540 = vmatmul.mubr.bf16.gmra.mrb[0].mxu0 %v317
  %v541 = vpop.f32.mrb[0].mxu0
  %v542 = vadd.f32 0.0, %v541
  %v543 = vpop.f32.mrb[0].mxu0
  %v544 = vpop.f32.mrb[0].mxu0
  %v545 = vadd.f32 0.0, %v544
  %v546 = vpop.f32.mrb[0].mxu0
  %547 = vmatprep.mubr.bf16.mxu0 0
  %548 = vmatmul.mubr.bf16.gmra.mrb[0].mxu0 %v320
  %v549 = vpop.f32.mrb[0].mxu0
  %v550 = vadd.f32 0.0, %v549
  %v551 = vpop.f32.mrb[0].mxu0
  %v552 = vpop.f32.mrb[0].mxu0
  %v553 = vadd.f32 0.0, %v552
  %v554 = vpop.f32.mrb[0].mxu0
  %555 = vmatprep.mubr.bf16.mxu0 0
  %556 = vmatmul.mubr.bf16.gmra.mrb[0].mxu0 %v323
  %v557 = vpop.f32.mrb[0].mxu0
  %v558 = vadd.f32 0.0, %v557
  %v559 = vpop.f32.mrb[0].mxu0
  %v560 = vpop.f32.mrb[0].mxu0
  %v561 = vadd.f32 0.0, %v560
  %v562 = vpop.f32.mrb[0].mxu0
  %563 = vmatprep.mubr.bf16.mxu0 0
  %564 = vmatmul.mubr.bf16.gmra.mrb[0].mxu0 %v326
  %v565 = vpop.f32.mrb[0].mxu0
  %v566 = vadd.f32 0.0, %v565
  %v567 = vpop.f32.mrb[0].mxu0
  %v568 = vpop.f32.mrb[0].mxu0
  %v569 = vadd.f32 0.0, %v568
  %v570 = vpop.f32.mrb[0].mxu0
  %571 = vmatprep.mubr.bf16.mxu0 0
  %572 = vmatmul.mubr.bf16.gmra.mrb[0].mxu0 %v329
  %v573 = vpop.f32.mrb[0].mxu0
  %v574 = vadd.f32 0.0, %v573
  %v575 = vpop.f32.mrb[0].mxu0
  %v576 = vpop.f32.mrb[0].mxu0
  %v577 = vadd.f32 0.0, %v576
  %v578 = vpop.f32.mrb[0].mxu0
  %579 = vmatprep.mubr.bf16.mxu0 0
  %580 = vmatmul.mubr.bf16.gmra.mrb[0].mxu0 %v332
  %v581 = vpop.f32.mrb[0].mxu0
  %v582 = vadd.f32 0.0, %v581
  %v583 = vpop.f32.mrb[0].mxu0
  %v584 = vpop.f32.mrb[0].mxu0
  %v585 = vadd.f32 0.0, %v584
  %v586 = vpop.f32.mrb[0].mxu0
  %587 = vmatprep.mubr.bf16.mxu0 0
  %588 = vmatmul.mubr.bf16.gmra.mrb[0].mxu0 %v335
  %v589 = vpop.f32.mrb[0].mxu0
  %v590 = vadd.f32 0.0, %v589
  %v591 = vpop.f32.mrb[0].mxu0
  %v592 = vpop.f32.mrb[0].mxu0
  %v593 = vadd.f32 0.0, %v592
  %v594 = vpop.f32.mrb[0].mxu0
  %595 = vmatprep.mubr.bf16.mxu0 0
  %596 = vmatmul.mubr.bf16.gmra.mrb[0].mxu0 %v338
  %v597 = vpop.f32.mrb[0].mxu0
  %v598 = vadd.f32 0.0, %v597
  %v599 = vpop.f32.mrb[0].mxu0
  %v600 = vpop.f32.mrb[0].mxu0
  %v601 = vadd.f32 0.0, %v600
  %v602 = vpop.f32.mrb[0].mxu0
  %603 = vmatprep.mubr.bf16.mxu0 0
  %604 = vmatmul.mubr.bf16.gmra.mrb[0].mxu0 %v341
  %v605 = vpop.f32.mrb[0].mxu0
  %v606 = vadd.f32 0.0, %v605
  %v607 = vpop.f32.mrb[0].mxu0
  %v608 = vpop.f32.mrb[0].mxu0
  %v609 = vadd.f32 0.0, %v608
  %v610 = vpop.f32.mrb[0].mxu0
  %611 = vmatprep.mubr.bf16.mxu0 0
  %612 = vmatmul.mubr.bf16.gmra.mrb[0].mxu0 %v344
  %v613 = vpop.f32.mrb[0].mxu0
  %v614 = vadd.f32 0.0, %v613
  %v615 = vpop.f32.mrb[0].mxu0
  %v616 = vpop.f32.mrb[0].mxu0
  %v617 = vadd.f32 0.0, %v616
  %v618 = vpop.f32.mrb[0].mxu0
  %619 = vmatprep.mubr.bf16.mxu0 0
  %620 = vmatmul.mubr.bf16.gmra.mrb[0].mxu0 %v347
  %v621 = vpop.f32.mrb[0].mxu0
  %v622 = vadd.f32 0.0, %v621
  %v623 = vpop.f32.mrb[0].mxu0
  %v624 = vpop.f32.mrb[0].mxu0
  %v625 = vadd.f32 0.0, %v624
  %v626 = vpop.f32.mrb[0].mxu0
  %627 = vmatprep.mubr.bf16.mxu0 0
  %628 = vmatmul.mubr.bf16.gmra.mrb[0].mxu0 %v350
  %v629 = vpop.f32.mrb[0].mxu0
  %v630 = vadd.f32 0.0, %v629
  %v631 = vpop.f32.mrb[0].mxu0
  %v632 = vpop.f32.mrb[0].mxu0
  %v633 = vadd.f32 0.0, %v632
  %v634 = vpop.f32.mrb[0].mxu0
  %635 = vmatprep.mubr.bf16.mxu0 0
  %636 = vmatmul.mubr.bf16.gmra.mrb[0].mxu0 %v353
  %v637 = vpop.f32.mrb[0].mxu0
  %v638 = vadd.f32 0.0, %v637
  %v639 = vpop.f32.mrb[0].mxu0
  %v640 = vpop.f32.mrb[0].mxu0
  %v641 = vadd.f32 0.0, %v640
  %v642 = vpop.f32.mrb[0].mxu0
  %643 = vdwg.mxu0
  %v644 = vld [vmem:[%s2] sm:$0x1]
  %v646 = vlaneseq
  %v647 = vshrl.u32 %v646, 7
  %v648 = vsub.s32 0, %v647
  %v649 = vrot.slane %v644, %v648
  %v651 = vmul.f32 %v390, %v649
  %v652 = vmul.f32 %v393, %v649
  %v653 = vmul.f32 %v398, %v649
  %v654 = vmul.f32 %v401, %v649
  %v655 = vmul.f32 %v406, %v649
  %v656 = vmul.f32 %v409, %v649
  %v657 = vmul.f32 %v414, %v649
  %v658 = vmul.f32 %v417, %v649
  %v659 = vmul.f32 %v422, %v649
  %v660 = vmul.f32 %v425, %v649
  %v661 = vmul.f32 %v430, %v649
  %v662 = vmul.f32 %v433, %v649
  %v663 = vmul.f32 %v438, %v649
  %v664 = vmul.f32 %v441, %v649
  %v665 = vmul.f32 %v446, %v649
  %v666 = vmul.f32 %v449, %v649
  %v667 = vmul.f32 %v454, %v649
  %v668 = vmul.f32 %v457, %v649
  %v669 = vmul.f32 %v462, %v649
  %v670 = vmul.f32 %v465, %v649
  %v671 = vmul.f32 %v470, %v649
  %v672 = vmul.f32 %v473, %v649
  %v673 = vmul.f32 %v478, %v649
  %v674 = vmul.f32 %v481, %v649
  %v675 = vmul.f32 %v486, %v649
  %v676 = vmul.f32 %v489, %v649
  %v677 = vmul.f32 %v494, %v649
  %v678 = vmul.f32 %v497, %v649
  %v679 = vmul.f32 %v502, %v649
  %v680 = vmul.f32 %v505, %v649
  %v681 = vmul.f32 %v510, %v649
  %v682 = vmul.f32 %v513, %v649
  %v683 = vmul.f32 %v518, %v649
  %v684 = vmul.f32 %v521, %v649
  %v685 = vmul.f32 %v526, %v649
  %v686 = vmul.f32 %v529, %v649
  %v687 = vmul.f32 %v534, %v649
  %v688 = vmul.f32 %v537, %v649
  %v689 = vmul.f32 %v542, %v649
  %v690 = vmul.f32 %v545, %v649
  %v691 = vmul.f32 %v550, %v649
  %v692 = vmul.f32 %v553, %v649
  %v693 = vmul.f32 %v558, %v649
  %v694 = vmul.f32 %v561, %v649
  %v695 = vmul.f32 %v566, %v649
  %v696 = vmul.f32 %v569, %v649
  %v697 = vmul.f32 %v574, %v649
  %v698 = vmul.f32 %v577, %v649
  %v699 = vmul.f32 %v582, %v649
  %v700 = vmul.f32 %v585, %v649
  %v701 = vmul.f32 %v590, %v649
  %v702 = vmul.f32 %v593, %v649
  %v703 = vmul.f32 %v598, %v649
  %v704 = vmul.f32 %v601, %v649
  %v705 = vmul.f32 %v606, %v649
  %v706 = vmul.f32 %v609, %v649
  %v707 = vmul.f32 %v614, %v649
  %v708 = vmul.f32 %v617, %v649
  %v709 = vmul.f32 %v622, %v649
  %v710 = vmul.f32 %v625, %v649
  %v711 = vmul.f32 %v630, %v649
  %v712 = vmul.f32 %v633, %v649
  %v713 = vmul.f32 %v638, %v649
  %v714 = vmul.f32 %v641, %v649
  %v715 = vld [vmem:[%s3] sm:$0x1]
  %v717 = vlaneseq
  %v718 = vshrl.u32 %v717, 7
  %v719 = vsub.s32 0, %v718
  %v720 = vrot.slane %v715, %v719
  %v722 = vadd.f32 %v651, %v720
  %v723 = vadd.f32 %v652, %v720
  %v724 = vadd.f32 %v653, %v720
  %v725 = vadd.f32 %v654, %v720
  %v726 = vadd.f32 %v655, %v720
  %v727 = vadd.f32 %v656, %v720
  %v728 = vadd.f32 %v657, %v720
  %v729 = vadd.f32 %v658, %v720
  %v730 = vadd.f32 %v659, %v720
  %v731 = vadd.f32 %v660, %v720
  %v732 = vadd.f32 %v661, %v720
  %v733 = vadd.f32 %v662, %v720
  %v734 = vadd.f32 %v663, %v720
  %v735 = vadd.f32 %v664, %v720
  %v736 = vadd.f32 %v665, %v720
  %v737 = vadd.f32 %v666, %v720
  %v738 = vadd.f32 %v667, %v720
  %v739 = vadd.f32 %v668, %v720
  %v740 = vadd.f32 %v669, %v720
  %v741 = vadd.f32 %v670, %v720
  %v742 = vadd.f32 %v671, %v720
  %v743 = vadd.f32 %v672, %v720
  %v744 = vadd.f32 %v673, %v720
  %v745 = vadd.f32 %v674, %v720
  %v746 = vadd.f32 %v675, %v720
  %v747 = vadd.f32 %v676, %v720
  %v748 = vadd.f32 %v677, %v720
  %v749 = vadd.f32 %v678, %v720
  %v750 = vadd.f32 %v679, %v720
  %v751 = vadd.f32 %v680, %v720
  %v752 = vadd.f32 %v681, %v720
  %v753 = vadd.f32 %v682, %v720
  %v754 = vadd.f32 %v683, %v720
  %v755 = vadd.f32 %v684, %v720
  %v756 = vadd.f32 %v685, %v720
  %v757 = vadd.f32 %v686, %v720
  %v758 = vadd.f32 %v687, %v720
  %v759 = vadd.f32 %v688, %v720
  %v760 = vadd.f32 %v689, %v720
  %v761 = vadd.f32 %v690, %v720
  %v762 = vadd.f32 %v691, %v720
  %v763 = vadd.f32 %v692, %v720
  %v764 = vadd.f32 %v693, %v720
  %v765 = vadd.f32 %v694, %v720
  %v766 = vadd.f32 %v695, %v720
  %v767 = vadd.f32 %v696, %v720
  %v768 = vadd.f32 %v697, %v720
  %v769 = vadd.f32 %v698, %v720
  %v770 = vadd.f32 %v699, %v720
  %v771 = vadd.f32 %v700, %v720
  %v772 = vadd.f32 %v701, %v720
  %v773 = vadd.f32 %v702, %v720
  %v774 = vadd.f32 %v703, %v720
  %v775 = vadd.f32 %v704, %v720
  %v776 = vadd.f32 %v705, %v720
  %v777 = vadd.f32 %v706, %v720
  %v778 = vadd.f32 %v707, %v720
  %v779 = vadd.f32 %v708, %v720
  %v780 = vadd.f32 %v709, %v720
  %v781 = vadd.f32 %v710, %v720
  %v782 = vadd.f32 %v711, %v720
  %v783 = vadd.f32 %v712, %v720
  %v784 = vadd.f32 %v713, %v720
  %v785 = vadd.f32 %v714, %v720
  %v786 = vxor.u32 %v722, 2147483648
  %v787 = vxor.u32 %v723, 2147483648
  %v788 = vxor.u32 %v724, 2147483648
  %v789 = vxor.u32 %v725, 2147483648
  %v790 = vxor.u32 %v726, 2147483648
  %v791 = vxor.u32 %v727, 2147483648
  %v792 = vxor.u32 %v728, 2147483648
  %v793 = vxor.u32 %v729, 2147483648
  %v794 = vxor.u32 %v730, 2147483648
  %v795 = vxor.u32 %v731, 2147483648
  %v796 = vxor.u32 %v732, 2147483648
  %v797 = vxor.u32 %v733, 2147483648
  %v798 = vxor.u32 %v734, 2147483648
  %v799 = vxor.u32 %v735, 2147483648
  %v800 = vxor.u32 %v736, 2147483648
  %v801 = vxor.u32 %v737, 2147483648
  %v802 = vxor.u32 %v738, 2147483648
  %v803 = vxor.u32 %v739, 2147483648
  %v804 = vxor.u32 %v740, 2147483648
  %v805 = vxor.u32 %v741, 2147483648
  %v806 = vxor.u32 %v742, 2147483648
  %v807 = vxor.u32 %v743, 2147483648
  %v808 = vxor.u32 %v744, 2147483648
  %v809 = vxor.u32 %v745, 2147483648
  %v810 = vxor.u32 %v746, 2147483648
  %v811 = vxor.u32 %v747, 2147483648
  %v812 = vxor.u32 %v748, 2147483648
  %v813 = vxor.u32 %v749, 2147483648
  %v814 = vxor.u32 %v750, 2147483648
  %v815 = vxor.u32 %v751, 2147483648
  %v816 = vxor.u32 %v752, 2147483648
  %v817 = vxor.u32 %v753, 2147483648
  %v818 = vxor.u32 %v754, 2147483648
  %v819 = vxor.u32 %v755, 2147483648
  %v820 = vxor.u32 %v756, 2147483648
  %v821 = vxor.u32 %v757, 2147483648
  %v822 = vxor.u32 %v758, 2147483648
  %v823 = vxor.u32 %v759, 2147483648
  %v824 = vxor.u32 %v760, 2147483648
  %v825 = vxor.u32 %v761, 2147483648
  %v826 = vxor.u32 %v762, 2147483648
  %v827 = vxor.u32 %v763, 2147483648
  %v828 = vxor.u32 %v764, 2147483648
  %v829 = vxor.u32 %v765, 2147483648
  %v830 = vxor.u32 %v766, 2147483648
  %v831 = vxor.u32 %v767, 2147483648
  %v832 = vxor.u32 %v768, 2147483648
  %v833 = vxor.u32 %v769, 2147483648
  %v834 = vxor.u32 %v770, 2147483648
  %v835 = vxor.u32 %v771, 2147483648
  %v836 = vxor.u32 %v772, 2147483648
  %v837 = vxor.u32 %v773, 2147483648
  %v838 = vxor.u32 %v774, 2147483648
  %v839 = vxor.u32 %v775, 2147483648
  %v840 = vxor.u32 %v776, 2147483648
  %v841 = vxor.u32 %v777, 2147483648
  %v842 = vxor.u32 %v778, 2147483648
  %v843 = vxor.u32 %v779, 2147483648
  %v844 = vxor.u32 %v780, 2147483648
  %v845 = vxor.u32 %v781, 2147483648
  %v846 = vxor.u32 %v782, 2147483648
  %v847 = vxor.u32 %v783, 2147483648
  %v848 = vxor.u32 %v784, 2147483648
  %v849 = vxor.u32 %v785, 2147483648
  %v850 = vmul.f32 %v786, 1.442695
  %v851 = vpow.pop %v850
  %v852 = vmul.f32 %v787, 1.442695
  %v853 = vpow.pop %v852
  %v854 = vmul.f32 %v788, 1.442695
  %v855 = vpow.pop %v854
  %v856 = vmul.f32 %v789, 1.442695
  %v857 = vpow.pop %v856
  %v858 = vmul.f32 %v790, 1.442695
  %v859 = vpow.pop %v858
  %v860 = vmul.f32 %v791, 1.442695
  %v861 = vpow.pop %v860
  %v862 = vmul.f32 %v792, 1.442695
  %v863 = vpow.pop %v862
  %v864 = vmul.f32 %v793, 1.442695
  %v865 = vpow.pop %v864
  %v866 = vmul.f32 %v794, 1.442695
  %v867 = vpow.pop %v866
  %v868 = vmul.f32 %v795, 1.442695
  %v869 = vpow.pop %v868
  %v870 = vmul.f32 %v796, 1.442695
  %v871 = vpow.pop %v870
  %v872 = vmul.f32 %v797, 1.442695
  %v873 = vpow.pop %v872
  %v874 = vmul.f32 %v798, 1.442695
  %v875 = vpow.pop %v874
  %v876 = vmul.f32 %v799, 1.442695
  %v877 = vpow.pop %v876
  %v878 = vmul.f32 %v800, 1.442695
  %v879 = vpow.pop %v878
  %v880 = vmul.f32 %v801, 1.442695
  %v881 = vpow.pop %v880
  %v882 = vmul.f32 %v802, 1.442695
  %v883 = vpow.pop %v882
  %v884 = vmul.f32 %v803, 1.442695
  %v885 = vpow.pop %v884
  %v886 = vmul.f32 %v804, 1.442695
  %v887 = vpow.pop %v886
  %v888 = vmul.f32 %v805, 1.442695
  %v889 = vpow.pop %v888
  %v890 = vmul.f32 %v806, 1.442695
  %v891 = vpow.pop %v890
  %v892 = vmul.f32 %v807, 1.442695
  %v893 = vpow.pop %v892
  %v894 = vmul.f32 %v808, 1.442695
  %v895 = vpow.pop %v894
  %v896 = vmul.f32 %v809, 1.442695
  %v897 = vpow.pop %v896
  %v898 = vmul.f32 %v810, 1.442695
  %v899 = vpow.pop %v898
  %v900 = vmul.f32 %v811, 1.442695
  %v901 = vpow.pop %v900
  %v902 = vmul.f32 %v812, 1.442695
  %v903 = vpow.pop %v902
  %v904 = vmul.f32 %v813, 1.442695
  %v905 = vpow.pop %v904
  %v906 = vmul.f32 %v814, 1.442695
  %v907 = vpow.pop %v906
  %v908 = vmul.f32 %v815, 1.442695
  %v909 = vpow.pop %v908
  %v910 = vmul.f32 %v816, 1.442695
  %v911 = vpow.pop %v910
  %v912 = vmul.f32 %v817, 1.442695
  %v913 = vpow.pop %v912
  %v914 = vmul.f32 %v818, 1.442695
  %v915 = vpow.pop %v914
  %v916 = vmul.f32 %v819, 1.442695
  %v917 = vpow.pop %v916
  %v918 = vmul.f32 %v820, 1.442695
  %v919 = vpow.pop %v918
  %v920 = vmul.f32 %v821, 1.442695
  %v921 = vpow.pop %v920
  %v922 = vmul.f32 %v822, 1.442695
  %v923 = vpow.pop %v922
  %v924 = vmul.f32 %v823, 1.442695
  %v925 = vpow.pop %v924
  %v926 = vmul.f32 %v824, 1.442695
  %v927 = vpow.pop %v926
  %v928 = vmul.f32 %v825, 1.442695
  %v929 = vpow.pop %v928
  %v930 = vmul.f32 %v826, 1.442695
  %v931 = vpow.pop %v930
  %v932 = vmul.f32 %v827, 1.442695
  %v933 = vpow.pop %v932
  %v934 = vmul.f32 %v828, 1.442695
  %v935 = vpow.pop %v934
  %v936 = vmul.f32 %v829, 1.442695
  %v937 = vpow.pop %v936
  %v938 = vmul.f32 %v830, 1.442695
  %v939 = vpow.pop %v938
  %v940 = vmul.f32 %v831, 1.442695
  %v941 = vpow.pop %v940
  %v942 = vmul.f32 %v832, 1.442695
  %v943 = vpow.pop %v942
  %v944 = vmul.f32 %v833, 1.442695
  %v945 = vpow.pop %v944
  %v946 = vmul.f32 %v834, 1.442695
  %v947 = vpow.pop %v946
  %v948 = vmul.f32 %v835, 1.442695
  %v949 = vpow.pop %v948
  %v950 = vmul.f32 %v836, 1.442695
  %v951 = vpow.pop %v950
  %v952 = vmul.f32 %v837, 1.442695
  %v953 = vpow.pop %v952
  %v954 = vmul.f32 %v838, 1.442695
  %v955 = vpow.pop %v954
  %v956 = vmul.f32 %v839, 1.442695
  %v957 = vpow.pop %v956
  %v958 = vmul.f32 %v840, 1.442695
  %v959 = vpow.pop %v958
  %v960 = vmul.f32 %v841, 1.442695
  %v961 = vpow.pop %v960
  %v962 = vmul.f32 %v842, 1.442695
  %v963 = vpow.pop %v962
  %v964 = vmul.f32 %v843, 1.442695
  %v965 = vpow.pop %v964
  %v966 = vmul.f32 %v844, 1.442695
  %v967 = vpow.pop %v966
  %v968 = vmul.f32 %v845, 1.442695
  %v969 = vpow.pop %v968
  %v970 = vmul.f32 %v846, 1.442695
  %v971 = vpow.pop %v970
  %v972 = vmul.f32 %v847, 1.442695
  %v973 = vpow.pop %v972
  %v974 = vmul.f32 %v848, 1.442695
  %v975 = vpow.pop %v974
  %v976 = vmul.f32 %v849, 1.442695
  %v977 = vpow.pop %v976
  %v978 = vadd.f32 %v851, 1.0
  %v979 = vadd.f32 %v853, 1.0
  %v980 = vadd.f32 %v855, 1.0
  %v981 = vadd.f32 %v857, 1.0
  %v982 = vadd.f32 %v859, 1.0
  %v983 = vadd.f32 %v861, 1.0
  %v984 = vadd.f32 %v863, 1.0
  %v985 = vadd.f32 %v865, 1.0
  %v986 = vadd.f32 %v867, 1.0
  %v987 = vadd.f32 %v869, 1.0
  %v988 = vadd.f32 %v871, 1.0
  %v989 = vadd.f32 %v873, 1.0
  %v990 = vadd.f32 %v875, 1.0
  %v991 = vadd.f32 %v877, 1.0
  %v992 = vadd.f32 %v879, 1.0
  %v993 = vadd.f32 %v881, 1.0
  %v994 = vadd.f32 %v883, 1.0
  %v995 = vadd.f32 %v885, 1.0
  %v996 = vadd.f32 %v887, 1.0
  %v997 = vadd.f32 %v889, 1.0
  %v998 = vadd.f32 %v891, 1.0
  %v999 = vadd.f32 %v893, 1.0
  %v1000 = vadd.f32 %v895, 1.0
  %v1001 = vadd.f32 %v897, 1.0
  %v1002 = vadd.f32 %v899, 1.0
  %v1003 = vadd.f32 %v901, 1.0
  %v1004 = vadd.f32 %v903, 1.0
  %v1005 = vadd.f32 %v905, 1.0
  %v1006 = vadd.f32 %v907, 1.0
  %v1007 = vadd.f32 %v909, 1.0
  %v1008 = vadd.f32 %v911, 1.0
  %v1009 = vadd.f32 %v913, 1.0
  %v1010 = vadd.f32 %v915, 1.0
  %v1011 = vadd.f32 %v917, 1.0
  %v1012 = vadd.f32 %v919, 1.0
  %v1013 = vadd.f32 %v921, 1.0
  %v1014 = vadd.f32 %v923, 1.0
  %v1015 = vadd.f32 %v925, 1.0
  %v1016 = vadd.f32 %v927, 1.0
  %v1017 = vadd.f32 %v929, 1.0
  %v1018 = vadd.f32 %v931, 1.0
  %v1019 = vadd.f32 %v933, 1.0
  %v1020 = vadd.f32 %v935, 1.0
  %v1021 = vadd.f32 %v937, 1.0
  %v1022 = vadd.f32 %v939, 1.0
  %v1023 = vadd.f32 %v941, 1.0
  %v1024 = vadd.f32 %v943, 1.0
  %v1025 = vadd.f32 %v945, 1.0
  %v1026 = vadd.f32 %v947, 1.0
  %v1027 = vadd.f32 %v949, 1.0
  %v1028 = vadd.f32 %v951, 1.0
  %v1029 = vadd.f32 %v953, 1.0
  %v1030 = vadd.f32 %v955, 1.0
  %v1031 = vadd.f32 %v957, 1.0
  %v1032 = vadd.f32 %v959, 1.0
  %v1033 = vadd.f32 %v961, 1.0
  %v1034 = vadd.f32 %v963, 1.0
  %v1035 = vadd.f32 %v965, 1.0
  %v1036 = vadd.f32 %v967, 1.0
  %v1037 = vadd.f32 %v969, 1.0
  %v1038 = vadd.f32 %v971, 1.0
  %v1039 = vadd.f32 %v973, 1.0
  %v1040 = vadd.f32 %v975, 1.0
  %v1041 = vadd.f32 %v977, 1.0
  %v1042 = vrcp.pop %v978
  %v1043 = vmul.f32 1.0, %v1042
  %v1044 = vrcp.pop %v979
  %v1045 = vmul.f32 1.0, %v1044
  %v1046 = vrcp.pop %v980
  %v1047 = vmul.f32 1.0, %v1046
  %v1048 = vrcp.pop %v981
  %v1049 = vmul.f32 1.0, %v1048
  %v1050 = vrcp.pop %v982
  %v1051 = vmul.f32 1.0, %v1050
  %v1052 = vrcp.pop %v983
  %v1053 = vmul.f32 1.0, %v1052
  %v1054 = vrcp.pop %v984
  %v1055 = vmul.f32 1.0, %v1054
  %v1056 = vrcp.pop %v985
  %v1057 = vmul.f32 1.0, %v1056
  %v1058 = vrcp.pop %v986
  %v1059 = vmul.f32 1.0, %v1058
  %v1060 = vrcp.pop %v987
  %v1061 = vmul.f32 1.0, %v1060
  %v1062 = vrcp.pop %v988
  %v1063 = vmul.f32 1.0, %v1062
  %v1064 = vrcp.pop %v989
  %v1065 = vmul.f32 1.0, %v1064
  %v1066 = vrcp.pop %v990
  %v1067 = vmul.f32 1.0, %v1066
  %v1068 = vrcp.pop %v991
  %v1069 = vmul.f32 1.0, %v1068
  %v1070 = vrcp.pop %v992
  %v1071 = vmul.f32 1.0, %v1070
  %v1072 = vrcp.pop %v993
  %v1073 = vmul.f32 1.0, %v1072
  %v1074 = vrcp.pop %v994
  %v1075 = vmul.f32 1.0, %v1074
  %v1076 = vrcp.pop %v995
  %v1077 = vmul.f32 1.0, %v1076
  %v1078 = vrcp.pop %v996
  %v1079 = vmul.f32 1.0, %v1078
  %v1080 = vrcp.pop %v997
  %v1081 = vmul.f32 1.0, %v1080
  %v1082 = vrcp.pop %v998
  %v1083 = vmul.f32 1.0, %v1082
  %v1084 = vrcp.pop %v999
  %v1085 = vmul.f32 1.0, %v1084
  %v1086 = vrcp.pop %v1000
  %v1087 = vmul.f32 1.0, %v1086
  %v1088 = vrcp.pop %v1001
  %v1089 = vmul.f32 1.0, %v1088
  %v1090 = vrcp.pop %v1002
  %v1091 = vmul.f32 1.0, %v1090
  %v1092 = vrcp.pop %v1003
  %v1093 = vmul.f32 1.0, %v1092
  %v1094 = vrcp.pop %v1004
  %v1095 = vmul.f32 1.0, %v1094
  %v1096 = vrcp.pop %v1005
  %v1097 = vmul.f32 1.0, %v1096
  %v1098 = vrcp.pop %v1006
  %v1099 = vmul.f32 1.0, %v1098
  %v1100 = vrcp.pop %v1007
  %v1101 = vmul.f32 1.0, %v1100
  %v1102 = vrcp.pop %v1008
  %v1103 = vmul.f32 1.0, %v1102
  %v1104 = vrcp.pop %v1009
  %v1105 = vmul.f32 1.0, %v1104
  %v1106 = vrcp.pop %v1010
  %v1107 = vmul.f32 1.0, %v1106
  %v1108 = vrcp.pop %v1011
  %v1109 = vmul.f32 1.0, %v1108
  %v1110 = vrcp.pop %v1012
  %v1111 = vmul.f32 1.0, %v1110
  %v1112 = vrcp.pop %v1013
  %v1113 = vmul.f32 1.0, %v1112
  %v1114 = vrcp.pop %v1014
  %v1115 = vmul.f32 1.0, %v1114
  %v1116 = vrcp.pop %v1015
  %v1117 = vmul.f32 1.0, %v1116
  %v1118 = vrcp.pop %v1016
  %v1119 = vmul.f32 1.0, %v1118
  %v1120 = vrcp.pop %v1017
  %v1121 = vmul.f32 1.0, %v1120
  %v1122 = vrcp.pop %v1018
  %v1123 = vmul.f32 1.0, %v1122
  %v1124 = vrcp.pop %v1019
  %v1125 = vmul.f32 1.0, %v1124
  %v1126 = vrcp.pop %v1020
  %v1127 = vmul.f32 1.0, %v1126
  %v1128 = vrcp.pop %v1021
  %v1129 = vmul.f32 1.0, %v1128
  %v1130 = vrcp.pop %v1022
  %v1131 = vmul.f32 1.0, %v1130
  %v1132 = vrcp.pop %v1023
  %v1133 = vmul.f32 1.0, %v1132
  %v1134 = vrcp.pop %v1024
  %v1135 = vmul.f32 1.0, %v1134
  %v1136 = vrcp.pop %v1025
  %v1137 = vmul.f32 1.0, %v1136
  %v1138 = vrcp.pop %v1026
  %v1139 = vmul.f32 1.0, %v1138
  %v1140 = vrcp.pop %v1027
  %v1141 = vmul.f32 1.0, %v1140
  %v1142 = vrcp.pop %v1028
  %v1143 = vmul.f32 1.0, %v1142
  %v1144 = vrcp.pop %v1029
  %v1145 = vmul.f32 1.0, %v1144
  %v1146 = vrcp.pop %v1030
  %v1147 = vmul.f32 1.0, %v1146
  %v1148 = vrcp.pop %v1031
  %v1149 = vmul.f32 1.0, %v1148
  %v1150 = vrcp.pop %v1032
  %v1151 = vmul.f32 1.0, %v1150
  %v1152 = vrcp.pop %v1033
  %v1153 = vmul.f32 1.0, %v1152
  %v1154 = vrcp.pop %v1034
  %v1155 = vmul.f32 1.0, %v1154
  %v1156 = vrcp.pop %v1035
  %v1157 = vmul.f32 1.0, %v1156
  %v1158 = vrcp.pop %v1036
  %v1159 = vmul.f32 1.0, %v1158
  %v1160 = vrcp.pop %v1037
  %v1161 = vmul.f32 1.0, %v1160
  %v1162 = vrcp.pop %v1038
  %v1163 = vmul.f32 1.0, %v1162
  %v1164 = vrcp.pop %v1039
  %v1165 = vmul.f32 1.0, %v1164
  %v1166 = vrcp.pop %v1040
  %v1167 = vmul.f32 1.0, %v1166
  %v1168 = vrcp.pop %v1041
  %v1169 = vmul.f32 1.0, %v1168
  %v1170 = vmul.f32 %v722, %v1043
  %v1171 = vmul.f32 %v723, %v1045
  %v1172 = vmul.f32 %v724, %v1047
  %v1173 = vmul.f32 %v725, %v1049
  %v1174 = vmul.f32 %v726, %v1051
  %v1175 = vmul.f32 %v727, %v1053
  %v1176 = vmul.f32 %v728, %v1055
  %v1177 = vmul.f32 %v729, %v1057
  %v1178 = vmul.f32 %v730, %v1059
  %v1179 = vmul.f32 %v731, %v1061
  %v1180 = vmul.f32 %v732, %v1063
  %v1181 = vmul.f32 %v733, %v1065
  %v1182 = vmul.f32 %v734, %v1067
  %v1183 = vmul.f32 %v735, %v1069
  %v1184 = vmul.f32 %v736, %v1071
  %v1185 = vmul.f32 %v737, %v1073
  %v1186 = vmul.f32 %v738, %v1075
  %v1187 = vmul.f32 %v739, %v1077
  %v1188 = vmul.f32 %v740, %v1079
  %v1189 = vmul.f32 %v741, %v1081
  %v1190 = vmul.f32 %v742, %v1083
  %v1191 = vmul.f32 %v743, %v1085
  %v1192 = vmul.f32 %v744, %v1087
  %v1193 = vmul.f32 %v745, %v1089
  %v1194 = vmul.f32 %v746, %v1091
  %v1195 = vmul.f32 %v747, %v1093
  %v1196 = vmul.f32 %v748, %v1095
  %v1197 = vmul.f32 %v749, %v1097
  %v1198 = vmul.f32 %v750, %v1099
  %v1199 = vmul.f32 %v751, %v1101
  %v1200 = vmul.f32 %v752, %v1103
  %v1201 = vmul.f32 %v753, %v1105
  %v1202 = vmul.f32 %v754, %v1107
  %v1203 = vmul.f32 %v755, %v1109
  %v1204 = vmul.f32 %v756, %v1111
  %v1205 = vmul.f32 %v757, %v1113
  %v1206 = vmul.f32 %v758, %v1115
  %v1207 = vmul.f32 %v759, %v1117
  %v1208 = vmul.f32 %v760, %v1119
  %v1209 = vmul.f32 %v761, %v1121
  %v1210 = vmul.f32 %v762, %v1123
  %v1211 = vmul.f32 %v763, %v1125
  %v1212 = vmul.f32 %v764, %v1127
  %v1213 = vmul.f32 %v765, %v1129
  %v1214 = vmul.f32 %v766, %v1131
  %v1215 = vmul.f32 %v767, %v1133
  %v1216 = vmul.f32 %v768, %v1135
  %v1217 = vmul.f32 %v769, %v1137
  %v1218 = vmul.f32 %v770, %v1139
  %v1219 = vmul.f32 %v771, %v1141
  %v1220 = vmul.f32 %v772, %v1143
  %v1221 = vmul.f32 %v773, %v1145
  %v1222 = vmul.f32 %v774, %v1147
  %v1223 = vmul.f32 %v775, %v1149
  %v1224 = vmul.f32 %v776, %v1151
  %v1225 = vmul.f32 %v777, %v1153
  %v1226 = vmul.f32 %v778, %v1155
  %v1227 = vmul.f32 %v779, %v1157
  %v1228 = vmul.f32 %v780, %v1159
  %v1229 = vmul.f32 %v781, %v1161
  %v1230 = vmul.f32 %v782, %v1163
  %v1231 = vmul.f32 %v783, %v1165
  %v1232 = vmul.f32 %v784, %v1167
  %v1233 = vmul.f32 %v785, %v1169
  %v1234 = vpack.c.bf16 %v1171, %v1170
  %v1235 = vpack.c.bf16 %v1173, %v1172
  %v1236 = vpack.c.bf16 %v1175, %v1174
  %v1237 = vpack.c.bf16 %v1177, %v1176
  %v1238 = vpack.c.bf16 %v1179, %v1178
  %v1239 = vpack.c.bf16 %v1181, %v1180
  %v1240 = vpack.c.bf16 %v1183, %v1182
  %v1241 = vpack.c.bf16 %v1185, %v1184
  %v1242 = vpack.c.bf16 %v1187, %v1186
  %v1243 = vpack.c.bf16 %v1189, %v1188
  %v1244 = vpack.c.bf16 %v1191, %v1190
  %v1245 = vpack.c.bf16 %v1193, %v1192
  %v1246 = vpack.c.bf16 %v1195, %v1194
  %v1247 = vpack.c.bf16 %v1197, %v1196
  %v1248 = vpack.c.bf16 %v1199, %v1198
  %v1249 = vpack.c.bf16 %v1201, %v1200
  %v1250 = vpack.c.bf16 %v1203, %v1202
  %v1251 = vpack.c.bf16 %v1205, %v1204
  %v1252 = vpack.c.bf16 %v1207, %v1206
  %v1253 = vpack.c.bf16 %v1209, %v1208
  %v1254 = vpack.c.bf16 %v1211, %v1210
  %v1255 = vpack.c.bf16 %v1213, %v1212
  %v1256 = vpack.c.bf16 %v1215, %v1214
  %v1257 = vpack.c.bf16 %v1217, %v1216
  %v1258 = vpack.c.bf16 %v1219, %v1218
  %v1259 = vpack.c.bf16 %v1221, %v1220
  %v1260 = vpack.c.bf16 %v1223, %v1222
  %v1261 = vpack.c.bf16 %v1225, %v1224
  %v1262 = vpack.c.bf16 %v1227, %v1226
  %v1263 = vpack.c.bf16 %v1229, %v1228
  %v1264 = vpack.c.bf16 %v1231, %v1230
  %v1265 = vpack.c.bf16 %v1233, %v1232
  %v1298 = vunpack.c.l.b16 %v1234
  %v1299 = vunpack.c.h.b16 %v1234
  %v1300 = vunpack.c.l.b16 %v1235
  %v1301 = vunpack.c.h.b16 %v1235
  %v1302 = vunpack.c.l.b16 %v1236
  %v1303 = vunpack.c.h.b16 %v1236
  %v1304 = vunpack.c.l.b16 %v1237
  %v1305 = vunpack.c.h.b16 %v1237
  %v1306 = vunpack.c.l.b16 %v1238
  %v1307 = vunpack.c.h.b16 %v1238
  %v1308 = vunpack.c.l.b16 %v1239
  %v1309 = vunpack.c.h.b16 %v1239
  %v1310 = vunpack.c.l.b16 %v1240
  %v1311 = vunpack.c.h.b16 %v1240
  %v1312 = vunpack.c.l.b16 %v1241
  %v1313 = vunpack.c.h.b16 %v1241
  %v1314 = vunpack.c.l.b16 %v1242
  %v1315 = vunpack.c.h.b16 %v1242
  %v1316 = vunpack.c.l.b16 %v1243
  %v1317 = vunpack.c.h.b16 %v1243
  %v1318 = vunpack.c.l.b16 %v1244
  %v1319 = vunpack.c.h.b16 %v1244
  %v1320 = vunpack.c.l.b16 %v1245
  %v1321 = vunpack.c.h.b16 %v1245
  %v1322 = vunpack.c.l.b16 %v1246
  %v1323 = vunpack.c.h.b16 %v1246
  %v1324 = vunpack.c.l.b16 %v1247
  %v1325 = vunpack.c.h.b16 %v1247
  %v1326 = vunpack.c.l.b16 %v1248
  %v1327 = vunpack.c.h.b16 %v1248
  %v1328 = vunpack.c.l.b16 %v1249
  %v1329 = vunpack.c.h.b16 %v1249
  %v1330 = vunpack.c.l.b16 %v1250
  %v1331 = vunpack.c.h.b16 %v1250
  %v1332 = vunpack.c.l.b16 %v1251
  %v1333 = vunpack.c.h.b16 %v1251
  %v1334 = vunpack.c.l.b16 %v1252
  %v1335 = vunpack.c.h.b16 %v1252
  %v1336 = vunpack.c.l.b16 %v1253
  %v1337 = vunpack.c.h.b16 %v1253
  %v1338 = vunpack.c.l.b16 %v1254
  %v1339 = vunpack.c.h.b16 %v1254
  %v1340 = vunpack.c.l.b16 %v1255
  %v1341 = vunpack.c.h.b16 %v1255
  %v1342 = vunpack.c.l.b16 %v1256
  %v1343 = vunpack.c.h.b16 %v1256
  %v1344 = vunpack.c.l.b16 %v1257
  %v1345 = vunpack.c.h.b16 %v1257
  %v1346 = vunpack.c.l.b16 %v1258
  %v1347 = vunpack.c.h.b16 %v1258
  %v1348 = vunpack.c.l.b16 %v1259
  %v1349 = vunpack.c.h.b16 %v1259
  %v1350 = vunpack.c.l.b16 %v1260
  %v1351 = vunpack.c.h.b16 %v1260
  %v1352 = vunpack.c.l.b16 %v1261
  %v1353 = vunpack.c.h.b16 %v1261
  %v1354 = vunpack.c.l.b16 %v1262
  %v1355 = vunpack.c.h.b16 %v1262
  %v1356 = vunpack.c.l.b16 %v1263
  %v1357 = vunpack.c.h.b16 %v1263
  %v1358 = vunpack.c.l.b16 %v1264
  %v1359 = vunpack.c.h.b16 %v1264
  %v1360 = vunpack.c.l.b16 %v1265
  %v1361 = vunpack.c.h.b16 %v1265
  %v1362 = vpack.c.b16 %v1298, %v1298
  %v1363 = vpack.c.b16 %v1299, %v1299
  %v1364 = vpack.c.b16 %v1300, %v1300
  %v1365 = vpack.c.b16 %v1301, %v1301
  %v1366 = vpack.c.b16 %v1302, %v1302
  %v1367 = vpack.c.b16 %v1303, %v1303
  %v1368 = vpack.c.b16 %v1304, %v1304
  %v1369 = vpack.c.b16 %v1305, %v1305
  %v1370 = vpack.c.b16 %v1306, %v1306
  %v1371 = vpack.c.b16 %v1307, %v1307
  %v1372 = vpack.c.b16 %v1308, %v1308
  %v1373 = vpack.c.b16 %v1309, %v1309
  %v1374 = vpack.c.b16 %v1310, %v1310
  %v1375 = vpack.c.b16 %v1311, %v1311
  %v1376 = vpack.c.b16 %v1312, %v1312
  %v1377 = vpack.c.b16 %v1313, %v1313
  %v1378 = vpack.c.b16 %v1314, %v1314
  %v1379 = vpack.c.b16 %v1315, %v1315
  %v1380 = vpack.c.b16 %v1316, %v1316
  %v1381 = vpack.c.b16 %v1317, %v1317
  %v1382 = vpack.c.b16 %v1318, %v1318
  %v1383 = vpack.c.b16 %v1319, %v1319
  %v1384 = vpack.c.b16 %v1320, %v1320
  %v1385 = vpack.c.b16 %v1321, %v1321
  %v1386 = vpack.c.b16 %v1322, %v1322
  %v1387 = vpack.c.b16 %v1323, %v1323
  %v1388 = vpack.c.b16 %v1324, %v1324
  %v1389 = vpack.c.b16 %v1325, %v1325
  %v1390 = vpack.c.b16 %v1326, %v1326
  %v1391 = vpack.c.b16 %v1327, %v1327
  %v1392 = vpack.c.b16 %v1328, %v1328
  %v1393 = vpack.c.b16 %v1329, %v1329
  %v1394 = vpack.c.b16 %v1330, %v1330
  %v1395 = vpack.c.b16 %v1331, %v1331
  %v1396 = vpack.c.b16 %v1332, %v1332
  %v1397 = vpack.c.b16 %v1333, %v1333
  %v1398 = vpack.c.b16 %v1334, %v1334
  %v1399 = vpack.c.b16 %v1335, %v1335
  %v1400 = vpack.c.b16 %v1336, %v1336
  %v1401 = vpack.c.b16 %v1337, %v1337
  %v1402 = vpack.c.b16 %v1338, %v1338
  %v1403 = vpack.c.b16 %v1339, %v1339
  %v1404 = vpack.c.b16 %v1340, %v1340
  %v1405 = vpack.c.b16 %v1341, %v1341
  %v1406 = vpack.c.b16 %v1342, %v1342
  %v1407 = vpack.c.b16 %v1343, %v1343
  %v1408 = vpack.c.b16 %v1344, %v1344
  %v1409 = vpack.c.b16 %v1345, %v1345
  %v1410 = vpack.c.b16 %v1346, %v1346
  %v1411 = vpack.c.b16 %v1347, %v1347
  %v1412 = vpack.c.b16 %v1348, %v1348
  %v1413 = vpack.c.b16 %v1349, %v1349
  %v1414 = vpack.c.b16 %v1350, %v1350
  %v1415 = vpack.c.b16 %v1351, %v1351
  %v1416 = vpack.c.b16 %v1352, %v1352
  %v1417 = vpack.c.b16 %v1353, %v1353
  %v1418 = vpack.c.b16 %v1354, %v1354
  %v1419 = vpack.c.b16 %v1355, %v1355
  %v1420 = vpack.c.b16 %v1356, %v1356
  %v1421 = vpack.c.b16 %v1357, %v1357
  %v1422 = vpack.c.b16 %v1358, %v1358
  %v1423 = vpack.c.b16 %v1359, %v1359
  %v1424 = vpack.c.b16 %v1360, %v1360
  %v1425 = vpack.c.b16 %v1361, %v1361
  %1490 = vst [vmem:[%s4] sm:$0xf] %v1362
  %1491 = vst [vmem:[%s4 + $0x4] sm:$0xf] %v1363
  %1492 = vst [vmem:[%s4 + $0x8] sm:$0xf] %v1364
  %1493 = vst [vmem:[%s4 + $0xc] sm:$0xf] %v1365
  %1494 = vst [vmem:[%s4 + $0x10] sm:$0xf] %v1366
  %1495 = vst [vmem:[%s4 + $0x14] sm:$0xf] %v1367
  %1496 = vst [vmem:[%s4 + $0x18] sm:$0xf] %v1368
  %1497 = vst [vmem:[%s4 + $0x1c] sm:$0xf] %v1369
  %1498 = vst [vmem:[%s4 + $0x20] sm:$0xf] %v1370
  %1499 = vst [vmem:[%s4 + $0x24] sm:$0xf] %v1371
  %1500 = vst [vmem:[%s4 + $0x28] sm:$0xf] %v1372
  %1501 = vst [vmem:[%s4 + $0x2c] sm:$0xf] %v1373
  %1502 = vst [vmem:[%s4 + $0x30] sm:$0xf] %v1374
  %1503 = vst [vmem:[%s4 + $0x34] sm:$0xf] %v1375
  %1504 = vst [vmem:[%s4 + $0x38] sm:$0xf] %v1376
  %1505 = vst [vmem:[%s4 + $0x3c] sm:$0xf] %v1377
  %1506 = vst [vmem:[%s4 + $0x40] sm:$0xf] %v1378
  %1507 = vst [vmem:[%s4 + $0x44] sm:$0xf] %v1379
  %1508 = vst [vmem:[%s4 + $0x48] sm:$0xf] %v1380
  %1509 = vst [vmem:[%s4 + $0x4c] sm:$0xf] %v1381
  %1510 = vst [vmem:[%s4 + $0x50] sm:$0xf] %v1382
  %1511 = vst [vmem:[%s4 + $0x54] sm:$0xf] %v1383
  %1512 = vst [vmem:[%s4 + $0x58] sm:$0xf] %v1384
  %1513 = vst [vmem:[%s4 + $0x5c] sm:$0xf] %v1385
  %1514 = vst [vmem:[%s4 + $0x60] sm:$0xf] %v1386
  %1515 = vst [vmem:[%s4 + $0x64] sm:$0xf] %v1387
  %1516 = vst [vmem:[%s4 + $0x68] sm:$0xf] %v1388
  %1517 = vst [vmem:[%s4 + $0x6c] sm:$0xf] %v1389
  %1518 = vst [vmem:[%s4 + $0x70] sm:$0xf] %v1390
  %1519 = vst [vmem:[%s4 + $0x74] sm:$0xf] %v1391
  %1520 = vst [vmem:[%s4 + $0x78] sm:$0xf] %v1392
  %1521 = vst [vmem:[%s4 + $0x7c] sm:$0xf] %v1393
  %1522 = vst [vmem:[%s4 + $0x80] sm:$0xf] %v1394
  %1523 = vst [vmem:[%s4 + $0x84] sm:$0xf] %v1395
  %1524 = vst [vmem:[%s4 + $0x88] sm:$0xf] %v1396
  %1525 = vst [vmem:[%s4 + $0x8c] sm:$0xf] %v1397
  %1526 = vst [vmem:[%s4 + $0x90] sm:$0xf] %v1398
  %1527 = vst [vmem:[%s4 + $0x94] sm:$0xf] %v1399
  %1528 = vst [vmem:[%s4 + $0x98] sm:$0xf] %v1400
  %1529 = vst [vmem:[%s4 + $0x9c] sm:$0xf] %v1401
  %1530 = vst [vmem:[%s4 + $0xa0] sm:$0xf] %v1402
  %1531 = vst [vmem:[%s4 + $0xa4] sm:$0xf] %v1403
  %1532 = vst [vmem:[%s4 + $0xa8] sm:$0xf] %v1404
  %1533 = vst [vmem:[%s4 + $0xac] sm:$0xf] %v1405
  %1534 = vst [vmem:[%s4 + $0xb0] sm:$0xf] %v1406
  %1535 = vst [vmem:[%s4 + $0xb4] sm:$0xf] %v1407
  %1536 = vst [vmem:[%s4 + $0xb8] sm:$0xf] %v1408
  %1537 = vst [vmem:[%s4 + $0xbc] sm:$0xf] %v1409
  %1538 = vst [vmem:[%s4 + $0xc0] sm:$0xf] %v1410
  %1539 = vst [vmem:[%s4 + $0xc4] sm:$0xf] %v1411
  %1540 = vst [vmem:[%s4 + $0xc8] sm:$0xf] %v1412
  %1541 = vst [vmem:[%s4 + $0xcc] sm:$0xf] %v1413
  %1542 = vst [vmem:[%s4 + $0xd0] sm:$0xf] %v1414
  %1543 = vst [vmem:[%s4 + $0xd4] sm:$0xf] %v1415
  %1544 = vst [vmem:[%s4 + $0xd8] sm:$0xf] %v1416
  %1545 = vst [vmem:[%s4 + $0xdc] sm:$0xf] %v1417
  %1546 = vst [vmem:[%s4 + $0xe0] sm:$0xf] %v1418
  %1547 = vst [vmem:[%s4 + $0xe4] sm:$0xf] %v1419
  %1548 = vst [vmem:[%s4 + $0xe8] sm:$0xf] %v1420
  %1549 = vst [vmem:[%s4 + $0xec] sm:$0xf] %v1421
  %1550 = vst [vmem:[%s4 + $0xf0] sm:$0xf] %v1422
  %1551 = vst [vmem:[%s4 + $0xf4] sm:$0xf] %v1423
  %1552 = vst [vmem:[%s4 + $0xf8] sm:$0xf] %v1424
  %1553 = vst [vmem:[%s4 + $0xfc] sm:$0xf] %v1425
  // Predicated region
  $region18: #{effnet_forward.4} parent=0 // pred_check
    _
  $region19: #{effnet_forward.4} parent=0 // pred_check_branch
    %1555 = sbr.rel (0) target = $region21
  $region20: #{effnet_forward.4} parent=0 // pred_region
    _
  $region21: #{effnet_forward.4} parent=0 // pred_fallthru
    _
  // Predicated region
  $region22: #{effnet_forward.4} parent=0 // pred_check
    _
  $region23: #{effnet_forward.4} parent=0 // pred_check_branch
    %1557 = sbr.rel (0) target = $region25
  $region24: #{effnet_forward.4} parent=0 // pred_region
    _
  $region25: #{effnet_forward.4} parent=0 // pred_fallthru
    _

// kernel: effnet_forward.6
$region0: #{effnet_forward.6}
  #allocation0 [shape = 'u32[]', space=smem, size = 0x4, offset = 0x4, fixed_abs, tag = 'smem constant byte address 0x4 - core index']
  #allocation1 [shape = 'u32[144,128]{1,0:T(1,128)}', space=vmem, size = 0x12000, scoped, tag = 'internal scratch']
  #allocation2 [shape = 'f32[2,256]{1,0:T(2,128)}', space=vmem, size = 0x800, scoped, tag = 'scratch operand']
  %s0 = inlined_call_operand.vmem [shape: bf16[2,256,128], index: 0, kind: input, shape index: {}]
  %s1 = inlined_call_operand.vmem [shape: bf16[128,1792], index: 1, kind: input, shape index: {}]
  %s2 = inlined_call_operand.vmem [shape: f32[1,1792], index: 2, kind: input, shape index: {}]
  %s3 = inlined_call_operand.vmem [shape: f32[1,1792], index: 3, kind: input, shape index: {}]
  %s4 = inlined_call_operand.vmem [shape: f32[2,1792], index: 4, kind: output, shape index: {}]
  %s5 = sld [smem:[#allocation0]]
  $region136: #{effnet_forward.6} parent=0
    _
  %s7 = ssub.s32 1, %s5
  %s8 = scalar_select 0, %s7, %s5
  $region1: #{effnet_forward.6} parent=0
    #allocation3 [shape = 'u8[65536]{0}', space=vmem, size = 0x10000, scoped, tag = 'input window, operand 0']
    #allocation4 [shape = 'u8[131072]{0}', space=vmem, size = 0x20000, scoped, tag = 'input window, operand 1']
    loop: start=0, step=1, limit=30
    $region2: #{effnet_forward.6} parent=1 // loop_pre_header
      _
    $region3: #{effnet_forward.6} parent=1 // loop_header
      %s10 = sphi 0, %s14
      %p11 = scmp.ge.s32.totalorder %s10, 30
      %s17 = sphi 0, %s29
      %s18 = sphi 0, %s25
      %s19 = sphi 0, %s17
      %s20 = sphi 0, %s18
      %s21 = sphi 0, %s19
      %s22 = sphi 0, %s20
      %s32 = sphi 0, %s34
      %s35 = sphi 0, %s32
      %s36 = sphi 0, %s35
      %s52 = sphi 0, %s36
      %s58 = sphi 0, %s60
      %s61 = sphi 0, %s58
      %s62 = sphi 0, %s61
      %s78 = sphi 0, %s62
      %s84 = sphi 0, %s86
      %s87 = sphi 0, %s84
      %s88 = sphi 0, %s87
      %s104 = sphi 0, %s88
      %s110 = sphi 0, %s112
      %s113 = sphi 0, %s110
      %s114 = sphi 0, %s113
      %s130 = sphi 0, %s114
      %s136 = sphi 0, %s138
      %s139 = sphi 0, %s136
      %s140 = sphi 0, %s139
      %s156 = sphi 0, %s140
    $region4: #{effnet_forward.6} parent=1 // loop_header_branch
      %13 = sbr.rel (%p11) target = $region8
    $region5: #{effnet_forward.6} parent=1 // loop_body
      %s15 = ssub.s32 %s10, 1
      %s16 = ssub.s32 %s10, 2
      %s23 = sadd.s32 1, %s18
      %p24 = scmp.ge.s32.totalorder %s23, 4
      %s25 = scalar_select %p24, 0, %s23
      %s26 = sadd.s32 1, %s17
      %s27 = scalar_select %p24, %s26, %s17
      %p28 = scmp.ge.s32.totalorder %s27, 7
      %s29 = scalar_select %p28, 0, %s27
      %s30 = ssub.s32 %s18, %s25
      %p31 = scmp.eq.s32.totalorder %s30, 0
      %s33 = sadd.s32 %s32, 1
      %s34 = scalar_select %p31, %s32, %s33
      %p37 = pneg %p31
      %p38 = scmp.eq.s32.totalorder %s10, 27
      %p39 = por %p37, %p38
      %p40 = scmp.ne.s32.totalorder %s32, %s35
      %p41 = scmp.eq.s32.totalorder %s10, 0
      %p42 = por %p40, %p41
      %p43 = scmp.ne.s32.totalorder %s32, %s35
      %p44 = scmp.eq.s32.totalorder %s15, 27
      %p45 = por %p43, %p44
      %p46 = scmp.ne.s32.totalorder %s35, %s36
      %p47 = scmp.eq.s32.totalorder %s15, 0
      %p48 = por %p46, %p47
      %p49 = scmp.ne.s32.totalorder %s35, %s36
      %p50 = scmp.eq.s32.totalorder %s16, 27
      %p51 = por %p49, %p50
      %p53 = scmp.ne.s32.totalorder %s36, %s52
      %p54 = scmp.eq.s32.totalorder %s16, 0
      %p55 = por %p53, %p54
      %s56 = ssub.s32 %s17, %s29
      %p57 = scmp.eq.s32.totalorder %s56, 0
      %s59 = sadd.s32 %s58, 1
      %s60 = scalar_select %p57, %s58, %s59
      %p63 = pneg %p57
      %p64 = scmp.eq.s32.totalorder %s10, 27
      %p65 = por %p63, %p64
      %p66 = scmp.ne.s32.totalorder %s58, %s61
      %p67 = scmp.eq.s32.totalorder %s10, 0
      %p68 = por %p66, %p67
      %p69 = scmp.ne.s32.totalorder %s58, %s61
      %p70 = scmp.eq.s32.totalorder %s15, 27
      %p71 = por %p69, %p70
      %p72 = scmp.ne.s32.totalorder %s61, %s62
      %p73 = scmp.eq.s32.totalorder %s15, 0
      %p74 = por %p72, %p73
      %p75 = scmp.ne.s32.totalorder %s61, %s62
      %p76 = scmp.eq.s32.totalorder %s16, 27
      %p77 = por %p75, %p76
      %p79 = scmp.ne.s32.totalorder %s62, %s78
      %p80 = scmp.eq.s32.totalorder %s16, 0
      %p81 = por %p79, %p80
      %s82 = ssub.s32 %s17, %s29
      %p83 = scmp.eq.s32.totalorder %s82, 0
      %s85 = sadd.s32 %s84, 1
      %s86 = scalar_select %p83, %s84, %s85
      %p89 = pneg %p83
      %p90 = scmp.eq.s32.totalorder %s10, 27
      %p91 = por %p89, %p90
      %p92 = scmp.ne.s32.totalorder %s84, %s87
      %p93 = scmp.eq.s32.totalorder %s10, 0
      %p94 = por %p92, %p93
      %p95 = scmp.ne.s32.totalorder %s84, %s87
      %p96 = scmp.eq.s32.totalorder %s15, 27
      %p97 = por %p95, %p96
      %p98 = scmp.ne.s32.totalorder %s87, %s88
      %p99 = scmp.eq.s32.totalorder %s15, 0
      %p100 = por %p98, %p99
      %p101 = scmp.ne.s32.totalorder %s87, %s88
      %p102 = scmp.eq.s32.totalorder %s16, 27
      %p103 = por %p101, %p102
      %p105 = scmp.ne.s32.totalorder %s88, %s104
      %p106 = scmp.eq.s32.totalorder %s16, 0
      %p107 = por %p105, %p106
      %s108 = ssub.s32 %s17, %s29
      %p109 = scmp.eq.s32.totalorder %s108, 0
      %s111 = sadd.s32 %s110, 1
      %s112 = scalar_select %p109, %s110, %s111
      %p115 = pneg %p109
      %p116 = scmp.eq.s32.totalorder %s10, 27
      %p117 = por %p115, %p116
      %p118 = scmp.ne.s32.totalorder %s110, %s113
      %p119 = scmp.eq.s32.totalorder %s10, 0
      %p120 = por %p118, %p119
      %p121 = scmp.ne.s32.totalorder %s110, %s113
      %p122 = scmp.eq.s32.totalorder %s15, 27
      %p123 = por %p121, %p122
      %p124 = scmp.ne.s32.totalorder %s113, %s114
      %p125 = scmp.eq.s32.totalorder %s15, 0
      %p126 = por %p124, %p125
      %p127 = scmp.ne.s32.totalorder %s113, %s114
      %p128 = scmp.eq.s32.totalorder %s16, 27
      %p129 = por %p127, %p128
      %p131 = scmp.ne.s32.totalorder %s114, %s130
      %p132 = scmp.eq.s32.totalorder %s16, 0
      %p133 = por %p131, %p132
      %s134 = ssub.s32 %s17, %s29
      %p135 = scmp.eq.s32.totalorder %s134, 0
      %s137 = sadd.s32 %s136, 1
      %s138 = scalar_select %p135, %s136, %s137
      %p141 = pneg %p135
      %p142 = scmp.eq.s32.totalorder %s10, 27
      %p143 = por %p141, %p142
      %p144 = scmp.ne.s32.totalorder %s136, %s139
      %p145 = scmp.eq.s32.totalorder %s10, 0
      %p146 = por %p144, %p145
      %p147 = scmp.ne.s32.totalorder %s136, %s139
      %p148 = scmp.eq.s32.totalorder %s15, 27
      %p149 = por %p147, %p148
      %p150 = scmp.ne.s32.totalorder %s139, %s140
      %p151 = scmp.eq.s32.totalorder %s15, 0
      %p152 = por %p150, %p151
      %p153 = scmp.ne.s32.totalorder %s139, %s140
      %p154 = scmp.eq.s32.totalorder %s16, 27
      %p155 = por %p153, %p154
      %p157 = scmp.ne.s32.totalorder %s140, %s156
      %p158 = scmp.eq.s32.totalorder %s16, 0
      %p159 = por %p157, %p158
      %p160 = scmp.le.s32.totalorder 1, %s10
      %p161 = scmp.lt.s32.totalorder %s10, 29
      %p162 = pnand %p160, %p161
      %p163 = pneg %p162
      // Predicated region
      $region9: #{effnet_forward.6} parent=5 // pred_check
        _
      $region10: #{effnet_forward.6} parent=5 // pred_check_branch
        %165 = sbr.rel (%p162) target = $region12
      $region11: #{effnet_forward.6} parent=5 // pred_region
        %s166 = ssub.s32 %s10, 1
      $region12: #{effnet_forward.6} parent=5 // pred_fallthru
        _
      %p167 = scmp.lt.s32.totalorder %s10, 28
      // Predicated region
      $region13: #{effnet_forward.6} parent=5 // pred_check
        %p168 = pneg %p167
      $region14: #{effnet_forward.6} parent=5 // pred_check_branch
        %170 = sbr.rel (%p168) target = $region16
      $region15: #{effnet_forward.6} parent=5 // pred_region
        // Predicated region
        $region17: #{effnet_forward.6} parent=15 // pred_check
          %p171 = pneg %p42
        $region18: #{effnet_forward.6} parent=15 // pred_check_branch
          %173 = sbr.rel (%p171) target = $region20
        $region19: #{effnet_forward.6} parent=15 // pred_region
          %s174 = sand.u32 %s32, 1
          %s175 = sand.u32 %s32, 1
          %s176 = smul.addr %s175, 64
          %s177 = scalar_lea.vmem [#allocation3], %s176
          %s178 = smul.u32 8, %s18
          %s179 = smul.addr %s178, 4
          %s180 = scalar_lea.vmem %s0, %s179
          // Predicated region
          $region21: #{effnet_forward.6} parent=19 // pred_check
            _
          $region22: #{effnet_forward.6} parent=19 // pred_check_branch
            %182 = sbr.rel (0) target = $region24
          $region23: #{effnet_forward.6} parent=19 // pred_region
            // Predicated region
            $region25: #{effnet_forward.6} parent=23 // pred_check
              _
            $region26: #{effnet_forward.6} parent=23 // pred_check_branch
              %184 = sbr.rel target = $region28
            $region27: #{effnet_forward.6} parent=23 // pred_region
              // Predicated region
              $region40: #{effnet_forward.6} parent=27 // pred_check
                _
              $region41: #{effnet_forward.6} parent=27 // pred_check_branch
                %229 = sbr.rel (0) target = $region43
              $region42: #{effnet_forward.6} parent=27 // pred_region
                loop: start=0, step=1, limit=1
                $region44: #{effnet_forward.6} parent=42 // loop_pre_header
                  _
                $region45: #{effnet_forward.6} parent=42 // loop_header
                  %s231 = sphi 0, %s235
                  %p232 = scmp.ge.s32.totalorder %s231, 1
                  %s236 = sphi %s180, %s180
                  %s237 = sphi %s177, %s177
                $region46: #{effnet_forward.6} parent=42 // loop_header_branch
                  %234 = sbr.rel (%p232) target = $region50
                $region47: #{effnet_forward.6} parent=42 // loop_body
                  _
                $region48: #{effnet_forward.6} parent=42 // loop_footer
                  %s235 = sadd.s32 1, %s231
                $region49: #{effnet_forward.6} parent=42 // loop_footer_branch
                  %230 = sbr.rel target = $region45
                $region50: #{effnet_forward.6} parent=42 // loop_exit
                  _
                loop: start=0, step=1, limit=1
                $region51: #{effnet_forward.6} parent=42 // loop_pre_header
                  _
                $region52: #{effnet_forward.6} parent=42 // loop_header
                  %s240 = sphi 0, %s244
                  %p241 = scmp.ge.s32.totalorder %s240, 1
                  %s245 = sphi %s180, %s180
                  %s246 = sphi %s177, %s177
                $region53: #{effnet_forward.6} parent=42 // loop_header_branch
                  %243 = sbr.rel (%p241) target = $region57
                $region54: #{effnet_forward.6} parent=42 // loop_body
                  %v247 = vld [vmem:[%s245] sm:$0xf]
                  %248 = vst [vmem:[%s246] sm:$0xf] %v247
                  %v249 = vld [vmem:[%s245 + $0x4] sm:$0xf]
                  %250 = vst [vmem:[%s246 + $0x4] sm:$0xf] %v249
                  %v251 = vld [vmem:[%s245 + $0x8] sm:$0xf]
                  %252 = vst [vmem:[%s246 + $0x8] sm:$0xf] %v251
                  %v253 = vld [vmem:[%s245 + $0xc] sm:$0xf]
                  %254 = vst [vmem:[%s246 + $0xc] sm:$0xf] %v253
                  %v255 = vld [vmem:[%s245 + $0x10] sm:$0xf]
                  %256 = vst [vmem:[%s246 + $0x10] sm:$0xf] %v255
                  %v257 = vld [vmem:[%s245 + $0x14] sm:$0xf]
                  %258 = vst [vmem:[%s246 + $0x14] sm:$0xf] %v257
                  %v259 = vld [vmem:[%s245 + $0x18] sm:$0xf]
                  %260 = vst [vmem:[%s246 + $0x18] sm:$0xf] %v259
                  %v261 = vld [vmem:[%s245 + $0x1c] sm:$0xf]
                  %262 = vst [vmem:[%s246 + $0x1c] sm:$0xf] %v261
                  %v263 = vld [vmem:[%s245 + $0x80] sm:$0xf]
                  %264 = vst [vmem:[%s246 + $0x20] sm:$0xf] %v263
                  %v265 = vld [vmem:[%s245 + $0x84] sm:$0xf]
                  %266 = vst [vmem:[%s246 + $0x24] sm:$0xf] %v265
                  %v267 = vld [vmem:[%s245 + $0x88] sm:$0xf]
                  %268 = vst [vmem:[%s246 + $0x28] sm:$0xf] %v267
                  %v269 = vld [vmem:[%s245 + $0x8c] sm:$0xf]
                  %270 = vst [vmem:[%s246 + $0x2c] sm:$0xf] %v269
                  %v271 = vld [vmem:[%s245 + $0x90] sm:$0xf]
                  %272 = vst [vmem:[%s246 + $0x30] sm:$0xf] %v271
                  %v273 = vld [vmem:[%s245 + $0x94] sm:$0xf]
                  %274 = vst [vmem:[%s246 + $0x34] sm:$0xf] %v273
                  %v275 = vld [vmem:[%s245 + $0x98] sm:$0xf]
                  %276 = vst [vmem:[%s246 + $0x38] sm:$0xf] %v275
                  %v277 = vld [vmem:[%s245 + $0x9c] sm:$0xf]
                  %278 = vst [vmem:[%s246 + $0x3c] sm:$0xf] %v277
                $region55: #{effnet_forward.6} parent=42 // loop_footer
                  %s244 = sadd.s32 1, %s240
                $region56: #{effnet_forward.6} parent=42 // loop_footer_branch
                  %239 = sbr.rel target = $region52
                $region57: #{effnet_forward.6} parent=42 // loop_exit
                  _
              $region43: #{effnet_forward.6} parent=27 // pred_fallthru
                _
            $region28: #{effnet_forward.6} parent=23 // pred_fallthru
              _
            // Predicated region
            $region29: #{effnet_forward.6} parent=23 // pred_check
              _
            $region30: #{effnet_forward.6} parent=23 // pred_check_branch
              %186 = sbr.rel (0) target = $region32
            $region31: #{effnet_forward.6} parent=23 // pred_region
              loop: start=0, step=1, limit=1
              $region33: #{effnet_forward.6} parent=31 // loop_pre_header
                _
              $region34: #{effnet_forward.6} parent=31 // loop_header
                %s189 = sphi 0, %s193
                %p190 = scmp.ge.s32.totalorder %s189, 1
                %s194 = sphi %s180, %s180
                %s195 = sphi %s177, %s177
              $region35: #{effnet_forward.6} parent=31 // loop_header_branch
                %192 = sbr.rel (%p190) target = $region39
              $region36: #{effnet_forward.6} parent=31 // loop_body
                %v196 = vld [vmem:[%s194] sm:$0xf]
                %197 = vst [vmem:[%s195] sm:$0xf] %v196
                %v198 = vld [vmem:[%s194 + $0x4] sm:$0xf]
                %199 = vst [vmem:[%s195 + $0x4] sm:$0xf] %v198
                %v200 = vld [vmem:[%s194 + $0x8] sm:$0xf]
                %201 = vst [vmem:[%s195 + $0x8] sm:$0xf] %v200
                %v202 = vld [vmem:[%s194 + $0xc] sm:$0xf]
                %203 = vst [vmem:[%s195 + $0xc] sm:$0xf] %v202
                %v204 = vld [vmem:[%s194 + $0x10] sm:$0xf]
                %205 = vst [vmem:[%s195 + $0x10] sm:$0xf] %v204
                %v206 = vld [vmem:[%s194 + $0x14] sm:$0xf]
                %207 = vst [vmem:[%s195 + $0x14] sm:$0xf] %v206
                %v208 = vld [vmem:[%s194 + $0x18] sm:$0xf]
                %209 = vst [vmem:[%s195 + $0x18] sm:$0xf] %v208
                %v210 = vld [vmem:[%s194 + $0x1c] sm:$0xf]
                %211 = vst [vmem:[%s195 + $0x1c] sm:$0xf] %v210
                %v212 = vld [vmem:[%s194 + $0x80] sm:$0xf]
                %213 = vst [vmem:[%s195 + $0x20] sm:$0xf] %v212
                %v214 = vld [vmem:[%s194 + $0x84] sm:$0xf]
                %215 = vst [vmem:[%s195 + $0x24] sm:$0xf] %v214
                %v216 = vld [vmem:[%s194 + $0x88] sm:$0xf]
                %217 = vst [vmem:[%s195 + $0x28] sm:$0xf] %v216
                %v218 = vld [vmem:[%s194 + $0x8c] sm:$0xf]
                %219 = vst [vmem:[%s195 + $0x2c] sm:$0xf] %v218
                %v220 = vld [vmem:[%s194 + $0x90] sm:$0xf]
                %221 = vst [vmem:[%s195 + $0x30] sm:$0xf] %v220
                %v222 = vld [vmem:[%s194 + $0x94] sm:$0xf]
                %223 = vst [vmem:[%s195 + $0x34] sm:$0xf] %v222
                %v224 = vld [vmem:[%s194 + $0x98] sm:$0xf]
                %225 = vst [vmem:[%s195 + $0x38] sm:$0xf] %v224
                %v226 = vld [vmem:[%s194 + $0x9c] sm:$0xf]
                %227 = vst [vmem:[%s195 + $0x3c] sm:$0xf] %v226
              $region37: #{effnet_forward.6} parent=31 // loop_footer
                %s193 = sadd.s32 1, %s189
              $region38: #{effnet_forward.6} parent=31 // loop_footer_branch
                %188 = sbr.rel target = $region34
              $region39: #{effnet_forward.6} parent=31 // loop_exit
                _
            $region32: #{effnet_forward.6} parent=23 // pred_fallthru
              _
          $region24: #{effnet_forward.6} parent=19 // pred_fallthru
            _
          %279 = vnop
        $region20: #{effnet_forward.6} parent=15 // pred_fallthru
          _
        // Predicated region
        $region58: #{effnet_forward.6} parent=15 // pred_check
          %p280 = pneg %p68
        $region59: #{effnet_forward.6} parent=15 // pred_check_branch
          %282 = sbr.rel (%p280) target = $region61
        $region60: #{effnet_forward.6} parent=15 // pred_region
          %s283 = sand.u32 %s58, 1
          %s284 = sand.u32 %s58, 1
          %s285 = smul.addr %s284, 128
          %s286 = scalar_lea.vmem [#allocation4], %s285
          %s287 = smul.u32 2, %s17
          %s288 = smul.addr %s287, 4
          %s289 = scalar_lea.vmem %s1, %s288
          // Predicated region
          $region62: #{effnet_forward.6} parent=60 // pred_check
            _
          $region63: #{effnet_forward.6} parent=60 // pred_check_branch
            %291 = sbr.rel (0) target = $region65
          $region64: #{effnet_forward.6} parent=60 // pred_region
            // Predicated region
            $region66: #{effnet_forward.6} parent=64 // pred_check
              _
            $region67: #{effnet_forward.6} parent=64 // pred_check_branch
              %293 = sbr.rel (0) target = $region69
            $region68: #{effnet_forward.6} parent=64 // pred_region
              // Predicated region
              $region81: #{effnet_forward.6} parent=68 // pred_check
                _
              $region82: #{effnet_forward.6} parent=68 // pred_check_branch
                %338 = sbr.rel (0) target = $region84
              $region83: #{effnet_forward.6} parent=68 // pred_region
                loop: start=0, step=1, limit=1
                $region85: #{effnet_forward.6} parent=83 // loop_pre_header
                  _
                $region86: #{effnet_forward.6} parent=83 // loop_header
                  %s340 = sphi 0, %s344
                  %p341 = scmp.ge.s32.totalorder %s340, 1
                  %s345 = sphi %s289, %s289
                  %s346 = sphi %s286, %s286
                $region87: #{effnet_forward.6} parent=83 // loop_header_branch
                  %343 = sbr.rel (%p341) target = $region91
                $region88: #{effnet_forward.6} parent=83 // loop_body
                  %v347 = vld [vmem:[%s345] sm:$0xff]
                  %348 = vst [vmem:[%s346] sm:$0xff] %v347
                  %v349 = vld [vmem:[%s345 + $0x38] sm:$0xff]
                  %350 = vst [vmem:[%s346 + $0x8] sm:$0xff] %v349
                  %v351 = vld [vmem:[%s345 + $0x70] sm:$0xff]
                  %352 = vst [vmem:[%s346 + $0x10] sm:$0xff] %v351
                  %v353 = vld [vmem:[%s345 + $0xa8] sm:$0xff]
                  %354 = vst [vmem:[%s346 + $0x18] sm:$0xff] %v353
                  %v355 = vld [vmem:[%s345 + $0xe0] sm:$0xff]
                  %356 = vst [vmem:[%s346 + $0x20] sm:$0xff] %v355
                  %v357 = vld [vmem:[%s345 + $0x118] sm:$0xff]
                  %358 = vst [vmem:[%s346 + $0x28] sm:$0xff] %v357
                  %v359 = vld [vmem:[%s345 + $0x150] sm:$0xff]
                  %360 = vst [vmem:[%s346 + $0x30] sm:$0xff] %v359
                  %v361 = vld [vmem:[%s345 + $0x188] sm:$0xff]
                  %362 = vst [vmem:[%s346 + $0x38] sm:$0xff] %v361
                  %v363 = vld [vmem:[%s345 + $0x1c0] sm:$0xff]
                  %364 = vst [vmem:[%s346 + $0x40] sm:$0xff] %v363
                  %v365 = vld [vmem:[%s345 + $0x1f8] sm:$0xff]
                  %366 = vst [vmem:[%s346 + $0x48] sm:$0xff] %v365
                  %v367 = vld [vmem:[%s345 + $0x230] sm:$0xff]
                  %368 = vst [vmem:[%s346 + $0x50] sm:$0xff] %v367
                  %v369 = vld [vmem:[%s345 + $0x268] sm:$0xff]
                  %370 = vst [vmem:[%s346 + $0x58] sm:$0xff] %v369
                  %v371 = vld [vmem:[%s345 + $0x2a0] sm:$0xff]
                  %372 = vst [vmem:[%s346 + $0x60] sm:$0xff] %v371
                  %v373 = vld [vmem:[%s345 + $0x2d8] sm:$0xff]
                  %374 = vst [vmem:[%s346 + $0x68] sm:$0xff] %v373
                  %v375 = vld [vmem:[%s345 + $0x310] sm:$0xff]
                  %376 = vst [vmem:[%s346 + $0x70] sm:$0xff] %v375
                  %v377 = vld [vmem:[%s345 + $0x348] sm:$0xff]
                  %378 = vst [vmem:[%s346 + $0x78] sm:$0xff] %v377
                $region89: #{effnet_forward.6} parent=83 // loop_footer
                  %s344 = sadd.s32 1, %s340
                $region90: #{effnet_forward.6} parent=83 // loop_footer_branch
                  %339 = sbr.rel target = $region86
                $region91: #{effnet_forward.6} parent=83 // loop_exit
                  _
              $region84: #{effnet_forward.6} parent=68 // pred_fallthru
                _
              // Predicated region
              $region92: #{effnet_forward.6} parent=68 // pred_check
                _
              $region93: #{effnet_forward.6} parent=68 // pred_check_branch
                %380 = sbr.rel target = $region95
              $region94: #{effnet_forward.6} parent=68 // pred_region
                _
              $region95: #{effnet_forward.6} parent=68 // pred_fallthru
                _
            $region69: #{effnet_forward.6} parent=64 // pred_fallthru
              _
            // Predicated region
            $region70: #{effnet_forward.6} parent=64 // pred_check
              _
            $region71: #{effnet_forward.6} parent=64 // pred_check_branch
              %295 = sbr.rel target = $region73
            $region72: #{effnet_forward.6} parent=64 // pred_region
              loop: start=0, step=1, limit=1
              $region74: #{effnet_forward.6} parent=72 // loop_pre_header
                _
              $region75: #{effnet_forward.6} parent=72 // loop_header
                %s298 = sphi 0, %s302
                %p299 = scmp.ge.s32.totalorder %s298, 1
                %s303 = sphi %s289, %s289
                %s304 = sphi %s286, %s286
              $region76: #{effnet_forward.6} parent=72 // loop_header_branch
                %301 = sbr.rel (%p299) target = $region80
              $region77: #{effnet_forward.6} parent=72 // loop_body
                %v305 = vld [vmem:[%s303] sm:$0xff]
                %306 = vst [vmem:[%s304] sm:$0xff] %v305
                %v307 = vld [vmem:[%s303 + $0x38] sm:$0xff]
                %308 = vst [vmem:[%s304 + $0x8] sm:$0xff] %v307
                %v309 = vld [vmem:[%s303 + $0x70] sm:$0xff]
                %310 = vst [vmem:[%s304 + $0x10] sm:$0xff] %v309
                %v311 = vld [vmem:[%s303 + $0xa8] sm:$0xff]
                %312 = vst [vmem:[%s304 + $0x18] sm:$0xff] %v311
                %v313 = vld [vmem:[%s303 + $0xe0] sm:$0xff]
                %314 = vst [vmem:[%s304 + $0x20] sm:$0xff] %v313
                %v315 = vld [vmem:[%s303 + $0x118] sm:$0xff]
                %316 = vst [vmem:[%s304 + $0x28] sm:$0xff] %v315
                %v317 = vld [vmem:[%s303 + $0x150] sm:$0xff]
                %318 = vst [vmem:[%s304 + $0x30] sm:$0xff] %v317
                %v319 = vld [vmem:[%s303 + $0x188] sm:$0xff]
                %320 = vst [vmem:[%s304 + $0x38] sm:$0xff] %v319
                %v321 = vld [vmem:[%s303 + $0x1c0] sm:$0xff]
                %322 = vst [vmem:[%s304 + $0x40] sm:$0xff] %v321
                %v323 = vld [vmem:[%s303 + $0x1f8] sm:$0xff]
                %324 = vst [vmem:[%s304 + $0x48] sm:$0xff] %v323
                %v325 = vld [vmem:[%s303 + $0x230] sm:$0xff]
                %326 = vst [vmem:[%s304 + $0x50] sm:$0xff] %v325
                %v327 = vld [vmem:[%s303 + $0x268] sm:$0xff]
                %328 = vst [vmem:[%s304 + $0x58] sm:$0xff] %v327
                %v329 = vld [vmem:[%s303 + $0x2a0] sm:$0xff]
                %330 = vst [vmem:[%s304 + $0x60] sm:$0xff] %v329
                %v331 = vld [vmem:[%s303 + $0x2d8] sm:$0xff]
                %332 = vst [vmem:[%s304 + $0x68] sm:$0xff] %v331
                %v333 = vld [vmem:[%s303 + $0x310] sm:$0xff]
                %334 = vst [vmem:[%s304 + $0x70] sm:$0xff] %v333
                %v335 = vld [vmem:[%s303 + $0x348] sm:$0xff]
                %336 = vst [vmem:[%s304 + $0x78] sm:$0xff] %v335
              $region78: #{effnet_forward.6} parent=72 // loop_footer
                %s302 = sadd.s32 1, %s298
              $region79: #{effnet_forward.6} parent=72 // loop_footer_branch
                %297 = sbr.rel target = $region75
              $region80: #{effnet_forward.6} parent=72 // loop_exit
                _
            $region73: #{effnet_forward.6} parent=64 // pred_fallthru
              _
          $region65: #{effnet_forward.6} parent=60 // pred_fallthru
            _
          %381 = vnop
        $region61: #{effnet_forward.6} parent=15 // pred_fallthru
          _
        // Predicated region
        $region96: #{effnet_forward.6} parent=15 // pred_check
          %p382 = pneg %p94
        $region97: #{effnet_forward.6} parent=15 // pred_check_branch
          %384 = sbr.rel (%p382) target = $region99
        $region98: #{effnet_forward.6} parent=15 // pred_region
          %s385 = smul.u32 2, %s17
          %p386 = scmp.lt.s32.totalorder %s385, 13
          %s387 = scalar_select %p386, %s385, 13
          %s388 = scalar_lea.vmem %s2, %s387
          %s389 = smul.u32 2, %s17
        $region99: #{effnet_forward.6} parent=15 // pred_fallthru
          _
        // Predicated region
        $region100: #{effnet_forward.6} parent=15 // pred_check
          %p390 = pneg %p120
        $region101: #{effnet_forward.6} parent=15 // pred_check_branch
          %392 = sbr.rel (%p390) target = $region103
        $region102: #{effnet_forward.6} parent=15 // pred_region
          %s393 = smul.u32 2, %s17
          %p394 = scmp.lt.s32.totalorder %s393, 13
          %s395 = scalar_select %p394, %s393, 13
          %s396 = scalar_lea.vmem %s3, %s395
          %s397 = smul.u32 2, %s17
        $region103: #{effnet_forward.6} parent=15 // pred_fallthru
          _
      $region16: #{effnet_forward.6} parent=5 // pred_fallthru
        _
      %p398 = scmp.le.s32.totalorder 1, %s10
      %p399 = scmp.lt.s32.totalorder %s10, 29
      %p400 = pnand %p398, %p399
      %p401 = pneg %p400
      // Predicated region
      $region104: #{effnet_forward.6} parent=5 // pred_check
        _
      $region105: #{effnet_forward.6} parent=5 // pred_check_branch
        %403 = sbr.rel (%p400) target = $region107
      $region106: #{effnet_forward.6} parent=5 // pred_region
        %s404 = ssub.s32 %s10, 1
        %s405 = sand.u32 %s35, 1
        %s406 = sand.u32 %s35, 1
        %s407 = smul.addr %s406, 64
        %s408 = scalar_lea.vmem [#allocation3], %s407
        // Predicated region
        $region108: #{effnet_forward.6} parent=106 // pred_check
          %p409 = pneg %p48
        $region109: #{effnet_forward.6} parent=106 // pred_check_branch
          %411 = sbr.rel (%p409) target = $region111
        $region110: #{effnet_forward.6} parent=106 // pred_region
          _
        $region111: #{effnet_forward.6} parent=106 // pred_fallthru
          _
        %s412 = sand.u32 %s61, 1
        %s413 = sand.u32 %s61, 1
        %s414 = smul.addr %s413, 128
        %s415 = scalar_lea.vmem [#allocation4], %s414
        // Predicated region
        $region112: #{effnet_forward.6} parent=106 // pred_check
          %p416 = pneg %p74
        $region113: #{effnet_forward.6} parent=106 // pred_check_branch
          %418 = sbr.rel (%p416) target = $region115
        $region114: #{effnet_forward.6} parent=106 // pred_region
          _
        $region115: #{effnet_forward.6} parent=106 // pred_fallthru
          _
        %s419 = sand.u32 %s35, 1
        %s420 = sand.u32 %s35, 1
        %s421 = smul.addr %s420, 64
        %s422 = scalar_lea.vmem [#allocation3], %s421
        %p423 = pneg %p48
        %p424 = pneg %p45
        %s425 = sand.u32 %s61, 1
        %s426 = sand.u32 %s61, 1
        %s427 = smul.addr %s426, 128
        %s428 = scalar_lea.vmem [#allocation4], %s427
        %p429 = pneg %p74
        %p430 = pneg %p71
        %s431 = smul.u32 2, %s19
        %p432 = scmp.lt.s32.totalorder %s431, 13
        %s433 = scalar_select %p432, %s431, 13
        %s434 = scalar_lea.vmem %s2, %s433
        %p435 = pneg %p100
        %p436 = pneg %p97
        %s437 = smul.u32 2, %s19
        %p438 = scmp.lt.s32.totalorder %s437, 13
        %s439 = scalar_select %p438, %s437, 13
        %s440 = scalar_lea.vmem %s3, %s439
        %p441 = pneg %p126
        %p442 = pneg %p123
        %p443 = pneg %p152
        %p444 = pneg %p149
        %s445 = smul.u32 2, %s19
        %p446 = scmp.lt.s32.totalorder %s445, 13
        %s447 = scalar_select %p446, %s445, 13
        %s448 = smul.addr %s447, 2
        %s449 = scalar_lea.vmem %s4, %s448
        %s450 = smul.u32 8, %s20
        %s451 = smul.u32 2, %s19
        %s452 = smul.u32 2, %s19
        %p453 = scmp.lt.s32.totalorder %s452, 13
        %s454 = scalar_select %p453, %s452, 13
        %s455 = scalar_lea.vmem %s2, %s454
        %s456 = smul.u32 2, %s19
        %s457 = smul.u32 2, %s19
        %p458 = scmp.lt.s32.totalorder %s457, 13
        %s459 = scalar_select %p458, %s457, 13
        %s460 = scalar_lea.vmem %s3, %s459
        %s461 = smul.u32 2, %s19
        %s462 = smul.u32 2, %s19
        %p463 = scmp.lt.s32.totalorder %s462, 13
        %s464 = scalar_select %p463, %s462, 13
        %s465 = smul.addr %s464, 2
        %s466 = scalar_lea.vmem %s4, %s465
        %s467 = smul.u32 2, %s19
        %p469 = scmp.eq.s32.totalorder %s20, 0
        // Predicated region
        $region116: #{effnet_forward.6} parent=106 // pred_check
          %p470 = pneg %p469
        $region117: #{effnet_forward.6} parent=106 // pred_check_branch
          %472 = sbr.rel (%p470) target = $region119
        $region118: #{effnet_forward.6} parent=106 // pred_region
          %473 = vst [vmem:[#allocation2] sm:$0xf] 0.0
        $region119: #{effnet_forward.6} parent=106 // pred_fallthru
          _
        %v474 = vld [vmem:[%s408] sm:$0xf]
        %v475 = vld [vmem:[%s408 + $0x4] sm:$0xf]
        %v476 = vld [vmem:[%s408 + $0x8] sm:$0xf]
        %v477 = vld [vmem:[%s408 + $0xc] sm:$0xf]
        %v478 = vld [vmem:[%s408 + $0x10] sm:$0xf]
        %v479 = vld [vmem:[%s408 + $0x14] sm:$0xf]
        %v480 = vld [vmem:[%s408 + $0x18] sm:$0xf]
        %v481 = vld [vmem:[%s408 + $0x1c] sm:$0xf]
        %v482 = vld [vmem:[%s408 + $0x20] sm:$0xf]
        %v483 = vld [vmem:[%s408 + $0x24] sm:$0xf]
        %v484 = vld [vmem:[%s408 + $0x28] sm:$0xf]
        %v485 = vld [vmem:[%s408 + $0x2c] sm:$0xf]
        %v486 = vld [vmem:[%s408 + $0x30] sm:$0xf]
        %v487 = vld [vmem:[%s408 + $0x34] sm:$0xf]
        %v488 = vld [vmem:[%s408 + $0x38] sm:$0xf]
        %v489 = vld [vmem:[%s408 + $0x3c] sm:$0xf]
        %v490 = vld [vmem:[%s415] sm:$0xff]
        %v491 = vld [vmem:[%s415 + $0x8] sm:$0xff]
        %v492 = vld [vmem:[%s415 + $0x10] sm:$0xff]
        %v493 = vld [vmem:[%s415 + $0x18] sm:$0xff]
        %v494 = vld [vmem:[%s415 + $0x20] sm:$0xff]
        %v495 = vld [vmem:[%s415 + $0x28] sm:$0xff]
        %v496 = vld [vmem:[%s415 + $0x30] sm:$0xff]
        %v497 = vld [vmem:[%s415 + $0x38] sm:$0xff]
        %v498 = vld [vmem:[%s415 + $0x40] sm:$0xff]
        %v499 = vld [vmem:[%s415 + $0x48] sm:$0xff]
        %v500 = vld [vmem:[%s415 + $0x50] sm:$0xff]
        %v501 = vld [vmem:[%s415 + $0x58] sm:$0xff]
        %v502 = vld [vmem:[%s415 + $0x60] sm:$0xff]
        %v503 = vld [vmem:[%s415 + $0x68] sm:$0xff]
        %v504 = vld [vmem:[%s415 + $0x70] sm:$0xff]
        %v505 = vld [vmem:[%s415 + $0x78] sm:$0xff]
        %v522 = vunpack.c.l.b16 %v474
        %v523 = vunpack.c.l.b16 %v475
        %v524 = vunpack.c.l.b16 %v476
        %v525 = vunpack.c.l.b16 %v477
        %v526 = vunpack.c.l.b16 %v478
        %v527 = vunpack.c.l.b16 %v479
        %v528 = vunpack.c.l.b16 %v480
        %v529 = vunpack.c.l.b16 %v481
        %v530 = vunpack.c.l.b16 %v482
        %v531 = vunpack.c.l.b16 %v483
        %v532 = vunpack.c.l.b16 %v484
        %v533 = vunpack.c.l.b16 %v485
        %v534 = vunpack.c.l.b16 %v486
        %v535 = vunpack.c.l.b16 %v487
        %v536 = vunpack.c.l.b16 %v488
        %v537 = vunpack.c.l.b16 %v489
        %v538 = vpack.c.b16 %v523, %v522
        %v539 = vpack.c.b16 %v525, %v524
        %v540 = vpack.c.b16 %v527, %v526
        %v541 = vpack.c.b16 %v529, %v528
        %v542 = vpack.c.b16 %v531, %v530
        %v543 = vpack.c.b16 %v533, %v532
        %v544 = vpack.c.b16 %v535, %v534
        %v545 = vpack.c.b16 %v537, %v536
        %v570 = vunpack.c.l.b16 %v490
        %v571 = vunpack.c.h.b16 %v490
        %v572 = vunpack.c.l.b16 %v491
        %v573 = vunpack.c.h.b16 %v491
        %v574 = vunpack.c.l.b16 %v492
        %v575 = vunpack.c.h.b16 %v492
        %v576 = vunpack.c.l.b16 %v493
        %v577 = vunpack.c.h.b16 %v493
        %v578 = vunpack.c.l.b16 %v494
        %v579 = vunpack.c.h.b16 %v494
        %v580 = vunpack.c.l.b16 %v495
        %v581 = vunpack.c.h.b16 %v495
        %v582 = vunpack.c.l.b16 %v496
        %v583 = vunpack.c.h.b16 %v496
        %v584 = vunpack.c.l.b16 %v497
        %v585 = vunpack.c.h.b16 %v497
        %v586 = vunpack.c.l.b16 %v498
        %v587 = vunpack.c.h.b16 %v498
        %v588 = vunpack.c.l.b16 %v499
        %v589 = vunpack.c.h.b16 %v499
        %v590 = vunpack.c.l.b16 %v500
        %v591 = vunpack.c.h.b16 %v500
        %v592 = vunpack.c.l.b16 %v501
        %v593 = vunpack.c.h.b16 %v501
        %v594 = vunpack.c.l.b16 %v502
        %v595 = vunpack.c.h.b16 %v502
        %v596 = vunpack.c.l.b16 %v503
        %v597 = vunpack.c.h.b16 %v503
        %v598 = vunpack.c.l.b16 %v504
        %v599 = vunpack.c.h.b16 %v504
        %v600 = vunpack.c.l.b16 %v505
        %v601 = vunpack.c.h.b16 %v505
        %v602 = vpack.c.b16 %v572, %v570
        %v603 = vpack.c.b16 %v573, %v571
        %v604 = vpack.c.b16 %v576, %v574
        %v605 = vpack.c.b16 %v577, %v575
        %v606 = vpack.c.b16 %v580, %v578
        %v607 = vpack.c.b16 %v581, %v579
        %v608 = vpack.c.b16 %v584, %v582
        %v609 = vpack.c.b16 %v585, %v583
        %v610 = vpack.c.b16 %v588, %v586
        %v611 = vpack.c.b16 %v589, %v587
        %v612 = vpack.c.b16 %v592, %v590
        %v613 = vpack.c.b16 %v593, %v591
        %v614 = vpack.c.b16 %v596, %v594
        %v615 = vpack.c.b16 %v597, %v595
        %v616 = vpack.c.b16 %v600, %v598
        %v617 = vpack.c.b16 %v601, %v599
        %634 = vmatprep.subr.bf16.mxu0 %v603
        %635 = vmatpush1.bf16.msra.mxu0 %v602
        %636 = vmatprep.subr.bf16.mxu0 %v605
        %637 = vmatpush1.bf16.msra.mxu0 %v604
        %638 = vmatprep.subr.bf16.mxu0 %v607
        %639 = vmatpush1.bf16.msra.mxu0 %v606
        %640 = vmatprep.subr.bf16.mxu0 %v609
        %641 = vmatpush1.bf16.msra.mxu0 %v608
        %642 = vmatprep.subr.bf16.mxu0 %v611
        %643 = vmatpush1.bf16.msra.mxu0 %v610
        %644 = vmatprep.subr.bf16.mxu0 %v613
        %645 = vmatpush1.bf16.msra.mxu0 %v612
        %646 = vmatprep.subr.bf16.mxu0 %v615
        %647 = vmatpush1.bf16.msra.mxu0 %v614
        %648 = vmatprep.subr.bf16.mxu0 %v617
        %649 = vmatpush1.bf16.msra.mxu0 %v616
        %650 = vmatprep.subr.bf16.mxu0 0
        %651 = vmatpush1.bf16.msra.mxu0 0
        %652 = vmatprep.subr.bf16.mxu0 0
        %653 = vmatpush1.bf16.msra.mxu0 0
        %654 = vmatprep.subr.bf16.mxu0 0
        %655 = vmatpush1.bf16.msra.mxu0 0
        %656 = vmatprep.subr.bf16.mxu0 0
        %657 = vmatpush1.bf16.msra.mxu0 0
        %658 = vmatprep.subr.bf16.mxu0 0
        %659 = vmatpush1.bf16.msra.mxu0 0
        %660 = vmatprep.subr.bf16.mxu0 0
        %661 = vmatpush1.bf16.msra.mxu0 0
        %662 = vmatprep.subr.bf16.mxu0 0
        %663 = vmatpush1.bf16.msra.mxu0 0
        %664 = vmatprep.subr.bf16.mxu0 0
        %665 = vmatpush1.bf16.msra.mxu0 0
        %666 = vmatprep.mubr.bf16.mxu0 0
        %667 = vmatmul.mubr.bf16.gmra.mrb[0].mxu0 %v538
        %v668 = vpop.f32.mrb[0].mxu0
        %v669 = vadd.f32 0.0, %v668
        %v670 = vpop.f32.mrb[0].mxu0
        %v671 = vadd.f32 0.0, %v670
        %v672 = vpop.f32.mrb[0].mxu0
        %v673 = vadd.f32 0.0, %v672
        %v674 = vpop.f32.mrb[0].mxu0
        %v675 = vadd.f32 0.0, %v674
        %676 = vmatprep.mubr.bf16.mxu0 0
        %677 = vmatmul.mubr.bf16.gmra.mrb[0].mxu0 %v539
        %v678 = vpop.f32.mrb[0].mxu0
        %v679 = vadd.f32 0.0, %v678
        %v680 = vpop.f32.mrb[0].mxu0
        %v681 = vadd.f32 0.0, %v680
        %v682 = vpop.f32.mrb[0].mxu0
        %v683 = vadd.f32 0.0, %v682
        %v684 = vpop.f32.mrb[0].mxu0
        %v685 = vadd.f32 0.0, %v684
        %686 = vmatprep.mubr.bf16.mxu0 0
        %687 = vmatmul.mubr.bf16.gmra.mrb[0].mxu0 %v540
        %v688 = vpop.f32.mrb[0].mxu0
        %v689 = vadd.f32 0.0, %v688
        %v690 = vpop.f32.mrb[0].mxu0
        %v691 = vadd.f32 0.0, %v690
        %v692 = vpop.f32.mrb[0].mxu0
        %v693 = vadd.f32 0.0, %v692
        %v694 = vpop.f32.mrb[0].mxu0
        %v695 = vadd.f32 0.0, %v694
        %696 = vmatprep.mubr.bf16.mxu0 0
        %697 = vmatmul.mubr.bf16.gmra.mrb[0].mxu0 %v541
        %v698 = vpop.f32.mrb[0].mxu0
        %v699 = vadd.f32 0.0, %v698
        %v700 = vpop.f32.mrb[0].mxu0
        %v701 = vadd.f32 0.0, %v700
        %v702 = vpop.f32.mrb[0].mxu0
        %v703 = vadd.f32 0.0, %v702
        %v704 = vpop.f32.mrb[0].mxu0
        %v705 = vadd.f32 0.0, %v704
        %706 = vmatprep.mubr.bf16.mxu0 0
        %707 = vmatmul.mubr.bf16.gmra.mrb[0].mxu0 %v542
        %v708 = vpop.f32.mrb[0].mxu0
        %v709 = vadd.f32 0.0, %v708
        %v710 = vpop.f32.mrb[0].mxu0
        %v711 = vadd.f32 0.0, %v710
        %v712 = vpop.f32.mrb[0].mxu0
        %v713 = vadd.f32 0.0, %v712
        %v714 = vpop.f32.mrb[0].mxu0
        %v715 = vadd.f32 0.0, %v714
        %716 = vmatprep.mubr.bf16.mxu0 0
        %717 = vmatmul.mubr.bf16.gmra.mrb[0].mxu0 %v543
        %v718 = vpop.f32.mrb[0].mxu0
        %v719 = vadd.f32 0.0, %v718
        %v720 = vpop.f32.mrb[0].mxu0
        %v721 = vadd.f32 0.0, %v720
        %v722 = vpop.f32.mrb[0].mxu0
        %v723 = vadd.f32 0.0, %v722
        %v724 = vpop.f32.mrb[0].mxu0
        %v725 = vadd.f32 0.0, %v724
        %726 = vmatprep.mubr.bf16.mxu0 0
        %727 = vmatmul.mubr.bf16.gmra.mrb[0].mxu0 %v544
        %v728 = vpop.f32.mrb[0].mxu0
        %v729 = vadd.f32 0.0, %v728
        %v730 = vpop.f32.mrb[0].mxu0
        %v731 = vadd.f32 0.0, %v730
        %v732 = vpop.f32.mrb[0].mxu0
        %v733 = vadd.f32 0.0, %v732
        %v734 = vpop.f32.mrb[0].mxu0
        %v735 = vadd.f32 0.0, %v734
        %736 = vmatprep.mubr.bf16.mxu0 0
        %737 = vmatmul.mubr.bf16.gmra.mrb[0].mxu0 %v545
        %v738 = vpop.f32.mrb[0].mxu0
        %v739 = vadd.f32 0.0, %v738
        %v740 = vpop.f32.mrb[0].mxu0
        %v741 = vadd.f32 0.0, %v740
        %v742 = vpop.f32.mrb[0].mxu0
        %v743 = vadd.f32 0.0, %v742
        %v744 = vpop.f32.mrb[0].mxu0
        %v745 = vadd.f32 0.0, %v744
        %746 = vdwg.mxu0
        %v747 = vld [vmem:[%s455] sm:$0x3]
        %v749 = vlaneseq
        %v750 = vshrl.u32 %v749, 7
        %v751 = vsub.s32 0, %v750
        %v752 = vrot.slane %v747, %v751
        %v753 = vlaneseq
        %v754 = vshrl.u32 %v753, 7
        %v755 = vsub.s32 1, %v754
        %v756 = vrot.slane %v747, %v755
        %v759 = vmul.f32 %v669, %v752
        %v760 = vmul.f32 %v671, %v756
        %v761 = vmul.f32 %v673, %v752
        %v762 = vmul.f32 %v675, %v756
        %v763 = vmul.f32 %v679, %v752
        %v764 = vmul.f32 %v681, %v756
        %v765 = vmul.f32 %v683, %v752
        %v766 = vmul.f32 %v685, %v756
        %v767 = vmul.f32 %v689, %v752
        %v768 = vmul.f32 %v691, %v756
        %v769 = vmul.f32 %v693, %v752
        %v770 = vmul.f32 %v695, %v756
        %v771 = vmul.f32 %v699, %v752
        %v772 = vmul.f32 %v701, %v756
        %v773 = vmul.f32 %v703, %v752
        %v774 = vmul.f32 %v705, %v756
        %v775 = vmul.f32 %v709, %v752
        %v776 = vmul.f32 %v711, %v756
        %v777 = vmul.f32 %v713, %v752
        %v778 = vmul.f32 %v715, %v756
        %v779 = vmul.f32 %v719, %v752
        %v780 = vmul.f32 %v721, %v756
        %v781 = vmul.f32 %v723, %v752
        %v782 = vmul.f32 %v725, %v756
        %v783 = vmul.f32 %v729, %v752
        %v784 = vmul.f32 %v731, %v756
        %v785 = vmul.f32 %v733, %v752
        %v786 = vmul.f32 %v735, %v756
        %v787 = vmul.f32 %v739, %v752
        %v788 = vmul.f32 %v741, %v756
        %v789 = vmul.f32 %v743, %v752
        %v790 = vmul.f32 %v745, %v756
        %v791 = vld [vmem:[%s460] sm:$0x3]
        %v793 = vlaneseq
        %v794 = vshrl.u32 %v793, 7
        %v795 = vsub.s32 0, %v794
        %v796 = vrot.slane %v791, %v795
        %v797 = vlaneseq
        %v798 = vshrl.u32 %v797, 7
        %v799 = vsub.s32 1, %v798
        %v800 = vrot.slane %v791, %v799
        %v803 = vadd.f32 %v759, %v796
        %v804 = vadd.f32 %v760, %v800
        %v805 = vadd.f32 %v761, %v796
        %v806 = vadd.f32 %v762, %v800
        %v807 = vadd.f32 %v763, %v796
        %v808 = vadd.f32 %v764, %v800
        %v809 = vadd.f32 %v765, %v796
        %v810 = vadd.f32 %v766, %v800
        %v811 = vadd.f32 %v767, %v796
        %v812 = vadd.f32 %v768, %v800
        %v813 = vadd.f32 %v769, %v796
        %v814 = vadd.f32 %v770, %v800
        %v815 = vadd.f32 %v771, %v796
        %v816 = vadd.f32 %v772, %v800
        %v817 = vadd.f32 %v773, %v796
        %v818 = vadd.f32 %v774, %v800
        %v819 = vadd.f32 %v775, %v796
        %v820 = vadd.f32 %v776, %v800
        %v821 = vadd.f32 %v777, %v796
        %v822 = vadd.f32 %v778, %v800
        %v823 = vadd.f32 %v779, %v796
        %v824 = vadd.f32 %v780, %v800
        %v825 = vadd.f32 %v781, %v796
        %v826 = vadd.f32 %v782, %v800
        %v827 = vadd.f32 %v783, %v796
        %v828 = vadd.f32 %v784, %v800
        %v829 = vadd.f32 %v785, %v796
        %v830 = vadd.f32 %v786, %v800
        %v831 = vadd.f32 %v787, %v796
        %v832 = vadd.f32 %v788, %v800
        %v833 = vadd.f32 %v789, %v796
        %v834 = vadd.f32 %v790, %v800
        %v835 = vxor.u32 %v803, 2147483648
        %v836 = vxor.u32 %v804, 2147483648
        %v837 = vxor.u32 %v805, 2147483648
        %v838 = vxor.u32 %v806, 2147483648
        %v839 = vxor.u32 %v807, 2147483648
        %v840 = vxor.u32 %v808, 2147483648
        %v841 = vxor.u32 %v809, 2147483648
        %v842 = vxor.u32 %v810, 2147483648
        %v843 = vxor.u32 %v811, 2147483648
        %v844 = vxor.u32 %v812, 2147483648
        %v845 = vxor.u32 %v813, 2147483648
        %v846 = vxor.u32 %v814, 2147483648
        %v847 = vxor.u32 %v815, 2147483648
        %v848 = vxor.u32 %v816, 2147483648
        %v849 = vxor.u32 %v817, 2147483648
        %v850 = vxor.u32 %v818, 2147483648
        %v851 = vxor.u32 %v819, 2147483648
        %v852 = vxor.u32 %v820, 2147483648
        %v853 = vxor.u32 %v821, 2147483648
        %v854 = vxor.u32 %v822, 2147483648
        %v855 = vxor.u32 %v823, 2147483648
        %v856 = vxor.u32 %v824, 2147483648
        %v857 = vxor.u32 %v825, 2147483648
        %v858 = vxor.u32 %v826, 2147483648
        %v859 = vxor.u32 %v827, 2147483648
        %v860 = vxor.u32 %v828, 2147483648
        %v861 = vxor.u32 %v829, 2147483648
        %v862 = vxor.u32 %v830, 2147483648
        %v863 = vxor.u32 %v831, 2147483648
        %v864 = vxor.u32 %v832, 2147483648
        %v865 = vxor.u32 %v833, 2147483648
        %v866 = vxor.u32 %v834, 2147483648
        %v867 = vmul.f32 %v835, 1.442695
        %v868 = vpow.pop %v867
        %v869 = vmul.f32 %v836, 1.442695
        %v870 = vpow.pop %v869
        %v871 = vmul.f32 %v837, 1.442695
        %v872 = vpow.pop %v871
        %v873 = vmul.f32 %v838, 1.442695
        %v874 = vpow.pop %v873
        %v875 = vmul.f32 %v839, 1.442695
        %v876 = vpow.pop %v875
        %v877 = vmul.f32 %v840, 1.442695
        %v878 = vpow.pop %v877
        %v879 = vmul.f32 %v841, 1.442695
        %v880 = vpow.pop %v879
        %v881 = vmul.f32 %v842, 1.442695
        %v882 = vpow.pop %v881
        %v883 = vmul.f32 %v843, 1.442695
        %v884 = vpow.pop %v883
        %v885 = vmul.f32 %v844, 1.442695
        %v886 = vpow.pop %v885
        %v887 = vmul.f32 %v845, 1.442695
        %v888 = vpow.pop %v887
        %v889 = vmul.f32 %v846, 1.442695
        %v890 = vpow.pop %v889
        %v891 = vmul.f32 %v847, 1.442695
        %v892 = vpow.pop %v891
        %v893 = vmul.f32 %v848, 1.442695
        %v894 = vpow.pop %v893
        %v895 = vmul.f32 %v849, 1.442695
        %v896 = vpow.pop %v895
        %v897 = vmul.f32 %v850, 1.442695
        %v898 = vpow.pop %v897
        %v899 = vmul.f32 %v851, 1.442695
        %v900 = vpow.pop %v899
        %v901 = vmul.f32 %v852, 1.442695
        %v902 = vpow.pop %v901
        %v903 = vmul.f32 %v853, 1.442695
        %v904 = vpow.pop %v903
        %v905 = vmul.f32 %v854, 1.442695
        %v906 = vpow.pop %v905
        %v907 = vmul.f32 %v855, 1.442695
        %v908 = vpow.pop %v907
        %v909 = vmul.f32 %v856, 1.442695
        %v910 = vpow.pop %v909
        %v911 = vmul.f32 %v857, 1.442695
        %v912 = vpow.pop %v911
        %v913 = vmul.f32 %v858, 1.442695
        %v914 = vpow.pop %v913
        %v915 = vmul.f32 %v859, 1.442695
        %v916 = vpow.pop %v915
        %v917 = vmul.f32 %v860, 1.442695
        %v918 = vpow.pop %v917
        %v919 = vmul.f32 %v861, 1.442695
        %v920 = vpow.pop %v919
        %v921 = vmul.f32 %v862, 1.442695
        %v922 = vpow.pop %v921
        %v923 = vmul.f32 %v863, 1.442695
        %v924 = vpow.pop %v923
        %v925 = vmul.f32 %v864, 1.442695
        %v926 = vpow.pop %v925
        %v927 = vmul.f32 %v865, 1.442695
        %v928 = vpow.pop %v927
        %v929 = vmul.f32 %v866, 1.442695
        %v930 = vpow.pop %v929
        %v931 = vadd.f32 %v868, 1.0
        %v932 = vadd.f32 %v870, 1.0
        %v933 = vadd.f32 %v872, 1.0
        %v934 = vadd.f32 %v874, 1.0
        %v935 = vadd.f32 %v876, 1.0
        %v936 = vadd.f32 %v878, 1.0
        %v937 = vadd.f32 %v880, 1.0
        %v938 = vadd.f32 %v882, 1.0
        %v939 = vadd.f32 %v884, 1.0
        %v940 = vadd.f32 %v886, 1.0
        %v941 = vadd.f32 %v888, 1.0
        %v942 = vadd.f32 %v890, 1.0
        %v943 = vadd.f32 %v892, 1.0
        %v944 = vadd.f32 %v894, 1.0
        %v945 = vadd.f32 %v896, 1.0
        %v946 = vadd.f32 %v898, 1.0
        %v947 = vadd.f32 %v900, 1.0
        %v948 = vadd.f32 %v902, 1.0
        %v949 = vadd.f32 %v904, 1.0
        %v950 = vadd.f32 %v906, 1.0
        %v951 = vadd.f32 %v908, 1.0
        %v952 = vadd.f32 %v910, 1.0
        %v953 = vadd.f32 %v912, 1.0
        %v954 = vadd.f32 %v914, 1.0
        %v955 = vadd.f32 %v916, 1.0
        %v956 = vadd.f32 %v918, 1.0
        %v957 = vadd.f32 %v920, 1.0
        %v958 = vadd.f32 %v922, 1.0
        %v959 = vadd.f32 %v924, 1.0
        %v960 = vadd.f32 %v926, 1.0
        %v961 = vadd.f32 %v928, 1.0
        %v962 = vadd.f32 %v930, 1.0
        %v963 = vrcp.pop %v931
        %v964 = vmul.f32 1.0, %v963
        %v965 = vrcp.pop %v932
        %v966 = vmul.f32 1.0, %v965
        %v967 = vrcp.pop %v933
        %v968 = vmul.f32 1.0, %v967
        %v969 = vrcp.pop %v934
        %v970 = vmul.f32 1.0, %v969
        %v971 = vrcp.pop %v935
        %v972 = vmul.f32 1.0, %v971
        %v973 = vrcp.pop %v936
        %v974 = vmul.f32 1.0, %v973
        %v975 = vrcp.pop %v937
        %v976 = vmul.f32 1.0, %v975
        %v977 = vrcp.pop %v938
        %v978 = vmul.f32 1.0, %v977
        %v979 = vrcp.pop %v939
        %v980 = vmul.f32 1.0, %v979
        %v981 = vrcp.pop %v940
        %v982 = vmul.f32 1.0, %v981
        %v983 = vrcp.pop %v941
        %v984 = vmul.f32 1.0, %v983
        %v985 = vrcp.pop %v942
        %v986 = vmul.f32 1.0, %v985
        %v987 = vrcp.pop %v943
        %v988 = vmul.f32 1.0, %v987
        %v989 = vrcp.pop %v944
        %v990 = vmul.f32 1.0, %v989
        %v991 = vrcp.pop %v945
        %v992 = vmul.f32 1.0, %v991
        %v993 = vrcp.pop %v946
        %v994 = vmul.f32 1.0, %v993
        %v995 = vrcp.pop %v947
        %v996 = vmul.f32 1.0, %v995
        %v997 = vrcp.pop %v948
        %v998 = vmul.f32 1.0, %v997
        %v999 = vrcp.pop %v949
        %v1000 = vmul.f32 1.0, %v999
        %v1001 = vrcp.pop %v950
        %v1002 = vmul.f32 1.0, %v1001
        %v1003 = vrcp.pop %v951
        %v1004 = vmul.f32 1.0, %v1003
        %v1005 = vrcp.pop %v952
        %v1006 = vmul.f32 1.0, %v1005
        %v1007 = vrcp.pop %v953
        %v1008 = vmul.f32 1.0, %v1007
        %v1009 = vrcp.pop %v954
        %v1010 = vmul.f32 1.0, %v1009
        %v1011 = vrcp.pop %v955
        %v1012 = vmul.f32 1.0, %v1011
        %v1013 = vrcp.pop %v956
        %v1014 = vmul.f32 1.0, %v1013
        %v1015 = vrcp.pop %v957
        %v1016 = vmul.f32 1.0, %v1015
        %v1017 = vrcp.pop %v958
        %v1018 = vmul.f32 1.0, %v1017
        %v1019 = vrcp.pop %v959
        %v1020 = vmul.f32 1.0, %v1019
        %v1021 = vrcp.pop %v960
        %v1022 = vmul.f32 1.0, %v1021
        %v1023 = vrcp.pop %v961
        %v1024 = vmul.f32 1.0, %v1023
        %v1025 = vrcp.pop %v962
        %v1026 = vmul.f32 1.0, %v1025
        %v1027 = vmul.f32 %v803, %v964
        %v1028 = vmul.f32 %v804, %v966
        %v1029 = vmul.f32 %v805, %v968
        %v1030 = vmul.f32 %v806, %v970
        %v1031 = vmul.f32 %v807, %v972
        %v1032 = vmul.f32 %v808, %v974
        %v1033 = vmul.f32 %v809, %v976
        %v1034 = vmul.f32 %v810, %v978
        %v1035 = vmul.f32 %v811, %v980
        %v1036 = vmul.f32 %v812, %v982
        %v1037 = vmul.f32 %v813, %v984
        %v1038 = vmul.f32 %v814, %v986
        %v1039 = vmul.f32 %v815, %v988
        %v1040 = vmul.f32 %v816, %v990
        %v1041 = vmul.f32 %v817, %v992
        %v1042 = vmul.f32 %v818, %v994
        %v1043 = vmul.f32 %v819, %v996
        %v1044 = vmul.f32 %v820, %v998
        %v1045 = vmul.f32 %v821, %v1000
        %v1046 = vmul.f32 %v822, %v1002
        %v1047 = vmul.f32 %v823, %v1004
        %v1048 = vmul.f32 %v824, %v1006
        %v1049 = vmul.f32 %v825, %v1008
        %v1050 = vmul.f32 %v826, %v1010
        %v1051 = vmul.f32 %v827, %v1012
        %v1052 = vmul.f32 %v828, %v1014
        %v1053 = vmul.f32 %v829, %v1016
        %v1054 = vmul.f32 %v830, %v1018
        %v1055 = vmul.f32 %v831, %v1020
        %v1056 = vmul.f32 %v832, %v1022
        %v1057 = vmul.f32 %v833, %v1024
        %v1058 = vmul.f32 %v834, %v1026
        %v1059 = vld [vmem:[#allocation2] sm:$0xf]
        %v1060 = vadd.f32 %v1027, %v1029
        %v1061 = vadd.f32 %v1060, %v1031
        %v1062 = vadd.f32 %v1061, %v1033
        %v1063 = vadd.f32 %v1062, %v1035
        %v1064 = vadd.f32 %v1063, %v1037
        %v1065 = vadd.f32 %v1064, %v1039
        %v1066 = vadd.f32 %v1065, %v1041
        %v1067 = vrot.slane %v1066, 4
        %v1068 = vadd.f32 %v1066, %v1067
        %v1069 = vrot.slane %v1068, 2
        %v1070 = vadd.f32 %v1068, %v1069
        %v1071 = vrot.slane %v1070, 1
        %v1072 = vadd.f32 %v1070, %v1071
        %v1073 = vadd.f32 %v1028, %v1030
        %v1074 = vadd.f32 %v1073, %v1032
        %v1075 = vadd.f32 %v1074, %v1034
        %v1076 = vadd.f32 %v1075, %v1036
        %v1077 = vadd.f32 %v1076, %v1038
        %v1078 = vadd.f32 %v1077, %v1040
        %v1079 = vadd.f32 %v1078, %v1042
        %v1080 = vrot.slane %v1079, 4
        %v1081 = vadd.f32 %v1079, %v1080
        %v1082 = vrot.slane %v1081, 2
        %v1083 = vadd.f32 %v1081, %v1082
        %v1084 = vrot.slane %v1083, 1
        %v1085 = vadd.f32 %v1083, %v1084
        %v1086 = vadd.f32 %v1043, %v1045
        %v1087 = vadd.f32 %v1086, %v1047
        %v1088 = vadd.f32 %v1087, %v1049
        %v1089 = vadd.f32 %v1088, %v1051
        %v1090 = vadd.f32 %v1089, %v1053
        %v1091 = vadd.f32 %v1090, %v1055
        %v1092 = vadd.f32 %v1091, %v1057
        %v1093 = vrot.slane %v1092, 4
        %v1094 = vadd.f32 %v1092, %v1093
        %v1095 = vrot.slane %v1094, 2
        %v1096 = vadd.f32 %v1094, %v1095
        %v1097 = vrot.slane %v1096, 1
        %v1098 = vadd.f32 %v1096, %v1097
        %v1099 = vadd.f32 %v1044, %v1046
        %v1100 = vadd.f32 %v1099, %v1048
        %v1101 = vadd.f32 %v1100, %v1050
        %v1102 = vadd.f32 %v1101, %v1052
        %v1103 = vadd.f32 %v1102, %v1054
        %v1104 = vadd.f32 %v1103, %v1056
        %v1105 = vadd.f32 %v1104, %v1058
        %v1106 = vrot.slane %v1105, 4
        %v1107 = vadd.f32 %v1105, %v1106
        %v1108 = vrot.slane %v1107, 2
        %v1109 = vadd.f32 %v1107, %v1108
        %v1110 = vrot.slane %v1109, 1
        %v1111 = vadd.f32 %v1109, %v1110
        %v1116 = vcombine.low %v1072, %v1085
        %v1118 = vunpack.c.l.s4 1983009808
        %v1119 = vunpack.c.0.s8 %v1118
        %v1120 = vlaneseq
        %v1121 = vshrl.u32 %v1120, 7
        %v1122 = vsub.s32 %v1119, %v1121
        %v1123 = vrot.slane %v1116, %v1122
        %v1124 = vcombine.low %v1098, %v1111
        %v1126 = vunpack.c.l.s4 1983009808
        %v1127 = vunpack.c.0.s8 %v1126
        %v1128 = vlaneseq
        %v1129 = vshrl.u32 %v1128, 7
        %v1130 = vsub.s32 %v1127, %v1129
        %v1131 = vrot.slane %v1124, %v1130
        %vm1132 = vcmask 1044484
        %v1133 = vsel %vm1132, %v1123, %v1123
        %vm1134 = vcmask 1046534
        %v1135 = vsel %vm1134, %v1123, %v1133
        %v1136 = vrot.slane %v1131, 7
        %vm1137 = vcmask 1041409
        %v1138 = vsel %vm1137, %v1136, %v1135
        %vm1139 = vcmask 1043459
        %v1140 = vsel %vm1139, %v1136, %v1138
        %vm1141 = vcmask 1045509
        %v1142 = vsel %vm1141, %v1136, %v1140
        %vm1143 = vcmask 1047559
        %v1144 = vsel %vm1143, %v1136, %v1142
        %v1146 = vadd.f32 %v1059, %v1144
        %1147 = vst [vmem:[#allocation2] sm:$0xf] %v1146
        %p1148 = scmp.eq.s32.totalorder %s20, 3
        // Predicated region
        $region120: #{effnet_forward.6} parent=106 // pred_check
          %p1149 = pneg %p1148
        $region121: #{effnet_forward.6} parent=106 // pred_check_branch
          %1151 = sbr.rel (%p1149) target = $region123
        $region122: #{effnet_forward.6} parent=106 // pred_region
          %v1152 = vld [vmem:[#allocation2] sm:$0xf]
          %v1153 = vmul.f32 %v1152, 0.00390625
          %1154 = vst [vmem:[%s466] sm:$0xf] %v1153
        $region123: #{effnet_forward.6} parent=106 // pred_fallthru
          _
        %s1155 = smul.u32 2, %s19
        %p1156 = scmp.lt.s32.totalorder %s1155, 13
        %s1157 = scalar_select %p1156, %s1155, 13
        %s1158 = smul.addr %s1157, 2
        %s1159 = scalar_lea.vmem %s4, %s1158
        // Predicated region
        $region124: #{effnet_forward.6} parent=106 // pred_check
          %p1160 = pneg %p149
        $region125: #{effnet_forward.6} parent=106 // pred_check_branch
          %1162 = sbr.rel (%p1160) target = $region127
        $region126: #{effnet_forward.6} parent=106 // pred_region
          %s1163 = smul.u32 2, %s19
        $region127: #{effnet_forward.6} parent=106 // pred_fallthru
          _
      $region107: #{effnet_forward.6} parent=5 // pred_fallthru
        _
      %p1164 = scmp.le.s32.totalorder 2, %s10
      // Predicated region
      $region128: #{effnet_forward.6} parent=5 // pred_check
        %p1165 = pneg %p1164
      $region129: #{effnet_forward.6} parent=5 // pred_check_branch
        %1167 = sbr.rel (%p1165) target = $region131
      $region130: #{effnet_forward.6} parent=5 // pred_region
        %s1168 = ssub.s32 %s10, 2
        // Predicated region
        $region132: #{effnet_forward.6} parent=130 // pred_check
          %p1169 = pneg %p155
        $region133: #{effnet_forward.6} parent=130 // pred_check_branch
          %1171 = sbr.rel (%p1169) target = $region135
        $region134: #{effnet_forward.6} parent=130 // pred_region
          %s1172 = smul.u32 2, %s21
          %p1173 = scmp.lt.s32.totalorder %s1172, 13
          %s1174 = scalar_select %p1173, %s1172, 13
          %s1175 = smul.addr %s1174, 2
          %s1176 = scalar_lea.vmem %s4, %s1175
        $region135: #{effnet_forward.6} parent=130 // pred_fallthru
          _
      $region131: #{effnet_forward.6} parent=5 // pred_fallthru
        _
    $region6: #{effnet_forward.6} parent=1 // loop_footer
      %s14 = sadd.s32 1, %s10
    $region7: #{effnet_forward.6} parent=1 // loop_footer_branch
      %9 = sbr.rel target = $region3
    $region8: #{effnet_forward.6} parent=1 // loop_exit
      _

// kernel: effnet_forward.5
$region0: #{effnet_forward.5}
  #allocation0 [shape = 'u32[]', space=smem, size = 0x4, offset = 0x4, fixed_abs, tag = 'smem constant byte address 0x4 - core index']
  #allocation1 [shape = 'u32[144,128]{1,0:T(1,128)}', space=vmem, size = 0x12000, scoped, tag = 'internal scratch']
  #allocation2 [shape = 'f32[18,32,128]{2,1,0:T(8,128)}', space=vmem, size = 0x48000, scoped, tag = 'scratch operand']
  #allocation3 [shape = 'f32[256,128]{1,0:T(8,128)}', space=vmem, size = 0x20000, scoped, tag = 'scratch operand']
  %s0 = inlined_call_operand.vmem [shape: bf16[2,256,128], index: 0, kind: input, shape index: {}]
  %s1 = inlined_call_operand.vmem [shape: bf16[128,128], index: 1, kind: input, shape index: {}]
  %s2 = inlined_call_operand.vmem [shape: f32[1,128], index: 2, kind: input, shape index: {}]
  %s3 = inlined_call_operand.vmem [shape: f32[1,128], index: 3, kind: input, shape index: {}]
  %s4 = inlined_call_operand.vmem [shape: f32[9,128], index: 4, kind: input, shape index: {}]
  %s5 = inlined_call_operand.vmem [shape: f32[1,128], index: 5, kind: input, shape index: {}]
  %s6 = inlined_call_operand.vmem [shape: f32[1,128], index: 6, kind: input, shape index: {}]
  %s7 = inlined_call_operand.vmem [shape: bf16[128,128], index: 7, kind: input, shape index: {}]
  %s8 = inlined_call_operand.vmem [shape: f32[1,128], index: 8, kind: input, shape index: {}]
  %s9 = inlined_call_operand.vmem [shape: bf16[128,128], index: 9, kind: input, shape index: {}]
  %s10 = inlined_call_operand.vmem [shape: f32[1,128], index: 10, kind: input, shape index: {}]
  %s11 = inlined_call_operand.vmem [shape: bf16[128,128], index: 11, kind: input, shape index: {}]
  %s12 = inlined_call_operand.vmem [shape: f32[1,128], index: 12, kind: input, shape index: {}]
  %s13 = inlined_call_operand.vmem [shape: f32[1,128], index: 13, kind: input, shape index: {}]
  %s14 = inlined_call_operand.vmem [shape: bf16[2,256,128], index: 14, kind: output, shape index: {}]
  %s15 = sld [smem:[#allocation0]]
  $region89: #{effnet_forward.5} parent=0
    _
  %s17 = ssub.s32 1, %s15
  %s18 = scalar_select 0, %s17, %s15
  loop: start=0, step=1, limit=4
  $region2: #{effnet_forward.5} parent=0 // loop_pre_header
    _
  $region3: #{effnet_forward.5} parent=0 // loop_header
    %s20 = sphi 0, %s24
    %p21 = scmp.ge.s32.totalorder %s20, 4
    %s30 = sphi 0, %s32
    %s33 = sphi 0, %s30
    %s34 = sphi 0, %s33
    %s50 = sphi 0, %s34
    %s54 = sphi 0, %s54
    %s56 = sphi 0, %s54
    %s57 = sphi 0, %s56
    %s71 = sphi 0, %s57
    %s75 = sphi 0, %s75
    %s77 = sphi 0, %s75
    %s78 = sphi 0, %s77
    %s92 = sphi 0, %s78
    %s96 = sphi 0, %s96
    %s98 = sphi 0, %s96
    %s99 = sphi 0, %s98
    %s113 = sphi 0, %s99
    %s117 = sphi 0, %s117
    %s119 = sphi 0, %s117
    %s120 = sphi 0, %s119
    %s134 = sphi 0, %s120
    %s138 = sphi 0, %s138
    %s140 = sphi 0, %s138
    %s141 = sphi 0, %s140
    %s155 = sphi 0, %s141
    %s159 = sphi 0, %s159
    %s161 = sphi 0, %s159
    %s162 = sphi 0, %s161
    %s176 = sphi 0, %s162
    %s180 = sphi 0, %s180
    %s182 = sphi 0, %s180
    %s183 = sphi 0, %s182
    %s197 = sphi 0, %s183
    %s201 = sphi 0, %s201
    %s203 = sphi 0, %s201
    %s204 = sphi 0, %s203
    %s218 = sphi 0, %s204
    %s222 = sphi 0, %s222
    %s224 = sphi 0, %s222
    %s225 = sphi 0, %s224
    %s239 = sphi 0, %s225
    %s243 = sphi 0, %s243
    %s245 = sphi 0, %s243
    %s246 = sphi 0, %s245
    %s260 = sphi 0, %s246
    %s264 = sphi 0, %s264
    %s266 = sphi 0, %s264
    %s267 = sphi 0, %s266
    %s281 = sphi 0, %s267
    %s285 = sphi 0, %s285
    %s287 = sphi 0, %s285
    %s288 = sphi 0, %s287
    %s302 = sphi 0, %s288
    %s306 = sphi 0, %s306
    %s308 = sphi 0, %s306
    %s309 = sphi 0, %s308
    %s323 = sphi 0, %s309
    %s329 = sphi 0, %s331
    %s332 = sphi 0, %s329
    %s333 = sphi 0, %s332
    %s349 = sphi 0, %s333
  $region4: #{effnet_forward.5} parent=0 // loop_header_branch
    %23 = sbr.rel (%p21) target = $region8
  $region5: #{effnet_forward.5} parent=0 // loop_body
    %s25 = ssub.s32 %s20, 1
    %s26 = ssub.s32 %s20, 2
    %s27 = sadd.s32 %s20, 1
    %s28 = ssub.s32 %s20, %s27
    %p29 = scmp.eq.s32.totalorder %s28, 0
    %s31 = sadd.s32 %s30, 1
    %s32 = scalar_select %p29, %s30, %s31
    %p35 = pneg %p29
    %p36 = scmp.eq.s32.totalorder %s20, 1
    %p37 = por %p35, %p36
    %p38 = scmp.ne.s32.totalorder %s30, %s33
    %p39 = scmp.eq.s32.totalorder %s20, 0
    %p40 = por %p38, %p39
    %p41 = scmp.ne.s32.totalorder %s30, %s33
    %p42 = scmp.eq.s32.totalorder %s25, 1
    %p43 = por %p41, %p42
    %p44 = scmp.ne.s32.totalorder %s33, %s34
    %p45 = scmp.eq.s32.totalorder %s25, 0
    %p46 = por %p44, %p45
    %p47 = scmp.ne.s32.totalorder %s33, %s34
    %p48 = scmp.eq.s32.totalorder %s26, 1
    %p49 = por %p47, %p48
    %p51 = scmp.ne.s32.totalorder %s34, %s50
    %p52 = scmp.eq.s32.totalorder %s26, 0
    %p53 = por %p51, %p52
    %s55 = sadd.s32 %s54, 1
    %p58 = scmp.eq.s32.totalorder %s20, 1
    %p59 = scmp.ne.s32.totalorder %s54, %s56
    %p60 = scmp.eq.s32.totalorder %s20, 0
    %p61 = por %p59, %p60
    %p62 = scmp.ne.s32.totalorder %s54, %s56
    %p63 = scmp.eq.s32.totalorder %s25, 1
    %p64 = por %p62, %p63
    %p65 = scmp.ne.s32.totalorder %s56, %s57
    %p66 = scmp.eq.s32.totalorder %s25, 0
    %p67 = por %p65, %p66
    %p68 = scmp.ne.s32.totalorder %s56, %s57
    %p69 = scmp.eq.s32.totalorder %s26, 1
    %p70 = por %p68, %p69
    %p72 = scmp.ne.s32.totalorder %s57, %s71
    %p73 = scmp.eq.s32.totalorder %s26, 0
    %p74 = por %p72, %p73
    %s76 = sadd.s32 %s75, 1
    %p79 = scmp.eq.s32.totalorder %s20, 1
    %p80 = scmp.ne.s32.totalorder %s75, %s77
    %p81 = scmp.eq.s32.totalorder %s20, 0
    %p82 = por %p80, %p81
    %p83 = scmp.ne.s32.totalorder %s75, %s77
    %p84 = scmp.eq.s32.totalorder %s25, 1
    %p85 = por %p83, %p84
    %p86 = scmp.ne.s32.totalorder %s77, %s78
    %p87 = scmp.eq.s32.totalorder %s25, 0
    %p88 = por %p86, %p87
    %p89 = scmp.ne.s32.totalorder %s77, %s78
    %p90 = scmp.eq.s32.totalorder %s26, 1
    %p91 = por %p89, %p90
    %p93 = scmp.ne.s32.totalorder %s78, %s92
    %p94 = scmp.eq.s32.totalorder %s26, 0
    %p95 = por %p93, %p94
    %s97 = sadd.s32 %s96, 1
    %p100 = scmp.eq.s32.totalorder %s20, 1
    %p101 = scmp.ne.s32.totalorder %s96, %s98
    %p102 = scmp.eq.s32.totalorder %s20, 0
    %p103 = por %p101, %p102
    %p104 = scmp.ne.s32.totalorder %s96, %s98
    %p105 = scmp.eq.s32.totalorder %s25, 1
    %p106 = por %p104, %p105
    %p107 = scmp.ne.s32.totalorder %s98, %s99
    %p108 = scmp.eq.s32.totalorder %s25, 0
    %p109 = por %p107, %p108
    %p110 = scmp.ne.s32.totalorder %s98, %s99
    %p111 = scmp.eq.s32.totalorder %s26, 1
    %p112 = por %p110, %p111
    %p114 = scmp.ne.s32.totalorder %s99, %s113
    %p115 = scmp.eq.s32.totalorder %s26, 0
    %p116 = por %p114, %p115
    %s118 = sadd.s32 %s117, 1
    %p121 = scmp.eq.s32.totalorder %s20, 1
    %p122 = scmp.ne.s32.totalorder %s117, %s119
    %p123 = scmp.eq.s32.totalorder %s20, 0
    %p124 = por %p122, %p123
    %p125 = scmp.ne.s32.totalorder %s117, %s119
    %p126 = scmp.eq.s32.totalorder %s25, 1
    %p127 = por %p125, %p126
    %p128 = scmp.ne.s32.totalorder %s119, %s120
    %p129 = scmp.eq.s32.totalorder %s25, 0
    %p130 = por %p128, %p129
    %p131 = scmp.ne.s32.totalorder %s119, %s120
    %p132 = scmp.eq.s32.totalorder %s26, 1
    %p133 = por %p131, %p132
    %p135 = scmp.ne.s32.totalorder %s120, %s134
    %p136 = scmp.eq.s32.totalorder %s26, 0
    %p137 = por %p135, %p136
    %s139 = sadd.s32 %s138, 1
    %p142 = scmp.eq.s32.totalorder %s20, 1
    %p143 = scmp.ne.s32.totalorder %s138, %s140
    %p144 = scmp.eq.s32.totalorder %s20, 0
    %p145 = por %p143, %p144
    %p146 = scmp.ne.s32.totalorder %s138, %s140
    %p147 = scmp.eq.s32.totalorder %s25, 1
    %p148 = por %p146, %p147
    %p149 = scmp.ne.s32.totalorder %s140, %s141
    %p150 = scmp.eq.s32.totalorder %s25, 0
    %p151 = por %p149, %p150
    %p152 = scmp.ne.s32.totalorder %s140, %s141
    %p153 = scmp.eq.s32.totalorder %s26, 1
    %p154 = por %p152, %p153
    %p156 = scmp.ne.s32.totalorder %s141, %s155
    %p157 = scmp.eq.s32.totalorder %s26, 0
    %p158 = por %p156, %p157
    %s160 = sadd.s32 %s159, 1
    %p163 = scmp.eq.s32.totalorder %s20, 1
    %p164 = scmp.ne.s32.totalorder %s159, %s161
    %p165 = scmp.eq.s32.totalorder %s20, 0
    %p166 = por %p164, %p165
    %p167 = scmp.ne.s32.totalorder %s159, %s161
    %p168 = scmp.eq.s32.totalorder %s25, 1
    %p169 = por %p167, %p168
    %p170 = scmp.ne.s32.totalorder %s161, %s162
    %p171 = scmp.eq.s32.totalorder %s25, 0
    %p172 = por %p170, %p171
    %p173 = scmp.ne.s32.totalorder %s161, %s162
    %p174 = scmp.eq.s32.totalorder %s26, 1
    %p175 = por %p173, %p174
    %p177 = scmp.ne.s32.totalorder %s162, %s176
    %p178 = scmp.eq.s32.totalorder %s26, 0
    %p179 = por %p177, %p178
    %s181 = sadd.s32 %s180, 1
    %p184 = scmp.eq.s32.totalorder %s20, 1
    %p185 = scmp.ne.s32.totalorder %s180, %s182
    %p186 = scmp.eq.s32.totalorder %s20, 0
    %p187 = por %p185, %p186
    %p188 = scmp.ne.s32.totalorder %s180, %s182
    %p189 = scmp.eq.s32.totalorder %s25, 1
    %p190 = por %p188, %p189
    %p191 = scmp.ne.s32.totalorder %s182, %s183
    %p192 = scmp.eq.s32.totalorder %s25, 0
    %p193 = por %p191, %p192
    %p194 = scmp.ne.s32.totalorder %s182, %s183
    %p195 = scmp.eq.s32.totalorder %s26, 1
    %p196 = por %p194, %p195
    %p198 = scmp.ne.s32.totalorder %s183, %s197
    %p199 = scmp.eq.s32.totalorder %s26, 0
    %p200 = por %p198, %p199
    %s202 = sadd.s32 %s201, 1
    %p205 = scmp.eq.s32.totalorder %s20, 1
    %p206 = scmp.ne.s32.totalorder %s201, %s203
    %p207 = scmp.eq.s32.totalorder %s20, 0
    %p208 = por %p206, %p207
    %p209 = scmp.ne.s32.totalorder %s201, %s203
    %p210 = scmp.eq.s32.totalorder %s25, 1
    %p211 = por %p209, %p210
    %p212 = scmp.ne.s32.totalorder %s203, %s204
    %p213 = scmp.eq.s32.totalorder %s25, 0
    %p214 = por %p212, %p213
    %p215 = scmp.ne.s32.totalorder %s203, %s204
    %p216 = scmp.eq.s32.totalorder %s26, 1
    %p217 = por %p215, %p216
    %p219 = scmp.ne.s32.totalorder %s204, %s218
    %p220 = scmp.eq.s32.totalorder %s26, 0
    %p221 = por %p219, %p220
    %s223 = sadd.s32 %s222, 1
    %p226 = scmp.eq.s32.totalorder %s20, 1
    %p227 = scmp.ne.s32.totalorder %s222, %s224
    %p228 = scmp.eq.s32.totalorder %s20, 0
    %p229 = por %p227, %p228
    %p230 = scmp.ne.s32.totalorder %s222, %s224
    %p231 = scmp.eq.s32.totalorder %s25, 1
    %p232 = por %p230, %p231
    %p233 = scmp.ne.s32.totalorder %s224, %s225
    %p234 = scmp.eq.s32.totalorder %s25, 0
    %p235 = por %p233, %p234
    %p236 = scmp.ne.s32.totalorder %s224, %s225
    %p237 = scmp.eq.s32.totalorder %s26, 1
    %p238 = por %p236, %p237
    %p240 = scmp.ne.s32.totalorder %s225, %s239
    %p241 = scmp.eq.s32.totalorder %s26, 0
    %p242 = por %p240, %p241
    %s244 = sadd.s32 %s243, 1
    %p247 = scmp.eq.s32.totalorder %s20, 1
    %p248 = scmp.ne.s32.totalorder %s243, %s245
    %p249 = scmp.eq.s32.totalorder %s20, 0
    %p250 = por %p248, %p249
    %p251 = scmp.ne.s32.totalorder %s243, %s245
    %p252 = scmp.eq.s32.totalorder %s25, 1
    %p253 = por %p251, %p252
    %p254 = scmp.ne.s32.totalorder %s245, %s246
    %p255 = scmp.eq.s32.totalorder %s25, 0
    %p256 = por %p254, %p255
    %p257 = scmp.ne.s32.totalorder %s245, %s246
    %p258 = scmp.eq.s32.totalorder %s26, 1
    %p259 = por %p257, %p258
    %p261 = scmp.ne.s32.totalorder %s246, %s260
    %p262 = scmp.eq.s32.totalorder %s26, 0
    %p263 = por %p261, %p262
    %s265 = sadd.s32 %s264, 1
    %p268 = scmp.eq.s32.totalorder %s20, 1
    %p269 = scmp.ne.s32.totalorder %s264, %s266
    %p270 = scmp.eq.s32.totalorder %s20, 0
    %p271 = por %p269, %p270
    %p272 = scmp.ne.s32.totalorder %s264, %s266
    %p273 = scmp.eq.s32.totalorder %s25, 1
    %p274 = por %p272, %p273
    %p275 = scmp.ne.s32.totalorder %s266, %s267
    %p276 = scmp.eq.s32.totalorder %s25, 0
    %p277 = por %p275, %p276
    %p278 = scmp.ne.s32.totalorder %s266, %s267
    %p279 = scmp.eq.s32.totalorder %s26, 1
    %p280 = por %p278, %p279
    %p282 = scmp.ne.s32.totalorder %s267, %s281
    %p283 = scmp.eq.s32.totalorder %s26, 0
    %p284 = por %p282, %p283
    %s286 = sadd.s32 %s285, 1
    %p289 = scmp.eq.s32.totalorder %s20, 1
    %p290 = scmp.ne.s32.totalorder %s285, %s287
    %p291 = scmp.eq.s32.totalorder %s20, 0
    %p292 = por %p290, %p291
    %p293 = scmp.ne.s32.totalorder %s285, %s287
    %p294 = scmp.eq.s32.totalorder %s25, 1
    %p295 = por %p293, %p294
    %p296 = scmp.ne.s32.totalorder %s287, %s288
    %p297 = scmp.eq.s32.totalorder %s25, 0
    %p298 = por %p296, %p297
    %p299 = scmp.ne.s32.totalorder %s287, %s288
    %p300 = scmp.eq.s32.totalorder %s26, 1
    %p301 = por %p299, %p300
    %p303 = scmp.ne.s32.totalorder %s288, %s302
    %p304 = scmp.eq.s32.totalorder %s26, 0
    %p305 = por %p303, %p304
    %s307 = sadd.s32 %s306, 1
    %p310 = scmp.eq.s32.totalorder %s20, 1
    %p311 = scmp.ne.s32.totalorder %s306, %s308
    %p312 = scmp.eq.s32.totalorder %s20, 0
    %p313 = por %p311, %p312
    %p314 = scmp.ne.s32.totalorder %s306, %s308
    %p315 = scmp.eq.s32.totalorder %s25, 1
    %p316 = por %p314, %p315
    %p317 = scmp.ne.s32.totalorder %s308, %s309
    %p318 = scmp.eq.s32.totalorder %s25, 0
    %p319 = por %p317, %p318
    %p320 = scmp.ne.s32.totalorder %s308, %s309
    %p321 = scmp.eq.s32.totalorder %s26, 1
    %p322 = por %p320, %p321
    %p324 = scmp.ne.s32.totalorder %s309, %s323
    %p325 = scmp.eq.s32.totalorder %s26, 0
    %p326 = por %p324, %p325
    %s327 = ssub.s32 %s20, %s27
    %p328 = scmp.eq.s32.totalorder %s327, 0
    %s330 = sadd.s32 %s329, 1
    %s331 = scalar_select %p328, %s329, %s330
    %p334 = pneg %p328
    %p335 = scmp.eq.s32.totalorder %s20, 1
    %p336 = por %p334, %p335
    %p337 = scmp.ne.s32.totalorder %s329, %s332
    %p338 = scmp.eq.s32.totalorder %s20, 0
    %p339 = por %p337, %p338
    %p340 = scmp.ne.s32.totalorder %s329, %s332
    %p341 = scmp.eq.s32.totalorder %s25, 1
    %p342 = por %p340, %p341
    %p343 = scmp.ne.s32.totalorder %s332, %s333
    %p344 = scmp.eq.s32.totalorder %s25, 0
    %p345 = por %p343, %p344
    %p346 = scmp.ne.s32.totalorder %s332, %s333
    %p347 = scmp.eq.s32.totalorder %s26, 1
    %p348 = por %p346, %p347
    %p350 = scmp.ne.s32.totalorder %s333, %s349
    %p351 = scmp.eq.s32.totalorder %s26, 0
    %p352 = por %p350, %p351
    %p353 = scmp.le.s32.totalorder 1, %s20
    %p354 = scmp.lt.s32.totalorder %s20, 3
    %p355 = pnand %p353, %p354
    %p356 = pneg %p355
    // Predicated region
    $region9: #{effnet_forward.5} parent=5 // pred_check
      _
    $region10: #{effnet_forward.5} parent=5 // pred_check_branch
      %358 = sbr.rel (%p355) target = $region12
    $region11: #{effnet_forward.5} parent=5 // pred_region
      %s359 = ssub.s32 %s20, 1
      // Predicated region
      $region13: #{effnet_forward.5} parent=11 // pred_check
        %p360 = pneg %p67
      $region14: #{effnet_forward.5} parent=11 // pred_check_branch
        %362 = sbr.rel (%p360) target = $region16
      $region15: #{effnet_forward.5} parent=11 // pred_region
        _
      $region16: #{effnet_forward.5} parent=11 // pred_fallthru
        _
      // Predicated region
      $region17: #{effnet_forward.5} parent=11 // pred_check
        %p363 = pneg %p88
      $region18: #{effnet_forward.5} parent=11 // pred_check_branch
        %365 = sbr.rel (%p363) target = $region20
      $region19: #{effnet_forward.5} parent=11 // pred_region
        _
      $region20: #{effnet_forward.5} parent=11 // pred_fallthru
        _
      // Predicated region
      $region21: #{effnet_forward.5} parent=11 // pred_check
        %p366 = pneg %p109
      $region22: #{effnet_forward.5} parent=11 // pred_check_branch
        %368 = sbr.rel (%p366) target = $region24
      $region23: #{effnet_forward.5} parent=11 // pred_region
        _
      $region24: #{effnet_forward.5} parent=11 // pred_fallthru
        _
      // Predicated region
      $region25: #{effnet_forward.5} parent=11 // pred_check
        %p369 = pneg %p130
      $region26: #{effnet_forward.5} parent=11 // pred_check_branch
        %371 = sbr.rel (%p369) target = $region28
      $region27: #{effnet_forward.5} parent=11 // pred_region
        _
      $region28: #{effnet_forward.5} parent=11 // pred_fallthru
        _
      // Predicated region
      $region29: #{effnet_forward.5} parent=11 // pred_check
        %p372 = pneg %p151
      $region30: #{effnet_forward.5} parent=11 // pred_check_branch
        %374 = sbr.rel (%p372) target = $region32
      $region31: #{effnet_forward.5} parent=11 // pred_region
        _
      $region32: #{effnet_forward.5} parent=11 // pred_fallthru
        _
      // Predicated region
      $region33: #{effnet_forward.5} parent=11 // pred_check
        %p375 = pneg %p172
      $region34: #{effnet_forward.5} parent=11 // pred_check_branch
        %377 = sbr.rel (%p375) target = $region36
      $region35: #{effnet_forward.5} parent=11 // pred_region
        _
      $region36: #{effnet_forward.5} parent=11 // pred_fallthru
        _
      // Predicated region
      $region37: #{effnet_forward.5} parent=11 // pred_check
        %p378 = pneg %p193
      $region38: #{effnet_forward.5} parent=11 // pred_check_branch
        %380 = sbr.rel (%p378) target = $region40
      $region39: #{effnet_forward.5} parent=11 // pred_region
        _
      $region40: #{effnet_forward.5} parent=11 // pred_fallthru
        _
      // Predicated region
      $region41: #{effnet_forward.5} parent=11 // pred_check
        %p381 = pneg %p214
      $region42: #{effnet_forward.5} parent=11 // pred_check_branch
        %383 = sbr.rel (%p381) target = $region44
      $region43: #{effnet_forward.5} parent=11 // pred_region
        _
      $region44: #{effnet_forward.5} parent=11 // pred_fallthru
        _
      // Predicated region
      $region45: #{effnet_forward.5} parent=11 // pred_check
        %p384 = pneg %p235
      $region46: #{effnet_forward.5} parent=11 // pred_check_branch
        %386 = sbr.rel (%p384) target = $region48
      $region47: #{effnet_forward.5} parent=11 // pred_region
        _
      $region48: #{effnet_forward.5} parent=11 // pred_fallthru
        _
      // Predicated region
      $region49: #{effnet_forward.5} parent=11 // pred_check
        %p387 = pneg %p256
      $region50: #{effnet_forward.5} parent=11 // pred_check_branch
        %389 = sbr.rel (%p387) target = $region52
      $region51: #{effnet_forward.5} parent=11 // pred_region
        _
      $region52: #{effnet_forward.5} parent=11 // pred_fallthru
        _
      // Predicated region
      $region53: #{effnet_forward.5} parent=11 // pred_check
        %p390 = pneg %p277
      $region54: #{effnet_forward.5} parent=11 // pred_check_branch
        %392 = sbr.rel (%p390) target = $region56
      $region55: #{effnet_forward.5} parent=11 // pred_region
        _
      $region56: #{effnet_forward.5} parent=11 // pred_fallthru
        _
      // Predicated region
      $region57: #{effnet_forward.5} parent=11 // pred_check
        %p393 = pneg %p298
      $region58: #{effnet_forward.5} parent=11 // pred_check_branch
        %395 = sbr.rel (%p393) target = $region60
      $region59: #{effnet_forward.5} parent=11 // pred_region
        _
      $region60: #{effnet_forward.5} parent=11 // pred_fallthru
        _
      // Predicated region
      $region61: #{effnet_forward.5} parent=11 // pred_check
        %p396 = pneg %p319
      $region62: #{effnet_forward.5} parent=11 // pred_check_branch
        %398 = sbr.rel (%p396) target = $region64
      $region63: #{effnet_forward.5} parent=11 // pred_region
        _
      $region64: #{effnet_forward.5} parent=11 // pred_fallthru
        _
    $region12: #{effnet_forward.5} parent=5 // pred_fallthru
      _
    %p399 = scmp.lt.s32.totalorder %s20, 2
    // Predicated region
    $region65: #{effnet_forward.5} parent=5 // pred_check
      %p400 = pneg %p399
    $region66: #{effnet_forward.5} parent=5 // pred_check_branch
      %402 = sbr.rel (%p400) target = $region68
    $region67: #{effnet_forward.5} parent=5 // pred_region
      // Predicated region
      $region69: #{effnet_forward.5} parent=67 // pred_check
        %p403 = pneg %p40
      $region70: #{effnet_forward.5} parent=67 // pred_check_branch
        %405 = sbr.rel (%p403) target = $region72
      $region71: #{effnet_forward.5} parent=67 // pred_region
        %p406 = scmp.lt.s32.totalorder %s20, 1
        %s407 = scalar_select %p406, %s20, 1
        %s408 = smul.addr %s407, 32
        %s409 = smul.addr %s408, 4
        %s410 = scalar_lea.vmem %s0, %s409
      $region72: #{effnet_forward.5} parent=67 // pred_fallthru
        _
    $region68: #{effnet_forward.5} parent=5 // pred_fallthru
      _
    %p411 = scmp.le.s32.totalorder 1, %s20
    %p412 = scmp.lt.s32.totalorder %s20, 3
    %p413 = pnand %p411, %p412
    %p414 = pneg %p413
    // Predicated region
    $region73: #{effnet_forward.5} parent=5 // pred_check
      _
    $region74: #{effnet_forward.5} parent=5 // pred_check_branch
      %416 = sbr.rel (%p413) target = $region76
    $region75: #{effnet_forward.5} parent=5 // pred_region
      %s417 = ssub.s32 %s20, 1
      %p418 = scmp.lt.s32.totalorder %s25, 1
      %s419 = scalar_select %p418, %s25, 1
      %s420 = smul.addr %s419, 32
      %s421 = smul.addr %s420, 4
      %s422 = scalar_lea.vmem %s0, %s421
      %p423 = pneg %p46
      %p424 = pneg %p43
      %p425 = pneg %p67
      %p426 = pneg %p64
      %p427 = pneg %p88
      %p428 = pneg %p85
      %p429 = pneg %p109
      %p430 = pneg %p106
      %p431 = pneg %p130
      %p432 = pneg %p127
      %p433 = pneg %p151
      %p434 = pneg %p148
      %p435 = pneg %p172
      %p436 = pneg %p169
      %p437 = pneg %p193
      %p438 = pneg %p190
      %p439 = pneg %p214
      %p440 = pneg %p211
      %p441 = pneg %p235
      %p442 = pneg %p232
      %p443 = pneg %p256
      %p444 = pneg %p253
      %p445 = pneg %p277
      %p446 = pneg %p274
      %p447 = pneg %p298
      %p448 = pneg %p295
      %p449 = pneg %p319
      %p450 = pneg %p316
      %p451 = pneg %p345
      %p452 = pneg %p342
      %p453 = scmp.lt.s32.totalorder %s25, 1
      %s454 = scalar_select %p453, %s25, 1
      %s455 = smul.addr %s454, 32
      %s456 = smul.addr %s455, 4
      %s457 = scalar_lea.vmem %s14, %s456
      %p458 = scmp.lt.s32.totalorder %s25, 1
      %s459 = scalar_select %p458, %s25, 1
      %s460 = smul.addr %s459, 32
      %s461 = smul.addr %s460, 4
      %s462 = scalar_lea.vmem %s0, %s461
      %p463 = scmp.lt.s32.totalorder %s25, 1
      %s464 = scalar_select %p463, %s25, 1
      %s465 = smul.addr %s464, 32
      %s466 = smul.addr %s465, 4
      %s467 = scalar_lea.vmem %s14, %s466
      %469 = vst [vmem:[#allocation2] sm:$0xff] 0.0
      %470 = vst [vmem:[#allocation2 + $0x8] sm:$0xff] 0.0
      %471 = vst [vmem:[#allocation2 + $0x10] sm:$0xff] 0.0
      %472 = vst [vmem:[#allocation2 + $0x18] sm:$0xff] 0.0
      %473 = vst [vmem:[#allocation2 + $0x20] sm:$0xff] 0.0
      %474 = vst [vmem:[#allocation2 + $0x28] sm:$0xff] 0.0
      %475 = vst [vmem:[#allocation2 + $0x30] sm:$0xff] 0.0
      %476 = vst [vmem:[#allocation2 + $0x38] sm:$0xff] 0.0
      %477 = vst [vmem:[#allocation2 + $0x40] sm:$0xff] 0.0
      %478 = vst [vmem:[#allocation2 + $0x48] sm:$0xff] 0.0
      %479 = vst [vmem:[#allocation2 + $0x50] sm:$0xff] 0.0
      %480 = vst [vmem:[#allocation2 + $0x58] sm:$0xff] 0.0
      %481 = vst [vmem:[#allocation2 + $0x60] sm:$0xff] 0.0
      %482 = vst [vmem:[#allocation2 + $0x68] sm:$0xff] 0.0
      %483 = vst [vmem:[#allocation2 + $0x70] sm:$0xff] 0.0
      %484 = vst [vmem:[#allocation2 + $0x78] sm:$0xff] 0.0
      %485 = vst [vmem:[#allocation2 + $0x80] sm:$0xff] 0.0
      %486 = vst [vmem:[#allocation2 + $0x88] sm:$0xff] 0.0
      %487 = vst [vmem:[#allocation2 + $0x90] sm:$0xff] 0.0
      %488 = vst [vmem:[#allocation2 + $0x98] sm:$0xff] 0.0
      %489 = vst [vmem:[#allocation2 + $0xa0] sm:$0xff] 0.0
      %490 = vst [vmem:[#allocation2 + $0xa8] sm:$0xff] 0.0
      %491 = vst [vmem:[#allocation2 + $0xb0] sm:$0xff] 0.0
      %492 = vst [vmem:[#allocation2 + $0xb8] sm:$0xff] 0.0
      %493 = vst [vmem:[#allocation2 + $0xc0] sm:$0xff] 0.0
      %494 = vst [vmem:[#allocation2 + $0xc8] sm:$0xff] 0.0
      %495 = vst [vmem:[#allocation2 + $0xd0] sm:$0xff] 0.0
      %496 = vst [vmem:[#allocation2 + $0xd8] sm:$0xff] 0.0
      %497 = vst [vmem:[#allocation2 + $0xe0] sm:$0xff] 0.0
      %498 = vst [vmem:[#allocation2 + $0xe8] sm:$0xff] 0.0
      %499 = vst [vmem:[#allocation2 + $0xf0] sm:$0xff] 0.0
      %500 = vst [vmem:[#allocation2 + $0xf8] sm:$0xff] 0.0
      %501 = vst [vmem:[#allocation2 + $0x100] sm:$0xff] 0.0
      %502 = vst [vmem:[#allocation2 + $0x108] sm:$0xff] 0.0
      %503 = vst [vmem:[#allocation2 + $0x110] sm:$0xff] 0.0
      %504 = vst [vmem:[#allocation2 + $0x118] sm:$0xff] 0.0
      %505 = vst [vmem:[#allocation2 + $0x120] sm:$0xff] 0.0
      %506 = vst [vmem:[#allocation2 + $0x128] sm:$0xff] 0.0
      %507 = vst [vmem:[#allocation2 + $0x130] sm:$0xff] 0.0
      %508 = vst [vmem:[#allocation2 + $0x138] sm:$0xff] 0.0
      %509 = vst [vmem:[#allocation2 + $0x140] sm:$0xff] 0.0
      %510 = vst [vmem:[#allocation2 + $0x148] sm:$0xff] 0.0
      %511 = vst [vmem:[#allocation2 + $0x150] sm:$0xff] 0.0
      %512 = vst [vmem:[#allocation2 + $0x158] sm:$0xff] 0.0
      %513 = vst [vmem:[#allocation2 + $0x160] sm:$0xff] 0.0
      %514 = vst [vmem:[#allocation2 + $0x168] sm:$0xff] 0.0
      %515 = vst [vmem:[#allocation2 + $0x170] sm:$0xff] 0.0
      %516 = vst [vmem:[#allocation2 + $0x178] sm:$0xff] 0.0
      %517 = vst [vmem:[#allocation2 + $0x180] sm:$0xff] 0.0
      %518 = vst [vmem:[#allocation2 + $0x188] sm:$0xff] 0.0
      %519 = vst [vmem:[#allocation2 + $0x190] sm:$0xff] 0.0
      %520 = vst [vmem:[#allocation2 + $0x198] sm:$0xff] 0.0
      %521 = vst [vmem:[#allocation2 + $0x1a0] sm:$0xff] 0.0
      %522 = vst [vmem:[#allocation2 + $0x1a8] sm:$0xff] 0.0
      %523 = vst [vmem:[#allocation2 + $0x1b0] sm:$0xff] 0.0
      %524 = vst [vmem:[#allocation2 + $0x1b8] sm:$0xff] 0.0
      %525 = vst [vmem:[#allocation2 + $0x1c0] sm:$0xff] 0.0
      %526 = vst [vmem:[#allocation2 + $0x1c8] sm:$0xff] 0.0
      %527 = vst [vmem:[#allocation2 + $0x1d0] sm:$0xff] 0.0
      %528 = vst [vmem:[#allocation2 + $0x1d8] sm:$0xff] 0.0
      %529 = vst [vmem:[#allocation2 + $0x1e0] sm:$0xff] 0.0
      %530 = vst [vmem:[#allocation2 + $0x1e8] sm:$0xff] 0.0
      %531 = vst [vmem:[#allocation2 + $0x1f0] sm:$0xff] 0.0
      %532 = vst [vmem:[#allocation2 + $0x1f8] sm:$0xff] 0.0
      %533 = vst [vmem:[#allocation2 + $0x200] sm:$0xff] 0.0
      %534 = vst [vmem:[#allocation2 + $0x208] sm:$0xff] 0.0
      %535 = vst [vmem:[#allocation2 + $0x210] sm:$0xff] 0.0
      %536 = vst [vmem:[#allocation2 + $0x218] sm:$0xff] 0.0
      %537 = vst [vmem:[#allocation2 + $0x220] sm:$0xff] 0.0
      %538 = vst [vmem:[#allocation2 + $0x228] sm:$0xff] 0.0
      %539 = vst [vmem:[#allocation2 + $0x230] sm:$0xff] 0.0
      %540 = vst [vmem:[#allocation2 + $0x238] sm:$0xff] 0.0
      %v541 = vld [vmem:[%s462] sm:$0xf]
      %v542 = vld [vmem:[%s462 + $0x4] sm:$0xf]
      %v543 = vld [vmem:[%s462 + $0x8] sm:$0xf]
      %v544 = vld [vmem:[%s462 + $0xc] sm:$0xf]
      %v545 = vld [vmem:[%s462 + $0x10] sm:$0xf]
      %v546 = vld [vmem:[%s462 + $0x14] sm:$0xf]
      %v547 = vld [vmem:[%s462 + $0x18] sm:$0xf]
      %v548 = vld [vmem:[%s462 + $0x1c] sm:$0xf]
      %v549 = vld [vmem:[%s462 + $0x20] sm:$0xf]
      %v550 = vld [vmem:[%s462 + $0x24] sm:$0xf]
      %v551 = vld [vmem:[%s462 + $0x28] sm:$0xf]
      %v552 = vld [vmem:[%s462 + $0x2c] sm:$0xf]
      %v553 = vld [vmem:[%s462 + $0x30] sm:$0xf]
      %v554 = vld [vmem:[%s462 + $0x34] sm:$0xf]
      %v555 = vld [vmem:[%s462 + $0x38] sm:$0xf]
      %v556 = vld [vmem:[%s462 + $0x3c] sm:$0xf]
      %v557 = vld [vmem:[%s1] sm:$0xf]
      %v558 = vld [vmem:[%s1 + $0x4] sm:$0xf]
      %v559 = vld [vmem:[%s1 + $0x8] sm:$0xf]
      %v560 = vld [vmem:[%s1 + $0xc] sm:$0xf]
      %v561 = vld [vmem:[%s1 + $0x10] sm:$0xf]
      %v562 = vld [vmem:[%s1 + $0x14] sm:$0xf]
      %v563 = vld [vmem:[%s1 + $0x18] sm:$0xf]
      %v564 = vld [vmem:[%s1 + $0x1c] sm:$0xf]
      %v565 = vld [vmem:[%s1 + $0x20] sm:$0xf]
      %v566 = vld [vmem:[%s1 + $0x24] sm:$0xf]
      %v567 = vld [vmem:[%s1 + $0x28] sm:$0xf]
      %v568 = vld [vmem:[%s1 + $0x2c] sm:$0xf]
      %v569 = vld [vmem:[%s1 + $0x30] sm:$0xf]
      %v570 = vld [vmem:[%s1 + $0x34] sm:$0xf]
      %v571 = vld [vmem:[%s1 + $0x38] sm:$0xf]
      %v572 = vld [vmem:[%s1 + $0x3c] sm:$0xf]
      %v589 = vunpack.c.l.b16 %v541
      %v590 = vunpack.c.l.b16 %v542
      %v591 = vunpack.c.l.b16 %v543
      %v592 = vunpack.c.l.b16 %v544
      %v593 = vunpack.c.l.b16 %v545
      %v594 = vunpack.c.l.b16 %v546
      %v595 = vunpack.c.l.b16 %v547
      %v596 = vunpack.c.l.b16 %v548
      %v597 = vunpack.c.l.b16 %v549
      %v598 = vunpack.c.l.b16 %v550
      %v599 = vunpack.c.l.b16 %v551
      %v600 = vunpack.c.l.b16 %v552
      %v601 = vunpack.c.l.b16 %v553
      %v602 = vunpack.c.l.b16 %v554
      %v603 = vunpack.c.l.b16 %v555
      %v604 = vunpack.c.l.b16 %v556
      %v605 = vpack.c.b16 %v590, %v589
      %v606 = vpack.c.b16 %v592, %v591
      %v607 = vpack.c.b16 %v594, %v593
      %v608 = vpack.c.b16 %v596, %v595
      %v609 = vpack.c.b16 %v598, %v597
      %v610 = vpack.c.b16 %v600, %v599
      %v611 = vpack.c.b16 %v602, %v601
      %v612 = vpack.c.b16 %v604, %v603
      %v637 = vunpack.c.l.b16 %v557
      %v638 = vunpack.c.l.b16 %v558
      %v639 = vunpack.c.l.b16 %v559
      %v640 = vunpack.c.l.b16 %v560
      %v641 = vunpack.c.l.b16 %v561
      %v642 = vunpack.c.l.b16 %v562
      %v643 = vunpack.c.l.b16 %v563
      %v644 = vunpack.c.l.b16 %v564
      %v645 = vunpack.c.l.b16 %v565
      %v646 = vunpack.c.l.b16 %v566
      %v647 = vunpack.c.l.b16 %v567
      %v648 = vunpack.c.l.b16 %v568
      %v649 = vunpack.c.l.b16 %v569
      %v650 = vunpack.c.l.b16 %v570
      %v651 = vunpack.c.l.b16 %v571
      %v652 = vunpack.c.l.b16 %v572
      %v653 = vpack.c.b16 %v638, %v637
      %v654 = vpack.c.b16 %v640, %v639
      %v655 = vpack.c.b16 %v642, %v641
      %v656 = vpack.c.b16 %v644, %v643
      %v657 = vpack.c.b16 %v646, %v645
      %v658 = vpack.c.b16 %v648, %v647
      %v659 = vpack.c.b16 %v650, %v649
      %v660 = vpack.c.b16 %v652, %v651
      %669 = vmatprep.subr.bf16.mxu0 0
      %670 = vmatpush1.bf16.msra.mxu0 %v653
      %671 = vmatprep.subr.bf16.mxu0 0
      %672 = vmatpush1.bf16.msra.mxu0 %v654
      %673 = vmatprep.subr.bf16.mxu0 0
      %674 = vmatpush1.bf16.msra.mxu0 %v655
      %675 = vmatprep.subr.bf16.mxu0 0
      %676 = vmatpush1.bf16.msra.mxu0 %v656
      %677 = vmatprep.subr.bf16.mxu0 0
      %678 = vmatpush1.bf16.msra.mxu0 %v657
      %679 = vmatprep.subr.bf16.mxu0 0
      %680 = vmatpush1.bf16.msra.mxu0 %v658
      %681 = vmatprep.subr.bf16.mxu0 0
      %682 = vmatpush1.bf16.msra.mxu0 %v659
      %683 = vmatprep.subr.bf16.mxu0 0
      %684 = vmatpush1.bf16.msra.mxu0 %v660
      %685 = vmatprep.subr.bf16.mxu0 0
      %686 = vmatpush1.bf16.msra.mxu0 0
      %687 = vmatprep.subr.bf16.mxu0 0
      %688 = vmatpush1.bf16.msra.mxu0 0
      %689 = vmatprep.subr.bf16.mxu0 0
      %690 = vmatpush1.bf16.msra.mxu0 0
      %691 = vmatprep.subr.bf16.mxu0 0
      %692 = vmatpush1.bf16.msra.mxu0 0
      %693 = vmatprep.subr.bf16.mxu0 0
      %694 = vmatpush1.bf16.msra.mxu0 0
      %695 = vmatprep.subr.bf16.mxu0 0
      %696 = vmatpush1.bf16.msra.mxu0 0
      %697 = vmatprep.subr.bf16.mxu0 0
      %698 = vmatpush1.bf16.msra.mxu0 0
      %699 = vmatprep.subr.bf16.mxu0 0
      %700 = vmatpush1.bf16.msra.mxu0 0
      %701 = vmatprep.mubr.bf16.mxu0 0
      %702 = vmatmul.mubr.bf16.gmra.mrb[0].mxu0 %v605
      %v703 = vpop.f32.mrb[0].mxu0
      %v704 = vadd.f32 0.0, %v703
      %v705 = vpop.f32.mrb[0].mxu0
      %v706 = vpop.f32.mrb[0].mxu0
      %v707 = vadd.f32 0.0, %v706
      %v708 = vpop.f32.mrb[0].mxu0
      %709 = vmatprep.mubr.bf16.mxu0 0
      %710 = vmatmul.mubr.bf16.gmra.mrb[0].mxu0 %v606
      %v711 = vpop.f32.mrb[0].mxu0
      %v712 = vadd.f32 0.0, %v711
      %v713 = vpop.f32.mrb[0].mxu0
      %v714 = vpop.f32.mrb[0].mxu0
      %v715 = vadd.f32 0.0, %v714
      %v716 = vpop.f32.mrb[0].mxu0
      %717 = vmatprep.mubr.bf16.mxu0 0
      %718 = vmatmul.mubr.bf16.gmra.mrb[0].mxu0 %v607
      %v719 = vpop.f32.mrb[0].mxu0
      %v720 = vadd.f32 0.0, %v719
      %v721 = vpop.f32.mrb[0].mxu0
      %v722 = vpop.f32.mrb[0].mxu0
      %v723 = vadd.f32 0.0, %v722
      %v724 = vpop.f32.mrb[0].mxu0
      %725 = vmatprep.mubr.bf16.mxu0 0
      %726 = vmatmul.mubr.bf16.gmra.mrb[0].mxu0 %v608
      %v727 = vpop.f32.mrb[0].mxu0
      %v728 = vadd.f32 0.0, %v727
      %v729 = vpop.f32.mrb[0].mxu0
      %v730 = vpop.f32.mrb[0].mxu0
      %v731 = vadd.f32 0.0, %v730
      %v732 = vpop.f32.mrb[0].mxu0
      %733 = vmatprep.mubr.bf16.mxu0 0
      %734 = vmatmul.mubr.bf16.gmra.mrb[0].mxu0 %v609
      %v735 = vpop.f32.mrb[0].mxu0
      %v736 = vadd.f32 0.0, %v735
      %v737 = vpop.f32.mrb[0].mxu0
      %v738 = vpop.f32.mrb[0].mxu0
      %v739 = vadd.f32 0.0, %v738
      %v740 = vpop.f32.mrb[0].mxu0
      %741 = vmatprep.mubr.bf16.mxu0 0
      %742 = vmatmul.mubr.bf16.gmra.mrb[0].mxu0 %v610
      %v743 = vpop.f32.mrb[0].mxu0
      %v744 = vadd.f32 0.0, %v743
      %v745 = vpop.f32.mrb[0].mxu0
      %v746 = vpop.f32.mrb[0].mxu0
      %v747 = vadd.f32 0.0, %v746
      %v748 = vpop.f32.mrb[0].mxu0
      %749 = vmatprep.mubr.bf16.mxu0 0
      %750 = vmatmul.mubr.bf16.gmra.mrb[0].mxu0 %v611
      %v751 = vpop.f32.mrb[0].mxu0
      %v752 = vadd.f32 0.0, %v751
      %v753 = vpop.f32.mrb[0].mxu0
      %v754 = vpop.f32.mrb[0].mxu0
      %v755 = vadd.f32 0.0, %v754
      %v756 = vpop.f32.mrb[0].mxu0
      %757 = vmatprep.mubr.bf16.mxu0 0
      %758 = vmatmul.mubr.bf16.gmra.mrb[0].mxu0 %v612
      %v759 = vpop.f32.mrb[0].mxu0
      %v760 = vadd.f32 0.0, %v759
      %v761 = vpop.f32.mrb[0].mxu0
      %v762 = vpop.f32.mrb[0].mxu0
      %v763 = vadd.f32 0.0, %v762
      %v764 = vpop.f32.mrb[0].mxu0
      %765 = vdwg.mxu0
      %v766 = vld [vmem:[%s2] sm:$0x1]
      %v768 = vlaneseq
      %v769 = vshrl.u32 %v768, 7
      %v770 = vsub.s32 0, %v769
      %v771 = vrot.slane %v766, %v770
      %v773 = vmul.f32 %v704, %v771
      %v774 = vmul.f32 %v707, %v771
      %v775 = vmul.f32 %v712, %v771
      %v776 = vmul.f32 %v715, %v771
      %v777 = vmul.f32 %v720, %v771
      %v778 = vmul.f32 %v723, %v771
      %v779 = vmul.f32 %v728, %v771
      %v780 = vmul.f32 %v731, %v771
      %v781 = vmul.f32 %v736, %v771
      %v782 = vmul.f32 %v739, %v771
      %v783 = vmul.f32 %v744, %v771
      %v784 = vmul.f32 %v747, %v771
      %v785 = vmul.f32 %v752, %v771
      %v786 = vmul.f32 %v755, %v771
      %v787 = vmul.f32 %v760, %v771
      %v788 = vmul.f32 %v763, %v771
      %v789 = vld [vmem:[%s3] sm:$0x1]
      %v791 = vlaneseq
      %v792 = vshrl.u32 %v791, 7
      %v793 = vsub.s32 0, %v792
      %v794 = vrot.slane %v789, %v793
      %v796 = vadd.f32 %v773, %v794
      %v797 = vadd.f32 %v774, %v794
      %v798 = vadd.f32 %v775, %v794
      %v799 = vadd.f32 %v776, %v794
      %v800 = vadd.f32 %v777, %v794
      %v801 = vadd.f32 %v778, %v794
      %v802 = vadd.f32 %v779, %v794
      %v803 = vadd.f32 %v780, %v794
      %v804 = vadd.f32 %v781, %v794
      %v805 = vadd.f32 %v782, %v794
      %v806 = vadd.f32 %v783, %v794
      %v807 = vadd.f32 %v784, %v794
      %v808 = vadd.f32 %v785, %v794
      %v809 = vadd.f32 %v786, %v794
      %v810 = vadd.f32 %v787, %v794
      %v811 = vadd.f32 %v788, %v794
      %v812 = vxor.u32 %v796, 2147483648
      %v813 = vxor.u32 %v797, 2147483648
      %v814 = vxor.u32 %v798, 2147483648
      %v815 = vxor.u32 %v799, 2147483648
      %v816 = vxor.u32 %v800, 2147483648
      %v817 = vxor.u32 %v801, 2147483648
      %v818 = vxor.u32 %v802, 2147483648
      %v819 = vxor.u32 %v803, 2147483648
      %v820 = vxor.u32 %v804, 2147483648
      %v821 = vxor.u32 %v805, 2147483648
      %v822 = vxor.u32 %v806, 2147483648
      %v823 = vxor.u32 %v807, 2147483648
      %v824 = vxor.u32 %v808, 2147483648
      %v825 = vxor.u32 %v809, 2147483648
      %v826 = vxor.u32 %v810, 2147483648
      %v827 = vxor.u32 %v811, 2147483648
      %v828 = vmul.f32 %v812, 1.442695
      %v829 = vpow.pop %v828
      %v830 = vmul.f32 %v813, 1.442695
      %v831 = vpow.pop %v830
      %v832 = vmul.f32 %v814, 1.442695
      %v833 = vpow.pop %v832
      %v834 = vmul.f32 %v815, 1.442695
      %v835 = vpow.pop %v834
      %v836 = vmul.f32 %v816, 1.442695
      %v837 = vpow.pop %v836
      %v838 = vmul.f32 %v817, 1.442695
      %v839 = vpow.pop %v838
      %v840 = vmul.f32 %v818, 1.442695
      %v841 = vpow.pop %v840
      %v842 = vmul.f32 %v819, 1.442695
      %v843 = vpow.pop %v842
      %v844 = vmul.f32 %v820, 1.442695
      %v845 = vpow.pop %v844
      %v846 = vmul.f32 %v821, 1.442695
      %v847 = vpow.pop %v846
      %v848 = vmul.f32 %v822, 1.442695
      %v849 = vpow.pop %v848
      %v850 = vmul.f32 %v823, 1.442695
      %v851 = vpow.pop %v850
      %v852 = vmul.f32 %v824, 1.442695
      %v853 = vpow.pop %v852
      %v854 = vmul.f32 %v825, 1.442695
      %v855 = vpow.pop %v854
      %v856 = vmul.f32 %v826, 1.442695
      %v857 = vpow.pop %v856
      %v858 = vmul.f32 %v827, 1.442695
      %v859 = vpow.pop %v858
      %v860 = vadd.f32 %v829, 1.0
      %v861 = vadd.f32 %v831, 1.0
      %v862 = vadd.f32 %v833, 1.0
      %v863 = vadd.f32 %v835, 1.0
      %v864 = vadd.f32 %v837, 1.0
      %v865 = vadd.f32 %v839, 1.0
      %v866 = vadd.f32 %v841, 1.0
      %v867 = vadd.f32 %v843, 1.0
      %v868 = vadd.f32 %v845, 1.0
      %v869 = vadd.f32 %v847, 1.0
      %v870 = vadd.f32 %v849, 1.0
      %v871 = vadd.f32 %v851, 1.0
      %v872 = vadd.f32 %v853, 1.0
      %v873 = vadd.f32 %v855, 1.0
      %v874 = vadd.f32 %v857, 1.0
      %v875 = vadd.f32 %v859, 1.0
      %v876 = vrcp.pop %v860
      %v877 = vmul.f32 1.0, %v876
      %v878 = vrcp.pop %v861
      %v879 = vmul.f32 1.0, %v878
      %v880 = vrcp.pop %v862
      %v881 = vmul.f32 1.0, %v880
      %v882 = vrcp.pop %v863
      %v883 = vmul.f32 1.0, %v882
      %v884 = vrcp.pop %v864
      %v885 = vmul.f32 1.0, %v884
      %v886 = vrcp.pop %v865
      %v887 = vmul.f32 1.0, %v886
      %v888 = vrcp.pop %v866
      %v889 = vmul.f32 1.0, %v888
      %v890 = vrcp.pop %v867
      %v891 = vmul.f32 1.0, %v890
      %v892 = vrcp.pop %v868
      %v893 = vmul.f32 1.0, %v892
      %v894 = vrcp.pop %v869
      %v895 = vmul.f32 1.0, %v894
      %v896 = vrcp.pop %v870
      %v897 = vmul.f32 1.0, %v896
      %v898 = vrcp.pop %v871
      %v899 = vmul.f32 1.0, %v898
      %v900 = vrcp.pop %v872
      %v901 = vmul.f32 1.0, %v900
      %v902 = vrcp.pop %v873
      %v903 = vmul.f32 1.0, %v902
      %v904 = vrcp.pop %v874
      %v905 = vmul.f32 1.0, %v904
      %v906 = vrcp.pop %v875
      %v907 = vmul.f32 1.0, %v906
      %v908 = vmul.f32 %v796, %v877
      %v909 = vmul.f32 %v797, %v879
      %v910 = vmul.f32 %v798, %v881
      %v911 = vmul.f32 %v799, %v883
      %v912 = vmul.f32 %v800, %v885
      %v913 = vmul.f32 %v801, %v887
      %v914 = vmul.f32 %v802, %v889
      %v915 = vmul.f32 %v803, %v891
      %v916 = vmul.f32 %v804, %v893
      %v917 = vmul.f32 %v805, %v895
      %v918 = vmul.f32 %v806, %v897
      %v919 = vmul.f32 %v807, %v899
      %v920 = vmul.f32 %v808, %v901
      %v921 = vmul.f32 %v809, %v903
      %v922 = vmul.f32 %v810, %v905
      %v923 = vmul.f32 %v811, %v907
      %s924 = scalar_lea.vmem [#allocation2], 32
      %925 = vst [vmem:[%s924 + $0x8] sm:$0xff] %v908
      %926 = vst [vmem:[%s924 + $0x10] sm:$0xff] %v909
      %927 = vst [vmem:[%s924 + $0x28] sm:$0xff] %v910
      %928 = vst [vmem:[%s924 + $0x30] sm:$0xff] %v911
      %929 = vst [vmem:[%s924 + $0x48] sm:$0xff] %v912
      %930 = vst [vmem:[%s924 + $0x50] sm:$0xff] %v913
      %931 = vst [vmem:[%s924 + $0x68] sm:$0xff] %v914
      %932 = vst [vmem:[%s924 + $0x70] sm:$0xff] %v915
      %933 = vst [vmem:[%s924 + $0x88] sm:$0xff] %v916
      %934 = vst [vmem:[%s924 + $0x90] sm:$0xff] %v917
      %935 = vst [vmem:[%s924 + $0xa8] sm:$0xff] %v918
      %936 = vst [vmem:[%s924 + $0xb0] sm:$0xff] %v919
      %937 = vst [vmem:[%s924 + $0xc8] sm:$0xff] %v920
      %938 = vst [vmem:[%s924 + $0xd0] sm:$0xff] %v921
      %939 = vst [vmem:[%s924 + $0xe8] sm:$0xff] %v922
      %940 = vst [vmem:[%s924 + $0xf0] sm:$0xff] %v923
      %v941 = vld [vmem:[%s462 + $0x40] sm:$0xf]
      %v942 = vld [vmem:[%s462 + $0x44] sm:$0xf]
      %v943 = vld [vmem:[%s462 + $0x48] sm:$0xf]
      %v944 = vld [vmem:[%s462 + $0x4c] sm:$0xf]
      %v945 = vld [vmem:[%s462 + $0x50] sm:$0xf]
      %v946 = vld [vmem:[%s462 + $0x54] sm:$0xf]
      %v947 = vld [vmem:[%s462 + $0x58] sm:$0xf]
      %v948 = vld [vmem:[%s462 + $0x5c] sm:$0xf]
      %v949 = vld [vmem:[%s462 + $0x60] sm:$0xf]
      %v950 = vld [vmem:[%s462 + $0x64] sm:$0xf]
      %v951 = vld [vmem:[%s462 + $0x68] sm:$0xf]
      %v952 = vld [vmem:[%s462 + $0x6c] sm:$0xf]
      %v953 = vld [vmem:[%s462 + $0x70] sm:$0xf]
      %v954 = vld [vmem:[%s462 + $0x74] sm:$0xf]
      %v955 = vld [vmem:[%s462 + $0x78] sm:$0xf]
      %v956 = vld [vmem:[%s462 + $0x7c] sm:$0xf]
      %v957 = vld [vmem:[%s1] sm:$0xf]
      %v958 = vld [vmem:[%s1 + $0x4] sm:$0xf]
      %v959 = vld [vmem:[%s1 + $0x8] sm:$0xf]
      %v960 = vld [vmem:[%s1 + $0xc] sm:$0xf]
      %v961 = vld [vmem:[%s1 + $0x10] sm:$0xf]
      %v962 = vld [vmem:[%s1 + $0x14] sm:$0xf]
      %v963 = vld [vmem:[%s1 + $0x18] sm:$0xf]
      %v964 = vld [vmem:[%s1 + $0x1c] sm:$0xf]
      %v965 = vld [vmem:[%s1 + $0x20] sm:$0xf]
      %v966 = vld [vmem:[%s1 + $0x24] sm:$0xf]
      %v967 = vld [vmem:[%s1 + $0x28] sm:$0xf]
      %v968 = vld [vmem:[%s1 + $0x2c] sm:$0xf]
      %v969 = vld [vmem:[%s1 + $0x30] sm:$0xf]
      %v970 = vld [vmem:[%s1 + $0x34] sm:$0xf]
      %v971 = vld [vmem:[%s1 + $0x38] sm:$0xf]
      %v972 = vld [vmem:[%s1 + $0x3c] sm:$0xf]
      %v989 = vunpack.c.l.b16 %v941
      %v990 = vunpack.c.l.b16 %v942
      %v991 = vunpack.c.l.b16 %v943
      %v992 = vunpack.c.l.b16 %v944
      %v993 = vunpack.c.l.b16 %v945
      %v994 = vunpack.c.l.b16 %v946
      %v995 = vunpack.c.l.b16 %v947
      %v996 = vunpack.c.l.b16 %v948
      %v997 = vunpack.c.l.b16 %v949
      %v998 = vunpack.c.l.b16 %v950
      %v999 = vunpack.c.l.b16 %v951
      %v1000 = vunpack.c.l.b16 %v952
      %v1001 = vunpack.c.l.b16 %v953
      %v1002 = vunpack.c.l.b16 %v954
      %v1003 = vunpack.c.l.b16 %v955
      %v1004 = vunpack.c.l.b16 %v956
      %v1005 = vpack.c.b16 %v990, %v989
      %v1006 = vpack.c.b16 %v992, %v991
      %v1007 = vpack.c.b16 %v994, %v993
      %v1008 = vpack.c.b16 %v996, %v995
      %v1009 = vpack.c.b16 %v998, %v997
      %v1010 = vpack.c.b16 %v1000, %v999
      %v1011 = vpack.c.b16 %v1002, %v1001
      %v1012 = vpack.c.b16 %v1004, %v1003
      %v1037 = vunpack.c.l.b16 %v957
      %v1038 = vunpack.c.l.b16 %v958
      %v1039 = vunpack.c.l.b16 %v959
      %v1040 = vunpack.c.l.b16 %v960
      %v1041 = vunpack.c.l.b16 %v961
      %v1042 = vunpack.c.l.b16 %v962
      %v1043 = vunpack.c.l.b16 %v963
      %v1044 = vunpack.c.l.b16 %v964
      %v1045 = vunpack.c.l.b16 %v965
      %v1046 = vunpack.c.l.b16 %v966
      %v1047 = vunpack.c.l.b16 %v967
      %v1048 = vunpack.c.l.b16 %v968
      %v1049 = vunpack.c.l.b16 %v969
      %v1050 = vunpack.c.l.b16 %v970
      %v1051 = vunpack.c.l.b16 %v971
      %v1052 = vunpack.c.l.b16 %v972
      %v1053 = vpack.c.b16 %v1038, %v1037
      %v1054 = vpack.c.b16 %v1040, %v1039
      %v1055 = vpack.c.b16 %v1042, %v1041
      %v1056 = vpack.c.b16 %v1044, %v1043
      %v1057 = vpack.c.b16 %v1046, %v1045
      %v1058 = vpack.c.b16 %v1048, %v1047
      %v1059 = vpack.c.b16 %v1050, %v1049
      %v1060 = vpack.c.b16 %v1052, %v1051
      %1069 = vmatprep.subr.bf16.mxu0 0
      %1070 = vmatpush1.bf16.msra.mxu0 %v1053
      %1071 = vmatprep.subr.bf16.mxu0 0
      %1072 = vmatpush1.bf16.msra.mxu0 %v1054
      %1073 = vmatprep.subr.bf16.mxu0 0
      %1074 = vmatpush1.bf16.msra.mxu0 %v1055
      %1075 = vmatprep.subr.bf16.mxu0 0
      %1076 = vmatpush1.bf16.msra.mxu0 %v1056
      %1077 = vmatprep.subr.bf16.mxu0 0
      %1078 = vmatpush1.bf16.msra.mxu0 %v1057
      %1079 = vmatprep.subr.bf16.mxu0 0
      %1080 = vmatpush1.bf16.msra.mxu0 %v1058
      %1081 = vmatprep.subr.bf16.mxu0 0
      %1082 = vmatpush1.bf16.msra.mxu0 %v1059
      %1083 = vmatprep.subr.bf16.mxu0 0
      %1084 = vmatpush1.bf16.msra.mxu0 %v1060
      %1085 = vmatprep.subr.bf16.mxu0 0
      %1086 = vmatpush1.bf16.msra.mxu0 0
      %1087 = vmatprep.subr.bf16.mxu0 0
      %1088 = vmatpush1.bf16.msra.mxu0 0
      %1089 = vmatprep.subr.bf16.mxu0 0
      %1090 = vmatpush1.bf16.msra.mxu0 0
      %1091 = vmatprep.subr.bf16.mxu0 0
      %1092 = vmatpush1.bf16.msra.mxu0 0
      %1093 = vmatprep.subr.bf16.mxu0 0
      %1094 = vmatpush1.bf16.msra.mxu0 0
      %1095 = vmatprep.subr.bf16.mxu0 0
      %1096 = vmatpush1.bf16.msra.mxu0 0
      %1097 = vmatprep.subr.bf16.mxu0 0
      %1098 = vmatpush1.bf16.msra.mxu0 0
      %1099 = vmatprep.subr.bf16.mxu0 0
      %1100 = vmatpush1.bf16.msra.mxu0 0
      %1101 = vmatprep.mubr.bf16.mxu0 0
      %1102 = vmatmul.mubr.bf16.gmra.mrb[0].mxu0 %v1005
      %v1103 = vpop.f32.mrb[0].mxu0
      %v1104 = vadd.f32 0.0, %v1103
      %v1105 = vpop.f32.mrb[0].mxu0
      %v1106 = vpop.f32.mrb[0].mxu0
      %v1107 = vadd.f32 0.0, %v1106
      %v1108 = vpop.f32.mrb[0].mxu0
      %1109 = vmatprep.mubr.bf16.mxu0 0
      %1110 = vmatmul.mubr.bf16.gmra.mrb[0].mxu0 %v1006
      %v1111 = vpop.f32.mrb[0].mxu0
      %v1112 = vadd.f32 0.0, %v1111
      %v1113 = vpop.f32.mrb[0].mxu0
      %v1114 = vpop.f32.mrb[0].mxu0
      %v1115 = vadd.f32 0.0, %v1114
      %v1116 = vpop.f32.mrb[0].mxu0
      %1117 = vmatprep.mubr.bf16.mxu0 0
      %1118 = vmatmul.mubr.bf16.gmra.mrb[0].mxu0 %v1007
      %v1119 = vpop.f32.mrb[0].mxu0
      %v1120 = vadd.f32 0.0, %v1119
      %v1121 = vpop.f32.mrb[0].mxu0
      %v1122 = vpop.f32.mrb[0].mxu0
      %v1123 = vadd.f32 0.0, %v1122
      %v1124 = vpop.f32.mrb[0].mxu0
      %1125 = vmatprep.mubr.bf16.mxu0 0
      %1126 = vmatmul.mubr.bf16.gmra.mrb[0].mxu0 %v1008
      %v1127 = vpop.f32.mrb[0].mxu0
      %v1128 = vadd.f32 0.0, %v1127
      %v1129 = vpop.f32.mrb[0].mxu0
      %v1130 = vpop.f32.mrb[0].mxu0
      %v1131 = vadd.f32 0.0, %v1130
      %v1132 = vpop.f32.mrb[0].mxu0
      %1133 = vmatprep.mubr.bf16.mxu0 0
      %1134 = vmatmul.mubr.bf16.gmra.mrb[0].mxu0 %v1009
      %v1135 = vpop.f32.mrb[0].mxu0
      %v1136 = vadd.f32 0.0, %v1135
      %v1137 = vpop.f32.mrb[0].mxu0
      %v1138 = vpop.f32.mrb[0].mxu0
      %v1139 = vadd.f32 0.0, %v1138
      %v1140 = vpop.f32.mrb[0].mxu0
      %1141 = vmatprep.mubr.bf16.mxu0 0
      %1142 = vmatmul.mubr.bf16.gmra.mrb[0].mxu0 %v1010
      %v1143 = vpop.f32.mrb[0].mxu0
      %v1144 = vadd.f32 0.0, %v1143
      %v1145 = vpop.f32.mrb[0].mxu0
      %v1146 = vpop.f32.mrb[0].mxu0
      %v1147 = vadd.f32 0.0, %v1146
      %v1148 = vpop.f32.mrb[0].mxu0
      %1149 = vmatprep.mubr.bf16.mxu0 0
      %1150 = vmatmul.mubr.bf16.gmra.mrb[0].mxu0 %v1011
      %v1151 = vpop.f32.mrb[0].mxu0
      %v1152 = vadd.f32 0.0, %v1151
      %v1153 = vpop.f32.mrb[0].mxu0
      %v1154 = vpop.f32.mrb[0].mxu0
      %v1155 = vadd.f32 0.0, %v1154
      %v1156 = vpop.f32.mrb[0].mxu0
      %1157 = vmatprep.mubr.bf16.mxu0 0
      %1158 = vmatmul.mubr.bf16.gmra.mrb[0].mxu0 %v1012
      %v1159 = vpop.f32.mrb[0].mxu0
      %v1160 = vadd.f32 0.0, %v1159
      %v1161 = vpop.f32.mrb[0].mxu0
      %v1162 = vpop.f32.mrb[0].mxu0
      %v1163 = vadd.f32 0.0, %v1162
      %v1164 = vpop.f32.mrb[0].mxu0
      %1165 = vdwg.mxu0
      %v1166 = vld [vmem:[%s2] sm:$0x1]
      %v1168 = vlaneseq
      %v1169 = vshrl.u32 %v1168, 7
      %v1170 = vsub.s32 0, %v1169
      %v1171 = vrot.slane %v1166, %v1170
      %v1173 = vmul.f32 %v1104, %v1171
      %v1174 = vmul.f32 %v1107, %v1171
      %v1175 = vmul.f32 %v1112, %v1171
      %v1176 = vmul.f32 %v1115, %v1171
      %v1177 = vmul.f32 %v1120, %v1171
      %v1178 = vmul.f32 %v1123, %v1171
      %v1179 = vmul.f32 %v1128, %v1171
      %v1180 = vmul.f32 %v1131, %v1171
      %v1181 = vmul.f32 %v1136, %v1171
      %v1182 = vmul.f32 %v1139, %v1171
      %v1183 = vmul.f32 %v1144, %v1171
      %v1184 = vmul.f32 %v1147, %v1171
      %v1185 = vmul.f32 %v1152, %v1171
      %v1186 = vmul.f32 %v1155, %v1171
      %v1187 = vmul.f32 %v1160, %v1171
      %v1188 = vmul.f32 %v1163, %v1171
      %v1189 = vld [vmem:[%s3] sm:$0x1]
      %v1191 = vlaneseq
      %v1192 = vshrl.u32 %v1191, 7
      %v1193 = vsub.s32 0, %v1192
      %v1194 = vrot.slane %v1189, %v1193
      %v1196 = vadd.f32 %v1173, %v1194
      %v1197 = vadd.f32 %v1174, %v1194
      %v1198 = vadd.f32 %v1175, %v1194
      %v1199 = vadd.f32 %v1176, %v1194
      %v1200 = vadd.f32 %v1177, %v1194
      %v1201 = vadd.f32 %v1178, %v1194
      %v1202 = vadd.f32 %v1179, %v1194
      %v1203 = vadd.f32 %v1180, %v1194
      %v1204 = vadd.f32 %v1181, %v1194
      %v1205 = vadd.f32 %v1182, %v1194
      %v1206 = vadd.f32 %v1183, %v1194
      %v1207 = vadd.f32 %v1184, %v1194
      %v1208 = vadd.f32 %v1185, %v1194
      %v1209 = vadd.f32 %v1186, %v1194
      %v1210 = vadd.f32 %v1187, %v1194
      %v1211 = vadd.f32 %v1188, %v1194
      %v1212 = vxor.u32 %v1196, 2147483648
      %v1213 = vxor.u32 %v1197, 2147483648
      %v1214 = vxor.u32 %v1198, 2147483648
      %v1215 = vxor.u32 %v1199, 2147483648
      %v1216 = vxor.u32 %v1200, 2147483648
      %v1217 = vxor.u32 %v1201, 2147483648
      %v1218 = vxor.u32 %v1202, 2147483648
      %v1219 = vxor.u32 %v1203, 2147483648
      %v1220 = vxor.u32 %v1204, 2147483648
      %v1221 = vxor.u32 %v1205, 2147483648
      %v1222 = vxor.u32 %v1206, 2147483648
      %v1223 = vxor.u32 %v1207, 2147483648
      %v1224 = vxor.u32 %v1208, 2147483648
      %v1225 = vxor.u32 %v1209, 2147483648
      %v1226 = vxor.u32 %v1210, 2147483648
      %v1227 = vxor.u32 %v1211, 2147483648
      %v1228 = vmul.f32 %v1212, 1.442695
      %v1229 = vpow.pop %v1228
      %v1230 = vmul.f32 %v1213, 1.442695
      %v1231 = vpow.pop %v1230
      %v1232 = vmul.f32 %v1214, 1.442695
      %v1233 = vpow.pop %v1232
      %v1234 = vmul.f32 %v1215, 1.442695
      %v1235 = vpow.pop %v1234
      %v1236 = vmul.f32 %v1216, 1.442695
      %v1237 = vpow.pop %v1236
      %v1238 = vmul.f32 %v1217, 1.442695
      %v1239 = vpow.pop %v1238
      %v1240 = vmul.f32 %v1218, 1.442695
      %v1241 = vpow.pop %v1240
      %v1242 = vmul.f32 %v1219, 1.442695
      %v1243 = vpow.pop %v1242
      %v1244 = vmul.f32 %v1220, 1.442695
      %v1245 = vpow.pop %v1244
      %v1246 = vmul.f32 %v1221, 1.442695
      %v1247 = vpow.pop %v1246
      %v1248 = vmul.f32 %v1222, 1.442695
      %v1249 = vpow.pop %v1248
      %v1250 = vmul.f32 %v1223, 1.442695
      %v1251 = vpow.pop %v1250
      %v1252 = vmul.f32 %v1224, 1.442695
      %v1253 = vpow.pop %v1252
      %v1254 = vmul.f32 %v1225, 1.442695
      %v1255 = vpow.pop %v1254
      %v1256 = vmul.f32 %v1226, 1.442695
      %v1257 = vpow.pop %v1256
      %v1258 = vmul.f32 %v1227, 1.442695
      %v1259 = vpow.pop %v1258
      %v1260 = vadd.f32 %v1229, 1.0
      %v1261 = vadd.f32 %v1231, 1.0
      %v1262 = vadd.f32 %v1233, 1.0
      %v1263 = vadd.f32 %v1235, 1.0
      %v1264 = vadd.f32 %v1237, 1.0
      %v1265 = vadd.f32 %v1239, 1.0
      %v1266 = vadd.f32 %v1241, 1.0
      %v1267 = vadd.f32 %v1243, 1.0
      %v1268 = vadd.f32 %v1245, 1.0
      %v1269 = vadd.f32 %v1247, 1.0
      %v1270 = vadd.f32 %v1249, 1.0
      %v1271 = vadd.f32 %v1251, 1.0
      %v1272 = vadd.f32 %v1253, 1.0
      %v1273 = vadd.f32 %v1255, 1.0
      %v1274 = vadd.f32 %v1257, 1.0
      %v1275 = vadd.f32 %v1259, 1.0
      %v1276 = vrcp.pop %v1260
      %v1277 = vmul.f32 1.0, %v1276
      %v1278 = vrcp.pop %v1261
      %v1279 = vmul.f32 1.0, %v1278
      %v1280 = vrcp.pop %v1262
      %v1281 = vmul.f32 1.0, %v1280
      %v1282 = vrcp.pop %v1263
      %v1283 = vmul.f32 1.0, %v1282
      %v1284 = vrcp.pop %v1264
      %v1285 = vmul.f32 1.0, %v1284
      %v1286 = vrcp.pop %v1265
      %v1287 = vmul.f32 1.0, %v1286
      %v1288 = vrcp.pop %v1266
      %v1289 = vmul.f32 1.0, %v1288
      %v1290 = vrcp.pop %v1267
      %v1291 = vmul.f32 1.0, %v1290
      %v1292 = vrcp.pop %v1268
      %v1293 = vmul.f32 1.0, %v1292
      %v1294 = vrcp.pop %v1269
      %v1295 = vmul.f32 1.0, %v1294
      %v1296 = vrcp.pop %v1270
      %v1297 = vmul.f32 1.0, %v1296
      %v1298 = vrcp.pop %v1271
      %v1299 = vmul.f32 1.0, %v1298
      %v1300 = vrcp.pop %v1272
      %v1301 = vmul.f32 1.0, %v1300
      %v1302 = vrcp.pop %v1273
      %v1303 = vmul.f32 1.0, %v1302
      %v1304 = vrcp.pop %v1274
      %v1305 = vmul.f32 1.0, %v1304
      %v1306 = vrcp.pop %v1275
      %v1307 = vmul.f32 1.0, %v1306
      %v1308 = vmul.f32 %v1196, %v1277
      %v1309 = vmul.f32 %v1197, %v1279
      %v1310 = vmul.f32 %v1198, %v1281
      %v1311 = vmul.f32 %v1199, %v1283
      %v1312 = vmul.f32 %v1200, %v1285
      %v1313 = vmul.f32 %v1201, %v1287
      %v1314 = vmul.f32 %v1202, %v1289
      %v1315 = vmul.f32 %v1203, %v1291
      %v1316 = vmul.f32 %v1204, %v1293
      %v1317 = vmul.f32 %v1205, %v1295
      %v1318 = vmul.f32 %v1206, %v1297
      %v1319 = vmul.f32 %v1207, %v1299
      %v1320 = vmul.f32 %v1208, %v1301
      %v1321 = vmul.f32 %v1209, %v1303
      %v1322 = vmul.f32 %v1210, %v1305
      %v1323 = vmul.f32 %v1211, %v1307
      %s1324 = scalar_lea.vmem [#allocation2], 288
      %1325 = vst [vmem:[%s1324 + $0x8] sm:$0xff] %v1308
      %1326 = vst [vmem:[%s1324 + $0x10] sm:$0xff] %v1309
      %1327 = vst [vmem:[%s1324 + $0x28] sm:$0xff] %v1310
      %1328 = vst [vmem:[%s1324 + $0x30] sm:$0xff] %v1311
      %1329 = vst [vmem:[%s1324 + $0x48] sm:$0xff] %v1312
      %1330 = vst [vmem:[%s1324 + $0x50] sm:$0xff] %v1313
      %1331 = vst [vmem:[%s1324 + $0x68] sm:$0xff] %v1314
      %1332 = vst [vmem:[%s1324 + $0x70] sm:$0xff] %v1315
      %1333 = vst [vmem:[%s1324 + $0x88] sm:$0xff] %v1316
      %1334 = vst [vmem:[%s1324 + $0x90] sm:$0xff] %v1317
      %1335 = vst [vmem:[%s1324 + $0xa8] sm:$0xff] %v1318
      %1336 = vst [vmem:[%s1324 + $0xb0] sm:$0xff] %v1319
      %1337 = vst [vmem:[%s1324 + $0xc8] sm:$0xff] %v1320
      %1338 = vst [vmem:[%s1324 + $0xd0] sm:$0xff] %v1321
      %1339 = vst [vmem:[%s1324 + $0xe8] sm:$0xff] %v1322
      %1340 = vst [vmem:[%s1324 + $0xf0] sm:$0xff] %v1323
      %v1341 = vld [vmem:[%s4] sm:$0xff]
      %v1342 = vld [vmem:[%s4 + $0x8] sm:$0x1]
      %v1343 = vld [vmem:[#allocation2] sm:$0xff]
      %v1344 = vld [vmem:[#allocation2 + $0x8] sm:$0xff]
      %v1345 = vld [vmem:[#allocation2 + $0x10] sm:$0xff]
      %v1346 = vld [vmem:[#allocation2 + $0x18] sm:$0xff]
      %v1347 = vld [vmem:[#allocation2 + $0x20] sm:$0xff]
      %v1348 = vld [vmem:[#allocation2 + $0x28] sm:$0xff]
      %v1349 = vld [vmem:[#allocation2 + $0x30] sm:$0xff]
      %v1350 = vld [vmem:[#allocation2 + $0x38] sm:$0xff]
      %v1351 = vld [vmem:[#allocation2 + $0x40] sm:$0xff]
      %v1352 = vld [vmem:[#allocation2 + $0x48] sm:$0xff]
      %v1353 = vld [vmem:[#allocation2 + $0x50] sm:$0xff]
      %v1354 = vld [vmem:[#allocation2 + $0x58] sm:$0xff]
      %v1355 = vld [vmem:[#allocation2 + $0x60] sm:$0xff]
      %v1356 = vld [vmem:[#allocation2 + $0x68] sm:$0xff]
      %v1357 = vld [vmem:[#allocation2 + $0x70] sm:$0xff]
      %v1358 = vld [vmem:[#allocation2 + $0x78] sm:$0xff]
      %v1359 = vld [vmem:[#allocation2 + $0x80] sm:$0xff]
      %v1360 = vld [vmem:[#allocation2 + $0x88] sm:$0xff]
      %v1361 = vld [vmem:[#allocation2 + $0x90] sm:$0xff]
      %v1362 = vld [vmem:[#allocation2 + $0x98] sm:$0xff]
      %v1363 = vld [vmem:[#allocation2 + $0xa0] sm:$0xff]
      %v1364 = vld [vmem:[#allocation2 + $0xa8] sm:$0xff]
      %v1365 = vld [vmem:[#allocation2 + $0xb0] sm:$0xff]
      %v1366 = vld [vmem:[#allocation2 + $0xb8] sm:$0xff]
      %v1367 = vld [vmem:[#allocation2 + $0xc0] sm:$0xff]
      %v1368 = vld [vmem:[#allocation2 + $0xc8] sm:$0xff]
      %v1369 = vld [vmem:[#allocation2 + $0xd0] sm:$0xff]
      %v1370 = vld [vmem:[#allocation2 + $0xd8] sm:$0xff]
      %v1371 = vld [vmem:[#allocation2 + $0xe0] sm:$0xff]
      %v1372 = vld [vmem:[#allocation2 + $0xe8] sm:$0xff]
      %v1373 = vld [vmem:[#allocation2 + $0xf0] sm:$0xff]
      %v1374 = vld [vmem:[#allocation2 + $0xf8] sm:$0xff]
      %v1375 = vld [vmem:[#allocation2 + $0x100] sm:$0xff]
      %v1376 = vld [vmem:[#allocation2 + $0x108] sm:$0xff]
      %v1377 = vld [vmem:[#allocation2 + $0x110] sm:$0xff]
      %v1378 = vld [vmem:[#allocation2 + $0x118] sm:$0xff]
      %v1379 = vld [vmem:[#allocation2 + $0x120] sm:$0xff]
      %v1380 = vld [vmem:[#allocation2 + $0x128] sm:$0xff]
      %v1381 = vld [vmem:[#allocation2 + $0x130] sm:$0xff]
      %v1382 = vld [vmem:[#allocation2 + $0x138] sm:$0xff]
      %v1383 = vlaneseq
      %v1384 = vshrl.u32 %v1383, 7
      %v1385 = vsub.s32 0, %v1384
      %v1386 = vrot.slane %v1341, %v1385
      %v1387 = vmul.f32 %v1343, %v1386
      %v1388 = vmul.f32 %v1344, %v1386
      %v1389 = vmul.f32 %v1345, %v1386
      %v1390 = vmul.f32 %v1347, %v1386
      %v1391 = vmul.f32 %v1348, %v1386
      %v1392 = vmul.f32 %v1349, %v1386
      %v1393 = vmul.f32 %v1351, %v1386
      %v1394 = vmul.f32 %v1352, %v1386
      %v1395 = vmul.f32 %v1353, %v1386
      %v1396 = vmul.f32 %v1355, %v1386
      %v1397 = vmul.f32 %v1356, %v1386
      %v1398 = vmul.f32 %v1357, %v1386
      %v1399 = vmul.f32 %v1359, %v1386
      %v1400 = vmul.f32 %v1360, %v1386
      %v1401 = vmul.f32 %v1361, %v1386
      %v1402 = vmul.f32 %v1363, %v1386
      %v1403 = vmul.f32 %v1364, %v1386
      %v1404 = vmul.f32 %v1365, %v1386
      %v1405 = vmul.f32 %v1367, %v1386
      %v1406 = vmul.f32 %v1368, %v1386
      %v1407 = vmul.f32 %v1369, %v1386
      %v1408 = vmul.f32 %v1371, %v1386
      %v1409 = vmul.f32 %v1372, %v1386
      %v1410 = vmul.f32 %v1373, %v1386
      %v1411 = vadd.f32 %v1387, 0.0
      %v1412 = vadd.f32 %v1388, 0.0
      %v1413 = vadd.f32 %v1389, 0.0
      %v1414 = vadd.f32 %v1390, 0.0
      %v1415 = vadd.f32 %v1391, 0.0
      %v1416 = vadd.f32 %v1392, 0.0
      %v1417 = vadd.f32 %v1393, 0.0
      %v1418 = vadd.f32 %v1394, 0.0
      %v1419 = vadd.f32 %v1395, 0.0
      %v1420 = vadd.f32 %v1396, 0.0
      %v1421 = vadd.f32 %v1397, 0.0
      %v1422 = vadd.f32 %v1398, 0.0
      %v1423 = vadd.f32 %v1399, 0.0
      %v1424 = vadd.f32 %v1400, 0.0
      %v1425 = vadd.f32 %v1401, 0.0
      %v1426 = vadd.f32 %v1402, 0.0
      %v1427 = vadd.f32 %v1403, 0.0
      %v1428 = vadd.f32 %v1404, 0.0
      %v1429 = vadd.f32 %v1405, 0.0
      %v1430 = vadd.f32 %v1406, 0.0
      %v1431 = vadd.f32 %v1407, 0.0
      %v1432 = vadd.f32 %v1408, 0.0
      %v1433 = vadd.f32 %v1409, 0.0
      %v1434 = vadd.f32 %v1410, 0.0
      %v1435 = vlaneseq
      %v1436 = vshrl.u32 %v1435, 7
      %v1437 = vsub.s32 1, %v1436
      %v1438 = vrot.slane %v1341, %v1437
      %v1439 = vmul.f32 %v1344, %v1438
      %v1440 = vmul.f32 %v1345, %v1438
      %v1441 = vmul.f32 %v1348, %v1438
      %v1442 = vmul.f32 %v1349, %v1438
      %v1443 = vmul.f32 %v1352, %v1438
      %v1444 = vmul.f32 %v1353, %v1438
      %v1445 = vmul.f32 %v1356, %v1438
      %v1446 = vmul.f32 %v1357, %v1438
      %v1447 = vmul.f32 %v1360, %v1438
      %v1448 = vmul.f32 %v1361, %v1438
      %v1449 = vmul.f32 %v1364, %v1438
      %v1450 = vmul.f32 %v1365, %v1438
      %v1451 = vmul.f32 %v1368, %v1438
      %v1452 = vmul.f32 %v1369, %v1438
      %v1453 = vmul.f32 %v1372, %v1438
      %v1454 = vmul.f32 %v1373, %v1438
      %vm1471 = vcmask 1046528
      %v1472 = vrot.slane %v1439, 1
      %v1473 = vrot.slane %v1440, 1
      %v1474 = vsel %vm1471, %v1472, %v1473
      %v1475 = vrot.slane %v1441, 1
      %v1476 = vrot.slane %v1442, 1
      %v1477 = vsel %vm1471, %v1475, %v1476
      %v1478 = vrot.slane %v1443, 1
      %v1479 = vrot.slane %v1444, 1
      %v1480 = vsel %vm1471, %v1478, %v1479
      %v1481 = vrot.slane %v1445, 1
      %v1482 = vrot.slane %v1446, 1
      %v1483 = vsel %vm1471, %v1481, %v1482
      %v1484 = vrot.slane %v1447, 1
      %v1485 = vrot.slane %v1448, 1
      %v1486 = vsel %vm1471, %v1484, %v1485
      %v1487 = vrot.slane %v1449, 1
      %v1488 = vrot.slane %v1450, 1
      %v1489 = vsel %vm1471, %v1487, %v1488
      %v1490 = vrot.slane %v1451, 1
      %v1491 = vrot.slane %v1452, 1
      %v1492 = vsel %vm1471, %v1490, %v1491
      %v1493 = vrot.slane %v1453, 1
      %v1494 = vrot.slane %v1454, 1
      %v1495 = vsel %vm1471, %v1493, %v1494
      %v1520 = vadd.f32 %v1411, %v1472
      %v1521 = vadd.f32 %v1412, %v1474
      %v1522 = vadd.f32 %v1413, %v1473
      %v1523 = vadd.f32 %v1414, %v1475
      %v1524 = vadd.f32 %v1415, %v1477
      %v1525 = vadd.f32 %v1416, %v1476
      %v1526 = vadd.f32 %v1417, %v1478
      %v1527 = vadd.f32 %v1418, %v1480
      %v1528 = vadd.f32 %v1419, %v1479
      %v1529 = vadd.f32 %v1420, %v1481
      %v1530 = vadd.f32 %v1421, %v1483
      %v1531 = vadd.f32 %v1422, %v1482
      %v1532 = vadd.f32 %v1423, %v1484
      %v1533 = vadd.f32 %v1424, %v1486
      %v1534 = vadd.f32 %v1425, %v1485
      %v1535 = vadd.f32 %v1426, %v1487
      %v1536 = vadd.f32 %v1427, %v1489
      %v1537 = vadd.f32 %v1428, %v1488
      %v1538 = vadd.f32 %v1429, %v1490
      %v1539 = vadd.f32 %v1430, %v1492
      %v1540 = vadd.f32 %v1431, %v1491
      %v1541 = vadd.f32 %v1432, %v1493
      %v1542 = vadd.f32 %v1433, %v1495
      %v1543 = vadd.f32 %v1434, %v1494
      %v1544 = vlaneseq
      %v1545 = vshrl.u32 %v1544, 7
      %v1546 = vsub.s32 2, %v1545
      %v1547 = vrot.slane %v1341, %v1546
      %v1548 = vmul.f32 %v1344, %v1547
      %v1549 = vmul.f32 %v1345, %v1547
      %v1550 = vmul.f32 %v1346, %v1547
      %v1551 = vmul.f32 %v1348, %v1547
      %v1552 = vmul.f32 %v1349, %v1547
      %v1553 = vmul.f32 %v1350, %v1547
      %v1554 = vmul.f32 %v1352, %v1547
      %v1555 = vmul.f32 %v1353, %v1547
      %v1556 = vmul.f32 %v1354, %v1547
      %v1557 = vmul.f32 %v1356, %v1547
      %v1558 = vmul.f32 %v1357, %v1547
      %v1559 = vmul.f32 %v1358, %v1547
      %v1560 = vmul.f32 %v1360, %v1547
      %v1561 = vmul.f32 %v1361, %v1547
      %v1562 = vmul.f32 %v1362, %v1547
      %v1563 = vmul.f32 %v1364, %v1547
      %v1564 = vmul.f32 %v1365, %v1547
      %v1565 = vmul.f32 %v1366, %v1547
      %v1566 = vmul.f32 %v1368, %v1547
      %v1567 = vmul.f32 %v1369, %v1547
      %v1568 = vmul.f32 %v1370, %v1547
      %v1569 = vmul.f32 %v1372, %v1547
      %v1570 = vmul.f32 %v1373, %v1547
      %v1571 = vmul.f32 %v1374, %v1547
      %vm1596 = vcmask 1045504
      %v1597 = vrot.slane %v1548, 2
      %v1598 = vrot.slane %v1549, 2
      %v1599 = vsel %vm1596, %v1597, %v1598
      %v1600 = vrot.slane %v1550, 2
      %v1601 = vsel %vm1596, %v1598, %v1600
      %v1602 = vrot.slane %v1551, 2
      %v1603 = vrot.slane %v1552, 2
      %v1604 = vsel %vm1596, %v1602, %v1603
      %v1605 = vrot.slane %v1553, 2
      %v1606 = vsel %vm1596, %v1603, %v1605
      %v1607 = vrot.slane %v1554, 2
      %v1608 = vrot.slane %v1555, 2
      %v1609 = vsel %vm1596, %v1607, %v1608
      %v1610 = vrot.slane %v1556, 2
      %v1611 = vsel %vm1596, %v1608, %v1610
      %v1612 = vrot.slane %v1557, 2
      %v1613 = vrot.slane %v1558, 2
      %v1614 = vsel %vm1596, %v1612, %v1613
      %v1615 = vrot.slane %v1559, 2
      %v1616 = vsel %vm1596, %v1613, %v1615
      %v1617 = vrot.slane %v1560, 2
      %v1618 = vrot.slane %v1561, 2
      %v1619 = vsel %vm1596, %v1617, %v1618
      %v1620 = vrot.slane %v1562, 2
      %v1621 = vsel %vm1596, %v1618, %v1620
      %v1622 = vrot.slane %v1563, 2
      %v1623 = vrot.slane %v1564, 2
      %v1624 = vsel %vm1596, %v1622, %v1623
      %v1625 = vrot.slane %v1565, 2
      %v1626 = vsel %vm1596, %v1623, %v1625
      %v1627 = vrot.slane %v1566, 2
      %v1628 = vrot.slane %v1567, 2
      %v1629 = vsel %vm1596, %v1627, %v1628
      %v1630 = vrot.slane %v1568, 2
      %v1631 = vsel %vm1596, %v1628, %v1630
      %v1632 = vrot.slane %v1569, 2
      %v1633 = vrot.slane %v1570, 2
      %v1634 = vsel %vm1596, %v1632, %v1633
      %v1635 = vrot.slane %v1571, 2
      %v1636 = vsel %vm1596, %v1633, %v1635
      %v1661 = vadd.f32 %v1520, %v1597
      %v1662 = vadd.f32 %v1521, %v1599
      %v1663 = vadd.f32 %v1522, %v1601
      %v1664 = vadd.f32 %v1523, %v1602
      %v1665 = vadd.f32 %v1524, %v1604
      %v1666 = vadd.f32 %v1525, %v1606
      %v1667 = vadd.f32 %v1526, %v1607
      %v1668 = vadd.f32 %v1527, %v1609
      %v1669 = vadd.f32 %v1528, %v1611
      %v1670 = vadd.f32 %v1529, %v1612
      %v1671 = vadd.f32 %v1530, %v1614
      %v1672 = vadd.f32 %v1531, %v1616
      %v1673 = vadd.f32 %v1532, %v1617
      %v1674 = vadd.f32 %v1533, %v1619
      %v1675 = vadd.f32 %v1534, %v1621
      %v1676 = vadd.f32 %v1535, %v1622
      %v1677 = vadd.f32 %v1536, %v1624
      %v1678 = vadd.f32 %v1537, %v1626
      %v1679 = vadd.f32 %v1538, %v1627
      %v1680 = vadd.f32 %v1539, %v1629
      %v1681 = vadd.f32 %v1540, %v1631
      %v1682 = vadd.f32 %v1541, %v1632
      %v1683 = vadd.f32 %v1542, %v1634
      %v1684 = vadd.f32 %v1543, %v1636
      %v1685 = vlaneseq
      %v1686 = vshrl.u32 %v1685, 7
      %v1687 = vsub.s32 3, %v1686
      %v1688 = vrot.slane %v1341, %v1687
      %v1689 = vmul.f32 %v1347, %v1688
      %v1690 = vmul.f32 %v1348, %v1688
      %v1691 = vmul.f32 %v1349, %v1688
      %v1692 = vmul.f32 %v1351, %v1688
      %v1693 = vmul.f32 %v1352, %v1688
      %v1694 = vmul.f32 %v1353, %v1688
      %v1695 = vmul.f32 %v1355, %v1688
      %v1696 = vmul.f32 %v1356, %v1688
      %v1697 = vmul.f32 %v1357, %v1688
      %v1698 = vmul.f32 %v1359, %v1688
      %v1699 = vmul.f32 %v1360, %v1688
      %v1700 = vmul.f32 %v1361, %v1688
      %v1701 = vmul.f32 %v1363, %v1688
      %v1702 = vmul.f32 %v1364, %v1688
      %v1703 = vmul.f32 %v1365, %v1688
      %v1704 = vmul.f32 %v1367, %v1688
      %v1705 = vmul.f32 %v1368, %v1688
      %v1706 = vmul.f32 %v1369, %v1688
      %v1707 = vmul.f32 %v1371, %v1688
      %v1708 = vmul.f32 %v1372, %v1688
      %v1709 = vmul.f32 %v1373, %v1688
      %v1710 = vmul.f32 %v1375, %v1688
      %v1711 = vmul.f32 %v1376, %v1688
      %v1712 = vmul.f32 %v1377, %v1688
      %v1713 = vadd.f32 %v1661, %v1689
      %v1714 = vadd.f32 %v1662, %v1690
      %v1715 = vadd.f32 %v1663, %v1691
      %v1716 = vadd.f32 %v1664, %v1692
      %v1717 = vadd.f32 %v1665, %v1693
      %v1718 = vadd.f32 %v1666, %v1694
      %v1719 = vadd.f32 %v1667, %v1695
      %v1720 = vadd.f32 %v1668, %v1696
      %v1721 = vadd.f32 %v1669, %v1697
      %v1722 = vadd.f32 %v1670, %v1698
      %v1723 = vadd.f32 %v1671, %v1699
      %v1724 = vadd.f32 %v1672, %v1700
      %v1725 = vadd.f32 %v1673, %v1701
      %v1726 = vadd.f32 %v1674, %v1702
      %v1727 = vadd.f32 %v1675, %v1703
      %v1728 = vadd.f32 %v1676, %v1704
      %v1729 = vadd.f32 %v1677, %v1705
      %v1730 = vadd.f32 %v1678, %v1706
      %v1731 = vadd.f32 %v1679, %v1707
      %v1732 = vadd.f32 %v1680, %v1708
      %v1733 = vadd.f32 %v1681, %v1709
      %v1734 = vadd.f32 %v1682, %v1710
      %v1735 = vadd.f32 %v1683, %v1711
      %v1736 = vadd.f32 %v1684, %v1712
      %v1737 = vlaneseq
      %v1738 = vshrl.u32 %v1737, 7
      %v1739 = vsub.s32 4, %v1738
      %v1740 = vrot.slane %v1341, %v1739
      %v1741 = vmul.f32 %v1348, %v1740
      %v1742 = vmul.f32 %v1349, %v1740
      %v1743 = vmul.f32 %v1352, %v1740
      %v1744 = vmul.f32 %v1353, %v1740
      %v1745 = vmul.f32 %v1356, %v1740
      %v1746 = vmul.f32 %v1357, %v1740
      %v1747 = vmul.f32 %v1360, %v1740
      %v1748 = vmul.f32 %v1361, %v1740
      %v1749 = vmul.f32 %v1364, %v1740
      %v1750 = vmul.f32 %v1365, %v1740
      %v1751 = vmul.f32 %v1368, %v1740
      %v1752 = vmul.f32 %v1369, %v1740
      %v1753 = vmul.f32 %v1372, %v1740
      %v1754 = vmul.f32 %v1373, %v1740
      %v1755 = vmul.f32 %v1376, %v1740
      %v1756 = vmul.f32 %v1377, %v1740
      %v1773 = vrot.slane %v1741, 1
      %v1774 = vrot.slane %v1742, 1
      %v1775 = vsel %vm1471, %v1773, %v1774
      %v1776 = vrot.slane %v1743, 1
      %v1777 = vrot.slane %v1744, 1
      %v1778 = vsel %vm1471, %v1776, %v1777
      %v1779 = vrot.slane %v1745, 1
      %v1780 = vrot.slane %v1746, 1
      %v1781 = vsel %vm1471, %v1779, %v1780
      %v1782 = vrot.slane %v1747, 1
      %v1783 = vrot.slane %v1748, 1
      %v1784 = vsel %vm1471, %v1782, %v1783
      %v1785 = vrot.slane %v1749, 1
      %v1786 = vrot.slane %v1750, 1
      %v1787 = vsel %vm1471, %v1785, %v1786
      %v1788 = vrot.slane %v1751, 1
      %v1789 = vrot.slane %v1752, 1
      %v1790 = vsel %vm1471, %v1788, %v1789
      %v1791 = vrot.slane %v1753, 1
      %v1792 = vrot.slane %v1754, 1
      %v1793 = vsel %vm1471, %v1791, %v1792
      %v1794 = vrot.slane %v1755, 1
      %v1795 = vrot.slane %v1756, 1
      %v1796 = vsel %vm1471, %v1794, %v1795
      %v1821 = vadd.f32 %v1713, %v1773
      %v1822 = vadd.f32 %v1714, %v1775
      %v1823 = vadd.f32 %v1715, %v1774
      %v1824 = vadd.f32 %v1716, %v1776
      %v1825 = vadd.f32 %v1717, %v1778
      %v1826 = vadd.f32 %v1718, %v1777
      %v1827 = vadd.f32 %v1719, %v1779
      %v1828 = vadd.f32 %v1720, %v1781
      %v1829 = vadd.f32 %v1721, %v1780
      %v1830 = vadd.f32 %v1722, %v1782
      %v1831 = vadd.f32 %v1723, %v1784
      %v1832 = vadd.f32 %v1724, %v1783
      %v1833 = vadd.f32 %v1725, %v1785
      %v1834 = vadd.f32 %v1726, %v1787
      %v1835 = vadd.f32 %v1727, %v1786
      %v1836 = vadd.f32 %v1728, %v1788
      %v1837 = vadd.f32 %v1729, %v1790
      %v1838 = vadd.f32 %v1730, %v1789
      %v1839 = vadd.f32 %v1731, %v1791
      %v1840 = vadd.f32 %v1732, %v1793
      %v1841 = vadd.f32 %v1733, %v1792
      %v1842 = vadd.f32 %v1734, %v1794
      %v1843 = vadd.f32 %v1735, %v1796
      %v1844 = vadd.f32 %v1736, %v1795
      %v1845 = vlaneseq
      %v1846 = vshrl.u32 %v1845, 7
      %v1847 = vsub.s32 5, %v1846
      %v1848 = vrot.slane %v1341, %v1847
      %v1849 = vmul.f32 %v1348, %v1848
      %v1850 = vmul.f32 %v1349, %v1848
      %v1851 = vmul.f32 %v1350, %v1848
      %v1852 = vmul.f32 %v1352, %v1848
      %v1853 = vmul.f32 %v1353, %v1848
      %v1854 = vmul.f32 %v1354, %v1848
      %v1855 = vmul.f32 %v1356, %v1848
      %v1856 = vmul.f32 %v1357, %v1848
      %v1857 = vmul.f32 %v1358, %v1848
      %v1858 = vmul.f32 %v1360, %v1848
      %v1859 = vmul.f32 %v1361, %v1848
      %v1860 = vmul.f32 %v1362, %v1848
      %v1861 = vmul.f32 %v1364, %v1848
      %v1862 = vmul.f32 %v1365, %v1848
      %v1863 = vmul.f32 %v1366, %v1848
      %v1864 = vmul.f32 %v1368, %v1848
      %v1865 = vmul.f32 %v1369, %v1848
      %v1866 = vmul.f32 %v1370, %v1848
      %v1867 = vmul.f32 %v1372, %v1848
      %v1868 = vmul.f32 %v1373, %v1848
      %v1869 = vmul.f32 %v1374, %v1848
      %v1870 = vmul.f32 %v1376, %v1848
      %v1871 = vmul.f32 %v1377, %v1848
      %v1872 = vmul.f32 %v1378, %v1848
      %v1897 = vrot.slane %v1849, 2
      %v1898 = vrot.slane %v1850, 2
      %v1899 = vsel %vm1596, %v1897, %v1898
      %v1900 = vrot.slane %v1851, 2
      %v1901 = vsel %vm1596, %v1898, %v1900
      %v1902 = vrot.slane %v1852, 2
      %v1903 = vrot.slane %v1853, 2
      %v1904 = vsel %vm1596, %v1902, %v1903
      %v1905 = vrot.slane %v1854, 2
      %v1906 = vsel %vm1596, %v1903, %v1905
      %v1907 = vrot.slane %v1855, 2
      %v1908 = vrot.slane %v1856, 2
      %v1909 = vsel %vm1596, %v1907, %v1908
      %v1910 = vrot.slane %v1857, 2
      %v1911 = vsel %vm1596, %v1908, %v1910
      %v1912 = vrot.slane %v1858, 2
      %v1913 = vrot.slane %v1859, 2
      %v1914 = vsel %vm1596, %v1912, %v1913
      %v1915 = vrot.slane %v1860, 2
      %v1916 = vsel %vm1596, %v1913, %v1915
      %v1917 = vrot.slane %v1861, 2
      %v1918 = vrot.slane %v1862, 2
      %v1919 = vsel %vm1596, %v1917, %v1918
      %v1920 = vrot.slane %v1863, 2
      %v1921 = vsel %vm1596, %v1918, %v1920
      %v1922 = vrot.slane %v1864, 2
      %v1923 = vrot.slane %v1865, 2
      %v1924 = vsel %vm1596, %v1922, %v1923
      %v1925 = vrot.slane %v1866, 2
      %v1926 = vsel %vm1596, %v1923, %v1925
      %v1927 = vrot.slane %v1867, 2
      %v1928 = vrot.slane %v1868, 2
      %v1929 = vsel %vm1596, %v1927, %v1928
      %v1930 = vrot.slane %v1869, 2
      %v1931 = vsel %vm1596, %v1928, %v1930
      %v1932 = vrot.slane %v1870, 2
      %v1933 = vrot.slane %v1871, 2
      %v1934 = vsel %vm1596, %v1932, %v1933
      %v1935 = vrot.slane %v1872, 2
      %v1936 = vsel %vm1596, %v1933, %v1935
      %v1961 = vadd.f32 %v1821, %v1897
      %v1962 = vadd.f32 %v1822, %v1899
      %v1963 = vadd.f32 %v1823, %v1901
      %v1964 = vadd.f32 %v1824, %v1902
      %v1965 = vadd.f32 %v1825, %v1904
      %v1966 = vadd.f32 %v1826, %v1906
      %v1967 = vadd.f32 %v1827, %v1907
      %v1968 = vadd.f32 %v1828, %v1909
      %v1969 = vadd.f32 %v1829, %v1911
      %v1970 = vadd.f32 %v1830, %v1912
      %v1971 = vadd.f32 %v1831, %v1914
      %v1972 = vadd.f32 %v1832, %v1916
      %v1973 = vadd.f32 %v1833, %v1917
      %v1974 = vadd.f32 %v1834, %v1919
      %v1975 = vadd.f32 %v1835, %v1921
      %v1976 = vadd.f32 %v1836, %v1922
      %v1977 = vadd.f32 %v1837, %v1924
      %v1978 = vadd.f32 %v1838, %v1926
      %v1979 = vadd.f32 %v1839, %v1927
      %v1980 = vadd.f32 %v1840, %v1929
      %v1981 = vadd.f32 %v1841, %v1931
      %v1982 = vadd.f32 %v1842, %v1932
      %v1983 = vadd.f32 %v1843, %v1934
      %v1984 = vadd.f32 %v1844, %v1936
      %v1985 = vlaneseq
      %v1986 = vshrl.u32 %v1985, 7
      %v1987 = vsub.s32 6, %v1986
      %v1988 = vrot.slane %v1341, %v1987
      %v1989 = vmul.f32 %v1351, %v1988
      %v1990 = vmul.f32 %v1352, %v1988
      %v1991 = vmul.f32 %v1353, %v1988
      %v1992 = vmul.f32 %v1355, %v1988
      %v1993 = vmul.f32 %v1356, %v1988
      %v1994 = vmul.f32 %v1357, %v1988
      %v1995 = vmul.f32 %v1359, %v1988
      %v1996 = vmul.f32 %v1360, %v1988
      %v1997 = vmul.f32 %v1361, %v1988
      %v1998 = vmul.f32 %v1363, %v1988
      %v1999 = vmul.f32 %v1364, %v1988
      %v2000 = vmul.f32 %v1365, %v1988
      %v2001 = vmul.f32 %v1367, %v1988
      %v2002 = vmul.f32 %v1368, %v1988
      %v2003 = vmul.f32 %v1369, %v1988
      %v2004 = vmul.f32 %v1371, %v1988
      %v2005 = vmul.f32 %v1372, %v1988
      %v2006 = vmul.f32 %v1373, %v1988
      %v2007 = vmul.f32 %v1375, %v1988
      %v2008 = vmul.f32 %v1376, %v1988
      %v2009 = vmul.f32 %v1377, %v1988
      %v2010 = vmul.f32 %v1379, %v1988
      %v2011 = vmul.f32 %v1380, %v1988
      %v2012 = vmul.f32 %v1381, %v1988
      %v2013 = vadd.f32 %v1961, %v1989
      %v2014 = vadd.f32 %v1962, %v1990
      %v2015 = vadd.f32 %v1963, %v1991
      %v2016 = vadd.f32 %v1964, %v1992
      %v2017 = vadd.f32 %v1965, %v1993
      %v2018 = vadd.f32 %v1966, %v1994
      %v2019 = vadd.f32 %v1967, %v1995
      %v2020 = vadd.f32 %v1968, %v1996
      %v2021 = vadd.f32 %v1969, %v1997
      %v2022 = vadd.f32 %v1970, %v1998
      %v2023 = vadd.f32 %v1971, %v1999
      %v2024 = vadd.f32 %v1972, %v2000
      %v2025 = vadd.f32 %v1973, %v2001
      %v2026 = vadd.f32 %v1974, %v2002
      %v2027 = vadd.f32 %v1975, %v2003
      %v2028 = vadd.f32 %v1976, %v2004
      %v2029 = vadd.f32 %v1977, %v2005
      %v2030 = vadd.f32 %v1978, %v2006
      %v2031 = vadd.f32 %v1979, %v2007
      %v2032 = vadd.f32 %v1980, %v2008
      %v2033 = vadd.f32 %v1981, %v2009
      %v2034 = vadd.f32 %v1982, %v2010
      %v2035 = vadd.f32 %v1983, %v2011
      %v2036 = vadd.f32 %v1984, %v2012
      %v2037 = vlaneseq
      %v2038 = vshrl.u32 %v2037, 7
      %v2039 = vsub.s32 7, %v2038
      %v2040 = vrot.slane %v1341, %v2039
      %v2041 = vmul.f32 %v1352, %v2040
      %v2042 = vmul.f32 %v1353, %v2040
      %v2043 = vmul.f32 %v1356, %v2040
      %v2044 = vmul.f32 %v1357, %v2040
      %v2045 = vmul.f32 %v1360, %v2040
      %v2046 = vmul.f32 %v1361, %v2040
      %v2047 = vmul.f32 %v1364, %v2040
      %v2048 = vmul.f32 %v1365, %v2040
      %v2049 = vmul.f32 %v1368, %v2040
      %v2050 = vmul.f32 %v1369, %v2040
      %v2051 = vmul.f32 %v1372, %v2040
      %v2052 = vmul.f32 %v1373, %v2040
      %v2053 = vmul.f32 %v1376, %v2040
      %v2054 = vmul.f32 %v1377, %v2040
      %v2055 = vmul.f32 %v1380, %v2040
      %v2056 = vmul.f32 %v1381, %v2040
      %v2073 = vrot.slane %v2041, 1
      %v2074 = vrot.slane %v2042, 1
      %v2075 = vsel %vm1471, %v2073, %v2074
      %v2076 = vrot.slane %v2043, 1
      %v2077 = vrot.slane %v2044, 1
      %v2078 = vsel %vm1471, %v2076, %v2077
      %v2079 = vrot.slane %v2045, 1
      %v2080 = vrot.slane %v2046, 1
      %v2081 = vsel %vm1471, %v2079, %v2080
      %v2082 = vrot.slane %v2047, 1
      %v2083 = vrot.slane %v2048, 1
      %v2084 = vsel %vm1471, %v2082, %v2083
      %v2085 = vrot.slane %v2049, 1
      %v2086 = vrot.slane %v2050, 1
      %v2087 = vsel %vm1471, %v2085, %v2086
      %v2088 = vrot.slane %v2051, 1
      %v2089 = vrot.slane %v2052, 1
      %v2090 = vsel %vm1471, %v2088, %v2089
      %v2091 = vrot.slane %v2053, 1
      %v2092 = vrot.slane %v2054, 1
      %v2093 = vsel %vm1471, %v2091, %v2092
      %v2094 = vrot.slane %v2055, 1
      %v2095 = vrot.slane %v2056, 1
      %v2096 = vsel %vm1471, %v2094, %v2095
      %v2121 = vadd.f32 %v2013, %v2073
      %v2122 = vadd.f32 %v2014, %v2075
      %v2123 = vadd.f32 %v2015, %v2074
      %v2124 = vadd.f32 %v2016, %v2076
      %v2125 = vadd.f32 %v2017, %v2078
      %v2126 = vadd.f32 %v2018, %v2077
      %v2127 = vadd.f32 %v2019, %v2079
      %v2128 = vadd.f32 %v2020, %v2081
      %v2129 = vadd.f32 %v2021, %v2080
      %v2130 = vadd.f32 %v2022, %v2082
      %v2131 = vadd.f32 %v2023, %v2084
      %v2132 = vadd.f32 %v2024, %v2083
      %v2133 = vadd.f32 %v2025, %v2085
      %v2134 = vadd.f32 %v2026, %v2087
      %v2135 = vadd.f32 %v2027, %v2086
      %v2136 = vadd.f32 %v2028, %v2088
      %v2137 = vadd.f32 %v2029, %v2090
      %v2138 = vadd.f32 %v2030, %v2089
      %v2139 = vadd.f32 %v2031, %v2091
      %v2140 = vadd.f32 %v2032, %v2093
      %v2141 = vadd.f32 %v2033, %v2092
      %v2142 = vadd.f32 %v2034, %v2094
      %v2143 = vadd.f32 %v2035, %v2096
      %v2144 = vadd.f32 %v2036, %v2095
      %v2145 = vlaneseq
      %v2146 = vshrl.u32 %v2145, 7
      %v2147 = vsub.s32 0, %v2146
      %v2148 = vrot.slane %v1342, %v2147
      %v2149 = vmul.f32 %v1352, %v2148
      %v2150 = vmul.f32 %v1353, %v2148
      %v2151 = vmul.f32 %v1354, %v2148
      %v2152 = vmul.f32 %v1356, %v2148
      %v2153 = vmul.f32 %v1357, %v2148
      %v2154 = vmul.f32 %v1358, %v2148
      %v2155 = vmul.f32 %v1360, %v2148
      %v2156 = vmul.f32 %v1361, %v2148
      %v2157 = vmul.f32 %v1362, %v2148
      %v2158 = vmul.f32 %v1364, %v2148
      %v2159 = vmul.f32 %v1365, %v2148
      %v2160 = vmul.f32 %v1366, %v2148
      %v2161 = vmul.f32 %v1368, %v2148
      %v2162 = vmul.f32 %v1369, %v2148
      %v2163 = vmul.f32 %v1370, %v2148
      %v2164 = vmul.f32 %v1372, %v2148
      %v2165 = vmul.f32 %v1373, %v2148
      %v2166 = vmul.f32 %v1374, %v2148
      %v2167 = vmul.f32 %v1376, %v2148
      %v2168 = vmul.f32 %v1377, %v2148
      %v2169 = vmul.f32 %v1378, %v2148
      %v2170 = vmul.f32 %v1380, %v2148
      %v2171 = vmul.f32 %v1381, %v2148
      %v2172 = vmul.f32 %v1382, %v2148
      %v2197 = vrot.slane %v2149, 2
      %v2198 = vrot.slane %v2150, 2
      %v2199 = vsel %vm1596, %v2197, %v2198
      %v2200 = vrot.slane %v2151, 2
      %v2201 = vsel %vm1596, %v2198, %v2200
      %v2202 = vrot.slane %v2152, 2
      %v2203 = vrot.slane %v2153, 2
      %v2204 = vsel %vm1596, %v2202, %v2203
      %v2205 = vrot.slane %v2154, 2
      %v2206 = vsel %vm1596, %v2203, %v2205
      %v2207 = vrot.slane %v2155, 2
      %v2208 = vrot.slane %v2156, 2
      %v2209 = vsel %vm1596, %v2207, %v2208
      %v2210 = vrot.slane %v2157, 2
      %v2211 = vsel %vm1596, %v2208, %v2210
      %v2212 = vrot.slane %v2158, 2
      %v2213 = vrot.slane %v2159, 2
      %v2214 = vsel %vm1596, %v2212, %v2213
      %v2215 = vrot.slane %v2160, 2
      %v2216 = vsel %vm1596, %v2213, %v2215
      %v2217 = vrot.slane %v2161, 2
      %v2218 = vrot.slane %v2162, 2
      %v2219 = vsel %vm1596, %v2217, %v2218
      %v2220 = vrot.slane %v2163, 2
      %v2221 = vsel %vm1596, %v2218, %v2220
      %v2222 = vrot.slane %v2164, 2
      %v2223 = vrot.slane %v2165, 2
      %v2224 = vsel %vm1596, %v2222, %v2223
      %v2225 = vrot.slane %v2166, 2
      %v2226 = vsel %vm1596, %v2223, %v2225
      %v2227 = vrot.slane %v2167, 2
      %v2228 = vrot.slane %v2168, 2
      %v2229 = vsel %vm1596, %v2227, %v2228
      %v2230 = vrot.slane %v2169, 2
      %v2231 = vsel %vm1596, %v2228, %v2230
      %v2232 = vrot.slane %v2170, 2
      %v2233 = vrot.slane %v2171, 2
      %v2234 = vsel %vm1596, %v2232, %v2233
      %v2235 = vrot.slane %v2172, 2
      %v2236 = vsel %vm1596, %v2233, %v2235
      %v2261 = vadd.f32 %v2121, %v2197
      %v2262 = vadd.f32 %v2122, %v2199
      %v2263 = vadd.f32 %v2123, %v2201
      %v2264 = vadd.f32 %v2124, %v2202
      %v2265 = vadd.f32 %v2125, %v2204
      %v2266 = vadd.f32 %v2126, %v2206
      %v2267 = vadd.f32 %v2127, %v2207
      %v2268 = vadd.f32 %v2128, %v2209
      %v2269 = vadd.f32 %v2129, %v2211
      %v2270 = vadd.f32 %v2130, %v2212
      %v2271 = vadd.f32 %v2131, %v2214
      %v2272 = vadd.f32 %v2132, %v2216
      %v2273 = vadd.f32 %v2133, %v2217
      %v2274 = vadd.f32 %v2134, %v2219
      %v2275 = vadd.f32 %v2135, %v2221
      %v2276 = vadd.f32 %v2136, %v2222
      %v2277 = vadd.f32 %v2137, %v2224
      %v2278 = vadd.f32 %v2138, %v2226
      %v2279 = vadd.f32 %v2139, %v2227
      %v2280 = vadd.f32 %v2140, %v2229
      %v2281 = vadd.f32 %v2141, %v2231
      %v2282 = vadd.f32 %v2142, %v2232
      %v2283 = vadd.f32 %v2143, %v2234
      %v2284 = vadd.f32 %v2144, %v2236
      %vm2309 = vcmask 1040384
      %v2310 = vrot.slane %v2261, 7
      %v2311 = vrot.slane %v2262, 7
      %v2312 = vsel %vm2309, %v2310, %v2311
      %v2313 = vrot.slane %v2263, 7
      %v2314 = vsel %vm2309, %v2311, %v2313
      %v2315 = vrot.slane %v2264, 7
      %v2316 = vrot.slane %v2265, 7
      %v2317 = vsel %vm2309, %v2315, %v2316
      %v2318 = vrot.slane %v2266, 7
      %v2319 = vsel %vm2309, %v2316, %v2318
      %v2320 = vrot.slane %v2267, 7
      %v2321 = vrot.slane %v2268, 7
      %v2322 = vsel %vm2309, %v2320, %v2321
      %v2323 = vrot.slane %v2269, 7
      %v2324 = vsel %vm2309, %v2321, %v2323
      %v2325 = vrot.slane %v2270, 7
      %v2326 = vrot.slane %v2271, 7
      %v2327 = vsel %vm2309, %v2325, %v2326
      %v2328 = vrot.slane %v2272, 7
      %v2329 = vsel %vm2309, %v2326, %v2328
      %v2330 = vrot.slane %v2273, 7
      %v2331 = vrot.slane %v2274, 7
      %v2332 = vsel %vm2309, %v2330, %v2331
      %v2333 = vrot.slane %v2275, 7
      %v2334 = vsel %vm2309, %v2331, %v2333
      %v2335 = vrot.slane %v2276, 7
      %v2336 = vrot.slane %v2277, 7
      %v2337 = vsel %vm2309, %v2335, %v2336
      %v2338 = vrot.slane %v2278, 7
      %v2339 = vsel %vm2309, %v2336, %v2338
      %v2340 = vrot.slane %v2279, 7
      %v2341 = vrot.slane %v2280, 7
      %v2342 = vsel %vm2309, %v2340, %v2341
      %v2343 = vrot.slane %v2281, 7
      %v2344 = vsel %vm2309, %v2341, %v2343
      %v2345 = vrot.slane %v2282, 7
      %v2346 = vrot.slane %v2283, 7
      %v2347 = vsel %vm2309, %v2345, %v2346
      %v2348 = vrot.slane %v2284, 7
      %v2349 = vsel %vm2309, %v2346, %v2348
      %v2366 = vld [vmem:[%s5] sm:$0x1]
      %v2368 = vlaneseq
      %v2369 = vshrl.u32 %v2368, 7
      %v2370 = vsub.s32 0, %v2369
      %v2371 = vrot.slane %v2366, %v2370
      %v2373 = vmul.f32 %v2312, %v2371
      %v2374 = vmul.f32 %v2314, %v2371
      %v2375 = vmul.f32 %v2317, %v2371
      %v2376 = vmul.f32 %v2319, %v2371
      %v2377 = vmul.f32 %v2322, %v2371
      %v2378 = vmul.f32 %v2324, %v2371
      %v2379 = vmul.f32 %v2327, %v2371
      %v2380 = vmul.f32 %v2329, %v2371
      %v2381 = vmul.f32 %v2332, %v2371
      %v2382 = vmul.f32 %v2334, %v2371
      %v2383 = vmul.f32 %v2337, %v2371
      %v2384 = vmul.f32 %v2339, %v2371
      %v2385 = vmul.f32 %v2342, %v2371
      %v2386 = vmul.f32 %v2344, %v2371
      %v2387 = vmul.f32 %v2347, %v2371
      %v2388 = vmul.f32 %v2349, %v2371
      %v2389 = vld [vmem:[%s6] sm:$0x1]
      %v2391 = vlaneseq
      %v2392 = vshrl.u32 %v2391, 7
      %v2393 = vsub.s32 0, %v2392
      %v2394 = vrot.slane %v2389, %v2393
      %v2396 = vadd.f32 %v2373, %v2394
      %v2397 = vadd.f32 %v2374, %v2394
      %v2398 = vadd.f32 %v2375, %v2394
      %v2399 = vadd.f32 %v2376, %v2394
      %v2400 = vadd.f32 %v2377, %v2394
      %v2401 = vadd.f32 %v2378, %v2394
      %v2402 = vadd.f32 %v2379, %v2394
      %v2403 = vadd.f32 %v2380, %v2394
      %v2404 = vadd.f32 %v2381, %v2394
      %v2405 = vadd.f32 %v2382, %v2394
      %v2406 = vadd.f32 %v2383, %v2394
      %v2407 = vadd.f32 %v2384, %v2394
      %v2408 = vadd.f32 %v2385, %v2394
      %v2409 = vadd.f32 %v2386, %v2394
      %v2410 = vadd.f32 %v2387, %v2394
      %v2411 = vadd.f32 %v2388, %v2394
      %v2412 = vxor.u32 %v2396, 2147483648
      %v2413 = vxor.u32 %v2397, 2147483648
      %v2414 = vxor.u32 %v2398, 2147483648
      %v2415 = vxor.u32 %v2399, 2147483648
      %v2416 = vxor.u32 %v2400, 2147483648
      %v2417 = vxor.u32 %v2401, 2147483648
      %v2418 = vxor.u32 %v2402, 2147483648
      %v2419 = vxor.u32 %v2403, 2147483648
      %v2420 = vxor.u32 %v2404, 2147483648
      %v2421 = vxor.u32 %v2405, 2147483648
      %v2422 = vxor.u32 %v2406, 2147483648
      %v2423 = vxor.u32 %v2407, 2147483648
      %v2424 = vxor.u32 %v2408, 2147483648
      %v2425 = vxor.u32 %v2409, 2147483648
      %v2426 = vxor.u32 %v2410, 2147483648
      %v2427 = vxor.u32 %v2411, 2147483648
      %v2428 = vmul.f32 %v2412, 1.442695
      %v2429 = vpow.pop %v2428
      %v2430 = vmul.f32 %v2413, 1.442695
      %v2431 = vpow.pop %v2430
      %v2432 = vmul.f32 %v2414, 1.442695
      %v2433 = vpow.pop %v2432
      %v2434 = vmul.f32 %v2415, 1.442695
      %v2435 = vpow.pop %v2434
      %v2436 = vmul.f32 %v2416, 1.442695
      %v2437 = vpow.pop %v2436
      %v2438 = vmul.f32 %v2417, 1.442695
      %v2439 = vpow.pop %v2438
      %v2440 = vmul.f32 %v2418, 1.442695
      %v2441 = vpow.pop %v2440
      %v2442 = vmul.f32 %v2419, 1.442695
      %v2443 = vpow.pop %v2442
      %v2444 = vmul.f32 %v2420, 1.442695
      %v2445 = vpow.pop %v2444
      %v2446 = vmul.f32 %v2421, 1.442695
      %v2447 = vpow.pop %v2446
      %v2448 = vmul.f32 %v2422, 1.442695
      %v2449 = vpow.pop %v2448
      %v2450 = vmul.f32 %v2423, 1.442695
      %v2451 = vpow.pop %v2450
      %v2452 = vmul.f32 %v2424, 1.442695
      %v2453 = vpow.pop %v2452
      %v2454 = vmul.f32 %v2425, 1.442695
      %v2455 = vpow.pop %v2454
      %v2456 = vmul.f32 %v2426, 1.442695
      %v2457 = vpow.pop %v2456
      %v2458 = vmul.f32 %v2427, 1.442695
      %v2459 = vpow.pop %v2458
      %v2460 = vadd.f32 %v2429, 1.0
      %v2461 = vadd.f32 %v2431, 1.0
      %v2462 = vadd.f32 %v2433, 1.0
      %v2463 = vadd.f32 %v2435, 1.0
      %v2464 = vadd.f32 %v2437, 1.0
      %v2465 = vadd.f32 %v2439, 1.0
      %v2466 = vadd.f32 %v2441, 1.0
      %v2467 = vadd.f32 %v2443, 1.0
      %v2468 = vadd.f32 %v2445, 1.0
      %v2469 = vadd.f32 %v2447, 1.0
      %v2470 = vadd.f32 %v2449, 1.0
      %v2471 = vadd.f32 %v2451, 1.0
      %v2472 = vadd.f32 %v2453, 1.0
      %v2473 = vadd.f32 %v2455, 1.0
      %v2474 = vadd.f32 %v2457, 1.0
      %v2475 = vadd.f32 %v2459, 1.0
      %v2476 = vrcp.pop %v2460
      %v2477 = vmul.f32 1.0, %v2476
      %v2478 = vrcp.pop %v2461
      %v2479 = vmul.f32 1.0, %v2478
      %v2480 = vrcp.pop %v2462
      %v2481 = vmul.f32 1.0, %v2480
      %v2482 = vrcp.pop %v2463
      %v2483 = vmul.f32 1.0, %v2482
      %v2484 = vrcp.pop %v2464
      %v2485 = vmul.f32 1.0, %v2484
      %v2486 = vrcp.pop %v2465
      %v2487 = vmul.f32 1.0, %v2486
      %v2488 = vrcp.pop %v2466
      %v2489 = vmul.f32 1.0, %v2488
      %v2490 = vrcp.pop %v2467
      %v2491 = vmul.f32 1.0, %v2490
      %v2492 = vrcp.pop %v2468
      %v2493 = vmul.f32 1.0, %v2492
      %v2494 = vrcp.pop %v2469
      %v2495 = vmul.f32 1.0, %v2494
      %v2496 = vrcp.pop %v2470
      %v2497 = vmul.f32 1.0, %v2496
      %v2498 = vrcp.pop %v2471
      %v2499 = vmul.f32 1.0, %v2498
      %v2500 = vrcp.pop %v2472
      %v2501 = vmul.f32 1.0, %v2500
      %v2502 = vrcp.pop %v2473
      %v2503 = vmul.f32 1.0, %v2502
      %v2504 = vrcp.pop %v2474
      %v2505 = vmul.f32 1.0, %v2504
      %v2506 = vrcp.pop %v2475
      %v2507 = vmul.f32 1.0, %v2506
      %v2508 = vmul.f32 %v2396, %v2477
      %v2509 = vmul.f32 %v2397, %v2479
      %v2510 = vmul.f32 %v2398, %v2481
      %v2511 = vmul.f32 %v2399, %v2483
      %v2512 = vmul.f32 %v2400, %v2485
      %v2513 = vmul.f32 %v2401, %v2487
      %v2514 = vmul.f32 %v2402, %v2489
      %v2515 = vmul.f32 %v2403, %v2491
      %v2516 = vmul.f32 %v2404, %v2493
      %v2517 = vmul.f32 %v2405, %v2495
      %v2518 = vmul.f32 %v2406, %v2497
      %v2519 = vmul.f32 %v2407, %v2499
      %v2520 = vmul.f32 %v2408, %v2501
      %v2521 = vmul.f32 %v2409, %v2503
      %v2522 = vmul.f32 %v2410, %v2505
      %v2523 = vmul.f32 %v2411, %v2507
      %v2524 = vadd.f32 %v2508, %v2509
      %v2525 = vadd.f32 %v2524, %v2510
      %v2526 = vadd.f32 %v2525, %v2511
      %v2527 = vadd.f32 %v2526, %v2512
      %v2528 = vadd.f32 %v2527, %v2513
      %v2529 = vadd.f32 %v2528, %v2514
      %v2530 = vadd.f32 %v2529, %v2515
      %v2531 = vadd.f32 %v2530, %v2516
      %v2532 = vadd.f32 %v2531, %v2517
      %v2533 = vadd.f32 %v2532, %v2518
      %v2534 = vadd.f32 %v2533, %v2519
      %v2535 = vadd.f32 %v2534, %v2520
      %v2536 = vadd.f32 %v2535, %v2521
      %v2537 = vadd.f32 %v2536, %v2522
      %v2538 = vadd.f32 %v2537, %v2523
      %v2539 = vrot.slane %v2538, 4
      %v2540 = vadd.f32 %v2538, %v2539
      %v2541 = vrot.slane %v2540, 2
      %v2542 = vadd.f32 %v2540, %v2541
      %v2543 = vrot.slane %v2542, 1
      %v2544 = vadd.f32 %v2542, %v2543
      %v2545 = vadd.f32 %v2544, 0.0
      %2546 = vst [vmem:[#allocation3] sm:$0xff] %v2508
      %2547 = vst [vmem:[#allocation3 + $0x8] sm:$0xff] %v2509
      %2548 = vst [vmem:[#allocation3 + $0x10] sm:$0xff] %v2510
      %2549 = vst [vmem:[#allocation3 + $0x18] sm:$0xff] %v2511
      %2550 = vst [vmem:[#allocation3 + $0x20] sm:$0xff] %v2512
      %2551 = vst [vmem:[#allocation3 + $0x28] sm:$0xff] %v2513
      %2552 = vst [vmem:[#allocation3 + $0x30] sm:$0xff] %v2514
      %2553 = vst [vmem:[#allocation3 + $0x38] sm:$0xff] %v2515
      %2554 = vst [vmem:[#allocation3 + $0x40] sm:$0xff] %v2516
      %2555 = vst [vmem:[#allocation3 + $0x48] sm:$0xff] %v2517
      %2556 = vst [vmem:[#allocation3 + $0x50] sm:$0xff] %v2518
      %2557 = vst [vmem:[#allocation3 + $0x58] sm:$0xff] %v2519
      %2558 = vst [vmem:[#allocation3 + $0x60] sm:$0xff] %v2520
      %2559 = vst [vmem:[#allocation3 + $0x68] sm:$0xff] %v2521
      %2560 = vst [vmem:[#allocation3 + $0x70] sm:$0xff] %v2522
      %2561 = vst [vmem:[#allocation3 + $0x78] sm:$0xff] %v2523
      %s2562 = scalar_lea.vmem [#allocation2], 256
      %v2563 = vld [vmem:[%s2562] sm:$0xff]
      %v2564 = vld [vmem:[%s2562 + $0x8] sm:$0xff]
      %v2565 = vld [vmem:[%s2562 + $0x10] sm:$0xff]
      %v2566 = vld [vmem:[%s2562 + $0x18] sm:$0xff]
      %v2567 = vld [vmem:[%s2562 + $0x20] sm:$0xff]
      %v2568 = vld [vmem:[%s2562 + $0x28] sm:$0xff]
      %v2569 = vld [vmem:[%s2562 + $0x30] sm:$0xff]
      %v2570 = vld [vmem:[%s2562 + $0x38] sm:$0xff]
      %v2571 = vld [vmem:[%s2562 + $0x40] sm:$0xff]
      %v2572 = vld [vmem:[%s2562 + $0x48] sm:$0xff]
      %v2573 = vld [vmem:[%s2562 + $0x50] sm:$0xff]
      %v2574 = vld [vmem:[%s2562 + $0x58] sm:$0xff]
      %v2575 = vld [vmem:[%s2562 + $0x60] sm:$0xff]
      %v2576 = vld [vmem:[%s2562 + $0x68] sm:$0xff]
      %v2577 = vld [vmem:[%s2562 + $0x70] sm:$0xff]
      %v2578 = vld [vmem:[%s2562 + $0x78] sm:$0xff]
      %v2579 = vld [vmem:[%s2562 + $0x80] sm:$0xff]
      %v2580 = vld [vmem:[%s2562 + $0x88] sm:$0xff]
      %v2581 = vld [vmem:[%s2562 + $0x90] sm:$0xff]
      %v2582 = vld [vmem:[%s2562 + $0x98] sm:$0xff]
      %v2583 = vld [vmem:[%s2562 + $0xa0] sm:$0xff]
      %v2584 = vld [vmem:[%s2562 + $0xa8] sm:$0xff]
      %v2585 = vld [vmem:[%s2562 + $0xb0] sm:$0xff]
      %v2586 = vld [vmem:[%s2562 + $0xb8] sm:$0xff]
      %v2587 = vld [vmem:[%s2562 + $0xc0] sm:$0xff]
      %v2588 = vld [vmem:[%s2562 + $0xc8] sm:$0xff]
      %v2589 = vld [vmem:[%s2562 + $0xd0] sm:$0xff]
      %v2590 = vld [vmem:[%s2562 + $0xd8] sm:$0xff]
      %v2591 = vld [vmem:[%s2562 + $0xe0] sm:$0xff]
      %v2592 = vld [vmem:[%s2562 + $0xe8] sm:$0xff]
      %v2593 = vld [vmem:[%s2562 + $0xf0] sm:$0xff]
      %v2594 = vld [vmem:[%s2562 + $0xf8] sm:$0xff]
      %v2595 = vld [vmem:[%s2562 + $0x100] sm:$0xff]
      %v2596 = vld [vmem:[%s2562 + $0x108] sm:$0xff]
      %v2597 = vld [vmem:[%s2562 + $0x110] sm:$0xff]
      %v2598 = vld [vmem:[%s2562 + $0x118] sm:$0xff]
      %v2599 = vld [vmem:[%s2562 + $0x120] sm:$0xff]
      %v2600 = vld [vmem:[%s2562 + $0x128] sm:$0xff]
      %v2601 = vld [vmem:[%s2562 + $0x130] sm:$0xff]
      %v2602 = vld [vmem:[%s2562 + $0x138] sm:$0xff]
      %v2603 = vmul.f32 %v2563, %v1386
      %v2604 = vmul.f32 %v2564, %v1386
      %v2605 = vmul.f32 %v2565, %v1386
      %v2606 = vmul.f32 %v2567, %v1386
      %v2607 = vmul.f32 %v2568, %v1386
      %v2608 = vmul.f32 %v2569, %v1386
      %v2609 = vmul.f32 %v2571, %v1386
      %v2610 = vmul.f32 %v2572, %v1386
      %v2611 = vmul.f32 %v2573, %v1386
      %v2612 = vmul.f32 %v2575, %v1386
      %v2613 = vmul.f32 %v2576, %v1386
      %v2614 = vmul.f32 %v2577, %v1386
      %v2615 = vmul.f32 %v2579, %v1386
      %v2616 = vmul.f32 %v2580, %v1386
      %v2617 = vmul.f32 %v2581, %v1386
      %v2618 = vmul.f32 %v2583, %v1386
      %v2619 = vmul.f32 %v2584, %v1386
      %v2620 = vmul.f32 %v2585, %v1386
      %v2621 = vmul.f32 %v2587, %v1386
      %v2622 = vmul.f32 %v2588, %v1386
      %v2623 = vmul.f32 %v2589, %v1386
      %v2624 = vmul.f32 %v2591, %v1386
      %v2625 = vmul.f32 %v2592, %v1386
      %v2626 = vmul.f32 %v2593, %v1386
      %v2627 = vadd.f32 %v2603, 0.0
      %v2628 = vadd.f32 %v2604, 0.0
      %v2629 = vadd.f32 %v2605, 0.0
      %v2630 = vadd.f32 %v2606, 0.0
      %v2631 = vadd.f32 %v2607, 0.0
      %v2632 = vadd.f32 %v2608, 0.0
      %v2633 = vadd.f32 %v2609, 0.0
      %v2634 = vadd.f32 %v2610, 0.0
      %v2635 = vadd.f32 %v2611, 0.0
      %v2636 = vadd.f32 %v2612, 0.0
      %v2637 = vadd.f32 %v2613, 0.0
      %v2638 = vadd.f32 %v2614, 0.0
      %v2639 = vadd.f32 %v2615, 0.0
      %v2640 = vadd.f32 %v2616, 0.0
      %v2641 = vadd.f32 %v2617, 0.0
      %v2642 = vadd.f32 %v2618, 0.0
      %v2643 = vadd.f32 %v2619, 0.0
      %v2644 = vadd.f32 %v2620, 0.0
      %v2645 = vadd.f32 %v2621, 0.0
      %v2646 = vadd.f32 %v2622, 0.0
      %v2647 = vadd.f32 %v2623, 0.0
      %v2648 = vadd.f32 %v2624, 0.0
      %v2649 = vadd.f32 %v2625, 0.0
      %v2650 = vadd.f32 %v2626, 0.0
      %v2651 = vmul.f32 %v2564, %v1438
      %v2652 = vmul.f32 %v2565, %v1438
      %v2653 = vmul.f32 %v2568, %v1438
      %v2654 = vmul.f32 %v2569, %v1438
      %v2655 = vmul.f32 %v2572, %v1438
      %v2656 = vmul.f32 %v2573, %v1438
      %v2657 = vmul.f32 %v2576, %v1438
      %v2658 = vmul.f32 %v2577, %v1438
      %v2659 = vmul.f32 %v2580, %v1438
      %v2660 = vmul.f32 %v2581, %v1438
      %v2661 = vmul.f32 %v2584, %v1438
      %v2662 = vmul.f32 %v2585, %v1438
      %v2663 = vmul.f32 %v2588, %v1438
      %v2664 = vmul.f32 %v2589, %v1438
      %v2665 = vmul.f32 %v2592, %v1438
      %v2666 = vmul.f32 %v2593, %v1438
      %v2683 = vrot.slane %v2651, 1
      %v2684 = vrot.slane %v2652, 1
      %v2685 = vsel %vm1471, %v2683, %v2684
      %v2686 = vrot.slane %v2653, 1
      %v2687 = vrot.slane %v2654, 1
      %v2688 = vsel %vm1471, %v2686, %v2687
      %v2689 = vrot.slane %v2655, 1
      %v2690 = vrot.slane %v2656, 1
      %v2691 = vsel %vm1471, %v2689, %v2690
      %v2692 = vrot.slane %v2657, 1
      %v2693 = vrot.slane %v2658, 1
      %v2694 = vsel %vm1471, %v2692, %v2693
      %v2695 = vrot.slane %v2659, 1
      %v2696 = vrot.slane %v2660, 1
      %v2697 = vsel %vm1471, %v2695, %v2696
      %v2698 = vrot.slane %v2661, 1
      %v2699 = vrot.slane %v2662, 1
      %v2700 = vsel %vm1471, %v2698, %v2699
      %v2701 = vrot.slane %v2663, 1
      %v2702 = vrot.slane %v2664, 1
      %v2703 = vsel %vm1471, %v2701, %v2702
      %v2704 = vrot.slane %v2665, 1
      %v2705 = vrot.slane %v2666, 1
      %v2706 = vsel %vm1471, %v2704, %v2705
      %v2731 = vadd.f32 %v2627, %v2683
      %v2732 = vadd.f32 %v2628, %v2685
      %v2733 = vadd.f32 %v2629, %v2684
      %v2734 = vadd.f32 %v2630, %v2686
      %v2735 = vadd.f32 %v2631, %v2688
      %v2736 = vadd.f32 %v2632, %v2687
      %v2737 = vadd.f32 %v2633, %v2689
      %v2738 = vadd.f32 %v2634, %v2691
      %v2739 = vadd.f32 %v2635, %v2690
      %v2740 = vadd.f32 %v2636, %v2692
      %v2741 = vadd.f32 %v2637, %v2694
      %v2742 = vadd.f32 %v2638, %v2693
      %v2743 = vadd.f32 %v2639, %v2695
      %v2744 = vadd.f32 %v2640, %v2697
      %v2745 = vadd.f32 %v2641, %v2696
      %v2746 = vadd.f32 %v2642, %v2698
      %v2747 = vadd.f32 %v2643, %v2700
      %v2748 = vadd.f32 %v2644, %v2699
      %v2749 = vadd.f32 %v2645, %v2701
      %v2750 = vadd.f32 %v2646, %v2703
      %v2751 = vadd.f32 %v2647, %v2702
      %v2752 = vadd.f32 %v2648, %v2704
      %v2753 = vadd.f32 %v2649, %v2706
      %v2754 = vadd.f32 %v2650, %v2705
      %v2755 = vmul.f32 %v2564, %v1547
      %v2756 = vmul.f32 %v2565, %v1547
      %v2757 = vmul.f32 %v2566, %v1547
      %v2758 = vmul.f32 %v2568, %v1547
      %v2759 = vmul.f32 %v2569, %v1547
      %v2760 = vmul.f32 %v2570, %v1547
      %v2761 = vmul.f32 %v2572, %v1547
      %v2762 = vmul.f32 %v2573, %v1547
      %v2763 = vmul.f32 %v2574, %v1547
      %v2764 = vmul.f32 %v2576, %v1547
      %v2765 = vmul.f32 %v2577, %v1547
      %v2766 = vmul.f32 %v2578, %v1547
      %v2767 = vmul.f32 %v2580, %v1547
      %v2768 = vmul.f32 %v2581, %v1547
      %v2769 = vmul.f32 %v2582, %v1547
      %v2770 = vmul.f32 %v2584, %v1547
      %v2771 = vmul.f32 %v2585, %v1547
      %v2772 = vmul.f32 %v2586, %v1547
      %v2773 = vmul.f32 %v2588, %v1547
      %v2774 = vmul.f32 %v2589, %v1547
      %v2775 = vmul.f32 %v2590, %v1547
      %v2776 = vmul.f32 %v2592, %v1547
      %v2777 = vmul.f32 %v2593, %v1547
      %v2778 = vmul.f32 %v2594, %v1547
      %v2803 = vrot.slane %v2755, 2
      %v2804 = vrot.slane %v2756, 2
      %v2805 = vsel %vm1596, %v2803, %v2804
      %v2806 = vrot.slane %v2757, 2
      %v2807 = vsel %vm1596, %v2804, %v2806
      %v2808 = vrot.slane %v2758, 2
      %v2809 = vrot.slane %v2759, 2
      %v2810 = vsel %vm1596, %v2808, %v2809
      %v2811 = vrot.slane %v2760, 2
      %v2812 = vsel %vm1596, %v2809, %v2811
      %v2813 = vrot.slane %v2761, 2
      %v2814 = vrot.slane %v2762, 2
      %v2815 = vsel %vm1596, %v2813, %v2814
      %v2816 = vrot.slane %v2763, 2
      %v2817 = vsel %vm1596, %v2814, %v2816
      %v2818 = vrot.slane %v2764, 2
      %v2819 = vrot.slane %v2765, 2
      %v2820 = vsel %vm1596, %v2818, %v2819
      %v2821 = vrot.slane %v2766, 2
      %v2822 = vsel %vm1596, %v2819, %v2821
      %v2823 = vrot.slane %v2767, 2
      %v2824 = vrot.slane %v2768, 2
      %v2825 = vsel %vm1596, %v2823, %v2824
      %v2826 = vrot.slane %v2769, 2
      %v2827 = vsel %vm1596, %v2824, %v2826
      %v2828 = vrot.slane %v2770, 2
      %v2829 = vrot.slane %v2771, 2
      %v2830 = vsel %vm1596, %v2828, %v2829
      %v2831 = vrot.slane %v2772, 2
      %v2832 = vsel %vm1596, %v2829, %v2831
      %v2833 = vrot.slane %v2773, 2
      %v2834 = vrot.slane %v2774, 2
      %v2835 = vsel %vm1596, %v2833, %v2834
      %v2836 = vrot.slane %v2775, 2
      %v2837 = vsel %vm1596, %v2834, %v2836
      %v2838 = vrot.slane %v2776, 2
      %v2839 = vrot.slane %v2777, 2
      %v2840 = vsel %vm1596, %v2838, %v2839
      %v2841 = vrot.slane %v2778, 2
      %v2842 = vsel %vm1596, %v2839, %v2841
      %v2867 = vadd.f32 %v2731, %v2803
      %v2868 = vadd.f32 %v2732, %v2805
      %v2869 = vadd.f32 %v2733, %v2807
      %v2870 = vadd.f32 %v2734, %v2808
      %v2871 = vadd.f32 %v2735, %v2810
      %v2872 = vadd.f32 %v2736, %v2812
      %v2873 = vadd.f32 %v2737, %v2813
      %v2874 = vadd.f32 %v2738, %v2815
      %v2875 = vadd.f32 %v2739, %v2817
      %v2876 = vadd.f32 %v2740, %v2818
      %v2877 = vadd.f32 %v2741, %v2820
      %v2878 = vadd.f32 %v2742, %v2822
      %v2879 = vadd.f32 %v2743, %v2823
      %v2880 = vadd.f32 %v2744, %v2825
      %v2881 = vadd.f32 %v2745, %v2827
      %v2882 = vadd.f32 %v2746, %v2828
      %v2883 = vadd.f32 %v2747, %v2830
      %v2884 = vadd.f32 %v2748, %v2832
      %v2885 = vadd.f32 %v2749, %v2833
      %v2886 = vadd.f32 %v2750, %v2835
      %v2887 = vadd.f32 %v2751, %v2837
      %v2888 = vadd.f32 %v2752, %v2838
      %v2889 = vadd.f32 %v2753, %v2840
      %v2890 = vadd.f32 %v2754, %v2842
      %v2891 = vmul.f32 %v2567, %v1688
      %v2892 = vmul.f32 %v2568, %v1688
      %v2893 = vmul.f32 %v2569, %v1688
      %v2894 = vmul.f32 %v2571, %v1688
      %v2895 = vmul.f32 %v2572, %v1688
      %v2896 = vmul.f32 %v2573, %v1688
      %v2897 = vmul.f32 %v2575, %v1688
      %v2898 = vmul.f32 %v2576, %v1688
      %v2899 = vmul.f32 %v2577, %v1688
      %v2900 = vmul.f32 %v2579, %v1688
      %v2901 = vmul.f32 %v2580, %v1688
      %v2902 = vmul.f32 %v2581, %v1688
      %v2903 = vmul.f32 %v2583, %v1688
      %v2904 = vmul.f32 %v2584, %v1688
      %v2905 = vmul.f32 %v2585, %v1688
      %v2906 = vmul.f32 %v2587, %v1688
      %v2907 = vmul.f32 %v2588, %v1688
      %v2908 = vmul.f32 %v2589, %v1688
      %v2909 = vmul.f32 %v2591, %v1688
      %v2910 = vmul.f32 %v2592, %v1688
      %v2911 = vmul.f32 %v2593, %v1688
      %v2912 = vmul.f32 %v2595, %v1688
      %v2913 = vmul.f32 %v2596, %v1688
      %v2914 = vmul.f32 %v2597, %v1688
      %v2915 = vadd.f32 %v2867, %v2891
      %v2916 = vadd.f32 %v2868, %v2892
      %v2917 = vadd.f32 %v2869, %v2893
      %v2918 = vadd.f32 %v2870, %v2894
      %v2919 = vadd.f32 %v2871, %v2895
      %v2920 = vadd.f32 %v2872, %v2896
      %v2921 = vadd.f32 %v2873, %v2897
      %v2922 = vadd.f32 %v2874, %v2898
      %v2923 = vadd.f32 %v2875, %v2899
      %v2924 = vadd.f32 %v2876, %v2900
      %v2925 = vadd.f32 %v2877, %v2901
      %v2926 = vadd.f32 %v2878, %v2902
      %v2927 = vadd.f32 %v2879, %v2903
      %v2928 = vadd.f32 %v2880, %v2904
      %v2929 = vadd.f32 %v2881, %v2905
      %v2930 = vadd.f32 %v2882, %v2906
      %v2931 = vadd.f32 %v2883, %v2907
      %v2932 = vadd.f32 %v2884, %v2908
      %v2933 = vadd.f32 %v2885, %v2909
      %v2934 = vadd.f32 %v2886, %v2910
      %v2935 = vadd.f32 %v2887, %v2911
      %v2936 = vadd.f32 %v2888, %v2912
      %v2937 = vadd.f32 %v2889, %v2913
      %v2938 = vadd.f32 %v2890, %v2914
      %v2939 = vmul.f32 %v2568, %v1740
      %v2940 = vmul.f32 %v2569, %v1740
      %v2941 = vmul.f32 %v2572, %v1740
      %v2942 = vmul.f32 %v2573, %v1740
      %v2943 = vmul.f32 %v2576, %v1740
      %v2944 = vmul.f32 %v2577, %v1740
      %v2945 = vmul.f32 %v2580, %v1740
      %v2946 = vmul.f32 %v2581, %v1740
      %v2947 = vmul.f32 %v2584, %v1740
      %v2948 = vmul.f32 %v2585, %v1740
      %v2949 = vmul.f32 %v2588, %v1740
      %v2950 = vmul.f32 %v2589, %v1740
      %v2951 = vmul.f32 %v2592, %v1740
      %v2952 = vmul.f32 %v2593, %v1740
      %v2953 = vmul.f32 %v2596, %v1740
      %v2954 = vmul.f32 %v2597, %v1740
      %v2971 = vrot.slane %v2939, 1
      %v2972 = vrot.slane %v2940, 1
      %v2973 = vsel %vm1471, %v2971, %v2972
      %v2974 = vrot.slane %v2941, 1
      %v2975 = vrot.slane %v2942, 1
      %v2976 = vsel %vm1471, %v2974, %v2975
      %v2977 = vrot.slane %v2943, 1
      %v2978 = vrot.slane %v2944, 1
      %v2979 = vsel %vm1471, %v2977, %v2978
      %v2980 = vrot.slane %v2945, 1
      %v2981 = vrot.slane %v2946, 1
      %v2982 = vsel %vm1471, %v2980, %v2981
      %v2983 = vrot.slane %v2947, 1
      %v2984 = vrot.slane %v2948, 1
      %v2985 = vsel %vm1471, %v2983, %v2984
      %v2986 = vrot.slane %v2949, 1
      %v2987 = vrot.slane %v2950, 1
      %v2988 = vsel %vm1471, %v2986, %v2987
      %v2989 = vrot.slane %v2951, 1
      %v2990 = vrot.slane %v2952, 1
      %v2991 = vsel %vm1471, %v2989, %v2990
      %v2992 = vrot.slane %v2953, 1
      %v2993 = vrot.slane %v2954, 1
      %v2994 = vsel %vm1471, %v2992, %v2993
      %v3019 = vadd.f32 %v2915, %v2971
      %v3020 = vadd.f32 %v2916, %v2973
      %v3021 = vadd.f32 %v2917, %v2972
      %v3022 = vadd.f32 %v2918, %v2974
      %v3023 = vadd.f32 %v2919, %v2976
      %v3024 = vadd.f32 %v2920, %v2975
      %v3025 = vadd.f32 %v2921, %v2977
      %v3026 = vadd.f32 %v2922, %v2979
      %v3027 = vadd.f32 %v2923, %v2978
      %v3028 = vadd.f32 %v2924, %v2980
      %v3029 = vadd.f32 %v2925, %v2982
      %v3030 = vadd.f32 %v2926, %v2981
      %v3031 = vadd.f32 %v2927, %v2983
      %v3032 = vadd.f32 %v2928, %v2985
      %v3033 = vadd.f32 %v2929, %v2984
      %v3034 = vadd.f32 %v2930, %v2986
      %v3035 = vadd.f32 %v2931, %v2988
      %v3036 = vadd.f32 %v2932, %v2987
      %v3037 = vadd.f32 %v2933, %v2989
      %v3038 = vadd.f32 %v2934, %v2991
      %v3039 = vadd.f32 %v2935, %v2990
      %v3040 = vadd.f32 %v2936, %v2992
      %v3041 = vadd.f32 %v2937, %v2994
      %v3042 = vadd.f32 %v2938, %v2993
      %v3043 = vmul.f32 %v2568, %v1848
      %v3044 = vmul.f32 %v2569, %v1848
      %v3045 = vmul.f32 %v2570, %v1848
      %v3046 = vmul.f32 %v2572, %v1848
      %v3047 = vmul.f32 %v2573, %v1848
      %v3048 = vmul.f32 %v2574, %v1848
      %v3049 = vmul.f32 %v2576, %v1848
      %v3050 = vmul.f32 %v2577, %v1848
      %v3051 = vmul.f32 %v2578, %v1848
      %v3052 = vmul.f32 %v2580, %v1848
      %v3053 = vmul.f32 %v2581, %v1848
      %v3054 = vmul.f32 %v2582, %v1848
      %v3055 = vmul.f32 %v2584, %v1848
      %v3056 = vmul.f32 %v2585, %v1848
      %v3057 = vmul.f32 %v2586, %v1848
      %v3058 = vmul.f32 %v2588, %v1848
      %v3059 = vmul.f32 %v2589, %v1848
      %v3060 = vmul.f32 %v2590, %v1848
      %v3061 = vmul.f32 %v2592, %v1848
      %v3062 = vmul.f32 %v2593, %v1848
      %v3063 = vmul.f32 %v2594, %v1848
      %v3064 = vmul.f32 %v2596, %v1848
      %v3065 = vmul.f32 %v2597, %v1848
      %v3066 = vmul.f32 %v2598, %v1848
      %v3091 = vrot.slane %v3043, 2
      %v3092 = vrot.slane %v3044, 2
      %v3093 = vsel %vm1596, %v3091, %v3092
      %v3094 = vrot.slane %v3045, 2
      %v3095 = vsel %vm1596, %v3092, %v3094
      %v3096 = vrot.slane %v3046, 2
      %v3097 = vrot.slane %v3047, 2
      %v3098 = vsel %vm1596, %v3096, %v3097
      %v3099 = vrot.slane %v3048, 2
      %v3100 = vsel %vm1596, %v3097, %v3099
      %v3101 = vrot.slane %v3049, 2
      %v3102 = vrot.slane %v3050, 2
      %v3103 = vsel %vm1596, %v3101, %v3102
      %v3104 = vrot.slane %v3051, 2
      %v3105 = vsel %vm1596, %v3102, %v3104
      %v3106 = vrot.slane %v3052, 2
      %v3107 = vrot.slane %v3053, 2
      %v3108 = vsel %vm1596, %v3106, %v3107
      %v3109 = vrot.slane %v3054, 2
      %v3110 = vsel %vm1596, %v3107, %v3109
      %v3111 = vrot.slane %v3055, 2
      %v3112 = vrot.slane %v3056, 2
      %v3113 = vsel %vm1596, %v3111, %v3112
      %v3114 = vrot.slane %v3057, 2
      %v3115 = vsel %vm1596, %v3112, %v3114
      %v3116 = vrot.slane %v3058, 2
      %v3117 = vrot.slane %v3059, 2
      %v3118 = vsel %vm1596, %v3116, %v3117
      %v3119 = vrot.slane %v3060, 2
      %v3120 = vsel %vm1596, %v3117, %v3119
      %v3121 = vrot.slane %v3061, 2
      %v3122 = vrot.slane %v3062, 2
      %v3123 = vsel %vm1596, %v3121, %v3122
      %v3124 = vrot.slane %v3063, 2
      %v3125 = vsel %vm1596, %v3122, %v3124
      %v3126 = vrot.slane %v3064, 2
      %v3127 = vrot.slane %v3065, 2
      %v3128 = vsel %vm1596, %v3126, %v3127
      %v3129 = vrot.slane %v3066, 2
      %v3130 = vsel %vm1596, %v3127, %v3129
      %v3155 = vadd.f32 %v3019, %v3091
      %v3156 = vadd.f32 %v3020, %v3093
      %v3157 = vadd.f32 %v3021, %v3095
      %v3158 = vadd.f32 %v3022, %v3096
      %v3159 = vadd.f32 %v3023, %v3098
      %v3160 = vadd.f32 %v3024, %v3100
      %v3161 = vadd.f32 %v3025, %v3101
      %v3162 = vadd.f32 %v3026, %v3103
      %v3163 = vadd.f32 %v3027, %v3105
      %v3164 = vadd.f32 %v3028, %v3106
      %v3165 = vadd.f32 %v3029, %v3108
      %v3166 = vadd.f32 %v3030, %v3110
      %v3167 = vadd.f32 %v3031, %v3111
      %v3168 = vadd.f32 %v3032, %v3113
      %v3169 = vadd.f32 %v3033, %v3115
      %v3170 = vadd.f32 %v3034, %v3116
      %v3171 = vadd.f32 %v3035, %v3118
      %v3172 = vadd.f32 %v3036, %v3120
      %v3173 = vadd.f32 %v3037, %v3121
      %v3174 = vadd.f32 %v3038, %v3123
      %v3175 = vadd.f32 %v3039, %v3125
      %v3176 = vadd.f32 %v3040, %v3126
      %v3177 = vadd.f32 %v3041, %v3128
      %v3178 = vadd.f32 %v3042, %v3130
      %v3179 = vmul.f32 %v2571, %v1988
      %v3180 = vmul.f32 %v2572, %v1988
      %v3181 = vmul.f32 %v2573, %v1988
      %v3182 = vmul.f32 %v2575, %v1988
      %v3183 = vmul.f32 %v2576, %v1988
      %v3184 = vmul.f32 %v2577, %v1988
      %v3185 = vmul.f32 %v2579, %v1988
      %v3186 = vmul.f32 %v2580, %v1988
      %v3187 = vmul.f32 %v2581, %v1988
      %v3188 = vmul.f32 %v2583, %v1988
      %v3189 = vmul.f32 %v2584, %v1988
      %v3190 = vmul.f32 %v2585, %v1988
      %v3191 = vmul.f32 %v2587, %v1988
      %v3192 = vmul.f32 %v2588, %v1988
      %v3193 = vmul.f32 %v2589, %v1988
      %v3194 = vmul.f32 %v2591, %v1988
      %v3195 = vmul.f32 %v2592, %v1988
      %v3196 = vmul.f32 %v2593, %v1988
      %v3197 = vmul.f32 %v2595, %v1988
      %v3198 = vmul.f32 %v2596, %v1988
      %v3199 = vmul.f32 %v2597, %v1988
      %v3200 = vmul.f32 %v2599, %v1988
      %v3201 = vmul.f32 %v2600, %v1988
      %v3202 = vmul.f32 %v2601, %v1988
      %v3203 = vadd.f32 %v3155, %v3179
      %v3204 = vadd.f32 %v3156, %v3180
      %v3205 = vadd.f32 %v3157, %v3181
      %v3206 = vadd.f32 %v3158, %v3182
      %v3207 = vadd.f32 %v3159, %v3183
      %v3208 = vadd.f32 %v3160, %v3184
      %v3209 = vadd.f32 %v3161, %v3185
      %v3210 = vadd.f32 %v3162, %v3186
      %v3211 = vadd.f32 %v3163, %v3187
      %v3212 = vadd.f32 %v3164, %v3188
      %v3213 = vadd.f32 %v3165, %v3189
      %v3214 = vadd.f32 %v3166, %v3190
      %v3215 = vadd.f32 %v3167, %v3191
      %v3216 = vadd.f32 %v3168, %v3192
      %v3217 = vadd.f32 %v3169, %v3193
      %v3218 = vadd.f32 %v3170, %v3194
      %v3219 = vadd.f32 %v3171, %v3195
      %v3220 = vadd.f32 %v3172, %v3196
      %v3221 = vadd.f32 %v3173, %v3197
      %v3222 = vadd.f32 %v3174, %v3198
      %v3223 = vadd.f32 %v3175, %v3199
      %v3224 = vadd.f32 %v3176, %v3200
      %v3225 = vadd.f32 %v3177, %v3201
      %v3226 = vadd.f32 %v3178, %v3202
      %v3227 = vmul.f32 %v2572, %v2040
      %v3228 = vmul.f32 %v2573, %v2040
      %v3229 = vmul.f32 %v2576, %v2040
      %v3230 = vmul.f32 %v2577, %v2040
      %v3231 = vmul.f32 %v2580, %v2040
      %v3232 = vmul.f32 %v2581, %v2040
      %v3233 = vmul.f32 %v2584, %v2040
      %v3234 = vmul.f32 %v2585, %v2040
      %v3235 = vmul.f32 %v2588, %v2040
      %v3236 = vmul.f32 %v2589, %v2040
      %v3237 = vmul.f32 %v2592, %v2040
      %v3238 = vmul.f32 %v2593, %v2040
      %v3239 = vmul.f32 %v2596, %v2040
      %v3240 = vmul.f32 %v2597, %v2040
      %v3241 = vmul.f32 %v2600, %v2040
      %v3242 = vmul.f32 %v2601, %v2040
      %v3259 = vrot.slane %v3227, 1
      %v3260 = vrot.slane %v3228, 1
      %v3261 = vsel %vm1471, %v3259, %v3260
      %v3262 = vrot.slane %v3229, 1
      %v3263 = vrot.slane %v3230, 1
      %v3264 = vsel %vm1471, %v3262, %v3263
      %v3265 = vrot.slane %v3231, 1
      %v3266 = vrot.slane %v3232, 1
      %v3267 = vsel %vm1471, %v3265, %v3266
      %v3268 = vrot.slane %v3233, 1
      %v3269 = vrot.slane %v3234, 1
      %v3270 = vsel %vm1471, %v3268, %v3269
      %v3271 = vrot.slane %v3235, 1
      %v3272 = vrot.slane %v3236, 1
      %v3273 = vsel %vm1471, %v3271, %v3272
      %v3274 = vrot.slane %v3237, 1
      %v3275 = vrot.slane %v3238, 1
      %v3276 = vsel %vm1471, %v3274, %v3275
      %v3277 = vrot.slane %v3239, 1
      %v3278 = vrot.slane %v3240, 1
      %v3279 = vsel %vm1471, %v3277, %v3278
      %v3280 = vrot.slane %v3241, 1
      %v3281 = vrot.slane %v3242, 1
      %v3282 = vsel %vm1471, %v3280, %v3281
      %v3307 = vadd.f32 %v3203, %v3259
      %v3308 = vadd.f32 %v3204, %v3261
      %v3309 = vadd.f32 %v3205, %v3260
      %v3310 = vadd.f32 %v3206, %v3262
      %v3311 = vadd.f32 %v3207, %v3264
      %v3312 = vadd.f32 %v3208, %v3263
      %v3313 = vadd.f32 %v3209, %v3265
      %v3314 = vadd.f32 %v3210, %v3267
      %v3315 = vadd.f32 %v3211, %v3266
      %v3316 = vadd.f32 %v3212, %v3268
      %v3317 = vadd.f32 %v3213, %v3270
      %v3318 = vadd.f32 %v3214, %v3269
      %v3319 = vadd.f32 %v3215, %v3271
      %v3320 = vadd.f32 %v3216, %v3273
      %v3321 = vadd.f32 %v3217, %v3272
      %v3322 = vadd.f32 %v3218, %v3274
      %v3323 = vadd.f32 %v3219, %v3276
      %v3324 = vadd.f32 %v3220, %v3275
      %v3325 = vadd.f32 %v3221, %v3277
      %v3326 = vadd.f32 %v3222, %v3279
      %v3327 = vadd.f32 %v3223, %v3278
      %v3328 = vadd.f32 %v3224, %v3280
      %v3329 = vadd.f32 %v3225, %v3282
      %v3330 = vadd.f32 %v3226, %v3281
      %v3331 = vmul.f32 %v2572, %v2148
      %v3332 = vmul.f32 %v2573, %v2148
      %v3333 = vmul.f32 %v2574, %v2148
      %v3334 = vmul.f32 %v2576, %v2148
      %v3335 = vmul.f32 %v2577, %v2148
      %v3336 = vmul.f32 %v2578, %v2148
      %v3337 = vmul.f32 %v2580, %v2148
      %v3338 = vmul.f32 %v2581, %v2148
      %v3339 = vmul.f32 %v2582, %v2148
      %v3340 = vmul.f32 %v2584, %v2148
      %v3341 = vmul.f32 %v2585, %v2148
      %v3342 = vmul.f32 %v2586, %v2148
      %v3343 = vmul.f32 %v2588, %v2148
      %v3344 = vmul.f32 %v2589, %v2148
      %v3345 = vmul.f32 %v2590, %v2148
      %v3346 = vmul.f32 %v2592, %v2148
      %v3347 = vmul.f32 %v2593, %v2148
      %v3348 = vmul.f32 %v2594, %v2148
      %v3349 = vmul.f32 %v2596, %v2148
      %v3350 = vmul.f32 %v2597, %v2148
      %v3351 = vmul.f32 %v2598, %v2148
      %v3352 = vmul.f32 %v2600, %v2148
      %v3353 = vmul.f32 %v2601, %v2148
      %v3354 = vmul.f32 %v2602, %v2148
      %v3379 = vrot.slane %v3331, 2
      %v3380 = vrot.slane %v3332, 2
      %v3381 = vsel %vm1596, %v3379, %v3380
      %v3382 = vrot.slane %v3333, 2
      %v3383 = vsel %vm1596, %v3380, %v3382
      %v3384 = vrot.slane %v3334, 2
      %v3385 = vrot.slane %v3335, 2
      %v3386 = vsel %vm1596, %v3384, %v3385
      %v3387 = vrot.slane %v3336, 2
      %v3388 = vsel %vm1596, %v3385, %v3387
      %v3389 = vrot.slane %v3337, 2
      %v3390 = vrot.slane %v3338, 2
      %v3391 = vsel %vm1596, %v3389, %v3390
      %v3392 = vrot.slane %v3339, 2
      %v3393 = vsel %vm1596, %v3390, %v3392
      %v3394 = vrot.slane %v3340, 2
      %v3395 = vrot.slane %v3341, 2
      %v3396 = vsel %vm1596, %v3394, %v3395
      %v3397 = vrot.slane %v3342, 2
      %v3398 = vsel %vm1596, %v3395, %v3397
      %v3399 = vrot.slane %v3343, 2
      %v3400 = vrot.slane %v3344, 2
      %v3401 = vsel %vm1596, %v3399, %v3400
      %v3402 = vrot.slane %v3345, 2
      %v3403 = vsel %vm1596, %v3400, %v3402
      %v3404 = vrot.slane %v3346, 2
      %v3405 = vrot.slane %v3347, 2
      %v3406 = vsel %vm1596, %v3404, %v3405
      %v3407 = vrot.slane %v3348, 2
      %v3408 = vsel %vm1596, %v3405, %v3407
      %v3409 = vrot.slane %v3349, 2
      %v3410 = vrot.slane %v3350, 2
      %v3411 = vsel %vm1596, %v3409, %v3410
      %v3412 = vrot.slane %v3351, 2
      %v3413 = vsel %vm1596, %v3410, %v3412
      %v3414 = vrot.slane %v3352, 2
      %v3415 = vrot.slane %v3353, 2
      %v3416 = vsel %vm1596, %v3414, %v3415
      %v3417 = vrot.slane %v3354, 2
      %v3418 = vsel %vm1596, %v3415, %v3417
      %v3443 = vadd.f32 %v3307, %v3379
      %v3444 = vadd.f32 %v3308, %v3381
      %v3445 = vadd.f32 %v3309, %v3383
      %v3446 = vadd.f32 %v3310, %v3384
      %v3447 = vadd.f32 %v3311, %v3386
      %v3448 = vadd.f32 %v3312, %v3388
      %v3449 = vadd.f32 %v3313, %v3389
      %v3450 = vadd.f32 %v3314, %v3391
      %v3451 = vadd.f32 %v3315, %v3393
      %v3452 = vadd.f32 %v3316, %v3394
      %v3453 = vadd.f32 %v3317, %v3396
      %v3454 = vadd.f32 %v3318, %v3398
      %v3455 = vadd.f32 %v3319, %v3399
      %v3456 = vadd.f32 %v3320, %v3401
      %v3457 = vadd.f32 %v3321, %v3403
      %v3458 = vadd.f32 %v3322, %v3404
      %v3459 = vadd.f32 %v3323, %v3406
      %v3460 = vadd.f32 %v3324, %v3408
      %v3461 = vadd.f32 %v3325, %v3409
      %v3462 = vadd.f32 %v3326, %v3411
      %v3463 = vadd.f32 %v3327, %v3413
      %v3464 = vadd.f32 %v3328, %v3414
      %v3465 = vadd.f32 %v3329, %v3416
      %v3466 = vadd.f32 %v3330, %v3418
      %v3491 = vrot.slane %v3443, 7
      %v3492 = vrot.slane %v3444, 7
      %v3493 = vsel %vm2309, %v3491, %v3492
      %v3494 = vrot.slane %v3445, 7
      %v3495 = vsel %vm2309, %v3492, %v3494
      %v3496 = vrot.slane %v3446, 7
      %v3497 = vrot.slane %v3447, 7
      %v3498 = vsel %vm2309, %v3496, %v3497
      %v3499 = vrot.slane %v3448, 7
      %v3500 = vsel %vm2309, %v3497, %v3499
      %v3501 = vrot.slane %v3449, 7
      %v3502 = vrot.slane %v3450, 7
      %v3503 = vsel %vm2309, %v3501, %v3502
      %v3504 = vrot.slane %v3451, 7
      %v3505 = vsel %vm2309, %v3502, %v3504
      %v3506 = vrot.slane %v3452, 7
      %v3507 = vrot.slane %v3453, 7
      %v3508 = vsel %vm2309, %v3506, %v3507
      %v3509 = vrot.slane %v3454, 7
      %v3510 = vsel %vm2309, %v3507, %v3509
      %v3511 = vrot.slane %v3455, 7
      %v3512 = vrot.slane %v3456, 7
      %v3513 = vsel %vm2309, %v3511, %v3512
      %v3514 = vrot.slane %v3457, 7
      %v3515 = vsel %vm2309, %v3512, %v3514
      %v3516 = vrot.slane %v3458, 7
      %v3517 = vrot.slane %v3459, 7
      %v3518 = vsel %vm2309, %v3516, %v3517
      %v3519 = vrot.slane %v3460, 7
      %v3520 = vsel %vm2309, %v3517, %v3519
      %v3521 = vrot.slane %v3461, 7
      %v3522 = vrot.slane %v3462, 7
      %v3523 = vsel %vm2309, %v3521, %v3522
      %v3524 = vrot.slane %v3463, 7
      %v3525 = vsel %vm2309, %v3522, %v3524
      %v3526 = vrot.slane %v3464, 7
      %v3527 = vrot.slane %v3465, 7
      %v3528 = vsel %vm2309, %v3526, %v3527
      %v3529 = vrot.slane %v3466, 7
      %v3530 = vsel %vm2309, %v3527, %v3529
      %v3547 = vld [vmem:[%s5] sm:$0x1]
      %v3549 = vlaneseq
      %v3550 = vshrl.u32 %v3549, 7
      %v3551 = vsub.s32 0, %v3550
      %v3552 = vrot.slane %v3547, %v3551
      %v3554 = vmul.f32 %v3493, %v3552
      %v3555 = vmul.f32 %v3495, %v3552
      %v3556 = vmul.f32 %v3498, %v3552
      %v3557 = vmul.f32 %v3500, %v3552
      %v3558 = vmul.f32 %v3503, %v3552
      %v3559 = vmul.f32 %v3505, %v3552
      %v3560 = vmul.f32 %v3508, %v3552
      %v3561 = vmul.f32 %v3510, %v3552
      %v3562 = vmul.f32 %v3513, %v3552
      %v3563 = vmul.f32 %v3515, %v3552
      %v3564 = vmul.f32 %v3518, %v3552
      %v3565 = vmul.f32 %v3520, %v3552
      %v3566 = vmul.f32 %v3523, %v3552
      %v3567 = vmul.f32 %v3525, %v3552
      %v3568 = vmul.f32 %v3528, %v3552
      %v3569 = vmul.f32 %v3530, %v3552
      %v3570 = vld [vmem:[%s6] sm:$0x1]
      %v3572 = vlaneseq
      %v3573 = vshrl.u32 %v3572, 7
      %v3574 = vsub.s32 0, %v3573
      %v3575 = vrot.slane %v3570, %v3574
      %v3577 = vadd.f32 %v3554, %v3575
      %v3578 = vadd.f32 %v3555, %v3575
      %v3579 = vadd.f32 %v3556, %v3575
      %v3580 = vadd.f32 %v3557, %v3575
      %v3581 = vadd.f32 %v3558, %v3575
      %v3582 = vadd.f32 %v3559, %v3575
      %v3583 = vadd.f32 %v3560, %v3575
      %v3584 = vadd.f32 %v3561, %v3575
      %v3585 = vadd.f32 %v3562, %v3575
      %v3586 = vadd.f32 %v3563, %v3575
      %v3587 = vadd.f32 %v3564, %v3575
      %v3588 = vadd.f32 %v3565, %v3575
      %v3589 = vadd.f32 %v3566, %v3575
      %v3590 = vadd.f32 %v3567, %v3575
      %v3591 = vadd.f32 %v3568, %v3575
      %v3592 = vadd.f32 %v3569, %v3575
      %v3593 = vxor.u32 %v3577, 2147483648
      %v3594 = vxor.u32 %v3578, 2147483648
      %v3595 = vxor.u32 %v3579, 2147483648
      %v3596 = vxor.u32 %v3580, 2147483648
      %v3597 = vxor.u32 %v3581, 2147483648
      %v3598 = vxor.u32 %v3582, 2147483648
      %v3599 = vxor.u32 %v3583, 2147483648
      %v3600 = vxor.u32 %v3584, 2147483648
      %v3601 = vxor.u32 %v3585, 2147483648
      %v3602 = vxor.u32 %v3586, 2147483648
      %v3603 = vxor.u32 %v3587, 2147483648
      %v3604 = vxor.u32 %v3588, 2147483648
      %v3605 = vxor.u32 %v3589, 2147483648
      %v3606 = vxor.u32 %v3590, 2147483648
      %v3607 = vxor.u32 %v3591, 2147483648
      %v3608 = vxor.u32 %v3592, 2147483648
      %v3609 = vmul.f32 %v3593, 1.442695
      %v3610 = vpow.pop %v3609
      %v3611 = vmul.f32 %v3594, 1.442695
      %v3612 = vpow.pop %v3611
      %v3613 = vmul.f32 %v3595, 1.442695
      %v3614 = vpow.pop %v3613
      %v3615 = vmul.f32 %v3596, 1.442695
      %v3616 = vpow.pop %v3615
      %v3617 = vmul.f32 %v3597, 1.442695
      %v3618 = vpow.pop %v3617
      %v3619 = vmul.f32 %v3598, 1.442695
      %v3620 = vpow.pop %v3619
      %v3621 = vmul.f32 %v3599, 1.442695
      %v3622 = vpow.pop %v3621
      %v3623 = vmul.f32 %v3600, 1.442695
      %v3624 = vpow.pop %v3623
      %v3625 = vmul.f32 %v3601, 1.442695
      %v3626 = vpow.pop %v3625
      %v3627 = vmul.f32 %v3602, 1.442695
      %v3628 = vpow.pop %v3627
      %v3629 = vmul.f32 %v3603, 1.442695
      %v3630 = vpow.pop %v3629
      %v3631 = vmul.f32 %v3604, 1.442695
      %v3632 = vpow.pop %v3631
      %v3633 = vmul.f32 %v3605, 1.442695
      %v3634 = vpow.pop %v3633
      %v3635 = vmul.f32 %v3606, 1.442695
      %v3636 = vpow.pop %v3635
      %v3637 = vmul.f32 %v3607, 1.442695
      %v3638 = vpow.pop %v3637
      %v3639 = vmul.f32 %v3608, 1.442695
      %v3640 = vpow.pop %v3639
      %v3641 = vadd.f32 %v3610, 1.0
      %v3642 = vadd.f32 %v3612, 1.0
      %v3643 = vadd.f32 %v3614, 1.0
      %v3644 = vadd.f32 %v3616, 1.0
      %v3645 = vadd.f32 %v3618, 1.0
      %v3646 = vadd.f32 %v3620, 1.0
      %v3647 = vadd.f32 %v3622, 1.0
      %v3648 = vadd.f32 %v3624, 1.0
      %v3649 = vadd.f32 %v3626, 1.0
      %v3650 = vadd.f32 %v3628, 1.0
      %v3651 = vadd.f32 %v3630, 1.0
      %v3652 = vadd.f32 %v3632, 1.0
      %v3653 = vadd.f32 %v3634, 1.0
      %v3654 = vadd.f32 %v3636, 1.0
      %v3655 = vadd.f32 %v3638, 1.0
      %v3656 = vadd.f32 %v3640, 1.0
      %v3657 = vrcp.pop %v3641
      %v3658 = vmul.f32 1.0, %v3657
      %v3659 = vrcp.pop %v3642
      %v3660 = vmul.f32 1.0, %v3659
      %v3661 = vrcp.pop %v3643
      %v3662 = vmul.f32 1.0, %v3661
      %v3663 = vrcp.pop %v3644
      %v3664 = vmul.f32 1.0, %v3663
      %v3665 = vrcp.pop %v3645
      %v3666 = vmul.f32 1.0, %v3665
      %v3667 = vrcp.pop %v3646
      %v3668 = vmul.f32 1.0, %v3667
      %v3669 = vrcp.pop %v3647
      %v3670 = vmul.f32 1.0, %v3669
      %v3671 = vrcp.pop %v3648
      %v3672 = vmul.f32 1.0, %v3671
      %v3673 = vrcp.pop %v3649
      %v3674 = vmul.f32 1.0, %v3673
      %v3675 = vrcp.pop %v3650
      %v3676 = vmul.f32 1.0, %v3675
      %v3677 = vrcp.pop %v3651
      %v3678 = vmul.f32 1.0, %v3677
      %v3679 = vrcp.pop %v3652
      %v3680 = vmul.f32 1.0, %v3679
      %v3681 = vrcp.pop %v3653
      %v3682 = vmul.f32 1.0, %v3681
      %v3683 = vrcp.pop %v3654
      %v3684 = vmul.f32 1.0, %v3683
      %v3685 = vrcp.pop %v3655
      %v3686 = vmul.f32 1.0, %v3685
      %v3687 = vrcp.pop %v3656
      %v3688 = vmul.f32 1.0, %v3687
      %v3689 = vmul.f32 %v3577, %v3658
      %v3690 = vmul.f32 %v3578, %v3660
      %v3691 = vmul.f32 %v3579, %v3662
      %v3692 = vmul.f32 %v3580, %v3664
      %v3693 = vmul.f32 %v3581, %v3666
      %v3694 = vmul.f32 %v3582, %v3668
      %v3695 = vmul.f32 %v3583, %v3670
      %v3696 = vmul.f32 %v3584, %v3672
      %v3697 = vmul.f32 %v3585, %v3674
      %v3698 = vmul.f32 %v3586, %v3676
      %v3699 = vmul.f32 %v3587, %v3678
      %v3700 = vmul.f32 %v3588, %v3680
      %v3701 = vmul.f32 %v3589, %v3682
      %v3702 = vmul.f32 %v3590, %v3684
      %v3703 = vmul.f32 %v3591, %v3686
      %v3704 = vmul.f32 %v3592, %v3688
      %v3705 = vadd.f32 %v3689, %v3690
      %v3706 = vadd.f32 %v3705, %v3691
      %v3707 = vadd.f32 %v3706, %v3692
      %v3708 = vadd.f32 %v3707, %v3693
      %v3709 = vadd.f32 %v3708, %v3694
      %v3710 = vadd.f32 %v3709, %v3695
      %v3711 = vadd.f32 %v3710, %v3696
      %v3712 = vadd.f32 %v3711, %v3697
      %v3713 = vadd.f32 %v3712, %v3698
      %v3714 = vadd.f32 %v3713, %v3699
      %v3715 = vadd.f32 %v3714, %v3700
      %v3716 = vadd.f32 %v3715, %v3701
      %v3717 = vadd.f32 %v3716, %v3702
      %v3718 = vadd.f32 %v3717, %v3703
      %v3719 = vadd.f32 %v3718, %v3704
      %v3720 = vrot.slane %v3719, 4
      %v3721 = vadd.f32 %v3719, %v3720
      %v3722 = vrot.slane %v3721, 2
      %v3723 = vadd.f32 %v3721, %v3722
      %v3724 = vrot.slane %v3723, 1
      %v3725 = vadd.f32 %v3723, %v3724
      %v3726 = vadd.f32 %v2545, %v3725
      %3727 = vst [vmem:[#allocation3 + $0x80] sm:$0xff] %v3689
      %3728 = vst [vmem:[#allocation3 + $0x88] sm:$0xff] %v3690
      %3729 = vst [vmem:[#allocation3 + $0x90] sm:$0xff] %v3691
      %3730 = vst [vmem:[#allocation3 + $0x98] sm:$0xff] %v3692
      %3731 = vst [vmem:[#allocation3 + $0xa0] sm:$0xff] %v3693
      %3732 = vst [vmem:[#allocation3 + $0xa8] sm:$0xff] %v3694
      %3733 = vst [vmem:[#allocation3 + $0xb0] sm:$0xff] %v3695
      %3734 = vst [vmem:[#allocation3 + $0xb8] sm:$0xff] %v3696
      %3735 = vst [vmem:[#allocation3 + $0xc0] sm:$0xff] %v3697
      %3736 = vst [vmem:[#allocation3 + $0xc8] sm:$0xff] %v3698
      %3737 = vst [vmem:[#allocation3 + $0xd0] sm:$0xff] %v3699
      %3738 = vst [vmem:[#allocation3 + $0xd8] sm:$0xff] %v3700
      %3739 = vst [vmem:[#allocation3 + $0xe0] sm:$0xff] %v3701
      %3740 = vst [vmem:[#allocation3 + $0xe8] sm:$0xff] %v3702
      %3741 = vst [vmem:[#allocation3 + $0xf0] sm:$0xff] %v3703
      %3742 = vst [vmem:[#allocation3 + $0xf8] sm:$0xff] %v3704
      %v3743 = vmul.f32 %v3726, 0.00390625
      %v3744 = vpack.c.bf16 %v3743, %v3743
      %v3745 = vld [vmem:[%s7] sm:$0xf]
      %v3746 = vld [vmem:[%s7 + $0x4] sm:$0xf]
      %v3747 = vld [vmem:[%s7 + $0x8] sm:$0xf]
      %v3748 = vld [vmem:[%s7 + $0xc] sm:$0xf]
      %v3749 = vld [vmem:[%s7 + $0x10] sm:$0xf]
      %v3750 = vld [vmem:[%s7 + $0x14] sm:$0xf]
      %v3751 = vld [vmem:[%s7 + $0x18] sm:$0xf]
      %v3752 = vld [vmem:[%s7 + $0x1c] sm:$0xf]
      %v3753 = vld [vmem:[%s7 + $0x20] sm:$0xf]
      %v3754 = vld [vmem:[%s7 + $0x24] sm:$0xf]
      %v3755 = vld [vmem:[%s7 + $0x28] sm:$0xf]
      %v3756 = vld [vmem:[%s7 + $0x2c] sm:$0xf]
      %v3757 = vld [vmem:[%s7 + $0x30] sm:$0xf]
      %v3758 = vld [vmem:[%s7 + $0x34] sm:$0xf]
      %v3759 = vld [vmem:[%s7 + $0x38] sm:$0xf]
      %v3760 = vld [vmem:[%s7 + $0x3c] sm:$0xf]
      %v3761 = vld [vmem:[%s8] sm:$0x1]
      %v3778 = vunpack.c.l.b16 %v3745
      %v3779 = vunpack.c.l.b16 %v3746
      %v3780 = vunpack.c.l.b16 %v3747
      %v3781 = vunpack.c.l.b16 %v3748
      %v3782 = vunpack.c.l.b16 %v3749
      %v3783 = vunpack.c.l.b16 %v3750
      %v3784 = vunpack.c.l.b16 %v3751
      %v3785 = vunpack.c.l.b16 %v3752
      %v3786 = vunpack.c.l.b16 %v3753
      %v3787 = vunpack.c.l.b16 %v3754
      %v3788 = vunpack.c.l.b16 %v3755
      %v3789 = vunpack.c.l.b16 %v3756
      %v3790 = vunpack.c.l.b16 %v3757
      %v3791 = vunpack.c.l.b16 %v3758
      %v3792 = vunpack.c.l.b16 %v3759
      %v3793 = vunpack.c.l.b16 %v3760
      %v3794 = vpack.c.b16 %v3779, %v3778
      %v3795 = vpack.c.b16 %v3781, %v3780
      %v3796 = vpack.c.b16 %v3783, %v3782
      %v3797 = vpack.c.b16 %v3785, %v3784
      %v3798 = vpack.c.b16 %v3787, %v3786
      %v3799 = vpack.c.b16 %v3789, %v3788
      %v3800 = vpack.c.b16 %v3791, %v3790
      %v3801 = vpack.c.b16 %v3793, %v3792
      %3810 = vmatprep.subr.bf16.mxu0 0
      %3811 = vmatpush1.bf16.msra.mxu0 %v3794
      %3812 = vmatprep.subr.bf16.mxu0 0
      %3813 = vmatpush1.bf16.msra.mxu0 %v3795
      %3814 = vmatprep.subr.bf16.mxu0 0
      %3815 = vmatpush1.bf16.msra.mxu0 %v3796
      %3816 = vmatprep.subr.bf16.mxu0 0
      %3817 = vmatpush1.bf16.msra.mxu0 %v3797
      %3818 = vmatprep.subr.bf16.mxu0 0
      %3819 = vmatpush1.bf16.msra.mxu0 %v3798
      %3820 = vmatprep.subr.bf16.mxu0 0
      %3821 = vmatpush1.bf16.msra.mxu0 %v3799
      %3822 = vmatprep.subr.bf16.mxu0 0
      %3823 = vmatpush1.bf16.msra.mxu0 %v3800
      %3824 = vmatprep.subr.bf16.mxu0 0
      %3825 = vmatpush1.bf16.msra.mxu0 %v3801
      %3826 = vmatprep.subr.bf16.mxu0 0
      %3827 = vmatpush1.bf16.msra.mxu0 0
      %3828 = vmatprep.subr.bf16.mxu0 0
      %3829 = vmatpush1.bf16.msra.mxu0 0
      %3830 = vmatprep.subr.bf16.mxu0 0
      %3831 = vmatpush1.bf16.msra.mxu0 0
      %3832 = vmatprep.subr.bf16.mxu0 0
      %3833 = vmatpush1.bf16.msra.mxu0 0
      %3834 = vmatprep.subr.bf16.mxu0 0
      %3835 = vmatpush1.bf16.msra.mxu0 0
      %3836 = vmatprep.subr.bf16.mxu0 0
      %3837 = vmatpush1.bf16.msra.mxu0 0
      %3838 = vmatprep.subr.bf16.mxu0 0
      %3839 = vmatpush1.bf16.msra.mxu0 0
      %3840 = vmatprep.subr.bf16.mxu0 0
      %3841 = vmatpush1.bf16.msra.mxu0 0
      %3842 = vmatprep.mubr.bf16.mxu0 0
      %3843 = vmatmul.mubr.bf16.gmra.mrb[0].mxu0 %v3744
      %v3844 = vpop.f32.mrb[0].mxu0
      %v3845 = vadd.f32 %v3761, %v3844
      %v3846 = vpop.f32.mrb[0].mxu0
      %v3847 = vpop.f32.mrb[0].mxu0
      %v3848 = vpop.f32.mrb[0].mxu0
      %3849 = vdwg.mxu0
      %v3850 = vxor.u32 %v3845, 2147483648
      %v3851 = vmul.f32 %v3850, 1.442695
      %v3852 = vpow.pop %v3851
      %v3853 = vadd.f32 %v3852, 1.0
      %v3854 = vrcp.pop %v3853
      %v3855 = vmul.f32 1.0, %v3854
      %v3856 = vmul.f32 %v3845, %v3855
      %v3857 = vpack.c.bf16 %v3856, %v3856
      %v3858 = vld [vmem:[%s9] sm:$0xf]
      %v3859 = vld [vmem:[%s9 + $0x4] sm:$0xf]
      %v3860 = vld [vmem:[%s9 + $0x8] sm:$0xf]
      %v3861 = vld [vmem:[%s9 + $0xc] sm:$0xf]
      %v3862 = vld [vmem:[%s9 + $0x10] sm:$0xf]
      %v3863 = vld [vmem:[%s9 + $0x14] sm:$0xf]
      %v3864 = vld [vmem:[%s9 + $0x18] sm:$0xf]
      %v3865 = vld [vmem:[%s9 + $0x1c] sm:$0xf]
      %v3866 = vld [vmem:[%s9 + $0x20] sm:$0xf]
      %v3867 = vld [vmem:[%s9 + $0x24] sm:$0xf]
      %v3868 = vld [vmem:[%s9 + $0x28] sm:$0xf]
      %v3869 = vld [vmem:[%s9 + $0x2c] sm:$0xf]
      %v3870 = vld [vmem:[%s9 + $0x30] sm:$0xf]
      %v3871 = vld [vmem:[%s9 + $0x34] sm:$0xf]
      %v3872 = vld [vmem:[%s9 + $0x38] sm:$0xf]
      %v3873 = vld [vmem:[%s9 + $0x3c] sm:$0xf]
      %v3874 = vld [vmem:[%s10] sm:$0x1]
      %v3891 = vunpack.c.l.b16 %v3858
      %v3892 = vunpack.c.l.b16 %v3859
      %v3893 = vunpack.c.l.b16 %v3860
      %v3894 = vunpack.c.l.b16 %v3861
      %v3895 = vunpack.c.l.b16 %v3862
      %v3896 = vunpack.c.l.b16 %v3863
      %v3897 = vunpack.c.l.b16 %v3864
      %v3898 = vunpack.c.l.b16 %v3865
      %v3899 = vunpack.c.l.b16 %v3866
      %v3900 = vunpack.c.l.b16 %v3867
      %v3901 = vunpack.c.l.b16 %v3868
      %v3902 = vunpack.c.l.b16 %v3869
      %v3903 = vunpack.c.l.b16 %v3870
      %v3904 = vunpack.c.l.b16 %v3871
      %v3905 = vunpack.c.l.b16 %v3872
      %v3906 = vunpack.c.l.b16 %v3873
      %v3907 = vpack.c.b16 %v3892, %v3891
      %v3908 = vpack.c.b16 %v3894, %v3893
      %v3909 = vpack.c.b16 %v3896, %v3895
      %v3910 = vpack.c.b16 %v3898, %v3897
      %v3911 = vpack.c.b16 %v3900, %v3899
      %v3912 = vpack.c.b16 %v3902, %v3901
      %v3913 = vpack.c.b16 %v3904, %v3903
      %v3914 = vpack.c.b16 %v3906, %v3905
      %3923 = vmatprep.subr.bf16.mxu0 0
      %3924 = vmatpush1.bf16.msra.mxu0 %v3907
      %3925 = vmatprep.subr.bf16.mxu0 0
      %3926 = vmatpush1.bf16.msra.mxu0 %v3908
      %3927 = vmatprep.subr.bf16.mxu0 0
      %3928 = vmatpush1.bf16.msra.mxu0 %v3909
      %3929 = vmatprep.subr.bf16.mxu0 0
      %3930 = vmatpush1.bf16.msra.mxu0 %v3910
      %3931 = vmatprep.subr.bf16.mxu0 0
      %3932 = vmatpush1.bf16.msra.mxu0 %v3911
      %3933 = vmatprep.subr.bf16.mxu0 0
      %3934 = vmatpush1.bf16.msra.mxu0 %v3912
      %3935 = vmatprep.subr.bf16.mxu0 0
      %3936 = vmatpush1.bf16.msra.mxu0 %v3913
      %3937 = vmatprep.subr.bf16.mxu0 0
      %3938 = vmatpush1.bf16.msra.mxu0 %v3914
      %3939 = vmatprep.subr.bf16.mxu0 0
      %3940 = vmatpush1.bf16.msra.mxu0 0
      %3941 = vmatprep.subr.bf16.mxu0 0
      %3942 = vmatpush1.bf16.msra.mxu0 0
      %3943 = vmatprep.subr.bf16.mxu0 0
      %3944 = vmatpush1.bf16.msra.mxu0 0
      %3945 = vmatprep.subr.bf16.mxu0 0
      %3946 = vmatpush1.bf16.msra.mxu0 0
      %3947 = vmatprep.subr.bf16.mxu0 0
      %3948 = vmatpush1.bf16.msra.mxu0 0
      %3949 = vmatprep.subr.bf16.mxu0 0
      %3950 = vmatpush1.bf16.msra.mxu0 0
      %3951 = vmatprep.subr.bf16.mxu0 0
      %3952 = vmatpush1.bf16.msra.mxu0 0
      %3953 = vmatprep.subr.bf16.mxu0 0
      %3954 = vmatpush1.bf16.msra.mxu0 0
      %3955 = vmatprep.mubr.bf16.mxu0 0
      %3956 = vmatmul.mubr.bf16.gmra.mrb[0].mxu0 %v3857
      %v3957 = vpop.f32.mrb[0].mxu0
      %v3958 = vadd.f32 %v3874, %v3957
      %v3959 = vpop.f32.mrb[0].mxu0
      %v3960 = vpop.f32.mrb[0].mxu0
      %v3961 = vpop.f32.mrb[0].mxu0
      %3962 = vdwg.mxu0
      %v3963 = vxor.u32 %v3958, 2147483648
      %v3964 = vmul.f32 %v3963, 1.442695
      %v3965 = vpow.pop %v3964
      %v3966 = vadd.f32 %v3965, 1.0
      %v3967 = vrcp.pop %v3966
      %v3968 = vmul.f32 1.0, %v3967
      %v3969 = vlaneseq
      %v3970 = vand.u32 %v3969, 127
      %vm3971 = vcmp.lt.s32.totalorder %v3970, 64
      %v3972 = vsel %vm3971, %v3968, 0.0
      %v3973 = vld [vmem:[#allocation3] sm:$0xff]
      %v3974 = vld [vmem:[#allocation3 + $0x8] sm:$0xff]
      %v3975 = vld [vmem:[#allocation3 + $0x10] sm:$0xff]
      %v3976 = vld [vmem:[#allocation3 + $0x18] sm:$0xff]
      %v3977 = vld [vmem:[#allocation3 + $0x20] sm:$0xff]
      %v3978 = vld [vmem:[#allocation3 + $0x28] sm:$0xff]
      %v3979 = vld [vmem:[#allocation3 + $0x30] sm:$0xff]
      %v3980 = vld [vmem:[#allocation3 + $0x38] sm:$0xff]
      %v3981 = vld [vmem:[#allocation3 + $0x40] sm:$0xff]
      %v3982 = vld [vmem:[#allocation3 + $0x48] sm:$0xff]
      %v3983 = vld [vmem:[#allocation3 + $0x50] sm:$0xff]
      %v3984 = vld [vmem:[#allocation3 + $0x58] sm:$0xff]
      %v3985 = vld [vmem:[#allocation3 + $0x60] sm:$0xff]
      %v3986 = vld [vmem:[#allocation3 + $0x68] sm:$0xff]
      %v3987 = vld [vmem:[#allocation3 + $0x70] sm:$0xff]
      %v3988 = vld [vmem:[#allocation3 + $0x78] sm:$0xff]
      %v3989 = vlaneseq
      %v3990 = vshrl.u32 %v3989, 7
      %v3991 = vsub.s32 0, %v3990
      %v3992 = vrot.slane %v3972, %v3991
      %v3993 = vmul.f32 %v3973, %v3992
      %v3994 = vmul.f32 %v3974, %v3992
      %v3995 = vmul.f32 %v3975, %v3992
      %v3996 = vmul.f32 %v3976, %v3992
      %v3997 = vmul.f32 %v3977, %v3992
      %v3998 = vmul.f32 %v3978, %v3992
      %v3999 = vmul.f32 %v3979, %v3992
      %v4000 = vmul.f32 %v3980, %v3992
      %v4001 = vmul.f32 %v3981, %v3992
      %v4002 = vmul.f32 %v3982, %v3992
      %v4003 = vmul.f32 %v3983, %v3992
      %v4004 = vmul.f32 %v3984, %v3992
      %v4005 = vmul.f32 %v3985, %v3992
      %v4006 = vmul.f32 %v3986, %v3992
      %v4007 = vmul.f32 %v3987, %v3992
      %v4008 = vmul.f32 %v3988, %v3992
      %v4009 = vpack.c.bf16 %v3994, %v3993
      %v4010 = vpack.c.bf16 %v3996, %v3995
      %v4011 = vpack.c.bf16 %v3998, %v3997
      %v4012 = vpack.c.bf16 %v4000, %v3999
      %v4013 = vpack.c.bf16 %v4002, %v4001
      %v4014 = vpack.c.bf16 %v4004, %v4003
      %v4015 = vpack.c.bf16 %v4006, %v4005
      %v4016 = vpack.c.bf16 %v4008, %v4007
      %v4017 = vld [vmem:[%s11] sm:$0xf]
      %v4018 = vld [vmem:[%s11 + $0x4] sm:$0xf]
      %v4019 = vld [vmem:[%s11 + $0x8] sm:$0xf]
      %v4020 = vld [vmem:[%s11 + $0xc] sm:$0xf]
      %v4021 = vld [vmem:[%s11 + $0x10] sm:$0xf]
      %v4022 = vld [vmem:[%s11 + $0x14] sm:$0xf]
      %v4023 = vld [vmem:[%s11 + $0x18] sm:$0xf]
      %v4024 = vld [vmem:[%s11 + $0x1c] sm:$0xf]
      %v4025 = vld [vmem:[%s11 + $0x20] sm:$0xf]
      %v4026 = vld [vmem:[%s11 + $0x24] sm:$0xf]
      %v4027 = vld [vmem:[%s11 + $0x28] sm:$0xf]
      %v4028 = vld [vmem:[%s11 + $0x2c] sm:$0xf]
      %v4029 = vld [vmem:[%s11 + $0x30] sm:$0xf]
      %v4030 = vld [vmem:[%s11 + $0x34] sm:$0xf]
      %v4031 = vld [vmem:[%s11 + $0x38] sm:$0xf]
      %v4032 = vld [vmem:[%s11 + $0x3c] sm:$0xf]
      %v4049 = vunpack.c.l.b16 %v4017
      %v4050 = vunpack.c.l.b16 %v4018
      %v4051 = vunpack.c.l.b16 %v4019
      %v4052 = vunpack.c.l.b16 %v4020
      %v4053 = vunpack.c.l.b16 %v4021
      %v4054 = vunpack.c.l.b16 %v4022
      %v4055 = vunpack.c.l.b16 %v4023
      %v4056 = vunpack.c.l.b16 %v4024
      %v4057 = vunpack.c.l.b16 %v4025
      %v4058 = vunpack.c.l.b16 %v4026
      %v4059 = vunpack.c.l.b16 %v4027
      %v4060 = vunpack.c.l.b16 %v4028
      %v4061 = vunpack.c.l.b16 %v4029
      %v4062 = vunpack.c.l.b16 %v4030
      %v4063 = vunpack.c.l.b16 %v4031
      %v4064 = vunpack.c.l.b16 %v4032
      %v4065 = vpack.c.b16 %v4050, %v4049
      %v4066 = vpack.c.b16 %v4052, %v4051
      %v4067 = vpack.c.b16 %v4054, %v4053
      %v4068 = vpack.c.b16 %v4056, %v4055
      %v4069 = vpack.c.b16 %v4058, %v4057
      %v4070 = vpack.c.b16 %v4060, %v4059
      %v4071 = vpack.c.b16 %v4062, %v4061
      %v4072 = vpack.c.b16 %v4064, %v4063
      %4081 = vmatprep.subr.bf16.mxu0 0
      %4082 = vmatpush1.bf16.msra.mxu0 %v4065
      %4083 = vmatprep.subr.bf16.mxu0 0
      %4084 = vmatpush1.bf16.msra.mxu0 %v4066
      %4085 = vmatprep.subr.bf16.mxu0 0
      %4086 = vmatpush1.bf16.msra.mxu0 %v4067
      %4087 = vmatprep.subr.bf16.mxu0 0
      %4088 = vmatpush1.bf16.msra.mxu0 %v4068
      %4089 = vmatprep.subr.bf16.mxu0 0
      %4090 = vmatpush1.bf16.msra.mxu0 %v4069
      %4091 = vmatprep.subr.bf16.mxu0 0
      %4092 = vmatpush1.bf16.msra.mxu0 %v4070
      %4093 = vmatprep.subr.bf16.mxu0 0
      %4094 = vmatpush1.bf16.msra.mxu0 %v4071
      %4095 = vmatprep.subr.bf16.mxu0 0
      %4096 = vmatpush1.bf16.msra.mxu0 %v4072
      %4097 = vmatprep.subr.bf16.mxu0 0
      %4098 = vmatpush1.bf16.msra.mxu0 0
      %4099 = vmatprep.subr.bf16.mxu0 0
      %4100 = vmatpush1.bf16.msra.mxu0 0
      %4101 = vmatprep.subr.bf16.mxu0 0
      %4102 = vmatpush1.bf16.msra.mxu0 0
      %4103 = vmatprep.subr.bf16.mxu0 0
      %4104 = vmatpush1.bf16.msra.mxu0 0
      %4105 = vmatprep.subr.bf16.mxu0 0
      %4106 = vmatpush1.bf16.msra.mxu0 0
      %4107 = vmatprep.subr.bf16.mxu0 0
      %4108 = vmatpush1.bf16.msra.mxu0 0
      %4109 = vmatprep.subr.bf16.mxu0 0
      %4110 = vmatpush1.bf16.msra.mxu0 0
      %4111 = vmatprep.subr.bf16.mxu0 0
      %4112 = vmatpush1.bf16.msra.mxu0 0
      %4113 = vmatprep.mubr.bf16.mxu0 0
      %4114 = vmatmul.mubr.bf16.gmra.mrb[0].mxu0 %v4009
      %v4115 = vpop.f32.mrb[0].mxu0
      %v4116 = vadd.f32 0.0, %v4115
      %v4117 = vpop.f32.mrb[0].mxu0
      %v4118 = vpop.f32.mrb[0].mxu0
      %v4119 = vadd.f32 0.0, %v4118
      %v4120 = vpop.f32.mrb[0].mxu0
      %4121 = vmatprep.mubr.bf16.mxu0 0
      %4122 = vmatmul.mubr.bf16.gmra.mrb[0].mxu0 %v4010
      %v4123 = vpop.f32.mrb[0].mxu0
      %v4124 = vadd.f32 0.0, %v4123
      %v4125 = vpop.f32.mrb[0].mxu0
      %v4126 = vpop.f32.mrb[0].mxu0
      %v4127 = vadd.f32 0.0, %v4126
      %v4128 = vpop.f32.mrb[0].mxu0
      %4129 = vmatprep.mubr.bf16.mxu0 0
      %4130 = vmatmul.mubr.bf16.gmra.mrb[0].mxu0 %v4011
      %v4131 = vpop.f32.mrb[0].mxu0
      %v4132 = vadd.f32 0.0, %v4131
      %v4133 = vpop.f32.mrb[0].mxu0
      %v4134 = vpop.f32.mrb[0].mxu0
      %v4135 = vadd.f32 0.0, %v4134
      %v4136 = vpop.f32.mrb[0].mxu0
      %4137 = vmatprep.mubr.bf16.mxu0 0
      %4138 = vmatmul.mubr.bf16.gmra.mrb[0].mxu0 %v4012
      %v4139 = vpop.f32.mrb[0].mxu0
      %v4140 = vadd.f32 0.0, %v4139
      %v4141 = vpop.f32.mrb[0].mxu0
      %v4142 = vpop.f32.mrb[0].mxu0
      %v4143 = vadd.f32 0.0, %v4142
      %v4144 = vpop.f32.mrb[0].mxu0
      %4145 = vmatprep.mubr.bf16.mxu0 0
      %4146 = vmatmul.mubr.bf16.gmra.mrb[0].mxu0 %v4013
      %v4147 = vpop.f32.mrb[0].mxu0
      %v4148 = vadd.f32 0.0, %v4147
      %v4149 = vpop.f32.mrb[0].mxu0
      %v4150 = vpop.f32.mrb[0].mxu0
      %v4151 = vadd.f32 0.0, %v4150
      %v4152 = vpop.f32.mrb[0].mxu0
      %4153 = vmatprep.mubr.bf16.mxu0 0
      %4154 = vmatmul.mubr.bf16.gmra.mrb[0].mxu0 %v4014
      %v4155 = vpop.f32.mrb[0].mxu0
      %v4156 = vadd.f32 0.0, %v4155
      %v4157 = vpop.f32.mrb[0].mxu0
      %v4158 = vpop.f32.mrb[0].mxu0
      %v4159 = vadd.f32 0.0, %v4158
      %v4160 = vpop.f32.mrb[0].mxu0
      %4161 = vmatprep.mubr.bf16.mxu0 0
      %4162 = vmatmul.mubr.bf16.gmra.mrb[0].mxu0 %v4015
      %v4163 = vpop.f32.mrb[0].mxu0
      %v4164 = vadd.f32 0.0, %v4163
      %v4165 = vpop.f32.mrb[0].mxu0
      %v4166 = vpop.f32.mrb[0].mxu0
      %v4167 = vadd.f32 0.0, %v4166
      %v4168 = vpop.f32.mrb[0].mxu0
      %4169 = vmatprep.mubr.bf16.mxu0 0
      %4170 = vmatmul.mubr.bf16.gmra.mrb[0].mxu0 %v4016
      %v4171 = vpop.f32.mrb[0].mxu0
      %v4172 = vadd.f32 0.0, %v4171
      %v4173 = vpop.f32.mrb[0].mxu0
      %v4174 = vpop.f32.mrb[0].mxu0
      %v4175 = vadd.f32 0.0, %v4174
      %v4176 = vpop.f32.mrb[0].mxu0
      %4177 = vdwg.mxu0
      %v4178 = vld [vmem:[%s12] sm:$0x1]
      %v4180 = vlaneseq
      %v4181 = vshrl.u32 %v4180, 7
      %v4182 = vsub.s32 0, %v4181
      %v4183 = vrot.slane %v4178, %v4182
      %v4185 = vmul.f32 %v4116, %v4183
      %v4186 = vmul.f32 %v4119, %v4183
      %v4187 = vmul.f32 %v4124, %v4183
      %v4188 = vmul.f32 %v4127, %v4183
      %v4189 = vmul.f32 %v4132, %v4183
      %v4190 = vmul.f32 %v4135, %v4183
      %v4191 = vmul.f32 %v4140, %v4183
      %v4192 = vmul.f32 %v4143, %v4183
      %v4193 = vmul.f32 %v4148, %v4183
      %v4194 = vmul.f32 %v4151, %v4183
      %v4195 = vmul.f32 %v4156, %v4183
      %v4196 = vmul.f32 %v4159, %v4183
      %v4197 = vmul.f32 %v4164, %v4183
      %v4198 = vmul.f32 %v4167, %v4183
      %v4199 = vmul.f32 %v4172, %v4183
      %v4200 = vmul.f32 %v4175, %v4183
      %v4201 = vld [vmem:[%s13] sm:$0x1]
      %v4203 = vlaneseq
      %v4204 = vshrl.u32 %v4203, 7
      %v4205 = vsub.s32 0, %v4204
      %v4206 = vrot.slane %v4201, %v4205
      %v4208 = vadd.f32 %v4185, %v4206
      %v4209 = vadd.f32 %v4186, %v4206
      %v4210 = vadd.f32 %v4187, %v4206
      %v4211 = vadd.f32 %v4188, %v4206
      %v4212 = vadd.f32 %v4189, %v4206
      %v4213 = vadd.f32 %v4190, %v4206
      %v4214 = vadd.f32 %v4191, %v4206
      %v4215 = vadd.f32 %v4192, %v4206
      %v4216 = vadd.f32 %v4193, %v4206
      %v4217 = vadd.f32 %v4194, %v4206
      %v4218 = vadd.f32 %v4195, %v4206
      %v4219 = vadd.f32 %v4196, %v4206
      %v4220 = vadd.f32 %v4197, %v4206
      %v4221 = vadd.f32 %v4198, %v4206
      %v4222 = vadd.f32 %v4199, %v4206
      %v4223 = vadd.f32 %v4200, %v4206
      %v4224 = vld [vmem:[%s462] sm:$0xf]
      %v4225 = vld [vmem:[%s462 + $0x4] sm:$0xf]
      %v4226 = vld [vmem:[%s462 + $0x8] sm:$0xf]
      %v4227 = vld [vmem:[%s462 + $0xc] sm:$0xf]
      %v4228 = vld [vmem:[%s462 + $0x10] sm:$0xf]
      %v4229 = vld [vmem:[%s462 + $0x14] sm:$0xf]
      %v4230 = vld [vmem:[%s462 + $0x18] sm:$0xf]
      %v4231 = vld [vmem:[%s462 + $0x1c] sm:$0xf]
      %v4232 = vld [vmem:[%s462 + $0x20] sm:$0xf]
      %v4233 = vld [vmem:[%s462 + $0x24] sm:$0xf]
      %v4234 = vld [vmem:[%s462 + $0x28] sm:$0xf]
      %v4235 = vld [vmem:[%s462 + $0x2c] sm:$0xf]
      %v4236 = vld [vmem:[%s462 + $0x30] sm:$0xf]
      %v4237 = vld [vmem:[%s462 + $0x34] sm:$0xf]
      %v4238 = vld [vmem:[%s462 + $0x38] sm:$0xf]
      %v4239 = vld [vmem:[%s462 + $0x3c] sm:$0xf]
      %v4240 = vunpack.c.l.bf16 %v4224
      %v4241 = vunpack.c.l.bf16 %v4225
      %v4242 = vunpack.c.l.bf16 %v4226
      %v4243 = vunpack.c.l.bf16 %v4227
      %v4244 = vunpack.c.l.bf16 %v4228
      %v4245 = vunpack.c.l.bf16 %v4229
      %v4246 = vunpack.c.l.bf16 %v4230
      %v4247 = vunpack.c.l.bf16 %v4231
      %v4248 = vunpack.c.l.bf16 %v4232
      %v4249 = vunpack.c.l.bf16 %v4233
      %v4250 = vunpack.c.l.bf16 %v4234
      %v4251 = vunpack.c.l.bf16 %v4235
      %v4252 = vunpack.c.l.bf16 %v4236
      %v4253 = vunpack.c.l.bf16 %v4237
      %v4254 = vunpack.c.l.bf16 %v4238
      %v4255 = vunpack.c.l.bf16 %v4239
      %v4256 = vadd.f32 %v4208, %v4240
      %v4257 = vadd.f32 %v4209, %v4241
      %v4258 = vadd.f32 %v4210, %v4242
      %v4259 = vadd.f32 %v4211, %v4243
      %v4260 = vadd.f32 %v4212, %v4244
      %v4261 = vadd.f32 %v4213, %v4245
      %v4262 = vadd.f32 %v4214, %v4246
      %v4263 = vadd.f32 %v4215, %v4247
      %v4264 = vadd.f32 %v4216, %v4248
      %v4265 = vadd.f32 %v4217, %v4249
      %v4266 = vadd.f32 %v4218, %v4250
      %v4267 = vadd.f32 %v4219, %v4251
      %v4268 = vadd.f32 %v4220, %v4252
      %v4269 = vadd.f32 %v4221, %v4253
      %v4270 = vadd.f32 %v4222, %v4254
      %v4271 = vadd.f32 %v4223, %v4255
      %v4272 = vpack.c.bf16 %v4257, %v4256
      %v4273 = vpack.c.bf16 %v4259, %v4258
      %v4274 = vpack.c.bf16 %v4261, %v4260
      %v4275 = vpack.c.bf16 %v4263, %v4262
      %v4276 = vpack.c.bf16 %v4265, %v4264
      %v4277 = vpack.c.bf16 %v4267, %v4266
      %v4278 = vpack.c.bf16 %v4269, %v4268
      %v4279 = vpack.c.bf16 %v4271, %v4270
      %v4288 = vunpack.c.l.b16 %v4272
      %v4289 = vunpack.c.h.b16 %v4272
      %v4290 = vunpack.c.l.b16 %v4273
      %v4291 = vunpack.c.h.b16 %v4273
      %v4292 = vunpack.c.l.b16 %v4274
      %v4293 = vunpack.c.h.b16 %v4274
      %v4294 = vunpack.c.l.b16 %v4275
      %v4295 = vunpack.c.h.b16 %v4275
      %v4296 = vunpack.c.l.b16 %v4276
      %v4297 = vunpack.c.h.b16 %v4276
      %v4298 = vunpack.c.l.b16 %v4277
      %v4299 = vunpack.c.h.b16 %v4277
      %v4300 = vunpack.c.l.b16 %v4278
      %v4301 = vunpack.c.h.b16 %v4278
      %v4302 = vunpack.c.l.b16 %v4279
      %v4303 = vunpack.c.h.b16 %v4279
      %v4304 = vpack.c.b16 %v4288, %v4288
      %v4305 = vpack.c.b16 %v4289, %v4289
      %v4306 = vpack.c.b16 %v4290, %v4290
      %v4307 = vpack.c.b16 %v4291, %v4291
      %v4308 = vpack.c.b16 %v4292, %v4292
      %v4309 = vpack.c.b16 %v4293, %v4293
      %v4310 = vpack.c.b16 %v4294, %v4294
      %v4311 = vpack.c.b16 %v4295, %v4295
      %v4312 = vpack.c.b16 %v4296, %v4296
      %v4313 = vpack.c.b16 %v4297, %v4297
      %v4314 = vpack.c.b16 %v4298, %v4298
      %v4315 = vpack.c.b16 %v4299, %v4299
      %v4316 = vpack.c.b16 %v4300, %v4300
      %v4317 = vpack.c.b16 %v4301, %v4301
      %v4318 = vpack.c.b16 %v4302, %v4302
      %v4319 = vpack.c.b16 %v4303, %v4303
      %4336 = vst [vmem:[%s467] sm:$0xf] %v4304
      %4337 = vst [vmem:[%s467 + $0x4] sm:$0xf] %v4305
      %4338 = vst [vmem:[%s467 + $0x8] sm:$0xf] %v4306
      %4339 = vst [vmem:[%s467 + $0xc] sm:$0xf] %v4307
      %4340 = vst [vmem:[%s467 + $0x10] sm:$0xf] %v4308
      %4341 = vst [vmem:[%s467 + $0x14] sm:$0xf] %v4309
      %4342 = vst [vmem:[%s467 + $0x18] sm:$0xf] %v4310
      %4343 = vst [vmem:[%s467 + $0x1c] sm:$0xf] %v4311
      %4344 = vst [vmem:[%s467 + $0x20] sm:$0xf] %v4312
      %4345 = vst [vmem:[%s467 + $0x24] sm:$0xf] %v4313
      %4346 = vst [vmem:[%s467 + $0x28] sm:$0xf] %v4314
      %4347 = vst [vmem:[%s467 + $0x2c] sm:$0xf] %v4315
      %4348 = vst [vmem:[%s467 + $0x30] sm:$0xf] %v4316
      %4349 = vst [vmem:[%s467 + $0x34] sm:$0xf] %v4317
      %4350 = vst [vmem:[%s467 + $0x38] sm:$0xf] %v4318
      %4351 = vst [vmem:[%s467 + $0x3c] sm:$0xf] %v4319
      %v4352 = vld [vmem:[#allocation3 + $0x80] sm:$0xff]
      %v4353 = vld [vmem:[#allocation3 + $0x88] sm:$0xff]
      %v4354 = vld [vmem:[#allocation3 + $0x90] sm:$0xff]
      %v4355 = vld [vmem:[#allocation3 + $0x98] sm:$0xff]
      %v4356 = vld [vmem:[#allocation3 + $0xa0] sm:$0xff]
      %v4357 = vld [vmem:[#allocation3 + $0xa8] sm:$0xff]
      %v4358 = vld [vmem:[#allocation3 + $0xb0] sm:$0xff]
      %v4359 = vld [vmem:[#allocation3 + $0xb8] sm:$0xff]
      %v4360 = vld [vmem:[#allocation3 + $0xc0] sm:$0xff]
      %v4361 = vld [vmem:[#allocation3 + $0xc8] sm:$0xff]
      %v4362 = vld [vmem:[#allocation3 + $0xd0] sm:$0xff]
      %v4363 = vld [vmem:[#allocation3 + $0xd8] sm:$0xff]
      %v4364 = vld [vmem:[#allocation3 + $0xe0] sm:$0xff]
      %v4365 = vld [vmem:[#allocation3 + $0xe8] sm:$0xff]
      %v4366 = vld [vmem:[#allocation3 + $0xf0] sm:$0xff]
      %v4367 = vld [vmem:[#allocation3 + $0xf8] sm:$0xff]
      %v4368 = vmul.f32 %v4352, %v3992
      %v4369 = vmul.f32 %v4353, %v3992
      %v4370 = vmul.f32 %v4354, %v3992
      %v4371 = vmul.f32 %v4355, %v3992
      %v4372 = vmul.f32 %v4356, %v3992
      %v4373 = vmul.f32 %v4357, %v3992
      %v4374 = vmul.f32 %v4358, %v3992
      %v4375 = vmul.f32 %v4359, %v3992
      %v4376 = vmul.f32 %v4360, %v3992
      %v4377 = vmul.f32 %v4361, %v3992
      %v4378 = vmul.f32 %v4362, %v3992
      %v4379 = vmul.f32 %v4363, %v3992
      %v4380 = vmul.f32 %v4364, %v3992
      %v4381 = vmul.f32 %v4365, %v3992
      %v4382 = vmul.f32 %v4366, %v3992
      %v4383 = vmul.f32 %v4367, %v3992
      %v4384 = vpack.c.bf16 %v4369, %v4368
      %v4385 = vpack.c.bf16 %v4371, %v4370
      %v4386 = vpack.c.bf16 %v4373, %v4372
      %v4387 = vpack.c.bf16 %v4375, %v4374
      %v4388 = vpack.c.bf16 %v4377, %v4376
      %v4389 = vpack.c.bf16 %v4379, %v4378
      %v4390 = vpack.c.bf16 %v4381, %v4380
      %v4391 = vpack.c.bf16 %v4383, %v4382
      %v4392 = vld [vmem:[%s11] sm:$0xf]
      %v4393 = vld [vmem:[%s11 + $0x4] sm:$0xf]
      %v4394 = vld [vmem:[%s11 + $0x8] sm:$0xf]
      %v4395 = vld [vmem:[%s11 + $0xc] sm:$0xf]
      %v4396 = vld [vmem:[%s11 + $0x10] sm:$0xf]
      %v4397 = vld [vmem:[%s11 + $0x14] sm:$0xf]
      %v4398 = vld [vmem:[%s11 + $0x18] sm:$0xf]
      %v4399 = vld [vmem:[%s11 + $0x1c] sm:$0xf]
      %v4400 = vld [vmem:[%s11 + $0x20] sm:$0xf]
      %v4401 = vld [vmem:[%s11 + $0x24] sm:$0xf]
      %v4402 = vld [vmem:[%s11 + $0x28] sm:$0xf]
      %v4403 = vld [vmem:[%s11 + $0x2c] sm:$0xf]
      %v4404 = vld [vmem:[%s11 + $0x30] sm:$0xf]
      %v4405 = vld [vmem:[%s11 + $0x34] sm:$0xf]
      %v4406 = vld [vmem:[%s11 + $0x38] sm:$0xf]
      %v4407 = vld [vmem:[%s11 + $0x3c] sm:$0xf]
      %v4424 = vunpack.c.l.b16 %v4392
      %v4425 = vunpack.c.l.b16 %v4393
      %v4426 = vunpack.c.l.b16 %v4394
      %v4427 = vunpack.c.l.b16 %v4395
      %v4428 = vunpack.c.l.b16 %v4396
      %v4429 = vunpack.c.l.b16 %v4397
      %v4430 = vunpack.c.l.b16 %v4398
      %v4431 = vunpack.c.l.b16 %v4399
      %v4432 = vunpack.c.l.b16 %v4400
      %v4433 = vunpack.c.l.b16 %v4401
      %v4434 = vunpack.c.l.b16 %v4402
      %v4435 = vunpack.c.l.b16 %v4403
      %v4436 = vunpack.c.l.b16 %v4404
      %v4437 = vunpack.c.l.b16 %v4405
      %v4438 = vunpack.c.l.b16 %v4406
      %v4439 = vunpack.c.l.b16 %v4407
      %v4440 = vpack.c.b16 %v4425, %v4424
      %v4441 = vpack.c.b16 %v4427, %v4426
      %v4442 = vpack.c.b16 %v4429, %v4428
      %v4443 = vpack.c.b16 %v4431, %v4430
      %v4444 = vpack.c.b16 %v4433, %v4432
      %v4445 = vpack.c.b16 %v4435, %v4434
      %v4446 = vpack.c.b16 %v4437, %v4436
      %v4447 = vpack.c.b16 %v4439, %v4438
      %4456 = vmatprep.subr.bf16.mxu0 0
      %4457 = vmatpush1.bf16.msra.mxu0 %v4440
      %4458 = vmatprep.subr.bf16.mxu0 0
      %4459 = vmatpush1.bf16.msra.mxu0 %v4441
      %4460 = vmatprep.subr.bf16.mxu0 0
      %4461 = vmatpush1.bf16.msra.mxu0 %v4442
      %4462 = vmatprep.subr.bf16.mxu0 0
      %4463 = vmatpush1.bf16.msra.mxu0 %v4443
      %4464 = vmatprep.subr.bf16.mxu0 0
      %4465 = vmatpush1.bf16.msra.mxu0 %v4444
      %4466 = vmatprep.subr.bf16.mxu0 0
      %4467 = vmatpush1.bf16.msra.mxu0 %v4445
      %4468 = vmatprep.subr.bf16.mxu0 0
      %4469 = vmatpush1.bf16.msra.mxu0 %v4446
      %4470 = vmatprep.subr.bf16.mxu0 0
      %4471 = vmatpush1.bf16.msra.mxu0 %v4447
      %4472 = vmatprep.subr.bf16.mxu0 0
      %4473 = vmatpush1.bf16.msra.mxu0 0
      %4474 = vmatprep.subr.bf16.mxu0 0
      %4475 = vmatpush1.bf16.msra.mxu0 0
      %4476 = vmatprep.subr.bf16.mxu0 0
      %4477 = vmatpush1.bf16.msra.mxu0 0
      %4478 = vmatprep.subr.bf16.mxu0 0
      %4479 = vmatpush1.bf16.msra.mxu0 0
      %4480 = vmatprep.subr.bf16.mxu0 0
      %4481 = vmatpush1.bf16.msra.mxu0 0
      %4482 = vmatprep.subr.bf16.mxu0 0
      %4483 = vmatpush1.bf16.msra.mxu0 0
      %4484 = vmatprep.subr.bf16.mxu0 0
      %4485 = vmatpush1.bf16.msra.mxu0 0
      %4486 = vmatprep.subr.bf16.mxu0 0
      %4487 = vmatpush1.bf16.msra.mxu0 0
      %4488 = vmatprep.mubr.bf16.mxu0 0
      %4489 = vmatmul.mubr.bf16.gmra.mrb[0].mxu0 %v4384
      %v4490 = vpop.f32.mrb[0].mxu0
      %v4491 = vadd.f32 0.0, %v4490
      %v4492 = vpop.f32.mrb[0].mxu0
      %v4493 = vpop.f32.mrb[0].mxu0
      %v4494 = vadd.f32 0.0, %v4493
      %v4495 = vpop.f32.mrb[0].mxu0
      %4496 = vmatprep.mubr.bf16.mxu0 0
      %4497 = vmatmul.mubr.bf16.gmra.mrb[0].mxu0 %v4385
      %v4498 = vpop.f32.mrb[0].mxu0
      %v4499 = vadd.f32 0.0, %v4498
      %v4500 = vpop.f32.mrb[0].mxu0
      %v4501 = vpop.f32.mrb[0].mxu0
      %v4502 = vadd.f32 0.0, %v4501
      %v4503 = vpop.f32.mrb[0].mxu0
      %4504 = vmatprep.mubr.bf16.mxu0 0
      %4505 = vmatmul.mubr.bf16.gmra.mrb[0].mxu0 %v4386
      %v4506 = vpop.f32.mrb[0].mxu0
      %v4507 = vadd.f32 0.0, %v4506
      %v4508 = vpop.f32.mrb[0].mxu0
      %v4509 = vpop.f32.mrb[0].mxu0
      %v4510 = vadd.f32 0.0, %v4509
      %v4511 = vpop.f32.mrb[0].mxu0
      %4512 = vmatprep.mubr.bf16.mxu0 0
      %4513 = vmatmul.mubr.bf16.gmra.mrb[0].mxu0 %v4387
      %v4514 = vpop.f32.mrb[0].mxu0
      %v4515 = vadd.f32 0.0, %v4514
      %v4516 = vpop.f32.mrb[0].mxu0
      %v4517 = vpop.f32.mrb[0].mxu0
      %v4518 = vadd.f32 0.0, %v4517
      %v4519 = vpop.f32.mrb[0].mxu0
      %4520 = vmatprep.mubr.bf16.mxu0 0
      %4521 = vmatmul.mubr.bf16.gmra.mrb[0].mxu0 %v4388
      %v4522 = vpop.f32.mrb[0].mxu0
      %v4523 = vadd.f32 0.0, %v4522
      %v4524 = vpop.f32.mrb[0].mxu0
      %v4525 = vpop.f32.mrb[0].mxu0
      %v4526 = vadd.f32 0.0, %v4525
      %v4527 = vpop.f32.mrb[0].mxu0
      %4528 = vmatprep.mubr.bf16.mxu0 0
      %4529 = vmatmul.mubr.bf16.gmra.mrb[0].mxu0 %v4389
      %v4530 = vpop.f32.mrb[0].mxu0
      %v4531 = vadd.f32 0.0, %v4530
      %v4532 = vpop.f32.mrb[0].mxu0
      %v4533 = vpop.f32.mrb[0].mxu0
      %v4534 = vadd.f32 0.0, %v4533
      %v4535 = vpop.f32.mrb[0].mxu0
      %4536 = vmatprep.mubr.bf16.mxu0 0
      %4537 = vmatmul.mubr.bf16.gmra.mrb[0].mxu0 %v4390
      %v4538 = vpop.f32.mrb[0].mxu0
      %v4539 = vadd.f32 0.0, %v4538
      %v4540 = vpop.f32.mrb[0].mxu0
      %v4541 = vpop.f32.mrb[0].mxu0
      %v4542 = vadd.f32 0.0, %v4541
      %v4543 = vpop.f32.mrb[0].mxu0
      %4544 = vmatprep.mubr.bf16.mxu0 0
      %4545 = vmatmul.mubr.bf16.gmra.mrb[0].mxu0 %v4391
      %v4546 = vpop.f32.mrb[0].mxu0
      %v4547 = vadd.f32 0.0, %v4546
      %v4548 = vpop.f32.mrb[0].mxu0
      %v4549 = vpop.f32.mrb[0].mxu0
      %v4550 = vadd.f32 0.0, %v4549
      %v4551 = vpop.f32.mrb[0].mxu0
      %4552 = vdwg.mxu0
      %v4553 = vld [vmem:[%s12] sm:$0x1]
      %v4555 = vlaneseq
      %v4556 = vshrl.u32 %v4555, 7
      %v4557 = vsub.s32 0, %v4556
      %v4558 = vrot.slane %v4553, %v4557
      %v4560 = vmul.f32 %v4491, %v4558
      %v4561 = vmul.f32 %v4494, %v4558
      %v4562 = vmul.f32 %v4499, %v4558
      %v4563 = vmul.f32 %v4502, %v4558
      %v4564 = vmul.f32 %v4507, %v4558
      %v4565 = vmul.f32 %v4510, %v4558
      %v4566 = vmul.f32 %v4515, %v4558
      %v4567 = vmul.f32 %v4518, %v4558
      %v4568 = vmul.f32 %v4523, %v4558
      %v4569 = vmul.f32 %v4526, %v4558
      %v4570 = vmul.f32 %v4531, %v4558
      %v4571 = vmul.f32 %v4534, %v4558
      %v4572 = vmul.f32 %v4539, %v4558
      %v4573 = vmul.f32 %v4542, %v4558
      %v4574 = vmul.f32 %v4547, %v4558
      %v4575 = vmul.f32 %v4550, %v4558
      %v4576 = vld [vmem:[%s13] sm:$0x1]
      %v4578 = vlaneseq
      %v4579 = vshrl.u32 %v4578, 7
      %v4580 = vsub.s32 0, %v4579
      %v4581 = vrot.slane %v4576, %v4580
      %v4583 = vadd.f32 %v4560, %v4581
      %v4584 = vadd.f32 %v4561, %v4581
      %v4585 = vadd.f32 %v4562, %v4581
      %v4586 = vadd.f32 %v4563, %v4581
      %v4587 = vadd.f32 %v4564, %v4581
      %v4588 = vadd.f32 %v4565, %v4581
      %v4589 = vadd.f32 %v4566, %v4581
      %v4590 = vadd.f32 %v4567, %v4581
      %v4591 = vadd.f32 %v4568, %v4581
      %v4592 = vadd.f32 %v4569, %v4581
      %v4593 = vadd.f32 %v4570, %v4581
      %v4594 = vadd.f32 %v4571, %v4581
      %v4595 = vadd.f32 %v4572, %v4581
      %v4596 = vadd.f32 %v4573, %v4581
      %v4597 = vadd.f32 %v4574, %v4581
      %v4598 = vadd.f32 %v4575, %v4581
      %v4599 = vld [vmem:[%s462 + $0x40] sm:$0xf]
      %v4600 = vld [vmem:[%s462 + $0x44] sm:$0xf]
      %v4601 = vld [vmem:[%s462 + $0x48] sm:$0xf]
      %v4602 = vld [vmem:[%s462 + $0x4c] sm:$0xf]
      %v4603 = vld [vmem:[%s462 + $0x50] sm:$0xf]
      %v4604 = vld [vmem:[%s462 + $0x54] sm:$0xf]
      %v4605 = vld [vmem:[%s462 + $0x58] sm:$0xf]
      %v4606 = vld [vmem:[%s462 + $0x5c] sm:$0xf]
      %v4607 = vld [vmem:[%s462 + $0x60] sm:$0xf]
      %v4608 = vld [vmem:[%s462 + $0x64] sm:$0xf]
      %v4609 = vld [vmem:[%s462 + $0x68] sm:$0xf]
      %v4610 = vld [vmem:[%s462 + $0x6c] sm:$0xf]
      %v4611 = vld [vmem:[%s462 + $0x70] sm:$0xf]
      %v4612 = vld [vmem:[%s462 + $0x74] sm:$0xf]
      %v4613 = vld [vmem:[%s462 + $0x78] sm:$0xf]
      %v4614 = vld [vmem:[%s462 + $0x7c] sm:$0xf]
      %v4615 = vunpack.c.l.bf16 %v4599
      %v4616 = vunpack.c.l.bf16 %v4600
      %v4617 = vunpack.c.l.bf16 %v4601
      %v4618 = vunpack.c.l.bf16 %v4602
      %v4619 = vunpack.c.l.bf16 %v4603
      %v4620 = vunpack.c.l.bf16 %v4604
      %v4621 = vunpack.c.l.bf16 %v4605
      %v4622 = vunpack.c.l.bf16 %v4606
      %v4623 = vunpack.c.l.bf16 %v4607
      %v4624 = vunpack.c.l.bf16 %v4608
      %v4625 = vunpack.c.l.bf16 %v4609
      %v4626 = vunpack.c.l.bf16 %v4610
      %v4627 = vunpack.c.l.bf16 %v4611
      %v4628 = vunpack.c.l.bf16 %v4612
      %v4629 = vunpack.c.l.bf16 %v4613
      %v4630 = vunpack.c.l.bf16 %v4614
      %v4631 = vadd.f32 %v4583, %v4615
      %v4632 = vadd.f32 %v4584, %v4616
      %v4633 = vadd.f32 %v4585, %v4617
      %v4634 = vadd.f32 %v4586, %v4618
      %v4635 = vadd.f32 %v4587, %v4619
      %v4636 = vadd.f32 %v4588, %v4620
      %v4637 = vadd.f32 %v4589, %v4621
      %v4638 = vadd.f32 %v4590, %v4622
      %v4639 = vadd.f32 %v4591, %v4623
      %v4640 = vadd.f32 %v4592, %v4624
      %v4641 = vadd.f32 %v4593, %v4625
      %v4642 = vadd.f32 %v4594, %v4626
      %v4643 = vadd.f32 %v4595, %v4627
      %v4644 = vadd.f32 %v4596, %v4628
      %v4645 = vadd.f32 %v4597, %v4629
      %v4646 = vadd.f32 %v4598, %v4630
      %v4647 = vpack.c.bf16 %v4632, %v4631
      %v4648 = vpack.c.bf16 %v4634, %v4633
      %v4649 = vpack.c.bf16 %v4636, %v4635
      %v4650 = vpack.c.bf16 %v4638, %v4637
      %v4651 = vpack.c.bf16 %v4640, %v4639
      %v4652 = vpack.c.bf16 %v4642, %v4641
      %v4653 = vpack.c.bf16 %v4644, %v4643
      %v4654 = vpack.c.bf16 %v4646, %v4645
      %v4663 = vunpack.c.l.b16 %v4647
      %v4664 = vunpack.c.h.b16 %v4647
      %v4665 = vunpack.c.l.b16 %v4648
      %v4666 = vunpack.c.h.b16 %v4648
      %v4667 = vunpack.c.l.b16 %v4649
      %v4668 = vunpack.c.h.b16 %v4649
      %v4669 = vunpack.c.l.b16 %v4650
      %v4670 = vunpack.c.h.b16 %v4650
      %v4671 = vunpack.c.l.b16 %v4651
      %v4672 = vunpack.c.h.b16 %v4651
      %v4673 = vunpack.c.l.b16 %v4652
      %v4674 = vunpack.c.h.b16 %v4652
      %v4675 = vunpack.c.l.b16 %v4653
      %v4676 = vunpack.c.h.b16 %v4653
      %v4677 = vunpack.c.l.b16 %v4654
      %v4678 = vunpack.c.h.b16 %v4654
      %v4679 = vpack.c.b16 %v4663, %v4663
      %v4680 = vpack.c.b16 %v4664, %v4664
      %v4681 = vpack.c.b16 %v4665, %v4665
      %v4682 = vpack.c.b16 %v4666, %v4666
      %v4683 = vpack.c.b16 %v4667, %v4667
      %v4684 = vpack.c.b16 %v4668, %v4668
      %v4685 = vpack.c.b16 %v4669, %v4669
      %v4686 = vpack.c.b16 %v4670, %v4670
      %v4687 = vpack.c.b16 %v4671, %v4671
      %v4688 = vpack.c.b16 %v4672, %v4672
      %v4689 = vpack.c.b16 %v4673, %v4673
      %v4690 = vpack.c.b16 %v4674, %v4674
      %v4691 = vpack.c.b16 %v4675, %v4675
      %v4692 = vpack.c.b16 %v4676, %v4676
      %v4693 = vpack.c.b16 %v4677, %v4677
      %v4694 = vpack.c.b16 %v4678, %v4678
      %4711 = vst [vmem:[%s467 + $0x40] sm:$0xf] %v4679
      %4712 = vst [vmem:[%s467 + $0x44] sm:$0xf] %v4680
      %4713 = vst [vmem:[%s467 + $0x48] sm:$0xf] %v4681
      %4714 = vst [vmem:[%s467 + $0x4c] sm:$0xf] %v4682
      %4715 = vst [vmem:[%s467 + $0x50] sm:$0xf] %v4683
      %4716 = vst [vmem:[%s467 + $0x54] sm:$0xf] %v4684
      %4717 = vst [vmem:[%s467 + $0x58] sm:$0xf] %v4685
      %4718 = vst [vmem:[%s467 + $0x5c] sm:$0xf] %v4686
      %4719 = vst [vmem:[%s467 + $0x60] sm:$0xf] %v4687
      %4720 = vst [vmem:[%s467 + $0x64] sm:$0xf] %v4688
      %4721 = vst [vmem:[%s467 + $0x68] sm:$0xf] %v4689
      %4722 = vst [vmem:[%s467 + $0x6c] sm:$0xf] %v4690
      %4723 = vst [vmem:[%s467 + $0x70] sm:$0xf] %v4691
      %4724 = vst [vmem:[%s467 + $0x74] sm:$0xf] %v4692
      %4725 = vst [vmem:[%s467 + $0x78] sm:$0xf] %v4693
      %4726 = vst [vmem:[%s467 + $0x7c] sm:$0xf] %v4694
      %p4727 = scmp.lt.s32.totalorder %s25, 1
      %s4728 = scalar_select %p4727, %s25, 1
      %s4729 = smul.addr %s4728, 32
      %s4730 = smul.addr %s4729, 4
      %s4731 = scalar_lea.vmem %s14, %s4730
      // Predicated region
      $region77: #{effnet_forward.5} parent=75 // pred_check
        %p4732 = pneg %p342
      $region78: #{effnet_forward.5} parent=75 // pred_check_branch
        %4734 = sbr.rel (%p4732) target = $region80
      $region79: #{effnet_forward.5} parent=75 // pred_region
        _
      $region80: #{effnet_forward.5} parent=75 // pred_fallthru
        _
    $region76: #{effnet_forward.5} parent=5 // pred_fallthru
      _
    %p4735 = scmp.le.s32.totalorder 2, %s20
    // Predicated region
    $region81: #{effnet_forward.5} parent=5 // pred_check
      %p4736 = pneg %p4735
    $region82: #{effnet_forward.5} parent=5 // pred_check_branch
      %4738 = sbr.rel (%p4736) target = $region84
    $region83: #{effnet_forward.5} parent=5 // pred_region
      %s4739 = ssub.s32 %s20, 2
      // Predicated region
      $region85: #{effnet_forward.5} parent=83 // pred_check
        %p4740 = pneg %p348
      $region86: #{effnet_forward.5} parent=83 // pred_check_branch
        %4742 = sbr.rel (%p4740) target = $region88
      $region87: #{effnet_forward.5} parent=83 // pred_region
        %p4743 = scmp.lt.s32.totalorder %s26, 1
        %s4744 = scalar_select %p4743, %s26, 1
        %s4745 = smul.addr %s4744, 32
        %s4746 = smul.addr %s4745, 4
        %s4747 = scalar_lea.vmem %s14, %s4746
      $region88: #{effnet_forward.5} parent=83 // pred_fallthru
        _
    $region84: #{effnet_forward.5} parent=5 // pred_fallthru
      _
  $region6: #{effnet_forward.5} parent=0 // loop_footer
    %s24 = sadd.s32 1, %s20
  $region7: #{effnet_forward.5} parent=0 // loop_footer_branch
    %19 = sbr.rel target = $region3
  $region8: #{effnet_forward.5} parent=0 // loop_exit
    _

// kernel: effnet_forward.7
$region0: #{effnet_forward.7}
  #allocation0 [shape = 'u32[]', space=smem, size = 0x4, offset = 0x4, fixed_abs, tag = 'smem constant byte address 0x4 - core index']
  #allocation1 [shape = 'u32[144,128]{1,0:T(1,128)}', space=vmem, size = 0x12000, scoped, tag = 'internal scratch']
  %s0 = inlined_call_operand.vmem [shape: f32[2,1792], index: 0, kind: input, shape index: {}]
  %s1 = inlined_call_operand.vmem [shape: bf16[1792,128], index: 1, kind: input, shape index: {}]
  %s2 = inlined_call_operand.vmem [shape: f32[1,128], index: 2, kind: input, shape index: {}]
  %s3 = inlined_call_operand.hbm [shape: f32[2,128], index: 3, kind: output, shape index: {}]
  %s4 = sld [smem:[#allocation0]]
  $region22: #{effnet_forward.7} parent=0
    _
  %s6 = ssub.s32 1, %s4
  %s7 = scalar_select 0, %s6, %s4
  $region1: #{effnet_forward.7} parent=0
    #allocation2 [shape = 'u8[1024]{0}', space=vmem, size = 0x400, scoped, tag = 'output window, operand 0, single buffered']
    #allocation3 [shape = 's32[1]{0}', space=sflag, size = 0x4, scoped, tag = 'scoped memory for effnet_forward.7']
    %8 = vsyncpa [#allocation3], 0
    // Predicated region
    $region2: #{effnet_forward.7} parent=1 // pred_check
      _
    $region3: #{effnet_forward.7} parent=1 // pred_check_branch
      %10 = sbr.rel (0) target = $region5
    $region4: #{effnet_forward.7} parent=1 // pred_region
      _
    $region5: #{effnet_forward.7} parent=1 // pred_fallthru
      _
    // Predicated region
    $region6: #{effnet_forward.7} parent=1 // pred_check
      _
    $region7: #{effnet_forward.7} parent=1 // pred_check_branch
      %12 = sbr.rel (0) target = $region9
    $region8: #{effnet_forward.7} parent=1 // pred_region
      _
    $region9: #{effnet_forward.7} parent=1 // pred_fallthru
      _
    // Predicated region
    $region10: #{effnet_forward.7} parent=1 // pred_check
      _
    $region11: #{effnet_forward.7} parent=1 // pred_check_branch
      %14 = sbr.rel (0) target = $region13
    $region12: #{effnet_forward.7} parent=1 // pred_region
      _
    $region13: #{effnet_forward.7} parent=1 // pred_fallthru
      _
    %v16 = vld [vmem:[%s0] sm:$0xff]
    %v17 = vld [vmem:[%s0 + $0x8] sm:$0xff]
    %v18 = vld [vmem:[%s0 + $0x10] sm:$0xff]
    %v19 = vld [vmem:[%s0 + $0x18] sm:$0xf]
    %v24 = vcombine.high %v16, %v16
    %v26 = vunpack.c.l.s4 1983009808
    %v27 = vunpack.c.0.s8 %v26
    %v28 = vlaneseq
    %v29 = vshrl.u32 %v28, 7
    %v30 = vsub.s32 %v27, %v29
    %v31 = vrot.slane %v16, %v30
    %v33 = vunpack.c.l.s4 1983009808
    %v34 = vunpack.c.0.s8 %v33
    %v35 = vlaneseq
    %v36 = vshrl.u32 %v35, 7
    %v37 = vsub.s32 %v34, %v36
    %v38 = vrot.slane %v24, %v37
    %v39 = vcombine.high %v31, %v31
    %v40 = vcombine.high %v38, %v38
    %v41 = vcombine.high %v17, %v17
    %v43 = vunpack.c.l.s4 1983009808
    %v44 = vunpack.c.0.s8 %v43
    %v45 = vlaneseq
    %v46 = vshrl.u32 %v45, 7
    %v47 = vsub.s32 %v44, %v46
    %v48 = vrot.slane %v17, %v47
    %v50 = vunpack.c.l.s4 1983009808
    %v51 = vunpack.c.0.s8 %v50
    %v52 = vlaneseq
    %v53 = vshrl.u32 %v52, 7
    %v54 = vsub.s32 %v51, %v53
    %v55 = vrot.slane %v41, %v54
    %v56 = vcombine.high %v48, %v48
    %v57 = vcombine.high %v55, %v55
    %v58 = vcombine.high %v18, %v18
    %v60 = vunpack.c.l.s4 1983009808
    %v61 = vunpack.c.0.s8 %v60
    %v62 = vlaneseq
    %v63 = vshrl.u32 %v62, 7
    %v64 = vsub.s32 %v61, %v63
    %v65 = vrot.slane %v18, %v64
    %v67 = vunpack.c.l.s4 1983009808
    %v68 = vunpack.c.0.s8 %v67
    %v69 = vlaneseq
    %v70 = vshrl.u32 %v69, 7
    %v71 = vsub.s32 %v68, %v70
    %v72 = vrot.slane %v58, %v71
    %v73 = vcombine.high %v65, %v65
    %v74 = vcombine.high %v72, %v72
    %v76 = vunpack.c.l.s4 1983009808
    %v77 = vunpack.c.0.s8 %v76
    %v78 = vlaneseq
    %v79 = vshrl.u32 %v78, 7
    %v80 = vsub.s32 %v77, %v79
    %v81 = vrot.slane %v19, %v80
    %v82 = vcombine.high %v81, %v81
    %v97 = vpack.c.bf16 %v31, %v31
    %v98 = vpack.c.bf16 %v39, %v39
    %v99 = vpack.c.bf16 %v38, %v38
    %v100 = vpack.c.bf16 %v40, %v40
    %v101 = vpack.c.bf16 %v48, %v48
    %v102 = vpack.c.bf16 %v56, %v56
    %v103 = vpack.c.bf16 %v55, %v55
    %v104 = vpack.c.bf16 %v57, %v57
    %v105 = vpack.c.bf16 %v65, %v65
    %v106 = vpack.c.bf16 %v73, %v73
    %v107 = vpack.c.bf16 %v72, %v72
    %v108 = vpack.c.bf16 %v74, %v74
    %v109 = vpack.c.bf16 %v81, %v81
    %v110 = vpack.c.bf16 %v82, %v82
    %v111 = vld [vmem:[%s1] sm:$0xf]
    %v112 = vld [vmem:[%s1 + $0x4] sm:$0xf]
    %v113 = vld [vmem:[%s1 + $0x8] sm:$0xf]
    %v114 = vld [vmem:[%s1 + $0xc] sm:$0xf]
    %v115 = vld [vmem:[%s1 + $0x10] sm:$0xf]
    %v116 = vld [vmem:[%s1 + $0x14] sm:$0xf]
    %v117 = vld [vmem:[%s1 + $0x18] sm:$0xf]
    %v118 = vld [vmem:[%s1 + $0x1c] sm:$0xf]
    %v119 = vld [vmem:[%s1 + $0x20] sm:$0xf]
    %v120 = vld [vmem:[%s1 + $0x24] sm:$0xf]
    %v121 = vld [vmem:[%s1 + $0x28] sm:$0xf]
    %v122 = vld [vmem:[%s1 + $0x2c] sm:$0xf]
    %v123 = vld [vmem:[%s1 + $0x30] sm:$0xf]
    %v124 = vld [vmem:[%s1 + $0x34] sm:$0xf]
    %v125 = vld [vmem:[%s1 + $0x38] sm:$0xf]
    %v126 = vld [vmem:[%s1 + $0x3c] sm:$0xf]
    %v127 = vld [vmem:[%s1 + $0x40] sm:$0xf]
    %v128 = vld [vmem:[%s1 + $0x44] sm:$0xf]
    %v129 = vld [vmem:[%s1 + $0x48] sm:$0xf]
    %v130 = vld [vmem:[%s1 + $0x4c] sm:$0xf]
    %v131 = vld [vmem:[%s1 + $0x50] sm:$0xf]
    %v132 = vld [vmem:[%s1 + $0x54] sm:$0xf]
    %v133 = vld [vmem:[%s1 + $0x58] sm:$0xf]
    %v134 = vld [vmem:[%s1 + $0x5c] sm:$0xf]
    %v135 = vld [vmem:[%s1 + $0x60] sm:$0xf]
    %v136 = vld [vmem:[%s1 + $0x64] sm:$0xf]
    %v137 = vld [vmem:[%s1 + $0x68] sm:$0xf]
    %v138 = vld [vmem:[%s1 + $0x6c] sm:$0xf]
    %v139 = vld [vmem:[%s1 + $0x70] sm:$0xf]
    %v140 = vld [vmem:[%s1 + $0x74] sm:$0xf]
    %v141 = vld [vmem:[%s1 + $0x78] sm:$0xf]
    %v142 = vld [vmem:[%s1 + $0x7c] sm:$0xf]
    %v143 = vld [vmem:[%s1 + $0x80] sm:$0xf]
    %v144 = vld [vmem:[%s1 + $0x84] sm:$0xf]
    %v145 = vld [vmem:[%s1 + $0x88] sm:$0xf]
    %v146 = vld [vmem:[%s1 + $0x8c] sm:$0xf]
    %v147 = vld [vmem:[%s1 + $0x90] sm:$0xf]
    %v148 = vld [vmem:[%s1 + $0x94] sm:$0xf]
    %v149 = vld [vmem:[%s1 + $0x98] sm:$0xf]
    %v150 = vld [vmem:[%s1 + $0x9c] sm:$0xf]
    %v151 = vld [vmem:[%s1 + $0xa0] sm:$0xf]
    %v152 = vld [vmem:[%s1 + $0xa4] sm:$0xf]
    %v153 = vld [vmem:[%s1 + $0xa8] sm:$0xf]
    %v154 = vld [vmem:[%s1 + $0xac] sm:$0xf]
    %v155 = vld [vmem:[%s1 + $0xb0] sm:$0xf]
    %v156 = vld [vmem:[%s1 + $0xb4] sm:$0xf]
    %v157 = vld [vmem:[%s1 + $0xb8] sm:$0xf]
    %v158 = vld [vmem:[%s1 + $0xbc] sm:$0xf]
    %v159 = vld [vmem:[%s1 + $0xc0] sm:$0xf]
    %v160 = vld [vmem:[%s1 + $0xc4] sm:$0xf]
    %v161 = vld [vmem:[%s1 + $0xc8] sm:$0xf]
    %v162 = vld [vmem:[%s1 + $0xcc] sm:$0xf]
    %v163 = vld [vmem:[%s1 + $0xd0] sm:$0xf]
    %v164 = vld [vmem:[%s1 + $0xd4] sm:$0xf]
    %v165 = vld [vmem:[%s1 + $0xd8] sm:$0xf]
    %v166 = vld [vmem:[%s1 + $0xdc] sm:$0xf]
    %v167 = vld [vmem:[%s1 + $0xe0] sm:$0xf]
    %v168 = vld [vmem:[%s1 + $0xe4] sm:$0xf]
    %v169 = vld [vmem:[%s1 + $0xe8] sm:$0xf]
    %v170 = vld [vmem:[%s1 + $0xec] sm:$0xf]
    %v171 = vld [vmem:[%s1 + $0xf0] sm:$0xf]
    %v172 = vld [vmem:[%s1 + $0xf4] sm:$0xf]
    %v173 = vld [vmem:[%s1 + $0xf8] sm:$0xf]
    %v174 = vld [vmem:[%s1 + $0xfc] sm:$0xf]
    %v175 = vld [vmem:[%s1 + $0x100] sm:$0xf]
    %v176 = vld [vmem:[%s1 + $0x104] sm:$0xf]
    %v177 = vld [vmem:[%s1 + $0x108] sm:$0xf]
    %v178 = vld [vmem:[%s1 + $0x10c] sm:$0xf]
    %v179 = vld [vmem:[%s1 + $0x110] sm:$0xf]
    %v180 = vld [vmem:[%s1 + $0x114] sm:$0xf]
    %v181 = vld [vmem:[%s1 + $0x118] sm:$0xf]
    %v182 = vld [vmem:[%s1 + $0x11c] sm:$0xf]
    %v183 = vld [vmem:[%s1 + $0x120] sm:$0xf]
    %v184 = vld [vmem:[%s1 + $0x124] sm:$0xf]
    %v185 = vld [vmem:[%s1 + $0x128] sm:$0xf]
    %v186 = vld [vmem:[%s1 + $0x12c] sm:$0xf]
    %v187 = vld [vmem:[%s1 + $0x130] sm:$0xf]
    %v188 = vld [vmem:[%s1 + $0x134] sm:$0xf]
    %v189 = vld [vmem:[%s1 + $0x138] sm:$0xf]
    %v190 = vld [vmem:[%s1 + $0x13c] sm:$0xf]
    %v191 = vld [vmem:[%s1 + $0x140] sm:$0xf]
    %v192 = vld [vmem:[%s1 + $0x144] sm:$0xf]
    %v193 = vld [vmem:[%s1 + $0x148] sm:$0xf]
    %v194 = vld [vmem:[%s1 + $0x14c] sm:$0xf]
    %v195 = vld [vmem:[%s1 + $0x150] sm:$0xf]
    %v196 = vld [vmem:[%s1 + $0x154] sm:$0xf]
    %v197 = vld [vmem:[%s1 + $0x158] sm:$0xf]
    %v198 = vld [vmem:[%s1 + $0x15c] sm:$0xf]
    %v199 = vld [vmem:[%s1 + $0x160] sm:$0xf]
    %v200 = vld [vmem:[%s1 + $0x164] sm:$0xf]
    %v201 = vld [vmem:[%s1 + $0x168] sm:$0xf]
    %v202 = vld [vmem:[%s1 + $0x16c] sm:$0xf]
    %v203 = vld [vmem:[%s1 + $0x170] sm:$0xf]
    %v204 = vld [vmem:[%s1 + $0x174] sm:$0xf]
    %v205 = vld [vmem:[%s1 + $0x178] sm:$0xf]
    %v206 = vld [vmem:[%s1 + $0x17c] sm:$0xf]
    %v207 = vld [vmem:[%s1 + $0x180] sm:$0xf]
    %v208 = vld [vmem:[%s1 + $0x184] sm:$0xf]
    %v209 = vld [vmem:[%s1 + $0x188] sm:$0xf]
    %v210 = vld [vmem:[%s1 + $0x18c] sm:$0xf]
    %v211 = vld [vmem:[%s1 + $0x190] sm:$0xf]
    %v212 = vld [vmem:[%s1 + $0x194] sm:$0xf]
    %v213 = vld [vmem:[%s1 + $0x198] sm:$0xf]
    %v214 = vld [vmem:[%s1 + $0x19c] sm:$0xf]
    %v215 = vld [vmem:[%s1 + $0x1a0] sm:$0xf]
    %v216 = vld [vmem:[%s1 + $0x1a4] sm:$0xf]
    %v217 = vld [vmem:[%s1 + $0x1a8] sm:$0xf]
    %v218 = vld [vmem:[%s1 + $0x1ac] sm:$0xf]
    %v219 = vld [vmem:[%s1 + $0x1b0] sm:$0xf]
    %v220 = vld [vmem:[%s1 + $0x1b4] sm:$0xf]
    %v221 = vld [vmem:[%s1 + $0x1b8] sm:$0xf]
    %v222 = vld [vmem:[%s1 + $0x1bc] sm:$0xf]
    %v223 = vld [vmem:[%s1 + $0x1c0] sm:$0xf]
    %v224 = vld [vmem:[%s1 + $0x1c4] sm:$0xf]
    %v225 = vld [vmem:[%s1 + $0x1c8] sm:$0xf]
    %v226 = vld [vmem:[%s1 + $0x1cc] sm:$0xf]
    %v227 = vld [vmem:[%s1 + $0x1d0] sm:$0xf]
    %v228 = vld [vmem:[%s1 + $0x1d4] sm:$0xf]
    %v229 = vld [vmem:[%s1 + $0x1d8] sm:$0xf]
    %v230 = vld [vmem:[%s1 + $0x1dc] sm:$0xf]
    %v231 = vld [vmem:[%s1 + $0x1e0] sm:$0xf]
    %v232 = vld [vmem:[%s1 + $0x1e4] sm:$0xf]
    %v233 = vld [vmem:[%s1 + $0x1e8] sm:$0xf]
    %v234 = vld [vmem:[%s1 + $0x1ec] sm:$0xf]
    %v235 = vld [vmem:[%s1 + $0x1f0] sm:$0xf]
    %v236 = vld [vmem:[%s1 + $0x1f4] sm:$0xf]
    %v237 = vld [vmem:[%s1 + $0x1f8] sm:$0xf]
    %v238 = vld [vmem:[%s1 + $0x1fc] sm:$0xf]
    %v239 = vld [vmem:[%s1 + $0x200] sm:$0xf]
    %v240 = vld [vmem:[%s1 + $0x204] sm:$0xf]
    %v241 = vld [vmem:[%s1 + $0x208] sm:$0xf]
    %v242 = vld [vmem:[%s1 + $0x20c] sm:$0xf]
    %v243 = vld [vmem:[%s1 + $0x210] sm:$0xf]
    %v244 = vld [vmem:[%s1 + $0x214] sm:$0xf]
    %v245 = vld [vmem:[%s1 + $0x218] sm:$0xf]
    %v246 = vld [vmem:[%s1 + $0x21c] sm:$0xf]
    %v247 = vld [vmem:[%s1 + $0x220] sm:$0xf]
    %v248 = vld [vmem:[%s1 + $0x224] sm:$0xf]
    %v249 = vld [vmem:[%s1 + $0x228] sm:$0xf]
    %v250 = vld [vmem:[%s1 + $0x22c] sm:$0xf]
    %v251 = vld [vmem:[%s1 + $0x230] sm:$0xf]
    %v252 = vld [vmem:[%s1 + $0x234] sm:$0xf]
    %v253 = vld [vmem:[%s1 + $0x238] sm:$0xf]
    %v254 = vld [vmem:[%s1 + $0x23c] sm:$0xf]
    %v255 = vld [vmem:[%s1 + $0x240] sm:$0xf]
    %v256 = vld [vmem:[%s1 + $0x244] sm:$0xf]
    %v257 = vld [vmem:[%s1 + $0x248] sm:$0xf]
    %v258 = vld [vmem:[%s1 + $0x24c] sm:$0xf]
    %v259 = vld [vmem:[%s1 + $0x250] sm:$0xf]
    %v260 = vld [vmem:[%s1 + $0x254] sm:$0xf]
    %v261 = vld [vmem:[%s1 + $0x258] sm:$0xf]
    %v262 = vld [vmem:[%s1 + $0x25c] sm:$0xf]
    %v263 = vld [vmem:[%s1 + $0x260] sm:$0xf]
    %v264 = vld [vmem:[%s1 + $0x264] sm:$0xf]
    %v265 = vld [vmem:[%s1 + $0x268] sm:$0xf]
    %v266 = vld [vmem:[%s1 + $0x26c] sm:$0xf]
    %v267 = vld [vmem:[%s1 + $0x270] sm:$0xf]
    %v268 = vld [vmem:[%s1 + $0x274] sm:$0xf]
    %v269 = vld [vmem:[%s1 + $0x278] sm:$0xf]
    %v270 = vld [vmem:[%s1 + $0x27c] sm:$0xf]
    %v271 = vld [vmem:[%s1 + $0x280] sm:$0xf]
    %v272 = vld [vmem:[%s1 + $0x284] sm:$0xf]
    %v273 = vld [vmem:[%s1 + $0x288] sm:$0xf]
    %v274 = vld [vmem:[%s1 + $0x28c] sm:$0xf]
    %v275 = vld [vmem:[%s1 + $0x290] sm:$0xf]
    %v276 = vld [vmem:[%s1 + $0x294] sm:$0xf]
    %v277 = vld [vmem:[%s1 + $0x298] sm:$0xf]
    %v278 = vld [vmem:[%s1 + $0x29c] sm:$0xf]
    %v279 = vld [vmem:[%s1 + $0x2a0] sm:$0xf]
    %v280 = vld [vmem:[%s1 + $0x2a4] sm:$0xf]
    %v281 = vld [vmem:[%s1 + $0x2a8] sm:$0xf]
    %v282 = vld [vmem:[%s1 + $0x2ac] sm:$0xf]
    %v283 = vld [vmem:[%s1 + $0x2b0] sm:$0xf]
    %v284 = vld [vmem:[%s1 + $0x2b4] sm:$0xf]
    %v285 = vld [vmem:[%s1 + $0x2b8] sm:$0xf]
    %v286 = vld [vmem:[%s1 + $0x2bc] sm:$0xf]
    %v287 = vld [vmem:[%s1 + $0x2c0] sm:$0xf]
    %v288 = vld [vmem:[%s1 + $0x2c4] sm:$0xf]
    %v289 = vld [vmem:[%s1 + $0x2c8] sm:$0xf]
    %v290 = vld [vmem:[%s1 + $0x2cc] sm:$0xf]
    %v291 = vld [vmem:[%s1 + $0x2d0] sm:$0xf]
    %v292 = vld [vmem:[%s1 + $0x2d4] sm:$0xf]
    %v293 = vld [vmem:[%s1 + $0x2d8] sm:$0xf]
    %v294 = vld [vmem:[%s1 + $0x2dc] sm:$0xf]
    %v295 = vld [vmem:[%s1 + $0x2e0] sm:$0xf]
    %v296 = vld [vmem:[%s1 + $0x2e4] sm:$0xf]
    %v297 = vld [vmem:[%s1 + $0x2e8] sm:$0xf]
    %v298 = vld [vmem:[%s1 + $0x2ec] sm:$0xf]
    %v299 = vld [vmem:[%s1 + $0x2f0] sm:$0xf]
    %v300 = vld [vmem:[%s1 + $0x2f4] sm:$0xf]
    %v301 = vld [vmem:[%s1 + $0x2f8] sm:$0xf]
    %v302 = vld [vmem:[%s1 + $0x2fc] sm:$0xf]
    %v303 = vld [vmem:[%s1 + $0x300] sm:$0xf]
    %v304 = vld [vmem:[%s1 + $0x304] sm:$0xf]
    %v305 = vld [vmem:[%s1 + $0x308] sm:$0xf]
    %v306 = vld [vmem:[%s1 + $0x30c] sm:$0xf]
    %v307 = vld [vmem:[%s1 + $0x310] sm:$0xf]
    %v308 = vld [vmem:[%s1 + $0x314] sm:$0xf]
    %v309 = vld [vmem:[%s1 + $0x318] sm:$0xf]
    %v310 = vld [vmem:[%s1 + $0x31c] sm:$0xf]
    %v311 = vld [vmem:[%s1 + $0x320] sm:$0xf]
    %v312 = vld [vmem:[%s1 + $0x324] sm:$0xf]
    %v313 = vld [vmem:[%s1 + $0x328] sm:$0xf]
    %v314 = vld [vmem:[%s1 + $0x32c] sm:$0xf]
    %v315 = vld [vmem:[%s1 + $0x330] sm:$0xf]
    %v316 = vld [vmem:[%s1 + $0x334] sm:$0xf]
    %v317 = vld [vmem:[%s1 + $0x338] sm:$0xf]
    %v318 = vld [vmem:[%s1 + $0x33c] sm:$0xf]
    %v319 = vld [vmem:[%s1 + $0x340] sm:$0xf]
    %v320 = vld [vmem:[%s1 + $0x344] sm:$0xf]
    %v321 = vld [vmem:[%s1 + $0x348] sm:$0xf]
    %v322 = vld [vmem:[%s1 + $0x34c] sm:$0xf]
    %v323 = vld [vmem:[%s1 + $0x350] sm:$0xf]
    %v324 = vld [vmem:[%s1 + $0x354] sm:$0xf]
    %v325 = vld [vmem:[%s1 + $0x358] sm:$0xf]
    %v326 = vld [vmem:[%s1 + $0x35c] sm:$0xf]
    %v327 = vld [vmem:[%s1 + $0x360] sm:$0xf]
    %v328 = vld [vmem:[%s1 + $0x364] sm:$0xf]
    %v329 = vld [vmem:[%s1 + $0x368] sm:$0xf]
    %v330 = vld [vmem:[%s1 + $0x36c] sm:$0xf]
    %v331 = vld [vmem:[%s1 + $0x370] sm:$0xf]
    %v332 = vld [vmem:[%s1 + $0x374] sm:$0xf]
    %v333 = vld [vmem:[%s1 + $0x378] sm:$0xf]
    %v334 = vld [vmem:[%s1 + $0x37c] sm:$0xf]
    %v335 = vld [vmem:[%s2] sm:$0x1]
    %v337 = vlaneseq
    %v338 = vshrl.u32 %v337, 7
    %v339 = vsub.s32 0, %v338
    %v340 = vrot.slane %v335, %v339
    %v566 = vunpack.c.l.b16 %v111
    %v567 = vunpack.c.l.b16 %v112
    %v568 = vunpack.c.l.b16 %v113
    %v569 = vunpack.c.l.b16 %v114
    %v570 = vunpack.c.l.b16 %v115
    %v571 = vunpack.c.l.b16 %v116
    %v572 = vunpack.c.l.b16 %v117
    %v573 = vunpack.c.l.b16 %v118
    %v574 = vunpack.c.l.b16 %v119
    %v575 = vunpack.c.l.b16 %v120
    %v576 = vunpack.c.l.b16 %v121
    %v577 = vunpack.c.l.b16 %v122
    %v578 = vunpack.c.l.b16 %v123
    %v579 = vunpack.c.l.b16 %v124
    %v580 = vunpack.c.l.b16 %v125
    %v581 = vunpack.c.l.b16 %v126
    %v582 = vunpack.c.l.b16 %v127
    %v583 = vunpack.c.l.b16 %v128
    %v584 = vunpack.c.l.b16 %v129
    %v585 = vunpack.c.l.b16 %v130
    %v586 = vunpack.c.l.b16 %v131
    %v587 = vunpack.c.l.b16 %v132
    %v588 = vunpack.c.l.b16 %v133
    %v589 = vunpack.c.l.b16 %v134
    %v590 = vunpack.c.l.b16 %v135
    %v591 = vunpack.c.l.b16 %v136
    %v592 = vunpack.c.l.b16 %v137
    %v593 = vunpack.c.l.b16 %v138
    %v594 = vunpack.c.l.b16 %v139
    %v595 = vunpack.c.l.b16 %v140
    %v596 = vunpack.c.l.b16 %v141
    %v597 = vunpack.c.l.b16 %v142
    %v598 = vunpack.c.l.b16 %v143
    %v599 = vunpack.c.l.b16 %v144
    %v600 = vunpack.c.l.b16 %v145
    %v601 = vunpack.c.l.b16 %v146
    %v602 = vunpack.c.l.b16 %v147
    %v603 = vunpack.c.l.b16 %v148
    %v604 = vunpack.c.l.b16 %v149
    %v605 = vunpack.c.l.b16 %v150
    %v606 = vunpack.c.l.b16 %v151
    %v607 = vunpack.c.l.b16 %v152
    %v608 = vunpack.c.l.b16 %v153
    %v609 = vunpack.c.l.b16 %v154
    %v610 = vunpack.c.l.b16 %v155
    %v611 = vunpack.c.l.b16 %v156
    %v612 = vunpack.c.l.b16 %v157
    %v613 = vunpack.c.l.b16 %v158
    %v614 = vunpack.c.l.b16 %v159
    %v615 = vunpack.c.l.b16 %v160
    %v616 = vunpack.c.l.b16 %v161
    %v617 = vunpack.c.l.b16 %v162
    %v618 = vunpack.c.l.b16 %v163
    %v619 = vunpack.c.l.b16 %v164
    %v620 = vunpack.c.l.b16 %v165
    %v621 = vunpack.c.l.b16 %v166
    %v622 = vunpack.c.l.b16 %v167
    %v623 = vunpack.c.l.b16 %v168
    %v624 = vunpack.c.l.b16 %v169
    %v625 = vunpack.c.l.b16 %v170
    %v626 = vunpack.c.l.b16 %v171
    %v627 = vunpack.c.l.b16 %v172
    %v628 = vunpack.c.l.b16 %v173
    %v629 = vunpack.c.l.b16 %v174
    %v630 = vunpack.c.l.b16 %v175
    %v631 = vunpack.c.l.b16 %v176
    %v632 = vunpack.c.l.b16 %v177
    %v633 = vunpack.c.l.b16 %v178
    %v634 = vunpack.c.l.b16 %v179
    %v635 = vunpack.c.l.b16 %v180
    %v636 = vunpack.c.l.b16 %v181
    %v637 = vunpack.c.l.b16 %v182
    %v638 = vunpack.c.l.b16 %v183
    %v639 = vunpack.c.l.b16 %v184
    %v640 = vunpack.c.l.b16 %v185
    %v641 = vunpack.c.l.b16 %v186
    %v642 = vunpack.c.l.b16 %v187
    %v643 = vunpack.c.l.b16 %v188
    %v644 = vunpack.c.l.b16 %v189
    %v645 = vunpack.c.l.b16 %v190
    %v646 = vunpack.c.l.b16 %v191
    %v647 = vunpack.c.l.b16 %v192
    %v648 = vunpack.c.l.b16 %v193
    %v649 = vunpack.c.l.b16 %v194
    %v650 = vunpack.c.l.b16 %v195
    %v651 = vunpack.c.l.b16 %v196
    %v652 = vunpack.c.l.b16 %v197
    %v653 = vunpack.c.l.b16 %v198
    %v654 = vunpack.c.l.b16 %v199
    %v655 = vunpack.c.l.b16 %v200
    %v656 = vunpack.c.l.b16 %v201
    %v657 = vunpack.c.l.b16 %v202
    %v658 = vunpack.c.l.b16 %v203
    %v659 = vunpack.c.l.b16 %v204
    %v660 = vunpack.c.l.b16 %v205
    %v661 = vunpack.c.l.b16 %v206
    %v662 = vunpack.c.l.b16 %v207
    %v663 = vunpack.c.l.b16 %v208
    %v664 = vunpack.c.l.b16 %v209
    %v665 = vunpack.c.l.b16 %v210
    %v666 = vunpack.c.l.b16 %v211
    %v667 = vunpack.c.l.b16 %v212
    %v668 = vunpack.c.l.b16 %v213
    %v669 = vunpack.c.l.b16 %v214
    %v670 = vunpack.c.l.b16 %v215
    %v671 = vunpack.c.l.b16 %v216
    %v672 = vunpack.c.l.b16 %v217
    %v673 = vunpack.c.l.b16 %v218
    %v674 = vunpack.c.l.b16 %v219
    %v675 = vunpack.c.l.b16 %v220
    %v676 = vunpack.c.l.b16 %v221
    %v677 = vunpack.c.l.b16 %v222
    %v678 = vunpack.c.l.b16 %v223
    %v679 = vunpack.c.l.b16 %v224
    %v680 = vunpack.c.l.b16 %v225
    %v681 = vunpack.c.l.b16 %v226
    %v682 = vunpack.c.l.b16 %v227
    %v683 = vunpack.c.l.b16 %v228
    %v684 = vunpack.c.l.b16 %v229
    %v685 = vunpack.c.l.b16 %v230
    %v686 = vunpack.c.l.b16 %v231
    %v687 = vunpack.c.l.b16 %v232
    %v688 = vunpack.c.l.b16 %v233
    %v689 = vunpack.c.l.b16 %v234
    %v690 = vunpack.c.l.b16 %v235
    %v691 = vunpack.c.l.b16 %v236
    %v692 = vunpack.c.l.b16 %v237
    %v693 = vunpack.c.l.b16 %v238
    %v694 = vunpack.c.l.b16 %v239
    %v695 = vunpack.c.l.b16 %v240
    %v696 = vunpack.c.l.b16 %v241
    %v697 = vunpack.c.l.b16 %v242
    %v698 = vunpack.c.l.b16 %v243
    %v699 = vunpack.c.l.b16 %v244
    %v700 = vunpack.c.l.b16 %v245
    %v701 = vunpack.c.l.b16 %v246
    %v702 = vunpack.c.l.b16 %v247
    %v703 = vunpack.c.l.b16 %v248
    %v704 = vunpack.c.l.b16 %v249
    %v705 = vunpack.c.l.b16 %v250
    %v706 = vunpack.c.l.b16 %v251
    %v707 = vunpack.c.l.b16 %v252
    %v708 = vunpack.c.l.b16 %v253
    %v709 = vunpack.c.l.b16 %v254
    %v710 = vunpack.c.l.b16 %v255
    %v711 = vunpack.c.l.b16 %v256
    %v712 = vunpack.c.l.b16 %v257
    %v713 = vunpack.c.l.b16 %v258
    %v714 = vunpack.c.l.b16 %v259
    %v715 = vunpack.c.l.b16 %v260
    %v716 = vunpack.c.l.b16 %v261
    %v717 = vunpack.c.l.b16 %v262
    %v718 = vunpack.c.l.b16 %v263
    %v719 = vunpack.c.l.b16 %v264
    %v720 = vunpack.c.l.b16 %v265
    %v721 = vunpack.c.l.b16 %v266
    %v722 = vunpack.c.l.b16 %v267
    %v723 = vunpack.c.l.b16 %v268
    %v724 = vunpack.c.l.b16 %v269
    %v725 = vunpack.c.l.b16 %v270
    %v726 = vunpack.c.l.b16 %v271
    %v727 = vunpack.c.l.b16 %v272
    %v728 = vunpack.c.l.b16 %v273
    %v729 = vunpack.c.l.b16 %v274
    %v730 = vunpack.c.l.b16 %v275
    %v731 = vunpack.c.l.b16 %v276
    %v732 = vunpack.c.l.b16 %v277
    %v733 = vunpack.c.l.b16 %v278
    %v734 = vunpack.c.l.b16 %v279
    %v735 = vunpack.c.l.b16 %v280
    %v736 = vunpack.c.l.b16 %v281
    %v737 = vunpack.c.l.b16 %v282
    %v738 = vunpack.c.l.b16 %v283
    %v739 = vunpack.c.l.b16 %v284
    %v740 = vunpack.c.l.b16 %v285
    %v741 = vunpack.c.l.b16 %v286
    %v742 = vunpack.c.l.b16 %v287
    %v743 = vunpack.c.l.b16 %v288
    %v744 = vunpack.c.l.b16 %v289
    %v745 = vunpack.c.l.b16 %v290
    %v746 = vunpack.c.l.b16 %v291
    %v747 = vunpack.c.l.b16 %v292
    %v748 = vunpack.c.l.b16 %v293
    %v749 = vunpack.c.l.b16 %v294
    %v750 = vunpack.c.l.b16 %v295
    %v751 = vunpack.c.l.b16 %v296
    %v752 = vunpack.c.l.b16 %v297
    %v753 = vunpack.c.l.b16 %v298
    %v754 = vunpack.c.l.b16 %v299
    %v755 = vunpack.c.l.b16 %v300
    %v756 = vunpack.c.l.b16 %v301
    %v757 = vunpack.c.l.b16 %v302
    %v758 = vunpack.c.l.b16 %v303
    %v759 = vunpack.c.l.b16 %v304
    %v760 = vunpack.c.l.b16 %v305
    %v761 = vunpack.c.l.b16 %v306
    %v762 = vunpack.c.l.b16 %v307
    %v763 = vunpack.c.l.b16 %v308
    %v764 = vunpack.c.l.b16 %v309
    %v765 = vunpack.c.l.b16 %v310
    %v766 = vunpack.c.l.b16 %v311
    %v767 = vunpack.c.l.b16 %v312
    %v768 = vunpack.c.l.b16 %v313
    %v769 = vunpack.c.l.b16 %v314
    %v770 = vunpack.c.l.b16 %v315
    %v771 = vunpack.c.l.b16 %v316
    %v772 = vunpack.c.l.b16 %v317
    %v773 = vunpack.c.l.b16 %v318
    %v774 = vunpack.c.l.b16 %v319
    %v775 = vunpack.c.l.b16 %v320
    %v776 = vunpack.c.l.b16 %v321
    %v777 = vunpack.c.l.b16 %v322
    %v778 = vunpack.c.l.b16 %v323
    %v779 = vunpack.c.l.b16 %v324
    %v780 = vunpack.c.l.b16 %v325
    %v781 = vunpack.c.l.b16 %v326
    %v782 = vunpack.c.l.b16 %v327
    %v783 = vunpack.c.l.b16 %v328
    %v784 = vunpack.c.l.b16 %v329
    %v785 = vunpack.c.l.b16 %v330
    %v786 = vunpack.c.l.b16 %v331
    %v787 = vunpack.c.l.b16 %v332
    %v788 = vunpack.c.l.b16 %v333
    %v789 = vunpack.c.l.b16 %v334
    %v790 = vpack.c.b16 %v567, %v566
    %v791 = vpack.c.b16 %v569, %v568
    %v792 = vpack.c.b16 %v571, %v570
    %v793 = vpack.c.b16 %v573, %v572
    %v794 = vpack.c.b16 %v575, %v574
    %v795 = vpack.c.b16 %v577, %v576
    %v796 = vpack.c.b16 %v579, %v578
    %v797 = vpack.c.b16 %v581, %v580
    %v798 = vpack.c.b16 %v583, %v582
    %v799 = vpack.c.b16 %v585, %v584
    %v800 = vpack.c.b16 %v587, %v586
    %v801 = vpack.c.b16 %v589, %v588
    %v802 = vpack.c.b16 %v591, %v590
    %v803 = vpack.c.b16 %v593, %v592
    %v804 = vpack.c.b16 %v595, %v594
    %v805 = vpack.c.b16 %v597, %v596
    %v806 = vpack.c.b16 %v599, %v598
    %v807 = vpack.c.b16 %v601, %v600
    %v808 = vpack.c.b16 %v603, %v602
    %v809 = vpack.c.b16 %v605, %v604
    %v810 = vpack.c.b16 %v607, %v606
    %v811 = vpack.c.b16 %v609, %v608
    %v812 = vpack.c.b16 %v611, %v610
    %v813 = vpack.c.b16 %v613, %v612
    %v814 = vpack.c.b16 %v615, %v614
    %v815 = vpack.c.b16 %v617, %v616
    %v816 = vpack.c.b16 %v619, %v618
    %v817 = vpack.c.b16 %v621, %v620
    %v818 = vpack.c.b16 %v623, %v622
    %v819 = vpack.c.b16 %v625, %v624
    %v820 = vpack.c.b16 %v627, %v626
    %v821 = vpack.c.b16 %v629, %v628
    %v822 = vpack.c.b16 %v631, %v630
    %v823 = vpack.c.b16 %v633, %v632
    %v824 = vpack.c.b16 %v635, %v634
    %v825 = vpack.c.b16 %v637, %v636
    %v826 = vpack.c.b16 %v639, %v638
    %v827 = vpack.c.b16 %v641, %v640
    %v828 = vpack.c.b16 %v643, %v642
    %v829 = vpack.c.b16 %v645, %v644
    %v830 = vpack.c.b16 %v647, %v646
    %v831 = vpack.c.b16 %v649, %v648
    %v832 = vpack.c.b16 %v651, %v650
    %v833 = vpack.c.b16 %v653, %v652
    %v834 = vpack.c.b16 %v655, %v654
    %v835 = vpack.c.b16 %v657, %v656
    %v836 = vpack.c.b16 %v659, %v658
    %v837 = vpack.c.b16 %v661, %v660
    %v838 = vpack.c.b16 %v663, %v662
    %v839 = vpack.c.b16 %v665, %v664
    %v840 = vpack.c.b16 %v667, %v666
    %v841 = vpack.c.b16 %v669, %v668
    %v842 = vpack.c.b16 %v671, %v670
    %v843 = vpack.c.b16 %v673, %v672
    %v844 = vpack.c.b16 %v675, %v674
    %v845 = vpack.c.b16 %v677, %v676
    %v846 = vpack.c.b16 %v679, %v678
    %v847 = vpack.c.b16 %v681, %v680
    %v848 = vpack.c.b16 %v683, %v682
    %v849 = vpack.c.b16 %v685, %v684
    %v850 = vpack.c.b16 %v687, %v686
    %v851 = vpack.c.b16 %v689, %v688
    %v852 = vpack.c.b16 %v691, %v690
    %v853 = vpack.c.b16 %v693, %v692
    %v854 = vpack.c.b16 %v695, %v694
    %v855 = vpack.c.b16 %v697, %v696
    %v856 = vpack.c.b16 %v699, %v698
    %v857 = vpack.c.b16 %v701, %v700
    %v858 = vpack.c.b16 %v703, %v702
    %v859 = vpack.c.b16 %v705, %v704
    %v860 = vpack.c.b16 %v707, %v706
    %v861 = vpack.c.b16 %v709, %v708
    %v862 = vpack.c.b16 %v711, %v710
    %v863 = vpack.c.b16 %v713, %v712
    %v864 = vpack.c.b16 %v715, %v714
    %v865 = vpack.c.b16 %v717, %v716
    %v866 = vpack.c.b16 %v719, %v718
    %v867 = vpack.c.b16 %v721, %v720
    %v868 = vpack.c.b16 %v723, %v722
    %v869 = vpack.c.b16 %v725, %v724
    %v870 = vpack.c.b16 %v727, %v726
    %v871 = vpack.c.b16 %v729, %v728
    %v872 = vpack.c.b16 %v731, %v730
    %v873 = vpack.c.b16 %v733, %v732
    %v874 = vpack.c.b16 %v735, %v734
    %v875 = vpack.c.b16 %v737, %v736
    %v876 = vpack.c.b16 %v739, %v738
    %v877 = vpack.c.b16 %v741, %v740
    %v878 = vpack.c.b16 %v743, %v742
    %v879 = vpack.c.b16 %v745, %v744
    %v880 = vpack.c.b16 %v747, %v746
    %v881 = vpack.c.b16 %v749, %v748
    %v882 = vpack.c.b16 %v751, %v750
    %v883 = vpack.c.b16 %v753, %v752
    %v884 = vpack.c.b16 %v755, %v754
    %v885 = vpack.c.b16 %v757, %v756
    %v886 = vpack.c.b16 %v759, %v758
    %v887 = vpack.c.b16 %v761, %v760
    %v888 = vpack.c.b16 %v763, %v762
    %v889 = vpack.c.b16 %v765, %v764
    %v890 = vpack.c.b16 %v767, %v766
    %v891 = vpack.c.b16 %v769, %v768
    %v892 = vpack.c.b16 %v771, %v770
    %v893 = vpack.c.b16 %v773, %v772
    %v894 = vpack.c.b16 %v775, %v774
    %v895 = vpack.c.b16 %v777, %v776
    %v896 = vpack.c.b16 %v779, %v778
    %v897 = vpack.c.b16 %v781, %v780
    %v898 = vpack.c.b16 %v783, %v782
    %v899 = vpack.c.b16 %v785, %v784
    %v900 = vpack.c.b16 %v787, %v786
    %v901 = vpack.c.b16 %v789, %v788
    %1014 = vmatprep.subr.bf16.mxu0 0
    %1015 = vmatpush1.bf16.msra.mxu0 %v790
    %1016 = vmatprep.subr.bf16.mxu0 0
    %1017 = vmatpush1.bf16.msra.mxu0 %v791
    %1018 = vmatprep.subr.bf16.mxu0 0
    %1019 = vmatpush1.bf16.msra.mxu0 %v792
    %1020 = vmatprep.subr.bf16.mxu0 0
    %1021 = vmatpush1.bf16.msra.mxu0 %v793
    %1022 = vmatprep.subr.bf16.mxu0 0
    %1023 = vmatpush1.bf16.msra.mxu0 %v794
    %1024 = vmatprep.subr.bf16.mxu0 0
    %1025 = vmatpush1.bf16.msra.mxu0 %v795
    %1026 = vmatprep.subr.bf16.mxu0 0
    %1027 = vmatpush1.bf16.msra.mxu0 %v796
    %1028 = vmatprep.subr.bf16.mxu0 0
    %1029 = vmatpush1.bf16.msra.mxu0 %v797
    %1030 = vmatprep.subr.bf16.mxu0 0
    %1031 = vmatpush1.bf16.msra.mxu0 %v798
    %1032 = vmatprep.subr.bf16.mxu0 0
    %1033 = vmatpush1.bf16.msra.mxu0 %v799
    %1034 = vmatprep.subr.bf16.mxu0 0
    %1035 = vmatpush1.bf16.msra.mxu0 %v800
    %1036 = vmatprep.subr.bf16.mxu0 0
    %1037 = vmatpush1.bf16.msra.mxu0 %v801
    %1038 = vmatprep.subr.bf16.mxu0 0
    %1039 = vmatpush1.bf16.msra.mxu0 %v802
    %1040 = vmatprep.subr.bf16.mxu0 0
    %1041 = vmatpush1.bf16.msra.mxu0 %v803
    %1042 = vmatprep.subr.bf16.mxu0 0
    %1043 = vmatpush1.bf16.msra.mxu0 %v804
    %1044 = vmatprep.subr.bf16.mxu0 0
    %1045 = vmatpush1.bf16.msra.mxu0 %v805
    %1046 = vmatprep.mubr.bf16.mxu0 %v98
    %1047 = vmatmul.mubr.bf16.gmra.mrb[0].mxu0 %v97
    %v1048 = vpop.f32.mrb[0].mxu0
    %v1049 = vadd.f32 %v340, %v1048
    %v1050 = vpop.f32.mrb[0].mxu0
    %v1051 = vpop.f32.mrb[0].mxu0
    %v1052 = vpop.f32.mrb[0].mxu0
    %1053 = vdwg.mxu0
    %1054 = vmatprep.subr.bf16.mxu0 0
    %1055 = vmatpush1.bf16.msra.mxu0 %v806
    %1056 = vmatprep.subr.bf16.mxu0 0
    %1057 = vmatpush1.bf16.msra.mxu0 %v807
    %1058 = vmatprep.subr.bf16.mxu0 0
    %1059 = vmatpush1.bf16.msra.mxu0 %v808
    %1060 = vmatprep.subr.bf16.mxu0 0
    %1061 = vmatpush1.bf16.msra.mxu0 %v809
    %1062 = vmatprep.subr.bf16.mxu0 0
    %1063 = vmatpush1.bf16.msra.mxu0 %v810
    %1064 = vmatprep.subr.bf16.mxu0 0
    %1065 = vmatpush1.bf16.msra.mxu0 %v811
    %1066 = vmatprep.subr.bf16.mxu0 0
    %1067 = vmatpush1.bf16.msra.mxu0 %v812
    %1068 = vmatprep.subr.bf16.mxu0 0
    %1069 = vmatpush1.bf16.msra.mxu0 %v813
    %1070 = vmatprep.subr.bf16.mxu0 0
    %1071 = vmatpush1.bf16.msra.mxu0 %v814
    %1072 = vmatprep.subr.bf16.mxu0 0
    %1073 = vmatpush1.bf16.msra.mxu0 %v815
    %1074 = vmatprep.subr.bf16.mxu0 0
    %1075 = vmatpush1.bf16.msra.mxu0 %v816
    %1076 = vmatprep.subr.bf16.mxu0 0
    %1077 = vmatpush1.bf16.msra.mxu0 %v817
    %1078 = vmatprep.subr.bf16.mxu0 0
    %1079 = vmatpush1.bf16.msra.mxu0 %v818
    %1080 = vmatprep.subr.bf16.mxu0 0
    %1081 = vmatpush1.bf16.msra.mxu0 %v819
    %1082 = vmatprep.subr.bf16.mxu0 0
    %1083 = vmatpush1.bf16.msra.mxu0 %v820
    %1084 = vmatprep.subr.bf16.mxu0 0
    %1085 = vmatpush1.bf16.msra.mxu0 %v821
    %1086 = vmatprep.mubr.bf16.mxu0 %v100
    %1087 = vmatmul.mubr.bf16.gmra.mrb[0].mxu0 %v99
    %v1088 = vpop.f32.mrb[0].mxu0
    %v1089 = vadd.f32 %v1049, %v1088
    %v1090 = vpop.f32.mrb[0].mxu0
    %v1091 = vpop.f32.mrb[0].mxu0
    %v1092 = vpop.f32.mrb[0].mxu0
    %1093 = vdwg.mxu0
    %1094 = vmatprep.subr.bf16.mxu0 0
    %1095 = vmatpush1.bf16.msra.mxu0 %v822
    %1096 = vmatprep.subr.bf16.mxu0 0
    %1097 = vmatpush1.bf16.msra.mxu0 %v823
    %1098 = vmatprep.subr.bf16.mxu0 0
    %1099 = vmatpush1.bf16.msra.mxu0 %v824
    %1100 = vmatprep.subr.bf16.mxu0 0
    %1101 = vmatpush1.bf16.msra.mxu0 %v825
    %1102 = vmatprep.subr.bf16.mxu0 0
    %1103 = vmatpush1.bf16.msra.mxu0 %v826
    %1104 = vmatprep.subr.bf16.mxu0 0
    %1105 = vmatpush1.bf16.msra.mxu0 %v827
    %1106 = vmatprep.subr.bf16.mxu0 0
    %1107 = vmatpush1.bf16.msra.mxu0 %v828
    %1108 = vmatprep.subr.bf16.mxu0 0
    %1109 = vmatpush1.bf16.msra.mxu0 %v829
    %1110 = vmatprep.subr.bf16.mxu0 0
    %1111 = vmatpush1.bf16.msra.mxu0 %v830
    %1112 = vmatprep.subr.bf16.mxu0 0
    %1113 = vmatpush1.bf16.msra.mxu0 %v831
    %1114 = vmatprep.subr.bf16.mxu0 0
    %1115 = vmatpush1.bf16.msra.mxu0 %v832
    %1116 = vmatprep.subr.bf16.mxu0 0
    %1117 = vmatpush1.bf16.msra.mxu0 %v833
    %1118 = vmatprep.subr.bf16.mxu0 0
    %1119 = vmatpush1.bf16.msra.mxu0 %v834
    %1120 = vmatprep.subr.bf16.mxu0 0
    %1121 = vmatpush1.bf16.msra.mxu0 %v835
    %1122 = vmatprep.subr.bf16.mxu0 0
    %1123 = vmatpush1.bf16.msra.mxu0 %v836
    %1124 = vmatprep.subr.bf16.mxu0 0
    %1125 = vmatpush1.bf16.msra.mxu0 %v837
    %1126 = vmatprep.mubr.bf16.mxu0 %v102
    %1127 = vmatmul.mubr.bf16.gmra.mrb[0].mxu0 %v101
    %v1128 = vpop.f32.mrb[0].mxu0
    %v1129 = vadd.f32 %v1089, %v1128
    %v1130 = vpop.f32.mrb[0].mxu0
    %v1131 = vpop.f32.mrb[0].mxu0
    %v1132 = vpop.f32.mrb[0].mxu0
    %1133 = vdwg.mxu0
    %1134 = vmatprep.subr.bf16.mxu0 0
    %1135 = vmatpush1.bf16.msra.mxu0 %v838
    %1136 = vmatprep.subr.bf16.mxu0 0
    %1137 = vmatpush1.bf16.msra.mxu0 %v839
    %1138 = vmatprep.subr.bf16.mxu0 0
    %1139 = vmatpush1.bf16.msra.mxu0 %v840
    %1140 = vmatprep.subr.bf16.mxu0 0
    %1141 = vmatpush1.bf16.msra.mxu0 %v841
    %1142 = vmatprep.subr.bf16.mxu0 0
    %1143 = vmatpush1.bf16.msra.mxu0 %v842
    %1144 = vmatprep.subr.bf16.mxu0 0
    %1145 = vmatpush1.bf16.msra.mxu0 %v843
    %1146 = vmatprep.subr.bf16.mxu0 0
    %1147 = vmatpush1.bf16.msra.mxu0 %v844
    %1148 = vmatprep.subr.bf16.mxu0 0
    %1149 = vmatpush1.bf16.msra.mxu0 %v845
    %1150 = vmatprep.subr.bf16.mxu0 0
    %1151 = vmatpush1.bf16.msra.mxu0 %v846
    %1152 = vmatprep.subr.bf16.mxu0 0
    %1153 = vmatpush1.bf16.msra.mxu0 %v847
    %1154 = vmatprep.subr.bf16.mxu0 0
    %1155 = vmatpush1.bf16.msra.mxu0 %v848
    %1156 = vmatprep.subr.bf16.mxu0 0
    %1157 = vmatpush1.bf16.msra.mxu0 %v849
    %1158 = vmatprep.subr.bf16.mxu0 0
    %1159 = vmatpush1.bf16.msra.mxu0 %v850
    %1160 = vmatprep.subr.bf16.mxu0 0
    %1161 = vmatpush1.bf16.msra.mxu0 %v851
    %1162 = vmatprep.subr.bf16.mxu0 0
    %1163 = vmatpush1.bf16.msra.mxu0 %v852
    %1164 = vmatprep.subr.bf16.mxu0 0
    %1165 = vmatpush1.bf16.msra.mxu0 %v853
    %1166 = vmatprep.mubr.bf16.mxu0 %v104
    %1167 = vmatmul.mubr.bf16.gmra.mrb[0].mxu0 %v103
    %v1168 = vpop.f32.mrb[0].mxu0
    %v1169 = vadd.f32 %v1129, %v1168
    %v1170 = vpop.f32.mrb[0].mxu0
    %v1171 = vpop.f32.mrb[0].mxu0
    %v1172 = vpop.f32.mrb[0].mxu0
    %1173 = vdwg.mxu0
    %1174 = vmatprep.subr.bf16.mxu0 0
    %1175 = vmatpush1.bf16.msra.mxu0 %v854
    %1176 = vmatprep.subr.bf16.mxu0 0
    %1177 = vmatpush1.bf16.msra.mxu0 %v855
    %1178 = vmatprep.subr.bf16.mxu0 0
    %1179 = vmatpush1.bf16.msra.mxu0 %v856
    %1180 = vmatprep.subr.bf16.mxu0 0
    %1181 = vmatpush1.bf16.msra.mxu0 %v857
    %1182 = vmatprep.subr.bf16.mxu0 0
    %1183 = vmatpush1.bf16.msra.mxu0 %v858
    %1184 = vmatprep.subr.bf16.mxu0 0
    %1185 = vmatpush1.bf16.msra.mxu0 %v859
    %1186 = vmatprep.subr.bf16.mxu0 0
    %1187 = vmatpush1.bf16.msra.mxu0 %v860
    %1188 = vmatprep.subr.bf16.mxu0 0
    %1189 = vmatpush1.bf16.msra.mxu0 %v861
    %1190 = vmatprep.subr.bf16.mxu0 0
    %1191 = vmatpush1.bf16.msra.mxu0 %v862
    %1192 = vmatprep.subr.bf16.mxu0 0
    %1193 = vmatpush1.bf16.msra.mxu0 %v863
    %1194 = vmatprep.subr.bf16.mxu0 0
    %1195 = vmatpush1.bf16.msra.mxu0 %v864
    %1196 = vmatprep.subr.bf16.mxu0 0
    %1197 = vmatpush1.bf16.msra.mxu0 %v865
    %1198 = vmatprep.subr.bf16.mxu0 0
    %1199 = vmatpush1.bf16.msra.mxu0 %v866
    %1200 = vmatprep.subr.bf16.mxu0 0
    %1201 = vmatpush1.bf16.msra.mxu0 %v867
    %1202 = vmatprep.subr.bf16.mxu0 0
    %1203 = vmatpush1.bf16.msra.mxu0 %v868
    %1204 = vmatprep.subr.bf16.mxu0 0
    %1205 = vmatpush1.bf16.msra.mxu0 %v869
    %1206 = vmatprep.mubr.bf16.mxu0 %v106
    %1207 = vmatmul.mubr.bf16.gmra.mrb[0].mxu0 %v105
    %v1208 = vpop.f32.mrb[0].mxu0
    %v1209 = vadd.f32 %v1169, %v1208
    %v1210 = vpop.f32.mrb[0].mxu0
    %v1211 = vpop.f32.mrb[0].mxu0
    %v1212 = vpop.f32.mrb[0].mxu0
    %1213 = vdwg.mxu0
    %1214 = vmatprep.subr.bf16.mxu0 0
    %1215 = vmatpush1.bf16.msra.mxu0 %v870
    %1216 = vmatprep.subr.bf16.mxu0 0
    %1217 = vmatpush1.bf16.msra.mxu0 %v871
    %1218 = vmatprep.subr.bf16.mxu0 0
    %1219 = vmatpush1.bf16.msra.mxu0 %v872
    %1220 = vmatprep.subr.bf16.mxu0 0
    %1221 = vmatpush1.bf16.msra.mxu0 %v873
    %1222 = vmatprep.subr.bf16.mxu0 0
    %1223 = vmatpush1.bf16.msra.mxu0 %v874
    %1224 = vmatprep.subr.bf16.mxu0 0
    %1225 = vmatpush1.bf16.msra.mxu0 %v875
    %1226 = vmatprep.subr.bf16.mxu0 0
    %1227 = vmatpush1.bf16.msra.mxu0 %v876
    %1228 = vmatprep.subr.bf16.mxu0 0
    %1229 = vmatpush1.bf16.msra.mxu0 %v877
    %1230 = vmatprep.subr.bf16.mxu0 0
    %1231 = vmatpush1.bf16.msra.mxu0 %v878
    %1232 = vmatprep.subr.bf16.mxu0 0
    %1233 = vmatpush1.bf16.msra.mxu0 %v879
    %1234 = vmatprep.subr.bf16.mxu0 0
    %1235 = vmatpush1.bf16.msra.mxu0 %v880
    %1236 = vmatprep.subr.bf16.mxu0 0
    %1237 = vmatpush1.bf16.msra.mxu0 %v881
    %1238 = vmatprep.subr.bf16.mxu0 0
    %1239 = vmatpush1.bf16.msra.mxu0 %v882
    %1240 = vmatprep.subr.bf16.mxu0 0
    %1241 = vmatpush1.bf16.msra.mxu0 %v883
    %1242 = vmatprep.subr.bf16.mxu0 0
    %1243 = vmatpush1.bf16.msra.mxu0 %v884
    %1244 = vmatprep.subr.bf16.mxu0 0
    %1245 = vmatpush1.bf16.msra.mxu0 %v885
    %1246 = vmatprep.mubr.bf16.mxu0 %v108
    %1247 = vmatmul.mubr.bf16.gmra.mrb[0].mxu0 %v107
    %v1248 = vpop.f32.mrb[0].mxu0
    %v1249 = vadd.f32 %v1209, %v1248
    %v1250 = vpop.f32.mrb[0].mxu0
    %v1251 = vpop.f32.mrb[0].mxu0
    %v1252 = vpop.f32.mrb[0].mxu0
    %1253 = vdwg.mxu0
    %1254 = vmatprep.subr.bf16.mxu0 0
    %1255 = vmatpush1.bf16.msra.mxu0 %v886
    %1256 = vmatprep.subr.bf16.mxu0 0
    %1257 = vmatpush1.bf16.msra.mxu0 %v887
    %1258 = vmatprep.subr.bf16.mxu0 0
    %1259 = vmatpush1.bf16.msra.mxu0 %v888
    %1260 = vmatprep.subr.bf16.mxu0 0
    %1261 = vmatpush1.bf16.msra.mxu0 %v889
    %1262 = vmatprep.subr.bf16.mxu0 0
    %1263 = vmatpush1.bf16.msra.mxu0 %v890
    %1264 = vmatprep.subr.bf16.mxu0 0
    %1265 = vmatpush1.bf16.msra.mxu0 %v891
    %1266 = vmatprep.subr.bf16.mxu0 0
    %1267 = vmatpush1.bf16.msra.mxu0 %v892
    %1268 = vmatprep.subr.bf16.mxu0 0
    %1269 = vmatpush1.bf16.msra.mxu0 %v893
    %1270 = vmatprep.subr.bf16.mxu0 0
    %1271 = vmatpush1.bf16.msra.mxu0 %v894
    %1272 = vmatprep.subr.bf16.mxu0 0
    %1273 = vmatpush1.bf16.msra.mxu0 %v895
    %1274 = vmatprep.subr.bf16.mxu0 0
    %1275 = vmatpush1.bf16.msra.mxu0 %v896
    %1276 = vmatprep.subr.bf16.mxu0 0
    %1277 = vmatpush1.bf16.msra.mxu0 %v897
    %1278 = vmatprep.subr.bf16.mxu0 0
    %1279 = vmatpush1.bf16.msra.mxu0 %v898
    %1280 = vmatprep.subr.bf16.mxu0 0
    %1281 = vmatpush1.bf16.msra.mxu0 %v899
    %1282 = vmatprep.subr.bf16.mxu0 0
    %1283 = vmatpush1.bf16.msra.mxu0 %v900
    %1284 = vmatprep.subr.bf16.mxu0 0
    %1285 = vmatpush1.bf16.msra.mxu0 %v901
    %1286 = vmatprep.mubr.bf16.mxu0 %v110
    %1287 = vmatmul.mubr.bf16.gmra.mrb[0].mxu0 %v109
    %v1288 = vpop.f32.mrb[0].mxu0
    %v1289 = vadd.f32 %v1249, %v1288
    %v1290 = vpop.f32.mrb[0].mxu0
    %v1291 = vpop.f32.mrb[0].mxu0
    %v1292 = vpop.f32.mrb[0].mxu0
    %1293 = vdwg.mxu0
    %v1294 = vmax.f32 %v1289, 0.0
    %1295 = vst [vmem:[#allocation2] sm:$0x3] %v1294
    // Predicated region
    $region14: #{effnet_forward.7} parent=1 // pred_check
      _
    $region15: #{effnet_forward.7} parent=1 // pred_check_branch
      %1297 = sbr.rel (0) target = $region17
    $region16: #{effnet_forward.7} parent=1 // pred_region
      %s1299 = ssub.s32 32, 32
      %1300 = vsyncadd [#allocation3], %s1299
      %s1302 = sshll.u32 [#allocation2], 4
      %s1303 = int_to_ptr.vmem [resolvable:$true] %s1302
      %1305 = dma.vmem_to_hbm [thread:$0]  %s1303, 32, %s3, [#allocation3]
    $region17: #{effnet_forward.7} parent=1 // pred_fallthru
      _
    // Predicated region
    $region18: #{effnet_forward.7} parent=1 // pred_check
      _
    $region19: #{effnet_forward.7} parent=1 // pred_check_branch
      %1307 = sbr.rel (0) target = $region21
    $region20: #{effnet_forward.7} parent=1 // pred_region
      %1308 = dma.done [#allocation3], 32
    $region21: #{effnet_forward.7} parent=1 // pred_fallthru
      _
    %1309 = vsyncpa [#allocation3], 1

</llo_original>
